<compile_context>
chip_gen: v7x
topology: tpu7x:2x2x1
jax: 0.10.0
libtpu: 0.0.40
codegen_flags: <defaults>
</compile_context>

<pallas_src>
import functools

import jax
import jax.numpy as jnp
from jax.experimental import pallas as pl
from jax.experimental.pallas import tpu as pltpu

D_MODEL = 32
N_HEADS = 4
D_FF = 64
N_LAYERS = 2
EPS = 1e-6


# ------------------------------ fused kernel --------------------------------

def _decoder_kernel(
    x_ref, mem_ref, tgt_mask_ref, src_mask_ref,
    sa_wqkv_ref, sa_bqkv_ref, sa_wo_ref, sa_bo_ref,
    ca_wq_ref, ca_bq_ref, ca_wkv_ref, ca_bkv_ref, ca_wo_ref, ca_bo_ref,
    ff_w1_ref, ff_b1_ref, ff_w2_ref, ff_b2_ref,
    ln_a_ref, ln_b_ref, fn_a_ref, fn_b_ref,
    o_ref, *, num_heads,
):
    f32 = jnp.float32
    n_layers = sa_wqkv_ref.shape[0]
    d_model = x_ref.shape[-1]
    batch = tgt_mask_ref.shape[0]
    lq = x_ref.shape[0] // batch
    ls = mem_ref.shape[0] // batch
    dk = d_model // num_heads

    def layer_norm(v, a, b):
        # Annotated-Transformer LayerNorm: unbiased std (N-1), eps added to std.
        mean = jnp.mean(v, axis=-1, keepdims=True)
        c = v - mean
        var = jnp.sum(c * c, axis=-1, keepdims=True) * (1.0 / (d_model - 1))
        # divide routed through the EUP (separate VLIW slot); use approx=False
        # if validating against the PyTorch reference at tight tolerance.
        inv = pl.reciprocal(jnp.sqrt(var) + EPS, approx=True)
        return c * inv * a + b

    def mha(q2, k2, v2, bias, lk, wo, bo, residual):
        # q2: (batch*lq, d_model); k2, v2: (batch*lk, d_model)
        # bias: additive mask bias, (batch, lq, lk), already broadcast/hoisted.
        # wo : (d_model, d_model); head merge folded in as per-head row blocks.
        # 1/sqrt(dk) is already folded into the Q projection weights.
        out = residual + bo
        for h in range(num_heads):
            lo = h * dk
            qh = q2[:, lo:lo + dk].reshape(batch, lq, dk)
            kh = k2[:, lo:lo + dk].reshape(batch, lk, dk)
            vh = v2[:, lo:lo + dk].reshape(batch, lk, dk)
            # batched scores over the batch dim (no materialized K transpose)
            s = jnp.einsum('bqd,bkd->bqk', qh, kh, preferred_element_type=f32)
            s = s + bias
            smax = jnp.max(s, axis=-1, keepdims=True)
            p = jnp.exp(s - smax)
            denom = jnp.sum(p, axis=-1, keepdims=True)
            p = p * pl.reciprocal(denom, approx=True)
            oh = jnp.einsum('bqk,bkd->bqd', p, vh, preferred_element_type=f32)
            # head merge folded into W_O: partial matmul against its row block
            out = out + jnp.dot(oh.reshape(batch * lq, dk), wo[lo:lo + dk, :],
                                preferred_element_type=f32)
        return out

    # Hoisted out of the layer/head loops: additive mask biases, computed once.
    tgt_bias = (tgt_mask_ref[...] - 1.0) * 1e9                    # (B, lq, lq)
    src_bias = jnp.broadcast_to((src_mask_ref[...] - 1.0) * 1e9,
                                (batch, lq, ls))                  # (B, lq, ls)

    x = x_ref[...].astype(f32)       # (batch*lq, d_model)
    mem = mem_ref[...].astype(f32)   # (batch*ls, d_model)

    for l in range(n_layers):
        ln_a = ln_a_ref[l]           # (3, d_model)
        ln_b = ln_b_ref[l]

        # --- sublayer 0: masked self-attention (pre-norm residual) ---
        xn = layer_norm(x, ln_a[0:1, :], ln_b[0:1, :])
        qkv = (jnp.dot(xn, sa_wqkv_ref[l], preferred_element_type=f32)
               + sa_bqkv_ref[l])
        x = mha(qkv[:, 0:d_model],
                qkv[:, d_model:2 * d_model],
                qkv[:, 2 * d_model:3 * d_model],
                tgt_bias, lq, sa_wo_ref[l], sa_bo_ref[l], x)

        # --- sublayer 1: source attention over encoder memory ---
        xn = layer_norm(x, ln_a[1:2, :], ln_b[1:2, :])
        q = jnp.dot(xn, ca_wq_ref[l], preferred_element_type=f32) + ca_bq_ref[l]
        kv = (jnp.dot(mem, ca_wkv_ref[l], preferred_element_type=f32)
              + ca_bkv_ref[l])
        x = mha(q,
                kv[:, 0:d_model],
                kv[:, d_model:2 * d_model],
                src_bias, ls, ca_wo_ref[l], ca_bo_ref[l], x)

        # --- sublayer 2: position-wise feed-forward ---
        xn = layer_norm(x, ln_a[2:3, :], ln_b[2:3, :])
        h1 = jnp.dot(xn, ff_w1_ref[l], preferred_element_type=f32) + ff_b1_ref[l]
        h1 = jnp.maximum(h1, 0.0)
        x = x + jnp.dot(h1, ff_w2_ref[l], preferred_element_type=f32) + ff_b2_ref[l]

    # final LayerNorm of the Decoder
    o_ref[...] = layer_norm(x, fn_a_ref[...], fn_b_ref[...]).astype(o_ref.dtype)


# ------------------------------ wrapper --------------------------------------

def decoder_forward(params, x, memory, src_mask, tgt_mask, num_heads=N_HEADS):
    # TODO(synk): dropout layers are identity at inference and are omitted.
    B, Lt, D = x.shape
    Ls = memory.shape[1]

    # Flatten (batch, seq) onto the sublane axis; with d_model=32 the VPU lane
    # utilization is <=25% — packing more sequences per call is the only lever
    # the workload allows here.
    x2 = x.reshape(B * Lt, D)
    mem2 = memory.reshape(B * Ls, D)

    args = (
        x2, mem2, tgt_mask.astype(jnp.float32), src_mask.astype(jnp.float32),
        params["sa_wqkv"], params["sa_bqkv"], params["sa_wo"], params["sa_bo"],
        params["ca_wq"], params["ca_bq"], params["ca_wkv"], params["ca_bkv"],
        params["ca_wo"], params["ca_bo"],
        params["ff_w1"], params["ff_b1"], params["ff_w2"], params["ff_b2"],
        params["ln_a"], params["ln_b"], params["norm_a"], params["norm_b"],
    )

    vmem_spec = pl.BlockSpec(memory_space=pltpu.MemorySpace.VMEM)
    out2 = pl.pallas_call(
        functools.partial(_decoder_kernel, num_heads=num_heads),
        out_shape=jax.ShapeDtypeStruct((B * Lt, D), x.dtype),
        in_specs=[vmem_spec] * len(args),   # whole arrays resident in VMEM
        out_specs=vmem_spec,
    )(*args)
    return out2.reshape(B, Lt, D)


# --------------------------- parameter init ---------------------------------

def init_params(key, d_model=D_MODEL, d_ff=D_FF, n_layers=N_LAYERS,
                num_heads=N_HEADS):
    dk = d_model // num_heads
    q_scale = 1.0 / (float(dk) ** 0.5)   # folded into Q projection (one-time)

    def dense(k, din, dout):
        w = jax.random.normal(k, (din, dout), jnp.float32) * 0.05
        b = jnp.zeros((1, dout), jnp.float32)
        return w, b

    sa_wqkv, sa_bqkv, sa_wo, sa_bo = [], [], [], []
    ca_wq, ca_bq, ca_wkv, ca_bkv, ca_wo, ca_bo = [], [], [], [], [], []
    ff_w1, ff_b1, ff_w2, ff_b2 = [], [], [], []
    ln_a, ln_b = [], []

    for _ in range(n_layers):
        (key, k_sq, k_sk, k_sv, k_so,
         k_cq, k_ck, k_cv, k_co, k_f1, k_f2) = jax.random.split(key, 11)

        # self-attention: fuse q|k|v projections into one (D, 3D) weight,
        # with the 1/sqrt(dk) score scale folded into the q columns & bias.
        wq, bq = dense(k_sq, d_model, d_model)
        wk, bk = dense(k_sk, d_model, d_model)
        wv, bv = dense(k_sv, d_model, d_model)
        wo, bo = dense(k_so, d_model, d_model)
        sa_wqkv.append(jnp.concatenate([wq * q_scale, wk, wv], axis=1))
        sa_bqkv.append(jnp.concatenate([bq * q_scale, bk, bv], axis=1))
        sa_wo.append(wo)
        sa_bo.append(bo)

        # source attention: q separate (acts on x, scale folded in),
        # fuse k|v (act on memory).
        wq, bq = dense(k_cq, d_model, d_model)
        wk, bk = dense(k_ck, d_model, d_model)
        wv, bv = dense(k_cv, d_model, d_model)
        wo, bo = dense(k_co, d_model, d_model)
        ca_wq.append(wq * q_scale)
        ca_bq.append(bq * q_scale)
        ca_wkv.append(jnp.concatenate([wk, wv], axis=1))
        ca_bkv.append(jnp.concatenate([bk, bv], axis=1))
        ca_wo.append(wo)
        ca_bo.append(bo)

        # position-wise feed forward
        w1, b1 = dense(k_f1, d_model, d_ff)
        w2, b2 = dense(k_f2, d_ff, d_model)
        ff_w1.append(w1)
        ff_b1.append(b1)
        ff_w2.append(w2)
        ff_b2.append(b2)

        # three sublayer LayerNorms (rows: self-attn, src-attn, ffn)
        ln_a.append(jnp.ones((3, d_model), jnp.float32))
        ln_b.append(jnp.zeros((3, d_model), jnp.float32))

    return {
        "sa_wqkv": jnp.stack(sa_wqkv), "sa_bqkv": jnp.stack(sa_bqkv),
        "sa_wo": jnp.stack(sa_wo), "sa_bo": jnp.stack(sa_bo),
        "ca_wq": jnp.stack(ca_wq), "ca_bq": jnp.stack(ca_bq),
        "ca_wkv": jnp.stack(ca_wkv), "ca_bkv": jnp.stack(ca_bkv),
        "ca_wo": jnp.stack(ca_wo), "ca_bo": jnp.stack(ca_bo),
        "ff_w1": jnp.stack(ff_w1), "ff_b1": jnp.stack(ff_b1),
        "ff_w2": jnp.stack(ff_w2), "ff_b2": jnp.stack(ff_b2),
        "ln_a": jnp.stack(ln_a), "ln_b": jnp.stack(ln_b),
        "norm_a": jnp.ones((1, d_model), jnp.float32),
        "norm_b": jnp.zeros((1, d_model), jnp.float32),
    }


# --------------------------------- main --------------------------------------

if __name__ == "__main__":
    key = jax.random.PRNGKey(0)
    k_p, k_x, k_m = jax.random.split(key, 3)

    B, Lt, Ls = 2, 8, 8
    params = init_params(k_p)

    x = jax.random.normal(k_x, (B, Lt, D_MODEL), jnp.float32)
    memory = jax.random.normal(k_m, (B, Ls, D_MODEL), jnp.float32)

    # src_mask: (B, 1, Ls) all-visible padding mask; tgt_mask: (B, Lt, Lt) causal
    src_mask = jnp.ones((B, 1, Ls), jnp.float32)
    tgt_mask = jnp.broadcast_to(
        jnp.tril(jnp.ones((Lt, Lt), jnp.float32))[None, :, :], (B, Lt, Lt)
    )

    fwd = jax.jit(functools.partial(decoder_forward, num_heads=N_HEADS))
    out = fwd(params, x, memory, src_mask, tgt_mask)
    jax.block_until_ready(out)
    assert out.shape == (B, Lt, D_MODEL)
    assert jnp.all(jnp.isfinite(out))
    print("KERNEL_OK")
</pallas_src>

<mosaic_0001>
module attributes {stable_mosaic.version = 11 : i64} {
  func.func @_decoder_kernel(%arg0: memref<16x32xf32, #tpu.memory_space<vmem>>, %arg1: memref<16x32xf32, #tpu.memory_space<vmem>>, %arg2: memref<2x8x8xf32, #tpu.memory_space<vmem>>, %arg3: memref<2x1x8xf32, #tpu.memory_space<vmem>>, %arg4: memref<2x32x96xf32, #tpu.memory_space<vmem>>, %arg5: memref<2x1x96xf32, #tpu.memory_space<vmem>>, %arg6: memref<2x32x32xf32, #tpu.memory_space<vmem>>, %arg7: memref<2x1x32xf32, #tpu.memory_space<vmem>>, %arg8: memref<2x32x32xf32, #tpu.memory_space<vmem>>, %arg9: memref<2x1x32xf32, #tpu.memory_space<vmem>>, %arg10: memref<2x32x64xf32, #tpu.memory_space<vmem>>, %arg11: memref<2x1x64xf32, #tpu.memory_space<vmem>>, %arg12: memref<2x32x32xf32, #tpu.memory_space<vmem>>, %arg13: memref<2x1x32xf32, #tpu.memory_space<vmem>>, %arg14: memref<2x32x64xf32, #tpu.memory_space<vmem>>, %arg15: memref<2x1x64xf32, #tpu.memory_space<vmem>>, %arg16: memref<2x64x32xf32, #tpu.memory_space<vmem>>, %arg17: memref<2x1x32xf32, #tpu.memory_space<vmem>>, %arg18: memref<2x3x32xf32, #tpu.memory_space<vmem>>, %arg19: memref<2x3x32xf32, #tpu.memory_space<vmem>>, %arg20: memref<1x32xf32, #tpu.memory_space<vmem>>, %arg21: memref<1x32xf32, #tpu.memory_space<vmem>>, %arg22: memref<16x32xf32, #tpu.memory_space<vmem>>) attributes {dimension_semantics = [], scalar_prefetch = 0 : i64, scratch_operands = 0 : i64, tpu.core_type = #tpu.core_type<tc>} {
    %c0 = arith.constant 0 : index
    %c0_0 = arith.constant 0 : index
    %c0_1 = arith.constant 0 : index
    %0 = vector.load %arg2[%c0, %c0_0, %c0_1] : memref<2x8x8xf32, #tpu.memory_space<vmem>>, vector<2x8x8xf32>
    %cst = arith.constant 1.000000e+00 : f32
    %1 = vector.broadcast %cst : f32 to vector<2x8x8xf32>
    %2 = arith.subf %0, %1 : vector<2x8x8xf32>
    %cst_2 = arith.constant 1.000000e+09 : f32
    %3 = vector.broadcast %cst_2 : f32 to vector<2x8x8xf32>
    %4 = arith.mulf %2, %3 : vector<2x8x8xf32>
    %c0_3 = arith.constant 0 : index
    %c0_4 = arith.constant 0 : index
    %c0_5 = arith.constant 0 : index
    %5 = vector.load %arg3[%c0_3, %c0_4, %c0_5] : memref<2x1x8xf32, #tpu.memory_space<vmem>>, vector<2x1x8xf32>
    %cst_6 = arith.constant 1.000000e+00 : f32
    %6 = vector.broadcast %cst_6 : f32 to vector<2x1x8xf32>
    %7 = arith.subf %5, %6 : vector<2x1x8xf32>
    %cst_7 = arith.constant 1.000000e+09 : f32
    %8 = vector.broadcast %cst_7 : f32 to vector<2x1x8xf32>
    %9 = arith.mulf %7, %8 : vector<2x1x8xf32>
    %10 = vector.shape_cast %9 : vector<2x1x8xf32> to vector<2x1x8xf32>
    %11 = vector.broadcast %10 : vector<2x1x8xf32> to vector<2x8x8xf32>
    %c0_8 = arith.constant 0 : index
    %c0_9 = arith.constant 0 : index
    %12 = vector.load %arg0[%c0_8, %c0_9] : memref<16x32xf32, #tpu.memory_space<vmem>>, vector<16x32xf32>
    %c0_10 = arith.constant 0 : index
    %c0_11 = arith.constant 0 : index
    %13 = vector.load %arg1[%c0_10, %c0_11] : memref<16x32xf32, #tpu.memory_space<vmem>>, vector<16x32xf32>
    %c0_12 = arith.constant 0 : index
    %c0_13 = arith.constant 0 : index
    %c0_14 = arith.constant 0 : index
    %14 = vector.load %arg18[%c0_12, %c0_13, %c0_14] : memref<2x3x32xf32, #tpu.memory_space<vmem>>, vector<1x3x32xf32>
    %15 = vector.shape_cast %14 : vector<1x3x32xf32> to vector<3x32xf32>
    %c0_15 = arith.constant 0 : index
    %c0_16 = arith.constant 0 : index
    %c0_17 = arith.constant 0 : index
    %16 = vector.load %arg19[%c0_15, %c0_16, %c0_17] : memref<2x3x32xf32, #tpu.memory_space<vmem>>, vector<1x3x32xf32>
    %17 = vector.shape_cast %16 : vector<1x3x32xf32> to vector<3x32xf32>
    %18 = vector.extract_strided_slice %15 {offsets = [0, 0], sizes = [1, 32], strides = [1, 1]} : vector<3x32xf32> to vector<1x32xf32>
    %19 = vector.extract_strided_slice %17 {offsets = [0, 0], sizes = [1, 32], strides = [1, 1]} : vector<3x32xf32> to vector<1x32xf32>
    %cst_18 = arith.constant dense<0.000000e+00> : vector<16xf32>
    %20 = vector.multi_reduction <add>, %12, %cst_18 [1] : vector<16x32xf32> to vector<16xf32>
    %21 = vector.shape_cast %20 : vector<16xf32> to vector<16x1xf32>
    %cst_19 = arith.constant 3.200000e+01 : f32
    %22 = vector.broadcast %cst_19 : f32 to vector<16x1xf32>
    %23 = arith.divf %21, %22 : vector<16x1xf32>
    %24 = vector.broadcast %23 : vector<16x1xf32> to vector<16x32xf32>
    %25 = arith.subf %12, %24 : vector<16x32xf32>
    %26 = arith.mulf %25, %25 : vector<16x32xf32>
    %cst_20 = arith.constant dense<0.000000e+00> : vector<16xf32>
    %27 = vector.multi_reduction <add>, %26, %cst_20 [1] : vector<16x32xf32> to vector<16xf32>
    %28 = vector.shape_cast %27 : vector<16xf32> to vector<16x1xf32>
    %cst_21 = arith.constant 0.0322580636 : f32
    %29 = vector.broadcast %cst_21 : f32 to vector<16x1xf32>
    %30 = arith.mulf %28, %29 : vector<16x1xf32>
    %31 = math.sqrt %30 : vector<16x1xf32>
    %cst_22 = arith.constant 9.99999997E-7 : f32
    %32 = vector.broadcast %cst_22 : f32 to vector<16x1xf32>
    %33 = arith.addf %31, %32 : vector<16x1xf32>
    %34 = tpu.reciprocal %33 {approx = true} : vector<16x1xf32> -> vector<16x1xf32>
    %35 = vector.broadcast %34 : vector<16x1xf32> to vector<16x32xf32>
    %36 = arith.mulf %25, %35 : vector<16x32xf32>
    %37 = vector.broadcast %18 : vector<1x32xf32> to vector<16x32xf32>
    %38 = arith.mulf %36, %37 : vector<16x32xf32>
    %39 = vector.broadcast %19 : vector<1x32xf32> to vector<16x32xf32>
    %40 = arith.addf %38, %39 : vector<16x32xf32>
    %c0_23 = arith.constant 0 : index
    %c0_24 = arith.constant 0 : index
    %c0_25 = arith.constant 0 : index
    %41 = vector.load %arg4[%c0_23, %c0_24, %c0_25] : memref<2x32x96xf32, #tpu.memory_space<vmem>>, vector<1x32x96xf32>
    %42 = vector.shape_cast %41 : vector<1x32x96xf32> to vector<32x96xf32>
    %cst_26 = arith.constant dense<0.000000e+00> : vector<16x96xf32>
    %43 = tpu.matmul %40, %42, %cst_26 {dimension_numbers = #tpu.dot_dimension_numbers<[1], [0], [0], [1], [0, 0, 1, 1], [], []>} : vector<16x32xf32>, vector<32x96xf32>, vector<16x96xf32> -> vector<16x96xf32>
    %c0_27 = arith.constant 0 : index
    %c0_28 = arith.constant 0 : index
    %c0_29 = arith.constant 0 : index
    %44 = vector.load %arg5[%c0_27, %c0_28, %c0_29] : memref<2x1x96xf32, #tpu.memory_space<vmem>>, vector<1x1x96xf32>
    %45 = vector.shape_cast %44 : vector<1x1x96xf32> to vector<1x96xf32>
    %46 = vector.broadcast %45 : vector<1x96xf32> to vector<16x96xf32>
    %47 = arith.addf %43, %46 : vector<16x96xf32>
    %48 = vector.extract_strided_slice %47 {offsets = [0, 0], sizes = [16, 32], strides = [1, 1]} : vector<16x96xf32> to vector<16x32xf32>
    %49 = vector.extract_strided_slice %47 {offsets = [0, 32], sizes = [16, 32], strides = [1, 1]} : vector<16x96xf32> to vector<16x32xf32>
    %50 = vector.extract_strided_slice %47 {offsets = [0, 64], sizes = [16, 32], strides = [1, 1]} : vector<16x96xf32> to vector<16x32xf32>
    %c0_30 = arith.constant 0 : index
    %c0_31 = arith.constant 0 : index
    %c0_32 = arith.constant 0 : index
    %51 = vector.load %arg6[%c0_30, %c0_31, %c0_32] : memref<2x32x32xf32, #tpu.memory_space<vmem>>, vector<1x32x32xf32>
    %52 = vector.shape_cast %51 : vector<1x32x32xf32> to vector<32x32xf32>
    %c0_33 = arith.constant 0 : index
    %c0_34 = arith.constant 0 : index
    %c0_35 = arith.constant 0 : index
    %53 = vector.load %arg7[%c0_33, %c0_34, %c0_35] : memref<2x1x32xf32, #tpu.memory_space<vmem>>, vector<1x1x32xf32>
    %54 = vector.shape_cast %53 : vector<1x1x32xf32> to vector<1x32xf32>
    %55 = vector.broadcast %54 : vector<1x32xf32> to vector<16x32xf32>
    %56 = arith.addf %12, %55 : vector<16x32xf32>
    %57 = vector.extract_strided_slice %48 {offsets = [0, 0], sizes = [16, 8], strides = [1, 1]} : vector<16x32xf32> to vector<16x8xf32>
    %58 = vector.shape_cast %57 : vector<16x8xf32> to vector<2x8x8xf32>
    %59 = vector.extract_strided_slice %49 {offsets = [0, 0], sizes = [16, 8], strides = [1, 1]} : vector<16x32xf32> to vector<16x8xf32>
    %60 = vector.shape_cast %59 : vector<16x8xf32> to vector<2x8x8xf32>
    %61 = vector.extract_strided_slice %50 {offsets = [0, 0], sizes = [16, 8], strides = [1, 1]} : vector<16x32xf32> to vector<16x8xf32>
    %62 = vector.shape_cast %61 : vector<16x8xf32> to vector<2x8x8xf32>
    "tpu.trace_start"() <{level = 10 : i32, message = "bqd,bkd->bqk"}> : () -> ()
    %cst_36 = arith.constant dense<0.000000e+00> : vector<2x8x8xf32>
    %63 = tpu.matmul %58, %60, %cst_36 {dimension_numbers = #tpu.dot_dimension_numbers<[2], [2], [1], [1], [0, 0, 0, 1, 1, 1], [0], [0]>} : vector<2x8x8xf32>, vector<2x8x8xf32>, vector<2x8x8xf32> -> vector<2x8x8xf32>
    "tpu.trace_stop"() : () -> ()
    %64 = arith.addf %63, %4 : vector<2x8x8xf32>
    %cst_37 = arith.constant dense<0xFF800000> : vector<2x8xf32>
    %65 = vector.multi_reduction <maximumf>, %64, %cst_37 [2] : vector<2x8x8xf32> to vector<2x8xf32>
    %66 = vector.shape_cast %65 : vector<2x8xf32> to vector<2x8x1xf32>
    %67 = vector.broadcast %66 : vector<2x8x1xf32> to vector<2x8x8xf32>
    %68 = arith.subf %64, %67 : vector<2x8x8xf32>
    %69 = math.exp %68 : vector<2x8x8xf32>
    %cst_38 = arith.constant dense<0.000000e+00> : vector<2x8xf32>
    %70 = vector.multi_reduction <add>, %69, %cst_38 [2] : vector<2x8x8xf32> to vector<2x8xf32>
    %71 = vector.shape_cast %70 : vector<2x8xf32> to vector<2x8x1xf32>
    %72 = tpu.reciprocal %71 {approx = true} : vector<2x8x1xf32> -> vector<2x8x1xf32>
    %73 = vector.broadcast %72 : vector<2x8x1xf32> to vector<2x8x8xf32>
    %74 = arith.mulf %69, %73 : vector<2x8x8xf32>
    "tpu.trace_start"() <{level = 10 : i32, message = "bqk,bkd->bqd"}> : () -> ()
    %cst_39 = arith.constant dense<0.000000e+00> : vector<2x8x8xf32>
    %75 = tpu.matmul %74, %62, %cst_39 {dimension_numbers = #tpu.dot_dimension_numbers<[2], [1], [1], [2], [0, 0, 0, 1, 1, 2], [0], [0]>} : vector<2x8x8xf32>, vector<2x8x8xf32>, vector<2x8x8xf32> -> vector<2x8x8xf32>
    "tpu.trace_stop"() : () -> ()
    %76 = vector.shape_cast %75 : vector<2x8x8xf32> to vector<16x8xf32>
    %77 = vector.extract_strided_slice %52 {offsets = [0, 0], sizes = [8, 32], strides = [1, 1]} : vector<32x32xf32> to vector<8x32xf32>
    %cst_40 = arith.constant dense<0.000000e+00> : vector<16x32xf32>
    %78 = tpu.matmul %76, %77, %cst_40 {dimension_numbers = #tpu.dot_dimension_numbers<[1], [0], [0], [1], [0, 0, 1, 1], [], []>} : vector<16x8xf32>, vector<8x32xf32>, vector<16x32xf32> -> vector<16x32xf32>
    %79 = arith.addf %56, %78 : vector<16x32xf32>
    %80 = vector.extract_strided_slice %48 {offsets = [0, 8], sizes = [16, 8], strides = [1, 1]} : vector<16x32xf32> to vector<16x8xf32>
    %81 = vector.shape_cast %80 : vector<16x8xf32> to vector<2x8x8xf32>
    %82 = vector.extract_strided_slice %49 {offsets = [0, 8], sizes = [16, 8], strides = [1, 1]} : vector<16x32xf32> to vector<16x8xf32>
    %83 = vector.shape_cast %82 : vector<16x8xf32> to vector<2x8x8xf32>
    %84 = vector.extract_strided_slice %50 {offsets = [0, 8], sizes = [16, 8], strides = [1, 1]} : vector<16x32xf32> to vector<16x8xf32>
    %85 = vector.shape_cast %84 : vector<16x8xf32> to vector<2x8x8xf32>
    "tpu.trace_start"() <{level = 10 : i32, message = "bqd,bkd->bqk"}> : () -> ()
    %cst_41 = arith.constant dense<0.000000e+00> : vector<2x8x8xf32>
    %86 = tpu.matmul %81, %83, %cst_41 {dimension_numbers = #tpu.dot_dimension_numbers<[2], [2], [1], [1], [0, 0, 0, 1, 1, 1], [0], [0]>} : vector<2x8x8xf32>, vector<2x8x8xf32>, vector<2x8x8xf32> -> vector<2x8x8xf32>
    "tpu.trace_stop"() : () -> ()
    %87 = arith.addf %86, %4 : vector<2x8x8xf32>
    %cst_42 = arith.constant dense<0xFF800000> : vector<2x8xf32>
    %88 = vector.multi_reduction <maximumf>, %87, %cst_42 [2] : vector<2x8x8xf32> to vector<2x8xf32>
    %89 = vector.shape_cast %88 : vector<2x8xf32> to vector<2x8x1xf32>
    %90 = vector.broadcast %89 : vector<2x8x1xf32> to vector<2x8x8xf32>
    %91 = arith.subf %87, %90 : vector<2x8x8xf32>
    %92 = math.exp %91 : vector<2x8x8xf32>
    %cst_43 = arith.constant dense<0.000000e+00> : vector<2x8xf32>
    %93 = vector.multi_reduction <add>, %92, %cst_43 [2] : vector<2x8x8xf32> to vector<2x8xf32>
    %94 = vector.shape_cast %93 : vector<2x8xf32> to vector<2x8x1xf32>
    %95 = tpu.reciprocal %94 {approx = true} : vector<2x8x1xf32> -> vector<2x8x1xf32>
    %96 = vector.broadcast %95 : vector<2x8x1xf32> to vector<2x8x8xf32>
    %97 = arith.mulf %92, %96 : vector<2x8x8xf32>
    "tpu.trace_start"() <{level = 10 : i32, message = "bqk,bkd->bqd"}> : () -> ()
    %cst_44 = arith.constant dense<0.000000e+00> : vector<2x8x8xf32>
    %98 = tpu.matmul %97, %85, %cst_44 {dimension_numbers = #tpu.dot_dimension_numbers<[2], [1], [1], [2], [0, 0, 0, 1, 1, 2], [0], [0]>} : vector<2x8x8xf32>, vector<2x8x8xf32>, vector<2x8x8xf32> -> vector<2x8x8xf32>
    "tpu.trace_stop"() : () -> ()
    %99 = vector.shape_cast %98 : vector<2x8x8xf32> to vector<16x8xf32>
    %100 = vector.extract_strided_slice %52 {offsets = [8, 0], sizes = [8, 32], strides = [1, 1]} : vector<32x32xf32> to vector<8x32xf32>
    %cst_45 = arith.constant dense<0.000000e+00> : vector<16x32xf32>
    %101 = tpu.matmul %99, %100, %cst_45 {dimension_numbers = #tpu.dot_dimension_numbers<[1], [0], [0], [1], [0, 0, 1, 1], [], []>} : vector<16x8xf32>, vector<8x32xf32>, vector<16x32xf32> -> vector<16x32xf32>
    %102 = arith.addf %79, %101 : vector<16x32xf32>
    %103 = vector.extract_strided_slice %48 {offsets = [0, 16], sizes = [16, 8], strides = [1, 1]} : vector<16x32xf32> to vector<16x8xf32>
    %104 = vector.shape_cast %103 : vector<16x8xf32> to vector<2x8x8xf32>
    %105 = vector.extract_strided_slice %49 {offsets = [0, 16], sizes = [16, 8], strides = [1, 1]} : vector<16x32xf32> to vector<16x8xf32>
    %106 = vector.shape_cast %105 : vector<16x8xf32> to vector<2x8x8xf32>
    %107 = vector.extract_strided_slice %50 {offsets = [0, 16], sizes = [16, 8], strides = [1, 1]} : vector<16x32xf32> to vector<16x8xf32>
    %108 = vector.shape_cast %107 : vector<16x8xf32> to vector<2x8x8xf32>
    "tpu.trace_start"() <{level = 10 : i32, message = "bqd,bkd->bqk"}> : () -> ()
    %cst_46 = arith.constant dense<0.000000e+00> : vector<2x8x8xf32>
    %109 = tpu.matmul %104, %106, %cst_46 {dimension_numbers = #tpu.dot_dimension_numbers<[2], [2], [1], [1], [0, 0, 0, 1, 1, 1], [0], [0]>} : vector<2x8x8xf32>, vector<2x8x8xf32>, vector<2x8x8xf32> -> vector<2x8x8xf32>
    "tpu.trace_stop"() : () -> ()
    %110 = arith.addf %109, %4 : vector<2x8x8xf32>
    %cst_47 = arith.constant dense<0xFF800000> : vector<2x8xf32>
    %111 = vector.multi_reduction <maximumf>, %110, %cst_47 [2] : vector<2x8x8xf32> to vector<2x8xf32>
    %112 = vector.shape_cast %111 : vector<2x8xf32> to vector<2x8x1xf32>
    %113 = vector.broadcast %112 : vector<2x8x1xf32> to vector<2x8x8xf32>
    %114 = arith.subf %110, %113 : vector<2x8x8xf32>
    %115 = math.exp %114 : vector<2x8x8xf32>
    %cst_48 = arith.constant dense<0.000000e+00> : vector<2x8xf32>
    %116 = vector.multi_reduction <add>, %115, %cst_48 [2] : vector<2x8x8xf32> to vector<2x8xf32>
    %117 = vector.shape_cast %116 : vector<2x8xf32> to vector<2x8x1xf32>
    %118 = tpu.reciprocal %117 {approx = true} : vector<2x8x1xf32> -> vector<2x8x1xf32>
    %119 = vector.broadcast %118 : vector<2x8x1xf32> to vector<2x8x8xf32>
    %120 = arith.mulf %115, %119 : vector<2x8x8xf32>
    "tpu.trace_start"() <{level = 10 : i32, message = "bqk,bkd->bqd"}> : () -> ()
    %cst_49 = arith.constant dense<0.000000e+00> : vector<2x8x8xf32>
    %121 = tpu.matmul %120, %108, %cst_49 {dimension_numbers = #tpu.dot_dimension_numbers<[2], [1], [1], [2], [0, 0, 0, 1, 1, 2], [0], [0]>} : vector<2x8x8xf32>, vector<2x8x8xf32>, vector<2x8x8xf32> -> vector<2x8x8xf32>
    "tpu.trace_stop"() : () -> ()
    %122 = vector.shape_cast %121 : vector<2x8x8xf32> to vector<16x8xf32>
    %123 = vector.extract_strided_slice %52 {offsets = [16, 0], sizes = [8, 32], strides = [1, 1]} : vector<32x32xf32> to vector<8x32xf32>
    %cst_50 = arith.constant dense<0.000000e+00> : vector<16x32xf32>
    %124 = tpu.matmul %122, %123, %cst_50 {dimension_numbers = #tpu.dot_dimension_numbers<[1], [0], [0], [1], [0, 0, 1, 1], [], []>} : vector<16x8xf32>, vector<8x32xf32>, vector<16x32xf32> -> vector<16x32xf32>
    %125 = arith.addf %102, %124 : vector<16x32xf32>
    %126 = vector.extract_strided_slice %48 {offsets = [0, 24], sizes = [16, 8], strides = [1, 1]} : vector<16x32xf32> to vector<16x8xf32>
    %127 = vector.shape_cast %126 : vector<16x8xf32> to vector<2x8x8xf32>
    %128 = vector.extract_strided_slice %49 {offsets = [0, 24], sizes = [16, 8], strides = [1, 1]} : vector<16x32xf32> to vector<16x8xf32>
    %129 = vector.shape_cast %128 : vector<16x8xf32> to vector<2x8x8xf32>
    %130 = vector.extract_strided_slice %50 {offsets = [0, 24], sizes = [16, 8], strides = [1, 1]} : vector<16x32xf32> to vector<16x8xf32>
    %131 = vector.shape_cast %130 : vector<16x8xf32> to vector<2x8x8xf32>
    "tpu.trace_start"() <{level = 10 : i32, message = "bqd,bkd->bqk"}> : () -> ()
    %cst_51 = arith.constant dense<0.000000e+00> : vector<2x8x8xf32>
    %132 = tpu.matmul %127, %129, %cst_51 {dimension_numbers = #tpu.dot_dimension_numbers<[2], [2], [1], [1], [0, 0, 0, 1, 1, 1], [0], [0]>} : vector<2x8x8xf32>, vector<2x8x8xf32>, vector<2x8x8xf32> -> vector<2x8x8xf32>
    "tpu.trace_stop"() : () -> ()
    %133 = arith.addf %132, %4 : vector<2x8x8xf32>
    %cst_52 = arith.constant dense<0xFF800000> : vector<2x8xf32>
    %134 = vector.multi_reduction <maximumf>, %133, %cst_52 [2] : vector<2x8x8xf32> to vector<2x8xf32>
    %135 = vector.shape_cast %134 : vector<2x8xf32> to vector<2x8x1xf32>
    %136 = vector.broadcast %135 : vector<2x8x1xf32> to vector<2x8x8xf32>
    %137 = arith.subf %133, %136 : vector<2x8x8xf32>
    %138 = math.exp %137 : vector<2x8x8xf32>
    %cst_53 = arith.constant dense<0.000000e+00> : vector<2x8xf32>
    %139 = vector.multi_reduction <add>, %138, %cst_53 [2] : vector<2x8x8xf32> to vector<2x8xf32>
    %140 = vector.shape_cast %139 : vector<2x8xf32> to vector<2x8x1xf32>
    %141 = tpu.reciprocal %140 {approx = true} : vector<2x8x1xf32> -> vector<2x8x1xf32>
    %142 = vector.broadcast %141 : vector<2x8x1xf32> to vector<2x8x8xf32>
    %143 = arith.mulf %138, %142 : vector<2x8x8xf32>
    "tpu.trace_start"() <{level = 10 : i32, message = "bqk,bkd->bqd"}> : () -> ()
    %cst_54 = arith.constant dense<0.000000e+00> : vector<2x8x8xf32>
    %144 = tpu.matmul %143, %131, %cst_54 {dimension_numbers = #tpu.dot_dimension_numbers<[2], [1], [1], [2], [0, 0, 0, 1, 1, 2], [0], [0]>} : vector<2x8x8xf32>, vector<2x8x8xf32>, vector<2x8x8xf32> -> vector<2x8x8xf32>
    "tpu.trace_stop"() : () -> ()
    %145 = vector.shape_cast %144 : vector<2x8x8xf32> to vector<16x8xf32>
    %146 = vector.extract_strided_slice %52 {offsets = [24, 0], sizes = [8, 32], strides = [1, 1]} : vector<32x32xf32> to vector<8x32xf32>
    %cst_55 = arith.constant dense<0.000000e+00> : vector<16x32xf32>
    %147 = tpu.matmul %145, %146, %cst_55 {dimension_numbers = #tpu.dot_dimension_numbers<[1], [0], [0], [1], [0, 0, 1, 1], [], []>} : vector<16x8xf32>, vector<8x32xf32>, vector<16x32xf32> -> vector<16x32xf32>
    %148 = arith.addf %125, %147 : vector<16x32xf32>
    %149 = vector.extract_strided_slice %15 {offsets = [1, 0], sizes = [1, 32], strides = [1, 1]} : vector<3x32xf32> to vector<1x32xf32>
    %150 = vector.extract_strided_slice %17 {offsets = [1, 0], sizes = [1, 32], strides = [1, 1]} : vector<3x32xf32> to vector<1x32xf32>
    %cst_56 = arith.constant dense<0.000000e+00> : vector<16xf32>
    %151 = vector.multi_reduction <add>, %148, %cst_56 [1] : vector<16x32xf32> to vector<16xf32>
    %152 = vector.shape_cast %151 : vector<16xf32> to vector<16x1xf32>
    %cst_57 = arith.constant 3.200000e+01 : f32
    %153 = vector.broadcast %cst_57 : f32 to vector<16x1xf32>
    %154 = arith.divf %152, %153 : vector<16x1xf32>
    %155 = vector.broadcast %154 : vector<16x1xf32> to vector<16x32xf32>
    %156 = arith.subf %148, %155 : vector<16x32xf32>
    %157 = arith.mulf %156, %156 : vector<16x32xf32>
    %cst_58 = arith.constant dense<0.000000e+00> : vector<16xf32>
    %158 = vector.multi_reduction <add>, %157, %cst_58 [1] : vector<16x32xf32> to vector<16xf32>
    %159 = vector.shape_cast %158 : vector<16xf32> to vector<16x1xf32>
    %cst_59 = arith.constant 0.0322580636 : f32
    %160 = vector.broadcast %cst_59 : f32 to vector<16x1xf32>
    %161 = arith.mulf %159, %160 : vector<16x1xf32>
    %162 = math.sqrt %161 : vector<16x1xf32>
    %cst_60 = arith.constant 9.99999997E-7 : f32
    %163 = vector.broadcast %cst_60 : f32 to vector<16x1xf32>
    %164 = arith.addf %162, %163 : vector<16x1xf32>
    %165 = tpu.reciprocal %164 {approx = true} : vector<16x1xf32> -> vector<16x1xf32>
    %166 = vector.broadcast %165 : vector<16x1xf32> to vector<16x32xf32>
    %167 = arith.mulf %156, %166 : vector<16x32xf32>
    %168 = vector.broadcast %149 : vector<1x32xf32> to vector<16x32xf32>
    %169 = arith.mulf %167, %168 : vector<16x32xf32>
    %170 = vector.broadcast %150 : vector<1x32xf32> to vector<16x32xf32>
    %171 = arith.addf %169, %170 : vector<16x32xf32>
    %c0_61 = arith.constant 0 : index
    %c0_62 = arith.constant 0 : index
    %c0_63 = arith.constant 0 : index
    %172 = vector.load %arg8[%c0_61, %c0_62, %c0_63] : memref<2x32x32xf32, #tpu.memory_space<vmem>>, vector<1x32x32xf32>
    %173 = vector.shape_cast %172 : vector<1x32x32xf32> to vector<32x32xf32>
    %cst_64 = arith.constant dense<0.000000e+00> : vector<16x32xf32>
    %174 = tpu.matmul %171, %173, %cst_64 {dimension_numbers = #tpu.dot_dimension_numbers<[1], [0], [0], [1], [0, 0, 1, 1], [], []>} : vector<16x32xf32>, vector<32x32xf32>, vector<16x32xf32> -> vector<16x32xf32>
    %c0_65 = arith.constant 0 : index
    %c0_66 = arith.constant 0 : index
    %c0_67 = arith.constant 0 : index
    %175 = vector.load %arg9[%c0_65, %c0_66, %c0_67] : memref<2x1x32xf32, #tpu.memory_space<vmem>>, vector<1x1x32xf32>
    %176 = vector.shape_cast %175 : vector<1x1x32xf32> to vector<1x32xf32>
    %177 = vector.broadcast %176 : vector<1x32xf32> to vector<16x32xf32>
    %178 = arith.addf %174, %177 : vector<16x32xf32>
    %c0_68 = arith.constant 0 : index
    %c0_69 = arith.constant 0 : index
    %c0_70 = arith.constant 0 : index
    %179 = vector.load %arg10[%c0_68, %c0_69, %c0_70] : memref<2x32x64xf32, #tpu.memory_space<vmem>>, vector<1x32x64xf32>
    %180 = vector.shape_cast %179 : vector<1x32x64xf32> to vector<32x64xf32>
    %cst_71 = arith.constant dense<0.000000e+00> : vector<16x64xf32>
    %181 = tpu.matmul %13, %180, %cst_71 {dimension_numbers = #tpu.dot_dimension_numbers<[1], [0], [0], [1], [0, 0, 1, 1], [], []>} : vector<16x32xf32>, vector<32x64xf32>, vector<16x64xf32> -> vector<16x64xf32>
    %c0_72 = arith.constant 0 : index
    %c0_73 = arith.constant 0 : index
    %c0_74 = arith.constant 0 : index
    %182 = vector.load %arg11[%c0_72, %c0_73, %c0_74] : memref<2x1x64xf32, #tpu.memory_space<vmem>>, vector<1x1x64xf32>
    %183 = vector.shape_cast %182 : vector<1x1x64xf32> to vector<1x64xf32>
    %184 = vector.broadcast %183 : vector<1x64xf32> to vector<16x64xf32>
    %185 = arith.addf %181, %184 : vector<16x64xf32>
    %186 = vector.extract_strided_slice %185 {offsets = [0, 0], sizes = [16, 32], strides = [1, 1]} : vector<16x64xf32> to vector<16x32xf32>
    %187 = vector.extract_strided_slice %185 {offsets = [0, 32], sizes = [16, 32], strides = [1, 1]} : vector<16x64xf32> to vector<16x32xf32>
    %c0_75 = arith.constant 0 : index
    %c0_76 = arith.constant 0 : index
    %c0_77 = arith.constant 0 : index
    %188 = vector.load %arg12[%c0_75, %c0_76, %c0_77] : memref<2x32x32xf32, #tpu.memory_space<vmem>>, vector<1x32x32xf32>
    %189 = vector.shape_cast %188 : vector<1x32x32xf32> to vector<32x32xf32>
    %c0_78 = arith.constant 0 : index
    %c0_79 = arith.constant 0 : index
    %c0_80 = arith.constant 0 : index
    %190 = vector.load %arg13[%c0_78, %c0_79, %c0_80] : memref<2x1x32xf32, #tpu.memory_space<vmem>>, vector<1x1x32xf32>
    %191 = vector.shape_cast %190 : vector<1x1x32xf32> to vector<1x32xf32>
    %192 = vector.broadcast %191 : vector<1x32xf32> to vector<16x32xf32>
    %193 = arith.addf %148, %192 : vector<16x32xf32>
    %194 = vector.extract_strided_slice %178 {offsets = [0, 0], sizes = [16, 8], strides = [1, 1]} : vector<16x32xf32> to vector<16x8xf32>
    %195 = vector.shape_cast %194 : vector<16x8xf32> to vector<2x8x8xf32>
    %196 = vector.extract_strided_slice %186 {offsets = [0, 0], sizes = [16, 8], strides = [1, 1]} : vector<16x32xf32> to vector<16x8xf32>
    %197 = vector.shape_cast %196 : vector<16x8xf32> to vector<2x8x8xf32>
    %198 = vector.extract_strided_slice %187 {offsets = [0, 0], sizes = [16, 8], strides = [1, 1]} : vector<16x32xf32> to vector<16x8xf32>
    %199 = vector.shape_cast %198 : vector<16x8xf32> to vector<2x8x8xf32>
    "tpu.trace_start"() <{level = 10 : i32, message = "bqd,bkd->bqk"}> : () -> ()
    %cst_81 = arith.constant dense<0.000000e+00> : vector<2x8x8xf32>
    %200 = tpu.matmul %195, %197, %cst_81 {dimension_numbers = #tpu.dot_dimension_numbers<[2], [2], [1], [1], [0, 0, 0, 1, 1, 1], [0], [0]>} : vector<2x8x8xf32>, vector<2x8x8xf32>, vector<2x8x8xf32> -> vector<2x8x8xf32>
    "tpu.trace_stop"() : () -> ()
    %201 = arith.addf %200, %11 : vector<2x8x8xf32>
    %cst_82 = arith.constant dense<0xFF800000> : vector<2x8xf32>
    %202 = vector.multi_reduction <maximumf>, %201, %cst_82 [2] : vector<2x8x8xf32> to vector<2x8xf32>
    %203 = vector.shape_cast %202 : vector<2x8xf32> to vector<2x8x1xf32>
    %204 = vector.broadcast %203 : vector<2x8x1xf32> to vector<2x8x8xf32>
    %205 = arith.subf %201, %204 : vector<2x8x8xf32>
    %206 = math.exp %205 : vector<2x8x8xf32>
    %cst_83 = arith.constant dense<0.000000e+00> : vector<2x8xf32>
    %207 = vector.multi_reduction <add>, %206, %cst_83 [2] : vector<2x8x8xf32> to vector<2x8xf32>
    %208 = vector.shape_cast %207 : vector<2x8xf32> to vector<2x8x1xf32>
    %209 = tpu.reciprocal %208 {approx = true} : vector<2x8x1xf32> -> vector<2x8x1xf32>
    %210 = vector.broadcast %209 : vector<2x8x1xf32> to vector<2x8x8xf32>
    %211 = arith.mulf %206, %210 : vector<2x8x8xf32>
    "tpu.trace_start"() <{level = 10 : i32, message = "bqk,bkd->bqd"}> : () -> ()
    %cst_84 = arith.constant dense<0.000000e+00> : vector<2x8x8xf32>
    %212 = tpu.matmul %211, %199, %cst_84 {dimension_numbers = #tpu.dot_dimension_numbers<[2], [1], [1], [2], [0, 0, 0, 1, 1, 2], [0], [0]>} : vector<2x8x8xf32>, vector<2x8x8xf32>, vector<2x8x8xf32> -> vector<2x8x8xf32>
    "tpu.trace_stop"() : () -> ()
    %213 = vector.shape_cast %212 : vector<2x8x8xf32> to vector<16x8xf32>
    %214 = vector.extract_strided_slice %189 {offsets = [0, 0], sizes = [8, 32], strides = [1, 1]} : vector<32x32xf32> to vector<8x32xf32>
    %cst_85 = arith.constant dense<0.000000e+00> : vector<16x32xf32>
    %215 = tpu.matmul %213, %214, %cst_85 {dimension_numbers = #tpu.dot_dimension_numbers<[1], [0], [0], [1], [0, 0, 1, 1], [], []>} : vector<16x8xf32>, vector<8x32xf32>, vector<16x32xf32> -> vector<16x32xf32>
    %216 = arith.addf %193, %215 : vector<16x32xf32>
    %217 = vector.extract_strided_slice %178 {offsets = [0, 8], sizes = [16, 8], strides = [1, 1]} : vector<16x32xf32> to vector<16x8xf32>
    %218 = vector.shape_cast %217 : vector<16x8xf32> to vector<2x8x8xf32>
    %219 = vector.extract_strided_slice %186 {offsets = [0, 8], sizes = [16, 8], strides = [1, 1]} : vector<16x32xf32> to vector<16x8xf32>
    %220 = vector.shape_cast %219 : vector<16x8xf32> to vector<2x8x8xf32>
    %221 = vector.extract_strided_slice %187 {offsets = [0, 8], sizes = [16, 8], strides = [1, 1]} : vector<16x32xf32> to vector<16x8xf32>
    %222 = vector.shape_cast %221 : vector<16x8xf32> to vector<2x8x8xf32>
    "tpu.trace_start"() <{level = 10 : i32, message = "bqd,bkd->bqk"}> : () -> ()
    %cst_86 = arith.constant dense<0.000000e+00> : vector<2x8x8xf32>
    %223 = tpu.matmul %218, %220, %cst_86 {dimension_numbers = #tpu.dot_dimension_numbers<[2], [2], [1], [1], [0, 0, 0, 1, 1, 1], [0], [0]>} : vector<2x8x8xf32>, vector<2x8x8xf32>, vector<2x8x8xf32> -> vector<2x8x8xf32>
    "tpu.trace_stop"() : () -> ()
    %224 = arith.addf %223, %11 : vector<2x8x8xf32>
    %cst_87 = arith.constant dense<0xFF800000> : vector<2x8xf32>
    %225 = vector.multi_reduction <maximumf>, %224, %cst_87 [2] : vector<2x8x8xf32> to vector<2x8xf32>
    %226 = vector.shape_cast %225 : vector<2x8xf32> to vector<2x8x1xf32>
    %227 = vector.broadcast %226 : vector<2x8x1xf32> to vector<2x8x8xf32>
    %228 = arith.subf %224, %227 : vector<2x8x8xf32>
    %229 = math.exp %228 : vector<2x8x8xf32>
    %cst_88 = arith.constant dense<0.000000e+00> : vector<2x8xf32>
    %230 = vector.multi_reduction <add>, %229, %cst_88 [2] : vector<2x8x8xf32> to vector<2x8xf32>
    %231 = vector.shape_cast %230 : vector<2x8xf32> to vector<2x8x1xf32>
    %232 = tpu.reciprocal %231 {approx = true} : vector<2x8x1xf32> -> vector<2x8x1xf32>
    %233 = vector.broadcast %232 : vector<2x8x1xf32> to vector<2x8x8xf32>
    %234 = arith.mulf %229, %233 : vector<2x8x8xf32>
    "tpu.trace_start"() <{level = 10 : i32, message = "bqk,bkd->bqd"}> : () -> ()
    %cst_89 = arith.constant dense<0.000000e+00> : vector<2x8x8xf32>
    %235 = tpu.matmul %234, %222, %cst_89 {dimension_numbers = #tpu.dot_dimension_numbers<[2], [1], [1], [2], [0, 0, 0, 1, 1, 2], [0], [0]>} : vector<2x8x8xf32>, vector<2x8x8xf32>, vector<2x8x8xf32> -> vector<2x8x8xf32>
    "tpu.trace_stop"() : () -> ()
    %236 = vector.shape_cast %235 : vector<2x8x8xf32> to vector<16x8xf32>
    %237 = vector.extract_strided_slice %189 {offsets = [8, 0], sizes = [8, 32], strides = [1, 1]} : vector<32x32xf32> to vector<8x32xf32>
    %cst_90 = arith.constant dense<0.000000e+00> : vector<16x32xf32>
    %238 = tpu.matmul %236, %237, %cst_90 {dimension_numbers = #tpu.dot_dimension_numbers<[1], [0], [0], [1], [0, 0, 1, 1], [], []>} : vector<16x8xf32>, vector<8x32xf32>, vector<16x32xf32> -> vector<16x32xf32>
    %239 = arith.addf %216, %238 : vector<16x32xf32>
    %240 = vector.extract_strided_slice %178 {offsets = [0, 16], sizes = [16, 8], strides = [1, 1]} : vector<16x32xf32> to vector<16x8xf32>
    %241 = vector.shape_cast %240 : vector<16x8xf32> to vector<2x8x8xf32>
    %242 = vector.extract_strided_slice %186 {offsets = [0, 16], sizes = [16, 8], strides = [1, 1]} : vector<16x32xf32> to vector<16x8xf32>
    %243 = vector.shape_cast %242 : vector<16x8xf32> to vector<2x8x8xf32>
    %244 = vector.extract_strided_slice %187 {offsets = [0, 16], sizes = [16, 8], strides = [1, 1]} : vector<16x32xf32> to vector<16x8xf32>
    %245 = vector.shape_cast %244 : vector<16x8xf32> to vector<2x8x8xf32>
    "tpu.trace_start"() <{level = 10 : i32, message = "bqd,bkd->bqk"}> : () -> ()
    %cst_91 = arith.constant dense<0.000000e+00> : vector<2x8x8xf32>
    %246 = tpu.matmul %241, %243, %cst_91 {dimension_numbers = #tpu.dot_dimension_numbers<[2], [2], [1], [1], [0, 0, 0, 1, 1, 1], [0], [0]>} : vector<2x8x8xf32>, vector<2x8x8xf32>, vector<2x8x8xf32> -> vector<2x8x8xf32>
    "tpu.trace_stop"() : () -> ()
    %247 = arith.addf %246, %11 : vector<2x8x8xf32>
    %cst_92 = arith.constant dense<0xFF800000> : vector<2x8xf32>
    %248 = vector.multi_reduction <maximumf>, %247, %cst_92 [2] : vector<2x8x8xf32> to vector<2x8xf32>
    %249 = vector.shape_cast %248 : vector<2x8xf32> to vector<2x8x1xf32>
    %250 = vector.broadcast %249 : vector<2x8x1xf32> to vector<2x8x8xf32>
    %251 = arith.subf %247, %250 : vector<2x8x8xf32>
    %252 = math.exp %251 : vector<2x8x8xf32>
    %cst_93 = arith.constant dense<0.000000e+00> : vector<2x8xf32>
    %253 = vector.multi_reduction <add>, %252, %cst_93 [2] : vector<2x8x8xf32> to vector<2x8xf32>
    %254 = vector.shape_cast %253 : vector<2x8xf32> to vector<2x8x1xf32>
    %255 = tpu.reciprocal %254 {approx = true} : vector<2x8x1xf32> -> vector<2x8x1xf32>
    %256 = vector.broadcast %255 : vector<2x8x1xf32> to vector<2x8x8xf32>
    %257 = arith.mulf %252, %256 : vector<2x8x8xf32>
    "tpu.trace_start"() <{level = 10 : i32, message = "bqk,bkd->bqd"}> : () -> ()
    %cst_94 = arith.constant dense<0.000000e+00> : vector<2x8x8xf32>
    %258 = tpu.matmul %257, %245, %cst_94 {dimension_numbers = #tpu.dot_dimension_numbers<[2], [1], [1], [2], [0, 0, 0, 1, 1, 2], [0], [0]>} : vector<2x8x8xf32>, vector<2x8x8xf32>, vector<2x8x8xf32> -> vector<2x8x8xf32>
    "tpu.trace_stop"() : () -> ()
    %259 = vector.shape_cast %258 : vector<2x8x8xf32> to vector<16x8xf32>
    %260 = vector.extract_strided_slice %189 {offsets = [16, 0], sizes = [8, 32], strides = [1, 1]} : vector<32x32xf32> to vector<8x32xf32>
    %cst_95 = arith.constant dense<0.000000e+00> : vector<16x32xf32>
    %261 = tpu.matmul %259, %260, %cst_95 {dimension_numbers = #tpu.dot_dimension_numbers<[1], [0], [0], [1], [0, 0, 1, 1], [], []>} : vector<16x8xf32>, vector<8x32xf32>, vector<16x32xf32> -> vector<16x32xf32>
    %262 = arith.addf %239, %261 : vector<16x32xf32>
    %263 = vector.extract_strided_slice %178 {offsets = [0, 24], sizes = [16, 8], strides = [1, 1]} : vector<16x32xf32> to vector<16x8xf32>
    %264 = vector.shape_cast %263 : vector<16x8xf32> to vector<2x8x8xf32>
    %265 = vector.extract_strided_slice %186 {offsets = [0, 24], sizes = [16, 8], strides = [1, 1]} : vector<16x32xf32> to vector<16x8xf32>
    %266 = vector.shape_cast %265 : vector<16x8xf32> to vector<2x8x8xf32>
    %267 = vector.extract_strided_slice %187 {offsets = [0, 24], sizes = [16, 8], strides = [1, 1]} : vector<16x32xf32> to vector<16x8xf32>
    %268 = vector.shape_cast %267 : vector<16x8xf32> to vector<2x8x8xf32>
    "tpu.trace_start"() <{level = 10 : i32, message = "bqd,bkd->bqk"}> : () -> ()
    %cst_96 = arith.constant dense<0.000000e+00> : vector<2x8x8xf32>
    %269 = tpu.matmul %264, %266, %cst_96 {dimension_numbers = #tpu.dot_dimension_numbers<[2], [2], [1], [1], [0, 0, 0, 1, 1, 1], [0], [0]>} : vector<2x8x8xf32>, vector<2x8x8xf32>, vector<2x8x8xf32> -> vector<2x8x8xf32>
    "tpu.trace_stop"() : () -> ()
    %270 = arith.addf %269, %11 : vector<2x8x8xf32>
    %cst_97 = arith.constant dense<0xFF800000> : vector<2x8xf32>
    %271 = vector.multi_reduction <maximumf>, %270, %cst_97 [2] : vector<2x8x8xf32> to vector<2x8xf32>
    %272 = vector.shape_cast %271 : vector<2x8xf32> to vector<2x8x1xf32>
    %273 = vector.broadcast %272 : vector<2x8x1xf32> to vector<2x8x8xf32>
    %274 = arith.subf %270, %273 : vector<2x8x8xf32>
    %275 = math.exp %274 : vector<2x8x8xf32>
    %cst_98 = arith.constant dense<0.000000e+00> : vector<2x8xf32>
    %276 = vector.multi_reduction <add>, %275, %cst_98 [2] : vector<2x8x8xf32> to vector<2x8xf32>
    %277 = vector.shape_cast %276 : vector<2x8xf32> to vector<2x8x1xf32>
    %278 = tpu.reciprocal %277 {approx = true} : vector<2x8x1xf32> -> vector<2x8x1xf32>
    %279 = vector.broadcast %278 : vector<2x8x1xf32> to vector<2x8x8xf32>
    %280 = arith.mulf %275, %279 : vector<2x8x8xf32>
    "tpu.trace_start"() <{level = 10 : i32, message = "bqk,bkd->bqd"}> : () -> ()
    %cst_99 = arith.constant dense<0.000000e+00> : vector<2x8x8xf32>
    %281 = tpu.matmul %280, %268, %cst_99 {dimension_numbers = #tpu.dot_dimension_numbers<[2], [1], [1], [2], [0, 0, 0, 1, 1, 2], [0], [0]>} : vector<2x8x8xf32>, vector<2x8x8xf32>, vector<2x8x8xf32> -> vector<2x8x8xf32>
    "tpu.trace_stop"() : () -> ()
    %282 = vector.shape_cast %281 : vector<2x8x8xf32> to vector<16x8xf32>
    %283 = vector.extract_strided_slice %189 {offsets = [24, 0], sizes = [8, 32], strides = [1, 1]} : vector<32x32xf32> to vector<8x32xf32>
    %cst_100 = arith.constant dense<0.000000e+00> : vector<16x32xf32>
    %284 = tpu.matmul %282, %283, %cst_100 {dimension_numbers = #tpu.dot_dimension_numbers<[1], [0], [0], [1], [0, 0, 1, 1], [], []>} : vector<16x8xf32>, vector<8x32xf32>, vector<16x32xf32> -> vector<16x32xf32>
    %285 = arith.addf %262, %284 : vector<16x32xf32>
    %286 = vector.extract_strided_slice %15 {offsets = [2, 0], sizes = [1, 32], strides = [1, 1]} : vector<3x32xf32> to vector<1x32xf32>
    %287 = vector.extract_strided_slice %17 {offsets = [2, 0], sizes = [1, 32], strides = [1, 1]} : vector<3x32xf32> to vector<1x32xf32>
    %cst_101 = arith.constant dense<0.000000e+00> : vector<16xf32>
    %288 = vector.multi_reduction <add>, %285, %cst_101 [1] : vector<16x32xf32> to vector<16xf32>
    %289 = vector.shape_cast %288 : vector<16xf32> to vector<16x1xf32>
    %cst_102 = arith.constant 3.200000e+01 : f32
    %290 = vector.broadcast %cst_102 : f32 to vector<16x1xf32>
    %291 = arith.divf %289, %290 : vector<16x1xf32>
    %292 = vector.broadcast %291 : vector<16x1xf32> to vector<16x32xf32>
    %293 = arith.subf %285, %292 : vector<16x32xf32>
    %294 = arith.mulf %293, %293 : vector<16x32xf32>
    %cst_103 = arith.constant dense<0.000000e+00> : vector<16xf32>
    %295 = vector.multi_reduction <add>, %294, %cst_103 [1] : vector<16x32xf32> to vector<16xf32>
    %296 = vector.shape_cast %295 : vector<16xf32> to vector<16x1xf32>
    %cst_104 = arith.constant 0.0322580636 : f32
    %297 = vector.broadcast %cst_104 : f32 to vector<16x1xf32>
    %298 = arith.mulf %296, %297 : vector<16x1xf32>
    %299 = math.sqrt %298 : vector<16x1xf32>
    %cst_105 = arith.constant 9.99999997E-7 : f32
    %300 = vector.broadcast %cst_105 : f32 to vector<16x1xf32>
    %301 = arith.addf %299, %300 : vector<16x1xf32>
    %302 = tpu.reciprocal %301 {approx = true} : vector<16x1xf32> -> vector<16x1xf32>
    %303 = vector.broadcast %302 : vector<16x1xf32> to vector<16x32xf32>
    %304 = arith.mulf %293, %303 : vector<16x32xf32>
    %305 = vector.broadcast %286 : vector<1x32xf32> to vector<16x32xf32>
    %306 = arith.mulf %304, %305 : vector<16x32xf32>
    %307 = vector.broadcast %287 : vector<1x32xf32> to vector<16x32xf32>
    %308 = arith.addf %306, %307 : vector<16x32xf32>
    %c0_106 = arith.constant 0 : index
    %c0_107 = arith.constant 0 : index
    %c0_108 = arith.constant 0 : index
    %309 = vector.load %arg14[%c0_106, %c0_107, %c0_108] : memref<2x32x64xf32, #tpu.memory_space<vmem>>, vector<1x32x64xf32>
    %310 = vector.shape_cast %309 : vector<1x32x64xf32> to vector<32x64xf32>
    %cst_109 = arith.constant dense<0.000000e+00> : vector<16x64xf32>
    %311 = tpu.matmul %308, %310, %cst_109 {dimension_numbers = #tpu.dot_dimension_numbers<[1], [0], [0], [1], [0, 0, 1, 1], [], []>} : vector<16x32xf32>, vector<32x64xf32>, vector<16x64xf32> -> vector<16x64xf32>
    %c0_110 = arith.constant 0 : index
    %c0_111 = arith.constant 0 : index
    %c0_112 = arith.constant 0 : index
    %312 = vector.load %arg15[%c0_110, %c0_111, %c0_112] : memref<2x1x64xf32, #tpu.memory_space<vmem>>, vector<1x1x64xf32>
    %313 = vector.shape_cast %312 : vector<1x1x64xf32> to vector<1x64xf32>
    %314 = vector.broadcast %313 : vector<1x64xf32> to vector<16x64xf32>
    %315 = arith.addf %311, %314 : vector<16x64xf32>
    %cst_113 = arith.constant 0.000000e+00 : f32
    %316 = vector.broadcast %cst_113 : f32 to vector<16x64xf32>
    %317 = arith.maximumf %315, %316 : vector<16x64xf32>
    %c0_114 = arith.constant 0 : index
    %c0_115 = arith.constant 0 : index
    %c0_116 = arith.constant 0 : index
    %318 = vector.load %arg16[%c0_114, %c0_115, %c0_116] : memref<2x64x32xf32, #tpu.memory_space<vmem>>, vector<1x64x32xf32>
    %319 = vector.shape_cast %318 : vector<1x64x32xf32> to vector<64x32xf32>
    %cst_117 = arith.constant dense<0.000000e+00> : vector<16x32xf32>
    %320 = tpu.matmul %317, %319, %cst_117 {dimension_numbers = #tpu.dot_dimension_numbers<[1], [0], [0], [1], [0, 0, 1, 1], [], []>} : vector<16x64xf32>, vector<64x32xf32>, vector<16x32xf32> -> vector<16x32xf32>
    %321 = arith.addf %285, %320 : vector<16x32xf32>
    %c0_118 = arith.constant 0 : index
    %c0_119 = arith.constant 0 : index
    %c0_120 = arith.constant 0 : index
    %322 = vector.load %arg17[%c0_118, %c0_119, %c0_120] : memref<2x1x32xf32, #tpu.memory_space<vmem>>, vector<1x1x32xf32>
    %323 = vector.shape_cast %322 : vector<1x1x32xf32> to vector<1x32xf32>
    %324 = vector.broadcast %323 : vector<1x32xf32> to vector<16x32xf32>
    %325 = arith.addf %321, %324 : vector<16x32xf32>
    %c1 = arith.constant 1 : index
    %c0_121 = arith.constant 0 : index
    %c0_122 = arith.constant 0 : index
    %326 = vector.load %arg18[%c1, %c0_121, %c0_122] : memref<2x3x32xf32, #tpu.memory_space<vmem>>, vector<1x3x32xf32>
    %327 = vector.shape_cast %326 : vector<1x3x32xf32> to vector<3x32xf32>
    %c1_123 = arith.constant 1 : index
    %c0_124 = arith.constant 0 : index
    %c0_125 = arith.constant 0 : index
    %328 = vector.load %arg19[%c1_123, %c0_124, %c0_125] : memref<2x3x32xf32, #tpu.memory_space<vmem>>, vector<1x3x32xf32>
    %329 = vector.shape_cast %328 : vector<1x3x32xf32> to vector<3x32xf32>
    %330 = vector.extract_strided_slice %327 {offsets = [0, 0], sizes = [1, 32], strides = [1, 1]} : vector<3x32xf32> to vector<1x32xf32>
    %331 = vector.extract_strided_slice %329 {offsets = [0, 0], sizes = [1, 32], strides = [1, 1]} : vector<3x32xf32> to vector<1x32xf32>
    %cst_126 = arith.constant dense<0.000000e+00> : vector<16xf32>
    %332 = vector.multi_reduction <add>, %325, %cst_126 [1] : vector<16x32xf32> to vector<16xf32>
    %333 = vector.shape_cast %332 : vector<16xf32> to vector<16x1xf32>
    %cst_127 = arith.constant 3.200000e+01 : f32
    %334 = vector.broadcast %cst_127 : f32 to vector<16x1xf32>
    %335 = arith.divf %333, %334 : vector<16x1xf32>
    %336 = vector.broadcast %335 : vector<16x1xf32> to vector<16x32xf32>
    %337 = arith.subf %325, %336 : vector<16x32xf32>
    %338 = arith.mulf %337, %337 : vector<16x32xf32>
    %cst_128 = arith.constant dense<0.000000e+00> : vector<16xf32>
    %339 = vector.multi_reduction <add>, %338, %cst_128 [1] : vector<16x32xf32> to vector<16xf32>
    %340 = vector.shape_cast %339 : vector<16xf32> to vector<16x1xf32>
    %cst_129 = arith.constant 0.0322580636 : f32
    %341 = vector.broadcast %cst_129 : f32 to vector<16x1xf32>
    %342 = arith.mulf %340, %341 : vector<16x1xf32>
    %343 = math.sqrt %342 : vector<16x1xf32>
    %cst_130 = arith.constant 9.99999997E-7 : f32
    %344 = vector.broadcast %cst_130 : f32 to vector<16x1xf32>
    %345 = arith.addf %343, %344 : vector<16x1xf32>
    %346 = tpu.reciprocal %345 {approx = true} : vector<16x1xf32> -> vector<16x1xf32>
    %347 = vector.broadcast %346 : vector<16x1xf32> to vector<16x32xf32>
    %348 = arith.mulf %337, %347 : vector<16x32xf32>
    %349 = vector.broadcast %330 : vector<1x32xf32> to vector<16x32xf32>
    %350 = arith.mulf %348, %349 : vector<16x32xf32>
    %351 = vector.broadcast %331 : vector<1x32xf32> to vector<16x32xf32>
    %352 = arith.addf %350, %351 : vector<16x32xf32>
    %c1_131 = arith.constant 1 : index
    %c0_132 = arith.constant 0 : index
    %c0_133 = arith.constant 0 : index
    %353 = vector.load %arg4[%c1_131, %c0_132, %c0_133] : memref<2x32x96xf32, #tpu.memory_space<vmem>>, vector<1x32x96xf32>
    %354 = vector.shape_cast %353 : vector<1x32x96xf32> to vector<32x96xf32>
    %cst_134 = arith.constant dense<0.000000e+00> : vector<16x96xf32>
    %355 = tpu.matmul %352, %354, %cst_134 {dimension_numbers = #tpu.dot_dimension_numbers<[1], [0], [0], [1], [0, 0, 1, 1], [], []>} : vector<16x32xf32>, vector<32x96xf32>, vector<16x96xf32> -> vector<16x96xf32>
    %c1_135 = arith.constant 1 : index
    %c0_136 = arith.constant 0 : index
    %c0_137 = arith.constant 0 : index
    %356 = vector.load %arg5[%c1_135, %c0_136, %c0_137] : memref<2x1x96xf32, #tpu.memory_space<vmem>>, vector<1x1x96xf32>
    %357 = vector.shape_cast %356 : vector<1x1x96xf32> to vector<1x96xf32>
    %358 = vector.broadcast %357 : vector<1x96xf32> to vector<16x96xf32>
    %359 = arith.addf %355, %358 : vector<16x96xf32>
    %360 = vector.extract_strided_slice %359 {offsets = [0, 0], sizes = [16, 32], strides = [1, 1]} : vector<16x96xf32> to vector<16x32xf32>
    %361 = vector.extract_strided_slice %359 {offsets = [0, 32], sizes = [16, 32], strides = [1, 1]} : vector<16x96xf32> to vector<16x32xf32>
    %362 = vector.extract_strided_slice %359 {offsets = [0, 64], sizes = [16, 32], strides = [1, 1]} : vector<16x96xf32> to vector<16x32xf32>
    %c1_138 = arith.constant 1 : index
    %c0_139 = arith.constant 0 : index
    %c0_140 = arith.constant 0 : index
    %363 = vector.load %arg6[%c1_138, %c0_139, %c0_140] : memref<2x32x32xf32, #tpu.memory_space<vmem>>, vector<1x32x32xf32>
    %364 = vector.shape_cast %363 : vector<1x32x32xf32> to vector<32x32xf32>
    %c1_141 = arith.constant 1 : index
    %c0_142 = arith.constant 0 : index
    %c0_143 = arith.constant 0 : index
    %365 = vector.load %arg7[%c1_141, %c0_142, %c0_143] : memref<2x1x32xf32, #tpu.memory_space<vmem>>, vector<1x1x32xf32>
    %366 = vector.shape_cast %365 : vector<1x1x32xf32> to vector<1x32xf32>
    %367 = vector.broadcast %366 : vector<1x32xf32> to vector<16x32xf32>
    %368 = arith.addf %325, %367 : vector<16x32xf32>
    %369 = vector.extract_strided_slice %360 {offsets = [0, 0], sizes = [16, 8], strides = [1, 1]} : vector<16x32xf32> to vector<16x8xf32>
    %370 = vector.shape_cast %369 : vector<16x8xf32> to vector<2x8x8xf32>
    %371 = vector.extract_strided_slice %361 {offsets = [0, 0], sizes = [16, 8], strides = [1, 1]} : vector<16x32xf32> to vector<16x8xf32>
    %372 = vector.shape_cast %371 : vector<16x8xf32> to vector<2x8x8xf32>
    %373 = vector.extract_strided_slice %362 {offsets = [0, 0], sizes = [16, 8], strides = [1, 1]} : vector<16x32xf32> to vector<16x8xf32>
    %374 = vector.shape_cast %373 : vector<16x8xf32> to vector<2x8x8xf32>
    "tpu.trace_start"() <{level = 10 : i32, message = "bqd,bkd->bqk"}> : () -> ()
    %cst_144 = arith.constant dense<0.000000e+00> : vector<2x8x8xf32>
    %375 = tpu.matmul %370, %372, %cst_144 {dimension_numbers = #tpu.dot_dimension_numbers<[2], [2], [1], [1], [0, 0, 0, 1, 1, 1], [0], [0]>} : vector<2x8x8xf32>, vector<2x8x8xf32>, vector<2x8x8xf32> -> vector<2x8x8xf32>
    "tpu.trace_stop"() : () -> ()
    %376 = arith.addf %375, %4 : vector<2x8x8xf32>
    %cst_145 = arith.constant dense<0xFF800000> : vector<2x8xf32>
    %377 = vector.multi_reduction <maximumf>, %376, %cst_145 [2] : vector<2x8x8xf32> to vector<2x8xf32>
    %378 = vector.shape_cast %377 : vector<2x8xf32> to vector<2x8x1xf32>
    %379 = vector.broadcast %378 : vector<2x8x1xf32> to vector<2x8x8xf32>
    %380 = arith.subf %376, %379 : vector<2x8x8xf32>
    %381 = math.exp %380 : vector<2x8x8xf32>
    %cst_146 = arith.constant dense<0.000000e+00> : vector<2x8xf32>
    %382 = vector.multi_reduction <add>, %381, %cst_146 [2] : vector<2x8x8xf32> to vector<2x8xf32>
    %383 = vector.shape_cast %382 : vector<2x8xf32> to vector<2x8x1xf32>
    %384 = tpu.reciprocal %383 {approx = true} : vector<2x8x1xf32> -> vector<2x8x1xf32>
    %385 = vector.broadcast %384 : vector<2x8x1xf32> to vector<2x8x8xf32>
    %386 = arith.mulf %381, %385 : vector<2x8x8xf32>
    "tpu.trace_start"() <{level = 10 : i32, message = "bqk,bkd->bqd"}> : () -> ()
    %cst_147 = arith.constant dense<0.000000e+00> : vector<2x8x8xf32>
    %387 = tpu.matmul %386, %374, %cst_147 {dimension_numbers = #tpu.dot_dimension_numbers<[2], [1], [1], [2], [0, 0, 0, 1, 1, 2], [0], [0]>} : vector<2x8x8xf32>, vector<2x8x8xf32>, vector<2x8x8xf32> -> vector<2x8x8xf32>
    "tpu.trace_stop"() : () -> ()
    %388 = vector.shape_cast %387 : vector<2x8x8xf32> to vector<16x8xf32>
    %389 = vector.extract_strided_slice %364 {offsets = [0, 0], sizes = [8, 32], strides = [1, 1]} : vector<32x32xf32> to vector<8x32xf32>
    %cst_148 = arith.constant dense<0.000000e+00> : vector<16x32xf32>
    %390 = tpu.matmul %388, %389, %cst_148 {dimension_numbers = #tpu.dot_dimension_numbers<[1], [0], [0], [1], [0, 0, 1, 1], [], []>} : vector<16x8xf32>, vector<8x32xf32>, vector<16x32xf32> -> vector<16x32xf32>
    %391 = arith.addf %368, %390 : vector<16x32xf32>
    %392 = vector.extract_strided_slice %360 {offsets = [0, 8], sizes = [16, 8], strides = [1, 1]} : vector<16x32xf32> to vector<16x8xf32>
    %393 = vector.shape_cast %392 : vector<16x8xf32> to vector<2x8x8xf32>
    %394 = vector.extract_strided_slice %361 {offsets = [0, 8], sizes = [16, 8], strides = [1, 1]} : vector<16x32xf32> to vector<16x8xf32>
    %395 = vector.shape_cast %394 : vector<16x8xf32> to vector<2x8x8xf32>
    %396 = vector.extract_strided_slice %362 {offsets = [0, 8], sizes = [16, 8], strides = [1, 1]} : vector<16x32xf32> to vector<16x8xf32>
    %397 = vector.shape_cast %396 : vector<16x8xf32> to vector<2x8x8xf32>
    "tpu.trace_start"() <{level = 10 : i32, message = "bqd,bkd->bqk"}> : () -> ()
    %cst_149 = arith.constant dense<0.000000e+00> : vector<2x8x8xf32>
    %398 = tpu.matmul %393, %395, %cst_149 {dimension_numbers = #tpu.dot_dimension_numbers<[2], [2], [1], [1], [0, 0, 0, 1, 1, 1], [0], [0]>} : vector<2x8x8xf32>, vector<2x8x8xf32>, vector<2x8x8xf32> -> vector<2x8x8xf32>
    "tpu.trace_stop"() : () -> ()
    %399 = arith.addf %398, %4 : vector<2x8x8xf32>
    %cst_150 = arith.constant dense<0xFF800000> : vector<2x8xf32>
    %400 = vector.multi_reduction <maximumf>, %399, %cst_150 [2] : vector<2x8x8xf32> to vector<2x8xf32>
    %401 = vector.shape_cast %400 : vector<2x8xf32> to vector<2x8x1xf32>
    %402 = vector.broadcast %401 : vector<2x8x1xf32> to vector<2x8x8xf32>
    %403 = arith.subf %399, %402 : vector<2x8x8xf32>
    %404 = math.exp %403 : vector<2x8x8xf32>
    %cst_151 = arith.constant dense<0.000000e+00> : vector<2x8xf32>
    %405 = vector.multi_reduction <add>, %404, %cst_151 [2] : vector<2x8x8xf32> to vector<2x8xf32>
    %406 = vector.shape_cast %405 : vector<2x8xf32> to vector<2x8x1xf32>
    %407 = tpu.reciprocal %406 {approx = true} : vector<2x8x1xf32> -> vector<2x8x1xf32>
    %408 = vector.broadcast %407 : vector<2x8x1xf32> to vector<2x8x8xf32>
    %409 = arith.mulf %404, %408 : vector<2x8x8xf32>
    "tpu.trace_start"() <{level = 10 : i32, message = "bqk,bkd->bqd"}> : () -> ()
    %cst_152 = arith.constant dense<0.000000e+00> : vector<2x8x8xf32>
    %410 = tpu.matmul %409, %397, %cst_152 {dimension_numbers = #tpu.dot_dimension_numbers<[2], [1], [1], [2], [0, 0, 0, 1, 1, 2], [0], [0]>} : vector<2x8x8xf32>, vector<2x8x8xf32>, vector<2x8x8xf32> -> vector<2x8x8xf32>
    "tpu.trace_stop"() : () -> ()
    %411 = vector.shape_cast %410 : vector<2x8x8xf32> to vector<16x8xf32>
    %412 = vector.extract_strided_slice %364 {offsets = [8, 0], sizes = [8, 32], strides = [1, 1]} : vector<32x32xf32> to vector<8x32xf32>
    %cst_153 = arith.constant dense<0.000000e+00> : vector<16x32xf32>
    %413 = tpu.matmul %411, %412, %cst_153 {dimension_numbers = #tpu.dot_dimension_numbers<[1], [0], [0], [1], [0, 0, 1, 1], [], []>} : vector<16x8xf32>, vector<8x32xf32>, vector<16x32xf32> -> vector<16x32xf32>
    %414 = arith.addf %391, %413 : vector<16x32xf32>
    %415 = vector.extract_strided_slice %360 {offsets = [0, 16], sizes = [16, 8], strides = [1, 1]} : vector<16x32xf32> to vector<16x8xf32>
    %416 = vector.shape_cast %415 : vector<16x8xf32> to vector<2x8x8xf32>
    %417 = vector.extract_strided_slice %361 {offsets = [0, 16], sizes = [16, 8], strides = [1, 1]} : vector<16x32xf32> to vector<16x8xf32>
    %418 = vector.shape_cast %417 : vector<16x8xf32> to vector<2x8x8xf32>
    %419 = vector.extract_strided_slice %362 {offsets = [0, 16], sizes = [16, 8], strides = [1, 1]} : vector<16x32xf32> to vector<16x8xf32>
    %420 = vector.shape_cast %419 : vector<16x8xf32> to vector<2x8x8xf32>
    "tpu.trace_start"() <{level = 10 : i32, message = "bqd,bkd->bqk"}> : () -> ()
    %cst_154 = arith.constant dense<0.000000e+00> : vector<2x8x8xf32>
    %421 = tpu.matmul %416, %418, %cst_154 {dimension_numbers = #tpu.dot_dimension_numbers<[2], [2], [1], [1], [0, 0, 0, 1, 1, 1], [0], [0]>} : vector<2x8x8xf32>, vector<2x8x8xf32>, vector<2x8x8xf32> -> vector<2x8x8xf32>
    "tpu.trace_stop"() : () -> ()
    %422 = arith.addf %421, %4 : vector<2x8x8xf32>
    %cst_155 = arith.constant dense<0xFF800000> : vector<2x8xf32>
    %423 = vector.multi_reduction <maximumf>, %422, %cst_155 [2] : vector<2x8x8xf32> to vector<2x8xf32>
    %424 = vector.shape_cast %423 : vector<2x8xf32> to vector<2x8x1xf32>
    %425 = vector.broadcast %424 : vector<2x8x1xf32> to vector<2x8x8xf32>
    %426 = arith.subf %422, %425 : vector<2x8x8xf32>
    %427 = math.exp %426 : vector<2x8x8xf32>
    %cst_156 = arith.constant dense<0.000000e+00> : vector<2x8xf32>
    %428 = vector.multi_reduction <add>, %427, %cst_156 [2] : vector<2x8x8xf32> to vector<2x8xf32>
    %429 = vector.shape_cast %428 : vector<2x8xf32> to vector<2x8x1xf32>
    %430 = tpu.reciprocal %429 {approx = true} : vector<2x8x1xf32> -> vector<2x8x1xf32>
    %431 = vector.broadcast %430 : vector<2x8x1xf32> to vector<2x8x8xf32>
    %432 = arith.mulf %427, %431 : vector<2x8x8xf32>
    "tpu.trace_start"() <{level = 10 : i32, message = "bqk,bkd->bqd"}> : () -> ()
    %cst_157 = arith.constant dense<0.000000e+00> : vector<2x8x8xf32>
    %433 = tpu.matmul %432, %420, %cst_157 {dimension_numbers = #tpu.dot_dimension_numbers<[2], [1], [1], [2], [0, 0, 0, 1, 1, 2], [0], [0]>} : vector<2x8x8xf32>, vector<2x8x8xf32>, vector<2x8x8xf32> -> vector<2x8x8xf32>
    "tpu.trace_stop"() : () -> ()
    %434 = vector.shape_cast %433 : vector<2x8x8xf32> to vector<16x8xf32>
    %435 = vector.extract_strided_slice %364 {offsets = [16, 0], sizes = [8, 32], strides = [1, 1]} : vector<32x32xf32> to vector<8x32xf32>
    %cst_158 = arith.constant dense<0.000000e+00> : vector<16x32xf32>
    %436 = tpu.matmul %434, %435, %cst_158 {dimension_numbers = #tpu.dot_dimension_numbers<[1], [0], [0], [1], [0, 0, 1, 1], [], []>} : vector<16x8xf32>, vector<8x32xf32>, vector<16x32xf32> -> vector<16x32xf32>
    %437 = arith.addf %414, %436 : vector<16x32xf32>
    %438 = vector.extract_strided_slice %360 {offsets = [0, 24], sizes = [16, 8], strides = [1, 1]} : vector<16x32xf32> to vector<16x8xf32>
    %439 = vector.shape_cast %438 : vector<16x8xf32> to vector<2x8x8xf32>
    %440 = vector.extract_strided_slice %361 {offsets = [0, 24], sizes = [16, 8], strides = [1, 1]} : vector<16x32xf32> to vector<16x8xf32>
    %441 = vector.shape_cast %440 : vector<16x8xf32> to vector<2x8x8xf32>
    %442 = vector.extract_strided_slice %362 {offsets = [0, 24], sizes = [16, 8], strides = [1, 1]} : vector<16x32xf32> to vector<16x8xf32>
    %443 = vector.shape_cast %442 : vector<16x8xf32> to vector<2x8x8xf32>
    "tpu.trace_start"() <{level = 10 : i32, message = "bqd,bkd->bqk"}> : () -> ()
    %cst_159 = arith.constant dense<0.000000e+00> : vector<2x8x8xf32>
    %444 = tpu.matmul %439, %441, %cst_159 {dimension_numbers = #tpu.dot_dimension_numbers<[2], [2], [1], [1], [0, 0, 0, 1, 1, 1], [0], [0]>} : vector<2x8x8xf32>, vector<2x8x8xf32>, vector<2x8x8xf32> -> vector<2x8x8xf32>
    "tpu.trace_stop"() : () -> ()
    %445 = arith.addf %444, %4 : vector<2x8x8xf32>
    %cst_160 = arith.constant dense<0xFF800000> : vector<2x8xf32>
    %446 = vector.multi_reduction <maximumf>, %445, %cst_160 [2] : vector<2x8x8xf32> to vector<2x8xf32>
    %447 = vector.shape_cast %446 : vector<2x8xf32> to vector<2x8x1xf32>
    %448 = vector.broadcast %447 : vector<2x8x1xf32> to vector<2x8x8xf32>
    %449 = arith.subf %445, %448 : vector<2x8x8xf32>
    %450 = math.exp %449 : vector<2x8x8xf32>
    %cst_161 = arith.constant dense<0.000000e+00> : vector<2x8xf32>
    %451 = vector.multi_reduction <add>, %450, %cst_161 [2] : vector<2x8x8xf32> to vector<2x8xf32>
    %452 = vector.shape_cast %451 : vector<2x8xf32> to vector<2x8x1xf32>
    %453 = tpu.reciprocal %452 {approx = true} : vector<2x8x1xf32> -> vector<2x8x1xf32>
    %454 = vector.broadcast %453 : vector<2x8x1xf32> to vector<2x8x8xf32>
    %455 = arith.mulf %450, %454 : vector<2x8x8xf32>
    "tpu.trace_start"() <{level = 10 : i32, message = "bqk,bkd->bqd"}> : () -> ()
    %cst_162 = arith.constant dense<0.000000e+00> : vector<2x8x8xf32>
    %456 = tpu.matmul %455, %443, %cst_162 {dimension_numbers = #tpu.dot_dimension_numbers<[2], [1], [1], [2], [0, 0, 0, 1, 1, 2], [0], [0]>} : vector<2x8x8xf32>, vector<2x8x8xf32>, vector<2x8x8xf32> -> vector<2x8x8xf32>
    "tpu.trace_stop"() : () -> ()
    %457 = vector.shape_cast %456 : vector<2x8x8xf32> to vector<16x8xf32>
    %458 = vector.extract_strided_slice %364 {offsets = [24, 0], sizes = [8, 32], strides = [1, 1]} : vector<32x32xf32> to vector<8x32xf32>
    %cst_163 = arith.constant dense<0.000000e+00> : vector<16x32xf32>
    %459 = tpu.matmul %457, %458, %cst_163 {dimension_numbers = #tpu.dot_dimension_numbers<[1], [0], [0], [1], [0, 0, 1, 1], [], []>} : vector<16x8xf32>, vector<8x32xf32>, vector<16x32xf32> -> vector<16x32xf32>
    %460 = arith.addf %437, %459 : vector<16x32xf32>
    %461 = vector.extract_strided_slice %327 {offsets = [1, 0], sizes = [1, 32], strides = [1, 1]} : vector<3x32xf32> to vector<1x32xf32>
    %462 = vector.extract_strided_slice %329 {offsets = [1, 0], sizes = [1, 32], strides = [1, 1]} : vector<3x32xf32> to vector<1x32xf32>
    %cst_164 = arith.constant dense<0.000000e+00> : vector<16xf32>
    %463 = vector.multi_reduction <add>, %460, %cst_164 [1] : vector<16x32xf32> to vector<16xf32>
    %464 = vector.shape_cast %463 : vector<16xf32> to vector<16x1xf32>
    %cst_165 = arith.constant 3.200000e+01 : f32
    %465 = vector.broadcast %cst_165 : f32 to vector<16x1xf32>
    %466 = arith.divf %464, %465 : vector<16x1xf32>
    %467 = vector.broadcast %466 : vector<16x1xf32> to vector<16x32xf32>
    %468 = arith.subf %460, %467 : vector<16x32xf32>
    %469 = arith.mulf %468, %468 : vector<16x32xf32>
    %cst_166 = arith.constant dense<0.000000e+00> : vector<16xf32>
    %470 = vector.multi_reduction <add>, %469, %cst_166 [1] : vector<16x32xf32> to vector<16xf32>
    %471 = vector.shape_cast %470 : vector<16xf32> to vector<16x1xf32>
    %cst_167 = arith.constant 0.0322580636 : f32
    %472 = vector.broadcast %cst_167 : f32 to vector<16x1xf32>
    %473 = arith.mulf %471, %472 : vector<16x1xf32>
    %474 = math.sqrt %473 : vector<16x1xf32>
    %cst_168 = arith.constant 9.99999997E-7 : f32
    %475 = vector.broadcast %cst_168 : f32 to vector<16x1xf32>
    %476 = arith.addf %474, %475 : vector<16x1xf32>
    %477 = tpu.reciprocal %476 {approx = true} : vector<16x1xf32> -> vector<16x1xf32>
    %478 = vector.broadcast %477 : vector<16x1xf32> to vector<16x32xf32>
    %479 = arith.mulf %468, %478 : vector<16x32xf32>
    %480 = vector.broadcast %461 : vector<1x32xf32> to vector<16x32xf32>
    %481 = arith.mulf %479, %480 : vector<16x32xf32>
    %482 = vector.broadcast %462 : vector<1x32xf32> to vector<16x32xf32>
    %483 = arith.addf %481, %482 : vector<16x32xf32>
    %c1_169 = arith.constant 1 : index
    %c0_170 = arith.constant 0 : index
    %c0_171 = arith.constant 0 : index
    %484 = vector.load %arg8[%c1_169, %c0_170, %c0_171] : memref<2x32x32xf32, #tpu.memory_space<vmem>>, vector<1x32x32xf32>
    %485 = vector.shape_cast %484 : vector<1x32x32xf32> to vector<32x32xf32>
    %cst_172 = arith.constant dense<0.000000e+00> : vector<16x32xf32>
    %486 = tpu.matmul %483, %485, %cst_172 {dimension_numbers = #tpu.dot_dimension_numbers<[1], [0], [0], [1], [0, 0, 1, 1], [], []>} : vector<16x32xf32>, vector<32x32xf32>, vector<16x32xf32> -> vector<16x32xf32>
    %c1_173 = arith.constant 1 : index
    %c0_174 = arith.constant 0 : index
    %c0_175 = arith.constant 0 : index
    %487 = vector.load %arg9[%c1_173, %c0_174, %c0_175] : memref<2x1x32xf32, #tpu.memory_space<vmem>>, vector<1x1x32xf32>
    %488 = vector.shape_cast %487 : vector<1x1x32xf32> to vector<1x32xf32>
    %489 = vector.broadcast %488 : vector<1x32xf32> to vector<16x32xf32>
    %490 = arith.addf %486, %489 : vector<16x32xf32>
    %c1_176 = arith.constant 1 : index
    %c0_177 = arith.constant 0 : index
    %c0_178 = arith.constant 0 : index
    %491 = vector.load %arg10[%c1_176, %c0_177, %c0_178] : memref<2x32x64xf32, #tpu.memory_space<vmem>>, vector<1x32x64xf32>
    %492 = vector.shape_cast %491 : vector<1x32x64xf32> to vector<32x64xf32>
    %cst_179 = arith.constant dense<0.000000e+00> : vector<16x64xf32>
    %493 = tpu.matmul %13, %492, %cst_179 {dimension_numbers = #tpu.dot_dimension_numbers<[1], [0], [0], [1], [0, 0, 1, 1], [], []>} : vector<16x32xf32>, vector<32x64xf32>, vector<16x64xf32> -> vector<16x64xf32>
    %c1_180 = arith.constant 1 : index
    %c0_181 = arith.constant 0 : index
    %c0_182 = arith.constant 0 : index
    %494 = vector.load %arg11[%c1_180, %c0_181, %c0_182] : memref<2x1x64xf32, #tpu.memory_space<vmem>>, vector<1x1x64xf32>
    %495 = vector.shape_cast %494 : vector<1x1x64xf32> to vector<1x64xf32>
    %496 = vector.broadcast %495 : vector<1x64xf32> to vector<16x64xf32>
    %497 = arith.addf %493, %496 : vector<16x64xf32>
    %498 = vector.extract_strided_slice %497 {offsets = [0, 0], sizes = [16, 32], strides = [1, 1]} : vector<16x64xf32> to vector<16x32xf32>
    %499 = vector.extract_strided_slice %497 {offsets = [0, 32], sizes = [16, 32], strides = [1, 1]} : vector<16x64xf32> to vector<16x32xf32>
    %c1_183 = arith.constant 1 : index
    %c0_184 = arith.constant 0 : index
    %c0_185 = arith.constant 0 : index
    %500 = vector.load %arg12[%c1_183, %c0_184, %c0_185] : memref<2x32x32xf32, #tpu.memory_space<vmem>>, vector<1x32x32xf32>
    %501 = vector.shape_cast %500 : vector<1x32x32xf32> to vector<32x32xf32>
    %c1_186 = arith.constant 1 : index
    %c0_187 = arith.constant 0 : index
    %c0_188 = arith.constant 0 : index
    %502 = vector.load %arg13[%c1_186, %c0_187, %c0_188] : memref<2x1x32xf32, #tpu.memory_space<vmem>>, vector<1x1x32xf32>
    %503 = vector.shape_cast %502 : vector<1x1x32xf32> to vector<1x32xf32>
    %504 = vector.broadcast %503 : vector<1x32xf32> to vector<16x32xf32>
    %505 = arith.addf %460, %504 : vector<16x32xf32>
    %506 = vector.extract_strided_slice %490 {offsets = [0, 0], sizes = [16, 8], strides = [1, 1]} : vector<16x32xf32> to vector<16x8xf32>
    %507 = vector.shape_cast %506 : vector<16x8xf32> to vector<2x8x8xf32>
    %508 = vector.extract_strided_slice %498 {offsets = [0, 0], sizes = [16, 8], strides = [1, 1]} : vector<16x32xf32> to vector<16x8xf32>
    %509 = vector.shape_cast %508 : vector<16x8xf32> to vector<2x8x8xf32>
    %510 = vector.extract_strided_slice %499 {offsets = [0, 0], sizes = [16, 8], strides = [1, 1]} : vector<16x32xf32> to vector<16x8xf32>
    %511 = vector.shape_cast %510 : vector<16x8xf32> to vector<2x8x8xf32>
    "tpu.trace_start"() <{level = 10 : i32, message = "bqd,bkd->bqk"}> : () -> ()
    %cst_189 = arith.constant dense<0.000000e+00> : vector<2x8x8xf32>
    %512 = tpu.matmul %507, %509, %cst_189 {dimension_numbers = #tpu.dot_dimension_numbers<[2], [2], [1], [1], [0, 0, 0, 1, 1, 1], [0], [0]>} : vector<2x8x8xf32>, vector<2x8x8xf32>, vector<2x8x8xf32> -> vector<2x8x8xf32>
    "tpu.trace_stop"() : () -> ()
    %513 = arith.addf %512, %11 : vector<2x8x8xf32>
    %cst_190 = arith.constant dense<0xFF800000> : vector<2x8xf32>
    %514 = vector.multi_reduction <maximumf>, %513, %cst_190 [2] : vector<2x8x8xf32> to vector<2x8xf32>
    %515 = vector.shape_cast %514 : vector<2x8xf32> to vector<2x8x1xf32>
    %516 = vector.broadcast %515 : vector<2x8x1xf32> to vector<2x8x8xf32>
    %517 = arith.subf %513, %516 : vector<2x8x8xf32>
    %518 = math.exp %517 : vector<2x8x8xf32>
    %cst_191 = arith.constant dense<0.000000e+00> : vector<2x8xf32>
    %519 = vector.multi_reduction <add>, %518, %cst_191 [2] : vector<2x8x8xf32> to vector<2x8xf32>
    %520 = vector.shape_cast %519 : vector<2x8xf32> to vector<2x8x1xf32>
    %521 = tpu.reciprocal %520 {approx = true} : vector<2x8x1xf32> -> vector<2x8x1xf32>
    %522 = vector.broadcast %521 : vector<2x8x1xf32> to vector<2x8x8xf32>
    %523 = arith.mulf %518, %522 : vector<2x8x8xf32>
    "tpu.trace_start"() <{level = 10 : i32, message = "bqk,bkd->bqd"}> : () -> ()
    %cst_192 = arith.constant dense<0.000000e+00> : vector<2x8x8xf32>
    %524 = tpu.matmul %523, %511, %cst_192 {dimension_numbers = #tpu.dot_dimension_numbers<[2], [1], [1], [2], [0, 0, 0, 1, 1, 2], [0], [0]>} : vector<2x8x8xf32>, vector<2x8x8xf32>, vector<2x8x8xf32> -> vector<2x8x8xf32>
    "tpu.trace_stop"() : () -> ()
    %525 = vector.shape_cast %524 : vector<2x8x8xf32> to vector<16x8xf32>
    %526 = vector.extract_strided_slice %501 {offsets = [0, 0], sizes = [8, 32], strides = [1, 1]} : vector<32x32xf32> to vector<8x32xf32>
    %cst_193 = arith.constant dense<0.000000e+00> : vector<16x32xf32>
    %527 = tpu.matmul %525, %526, %cst_193 {dimension_numbers = #tpu.dot_dimension_numbers<[1], [0], [0], [1], [0, 0, 1, 1], [], []>} : vector<16x8xf32>, vector<8x32xf32>, vector<16x32xf32> -> vector<16x32xf32>
    %528 = arith.addf %505, %527 : vector<16x32xf32>
    %529 = vector.extract_strided_slice %490 {offsets = [0, 8], sizes = [16, 8], strides = [1, 1]} : vector<16x32xf32> to vector<16x8xf32>
    %530 = vector.shape_cast %529 : vector<16x8xf32> to vector<2x8x8xf32>
    %531 = vector.extract_strided_slice %498 {offsets = [0, 8], sizes = [16, 8], strides = [1, 1]} : vector<16x32xf32> to vector<16x8xf32>
    %532 = vector.shape_cast %531 : vector<16x8xf32> to vector<2x8x8xf32>
    %533 = vector.extract_strided_slice %499 {offsets = [0, 8], sizes = [16, 8], strides = [1, 1]} : vector<16x32xf32> to vector<16x8xf32>
    %534 = vector.shape_cast %533 : vector<16x8xf32> to vector<2x8x8xf32>
    "tpu.trace_start"() <{level = 10 : i32, message = "bqd,bkd->bqk"}> : () -> ()
    %cst_194 = arith.constant dense<0.000000e+00> : vector<2x8x8xf32>
    %535 = tpu.matmul %530, %532, %cst_194 {dimension_numbers = #tpu.dot_dimension_numbers<[2], [2], [1], [1], [0, 0, 0, 1, 1, 1], [0], [0]>} : vector<2x8x8xf32>, vector<2x8x8xf32>, vector<2x8x8xf32> -> vector<2x8x8xf32>
    "tpu.trace_stop"() : () -> ()
    %536 = arith.addf %535, %11 : vector<2x8x8xf32>
    %cst_195 = arith.constant dense<0xFF800000> : vector<2x8xf32>
    %537 = vector.multi_reduction <maximumf>, %536, %cst_195 [2] : vector<2x8x8xf32> to vector<2x8xf32>
    %538 = vector.shape_cast %537 : vector<2x8xf32> to vector<2x8x1xf32>
    %539 = vector.broadcast %538 : vector<2x8x1xf32> to vector<2x8x8xf32>
    %540 = arith.subf %536, %539 : vector<2x8x8xf32>
    %541 = math.exp %540 : vector<2x8x8xf32>
    %cst_196 = arith.constant dense<0.000000e+00> : vector<2x8xf32>
    %542 = vector.multi_reduction <add>, %541, %cst_196 [2] : vector<2x8x8xf32> to vector<2x8xf32>
    %543 = vector.shape_cast %542 : vector<2x8xf32> to vector<2x8x1xf32>
    %544 = tpu.reciprocal %543 {approx = true} : vector<2x8x1xf32> -> vector<2x8x1xf32>
    %545 = vector.broadcast %544 : vector<2x8x1xf32> to vector<2x8x8xf32>
    %546 = arith.mulf %541, %545 : vector<2x8x8xf32>
    "tpu.trace_start"() <{level = 10 : i32, message = "bqk,bkd->bqd"}> : () -> ()
    %cst_197 = arith.constant dense<0.000000e+00> : vector<2x8x8xf32>
    %547 = tpu.matmul %546, %534, %cst_197 {dimension_numbers = #tpu.dot_dimension_numbers<[2], [1], [1], [2], [0, 0, 0, 1, 1, 2], [0], [0]>} : vector<2x8x8xf32>, vector<2x8x8xf32>, vector<2x8x8xf32> -> vector<2x8x8xf32>
    "tpu.trace_stop"() : () -> ()
    %548 = vector.shape_cast %547 : vector<2x8x8xf32> to vector<16x8xf32>
    %549 = vector.extract_strided_slice %501 {offsets = [8, 0], sizes = [8, 32], strides = [1, 1]} : vector<32x32xf32> to vector<8x32xf32>
    %cst_198 = arith.constant dense<0.000000e+00> : vector<16x32xf32>
    %550 = tpu.matmul %548, %549, %cst_198 {dimension_numbers = #tpu.dot_dimension_numbers<[1], [0], [0], [1], [0, 0, 1, 1], [], []>} : vector<16x8xf32>, vector<8x32xf32>, vector<16x32xf32> -> vector<16x32xf32>
    %551 = arith.addf %528, %550 : vector<16x32xf32>
    %552 = vector.extract_strided_slice %490 {offsets = [0, 16], sizes = [16, 8], strides = [1, 1]} : vector<16x32xf32> to vector<16x8xf32>
    %553 = vector.shape_cast %552 : vector<16x8xf32> to vector<2x8x8xf32>
    %554 = vector.extract_strided_slice %498 {offsets = [0, 16], sizes = [16, 8], strides = [1, 1]} : vector<16x32xf32> to vector<16x8xf32>
    %555 = vector.shape_cast %554 : vector<16x8xf32> to vector<2x8x8xf32>
    %556 = vector.extract_strided_slice %499 {offsets = [0, 16], sizes = [16, 8], strides = [1, 1]} : vector<16x32xf32> to vector<16x8xf32>
    %557 = vector.shape_cast %556 : vector<16x8xf32> to vector<2x8x8xf32>
    "tpu.trace_start"() <{level = 10 : i32, message = "bqd,bkd->bqk"}> : () -> ()
    %cst_199 = arith.constant dense<0.000000e+00> : vector<2x8x8xf32>
    %558 = tpu.matmul %553, %555, %cst_199 {dimension_numbers = #tpu.dot_dimension_numbers<[2], [2], [1], [1], [0, 0, 0, 1, 1, 1], [0], [0]>} : vector<2x8x8xf32>, vector<2x8x8xf32>, vector<2x8x8xf32> -> vector<2x8x8xf32>
    "tpu.trace_stop"() : () -> ()
    %559 = arith.addf %558, %11 : vector<2x8x8xf32>
    %cst_200 = arith.constant dense<0xFF800000> : vector<2x8xf32>
    %560 = vector.multi_reduction <maximumf>, %559, %cst_200 [2] : vector<2x8x8xf32> to vector<2x8xf32>
    %561 = vector.shape_cast %560 : vector<2x8xf32> to vector<2x8x1xf32>
    %562 = vector.broadcast %561 : vector<2x8x1xf32> to vector<2x8x8xf32>
    %563 = arith.subf %559, %562 : vector<2x8x8xf32>
    %564 = math.exp %563 : vector<2x8x8xf32>
    %cst_201 = arith.constant dense<0.000000e+00> : vector<2x8xf32>
    %565 = vector.multi_reduction <add>, %564, %cst_201 [2] : vector<2x8x8xf32> to vector<2x8xf32>
    %566 = vector.shape_cast %565 : vector<2x8xf32> to vector<2x8x1xf32>
    %567 = tpu.reciprocal %566 {approx = true} : vector<2x8x1xf32> -> vector<2x8x1xf32>
    %568 = vector.broadcast %567 : vector<2x8x1xf32> to vector<2x8x8xf32>
    %569 = arith.mulf %564, %568 : vector<2x8x8xf32>
    "tpu.trace_start"() <{level = 10 : i32, message = "bqk,bkd->bqd"}> : () -> ()
    %cst_202 = arith.constant dense<0.000000e+00> : vector<2x8x8xf32>
    %570 = tpu.matmul %569, %557, %cst_202 {dimension_numbers = #tpu.dot_dimension_numbers<[2], [1], [1], [2], [0, 0, 0, 1, 1, 2], [0], [0]>} : vector<2x8x8xf32>, vector<2x8x8xf32>, vector<2x8x8xf32> -> vector<2x8x8xf32>
    "tpu.trace_stop"() : () -> ()
    %571 = vector.shape_cast %570 : vector<2x8x8xf32> to vector<16x8xf32>
    %572 = vector.extract_strided_slice %501 {offsets = [16, 0], sizes = [8, 32], strides = [1, 1]} : vector<32x32xf32> to vector<8x32xf32>
    %cst_203 = arith.constant dense<0.000000e+00> : vector<16x32xf32>
    %573 = tpu.matmul %571, %572, %cst_203 {dimension_numbers = #tpu.dot_dimension_numbers<[1], [0], [0], [1], [0, 0, 1, 1], [], []>} : vector<16x8xf32>, vector<8x32xf32>, vector<16x32xf32> -> vector<16x32xf32>
    %574 = arith.addf %551, %573 : vector<16x32xf32>
    %575 = vector.extract_strided_slice %490 {offsets = [0, 24], sizes = [16, 8], strides = [1, 1]} : vector<16x32xf32> to vector<16x8xf32>
    %576 = vector.shape_cast %575 : vector<16x8xf32> to vector<2x8x8xf32>
    %577 = vector.extract_strided_slice %498 {offsets = [0, 24], sizes = [16, 8], strides = [1, 1]} : vector<16x32xf32> to vector<16x8xf32>
    %578 = vector.shape_cast %577 : vector<16x8xf32> to vector<2x8x8xf32>
    %579 = vector.extract_strided_slice %499 {offsets = [0, 24], sizes = [16, 8], strides = [1, 1]} : vector<16x32xf32> to vector<16x8xf32>
    %580 = vector.shape_cast %579 : vector<16x8xf32> to vector<2x8x8xf32>
    "tpu.trace_start"() <{level = 10 : i32, message = "bqd,bkd->bqk"}> : () -> ()
    %cst_204 = arith.constant dense<0.000000e+00> : vector<2x8x8xf32>
    %581 = tpu.matmul %576, %578, %cst_204 {dimension_numbers = #tpu.dot_dimension_numbers<[2], [2], [1], [1], [0, 0, 0, 1, 1, 1], [0], [0]>} : vector<2x8x8xf32>, vector<2x8x8xf32>, vector<2x8x8xf32> -> vector<2x8x8xf32>
    "tpu.trace_stop"() : () -> ()
    %582 = arith.addf %581, %11 : vector<2x8x8xf32>
    %cst_205 = arith.constant dense<0xFF800000> : vector<2x8xf32>
    %583 = vector.multi_reduction <maximumf>, %582, %cst_205 [2] : vector<2x8x8xf32> to vector<2x8xf32>
    %584 = vector.shape_cast %583 : vector<2x8xf32> to vector<2x8x1xf32>
    %585 = vector.broadcast %584 : vector<2x8x1xf32> to vector<2x8x8xf32>
    %586 = arith.subf %582, %585 : vector<2x8x8xf32>
    %587 = math.exp %586 : vector<2x8x8xf32>
    %cst_206 = arith.constant dense<0.000000e+00> : vector<2x8xf32>
    %588 = vector.multi_reduction <add>, %587, %cst_206 [2] : vector<2x8x8xf32> to vector<2x8xf32>
    %589 = vector.shape_cast %588 : vector<2x8xf32> to vector<2x8x1xf32>
    %590 = tpu.reciprocal %589 {approx = true} : vector<2x8x1xf32> -> vector<2x8x1xf32>
    %591 = vector.broadcast %590 : vector<2x8x1xf32> to vector<2x8x8xf32>
    %592 = arith.mulf %587, %591 : vector<2x8x8xf32>
    "tpu.trace_start"() <{level = 10 : i32, message = "bqk,bkd->bqd"}> : () -> ()
    %cst_207 = arith.constant dense<0.000000e+00> : vector<2x8x8xf32>
    %593 = tpu.matmul %592, %580, %cst_207 {dimension_numbers = #tpu.dot_dimension_numbers<[2], [1], [1], [2], [0, 0, 0, 1, 1, 2], [0], [0]>} : vector<2x8x8xf32>, vector<2x8x8xf32>, vector<2x8x8xf32> -> vector<2x8x8xf32>
    "tpu.trace_stop"() : () -> ()
    %594 = vector.shape_cast %593 : vector<2x8x8xf32> to vector<16x8xf32>
    %595 = vector.extract_strided_slice %501 {offsets = [24, 0], sizes = [8, 32], strides = [1, 1]} : vector<32x32xf32> to vector<8x32xf32>
    %cst_208 = arith.constant dense<0.000000e+00> : vector<16x32xf32>
    %596 = tpu.matmul %594, %595, %cst_208 {dimension_numbers = #tpu.dot_dimension_numbers<[1], [0], [0], [1], [0, 0, 1, 1], [], []>} : vector<16x8xf32>, vector<8x32xf32>, vector<16x32xf32> -> vector<16x32xf32>
    %597 = arith.addf %574, %596 : vector<16x32xf32>
    %598 = vector.extract_strided_slice %327 {offsets = [2, 0], sizes = [1, 32], strides = [1, 1]} : vector<3x32xf32> to vector<1x32xf32>
    %599 = vector.extract_strided_slice %329 {offsets = [2, 0], sizes = [1, 32], strides = [1, 1]} : vector<3x32xf32> to vector<1x32xf32>
    %cst_209 = arith.constant dense<0.000000e+00> : vector<16xf32>
    %600 = vector.multi_reduction <add>, %597, %cst_209 [1] : vector<16x32xf32> to vector<16xf32>
    %601 = vector.shape_cast %600 : vector<16xf32> to vector<16x1xf32>
    %cst_210 = arith.constant 3.200000e+01 : f32
    %602 = vector.broadcast %cst_210 : f32 to vector<16x1xf32>
    %603 = arith.divf %601, %602 : vector<16x1xf32>
    %604 = vector.broadcast %603 : vector<16x1xf32> to vector<16x32xf32>
    %605 = arith.subf %597, %604 : vector<16x32xf32>
    %606 = arith.mulf %605, %605 : vector<16x32xf32>
    %cst_211 = arith.constant dense<0.000000e+00> : vector<16xf32>
    %607 = vector.multi_reduction <add>, %606, %cst_211 [1] : vector<16x32xf32> to vector<16xf32>
    %608 = vector.shape_cast %607 : vector<16xf32> to vector<16x1xf32>
    %cst_212 = arith.constant 0.0322580636 : f32
    %609 = vector.broadcast %cst_212 : f32 to vector<16x1xf32>
    %610 = arith.mulf %608, %609 : vector<16x1xf32>
    %611 = math.sqrt %610 : vector<16x1xf32>
    %cst_213 = arith.constant 9.99999997E-7 : f32
    %612 = vector.broadcast %cst_213 : f32 to vector<16x1xf32>
    %613 = arith.addf %611, %612 : vector<16x1xf32>
    %614 = tpu.reciprocal %613 {approx = true} : vector<16x1xf32> -> vector<16x1xf32>
    %615 = vector.broadcast %614 : vector<16x1xf32> to vector<16x32xf32>
    %616 = arith.mulf %605, %615 : vector<16x32xf32>
    %617 = vector.broadcast %598 : vector<1x32xf32> to vector<16x32xf32>
    %618 = arith.mulf %616, %617 : vector<16x32xf32>
    %619 = vector.broadcast %599 : vector<1x32xf32> to vector<16x32xf32>
    %620 = arith.addf %618, %619 : vector<16x32xf32>
    %c1_214 = arith.constant 1 : index
    %c0_215 = arith.constant 0 : index
    %c0_216 = arith.constant 0 : index
    %621 = vector.load %arg14[%c1_214, %c0_215, %c0_216] : memref<2x32x64xf32, #tpu.memory_space<vmem>>, vector<1x32x64xf32>
    %622 = vector.shape_cast %621 : vector<1x32x64xf32> to vector<32x64xf32>
    %cst_217 = arith.constant dense<0.000000e+00> : vector<16x64xf32>
    %623 = tpu.matmul %620, %622, %cst_217 {dimension_numbers = #tpu.dot_dimension_numbers<[1], [0], [0], [1], [0, 0, 1, 1], [], []>} : vector<16x32xf32>, vector<32x64xf32>, vector<16x64xf32> -> vector<16x64xf32>
    %c1_218 = arith.constant 1 : index
    %c0_219 = arith.constant 0 : index
    %c0_220 = arith.constant 0 : index
    %624 = vector.load %arg15[%c1_218, %c0_219, %c0_220] : memref<2x1x64xf32, #tpu.memory_space<vmem>>, vector<1x1x64xf32>
    %625 = vector.shape_cast %624 : vector<1x1x64xf32> to vector<1x64xf32>
    %626 = vector.broadcast %625 : vector<1x64xf32> to vector<16x64xf32>
    %627 = arith.addf %623, %626 : vector<16x64xf32>
    %cst_221 = arith.constant 0.000000e+00 : f32
    %628 = vector.broadcast %cst_221 : f32 to vector<16x64xf32>
    %629 = arith.maximumf %627, %628 : vector<16x64xf32>
    %c1_222 = arith.constant 1 : index
    %c0_223 = arith.constant 0 : index
    %c0_224 = arith.constant 0 : index
    %630 = vector.load %arg16[%c1_222, %c0_223, %c0_224] : memref<2x64x32xf32, #tpu.memory_space<vmem>>, vector<1x64x32xf32>
    %631 = vector.shape_cast %630 : vector<1x64x32xf32> to vector<64x32xf32>
    %cst_225 = arith.constant dense<0.000000e+00> : vector<16x32xf32>
    %632 = tpu.matmul %629, %631, %cst_225 {dimension_numbers = #tpu.dot_dimension_numbers<[1], [0], [0], [1], [0, 0, 1, 1], [], []>} : vector<16x64xf32>, vector<64x32xf32>, vector<16x32xf32> -> vector<16x32xf32>
    %633 = arith.addf %597, %632 : vector<16x32xf32>
    %c1_226 = arith.constant 1 : index
    %c0_227 = arith.constant 0 : index
    %c0_228 = arith.constant 0 : index
    %634 = vector.load %arg17[%c1_226, %c0_227, %c0_228] : memref<2x1x32xf32, #tpu.memory_space<vmem>>, vector<1x1x32xf32>
    %635 = vector.shape_cast %634 : vector<1x1x32xf32> to vector<1x32xf32>
    %636 = vector.broadcast %635 : vector<1x32xf32> to vector<16x32xf32>
    %637 = arith.addf %633, %636 : vector<16x32xf32>
    %c0_229 = arith.constant 0 : index
    %c0_230 = arith.constant 0 : index
    %638 = vector.load %arg20[%c0_229, %c0_230] : memref<1x32xf32, #tpu.memory_space<vmem>>, vector<1x32xf32>
    %c0_231 = arith.constant 0 : index
    %c0_232 = arith.constant 0 : index
    %639 = vector.load %arg21[%c0_231, %c0_232] : memref<1x32xf32, #tpu.memory_space<vmem>>, vector<1x32xf32>
    %cst_233 = arith.constant dense<0.000000e+00> : vector<16xf32>
    %640 = vector.multi_reduction <add>, %637, %cst_233 [1] : vector<16x32xf32> to vector<16xf32>
    %641 = vector.shape_cast %640 : vector<16xf32> to vector<16x1xf32>
    %cst_234 = arith.constant 3.200000e+01 : f32
    %642 = vector.broadcast %cst_234 : f32 to vector<16x1xf32>
    %643 = arith.divf %641, %642 : vector<16x1xf32>
    %644 = vector.broadcast %643 : vector<16x1xf32> to vector<16x32xf32>
    %645 = arith.subf %637, %644 : vector<16x32xf32>
    %646 = arith.mulf %645, %645 : vector<16x32xf32>
    %cst_235 = arith.constant dense<0.000000e+00> : vector<16xf32>
    %647 = vector.multi_reduction <add>, %646, %cst_235 [1] : vector<16x32xf32> to vector<16xf32>
    %648 = vector.shape_cast %647 : vector<16xf32> to vector<16x1xf32>
    %cst_236 = arith.constant 0.0322580636 : f32
    %649 = vector.broadcast %cst_236 : f32 to vector<16x1xf32>
    %650 = arith.mulf %648, %649 : vector<16x1xf32>
    %651 = math.sqrt %650 : vector<16x1xf32>
    %cst_237 = arith.constant 9.99999997E-7 : f32
    %652 = vector.broadcast %cst_237 : f32 to vector<16x1xf32>
    %653 = arith.addf %651, %652 : vector<16x1xf32>
    %654 = tpu.reciprocal %653 {approx = true} : vector<16x1xf32> -> vector<16x1xf32>
    %655 = vector.broadcast %654 : vector<16x1xf32> to vector<16x32xf32>
    %656 = arith.mulf %645, %655 : vector<16x32xf32>
    %657 = vector.broadcast %638 : vector<1x32xf32> to vector<16x32xf32>
    %658 = arith.mulf %656, %657 : vector<16x32xf32>
    %659 = vector.broadcast %639 : vector<1x32xf32> to vector<16x32xf32>
    %660 = arith.addf %658, %659 : vector<16x32xf32>
    %c0_238 = arith.constant 0 : index
    %c0_239 = arith.constant 0 : index
    %661 = vector.load %arg22[%c0_238, %c0_239] : memref<16x32xf32, #tpu.memory_space<vmem>>, vector<16x32xf32>
    tpu.vector_store %arg22[%c0_238, %c0_239], %660 {strides = array<i32>} : memref<16x32xf32, #tpu.memory_space<vmem>>, vector<16x32xf32>,
    return
  }
}

</mosaic_0001>

<llo_original>
// kernel: decoder_forward.1
$region0: #{decoder_forward.1}
  #allocation0 [shape = 'u32[]', space=smem, size = 0x4, offset = 0x4, fixed_abs, tag = 'smem constant byte address 0x4 - core index']
  #allocation1 [shape = 'u32[144,128]{1,0:T(1,128)}', space=vmem, size = 0x12000, scoped, tag = 'internal scratch']
  %s0 = inlined_call_operand.vmem [shape: f32[16,32], index: 0, kind: input, shape index: {}]
  %s1 = inlined_call_operand.vmem [shape: f32[16,32], index: 1, kind: input, shape index: {}]
  %s2 = inlined_call_operand.vmem [shape: f32[2,8,8], index: 2, kind: input, shape index: {}]
  %s3 = inlined_call_operand.vmem [shape: f32[2,1,8], index: 3, kind: input, shape index: {}]
  %s4 = inlined_call_operand.vmem [shape: f32[2,32,96], index: 4, kind: input, shape index: {}]
  %s5 = inlined_call_operand.hbm [shape: f32[2,1,96], index: 5, kind: input, shape index: {}]
  %s6 = inlined_call_operand.vmem [shape: f32[2,32,32], index: 6, kind: input, shape index: {}]
  %s7 = inlined_call_operand.hbm [shape: f32[2,1,32], index: 7, kind: input, shape index: {}]
  %s8 = inlined_call_operand.vmem [shape: f32[2,32,32], index: 8, kind: input, shape index: {}]
  %s9 = inlined_call_operand.hbm [shape: f32[2,1,32], index: 9, kind: input, shape index: {}]
  %s10 = inlined_call_operand.hbm [shape: f32[2,32,64], index: 10, kind: input, shape index: {}]
  %s11 = inlined_call_operand.hbm [shape: f32[2,1,64], index: 11, kind: input, shape index: {}]
  %s12 = inlined_call_operand.hbm [shape: f32[2,32,32], index: 12, kind: input, shape index: {}]
  %s13 = inlined_call_operand.hbm [shape: f32[2,1,32], index: 13, kind: input, shape index: {}]
  %s14 = inlined_call_operand.hbm [shape: f32[2,32,64], index: 14, kind: input, shape index: {}]
  %s15 = inlined_call_operand.hbm [shape: f32[2,1,64], index: 15, kind: input, shape index: {}]
  %s16 = inlined_call_operand.vmem [shape: f32[2,64,32], index: 16, kind: input, shape index: {}]
  %s17 = inlined_call_operand.hbm [shape: f32[2,1,32], index: 17, kind: input, shape index: {}]
  %s18 = inlined_call_operand.vmem [shape: f32[2,3,32], index: 18, kind: input, shape index: {}]
  %s19 = inlined_call_operand.vmem [shape: f32[2,3,32], index: 19, kind: input, shape index: {}]
  %s20 = inlined_call_operand.hbm [shape: f32[1,32], index: 20, kind: input, shape index: {}]
  %s21 = inlined_call_operand.hbm [shape: f32[1,32], index: 21, kind: input, shape index: {}]
  %s22 = inlined_call_operand.hbm [shape: f32[16,32], index: 22, kind: output, shape index: {}]
  %s23 = sld [smem:[#allocation0]]
  $region146: #{decoder_forward.1} parent=0
    _
  %s25 = ssub.s32 1, %s23
  %s26 = scalar_select 0, %s25, %s23
  $region1: #{decoder_forward.1} parent=0
    #allocation2 [shape = 'u8[1024]{0}', space=vmem, size = 0x400, scoped, tag = 'input window, operand 5, single buffered']
    #allocation3 [shape = 's32[1]{0}', space=sflag, size = 0x4, scoped, tag = 'scoped memory for decoder_forward.1']
    #allocation4 [shape = 's32[1]{0}', space=sflag, size = 0x4, scoped, tag = 'scoped memory for decoder_forward.1']
    #allocation5 [shape = 'u8[1024]{0}', space=vmem, size = 0x400, scoped, tag = 'input window, operand 7, single buffered']
    #allocation6 [shape = 's32[1]{0}', space=sflag, size = 0x4, scoped, tag = 'scoped memory for decoder_forward.1']
    #allocation7 [shape = 'u8[1024]{0}', space=vmem, size = 0x400, scoped, tag = 'input window, operand 9, single buffered']
    #allocation8 [shape = 'u8[32768]{0}', space=vmem, size = 0x8000, scoped, tag = 'input window, operand 10, single buffered']
    #allocation9 [shape = 's32[1]{0}', space=sflag, size = 0x4, scoped, tag = 'scoped memory for decoder_forward.1']
    #allocation10 [shape = 'u8[1024]{0}', space=vmem, size = 0x400, scoped, tag = 'input window, operand 11, single buffered']
    #allocation11 [shape = 'u8[32768]{0}', space=vmem, size = 0x8000, scoped, tag = 'input window, operand 12, single buffered']
    #allocation12 [shape = 's32[1]{0}', space=sflag, size = 0x4, scoped, tag = 'scoped memory for decoder_forward.1']
    #allocation13 [shape = 'u8[1024]{0}', space=vmem, size = 0x400, scoped, tag = 'input window, operand 13, single buffered']
    #allocation14 [shape = 'u8[32768]{0}', space=vmem, size = 0x8000, scoped, tag = 'input window, operand 14, single buffered']
    #allocation15 [shape = 's32[1]{0}', space=sflag, size = 0x4, scoped, tag = 'scoped memory for decoder_forward.1']
    #allocation16 [shape = 'u8[1024]{0}', space=vmem, size = 0x400, scoped, tag = 'input window, operand 15, single buffered']
    #allocation17 [shape = 'u8[1024]{0}', space=vmem, size = 0x400, scoped, tag = 'input window, operand 17, single buffered']
    #allocation18 [shape = 's32[1]{0}', space=sflag, size = 0x4, scoped, tag = 'scoped memory for decoder_forward.1']
    #allocation19 [shape = 'u8[512]{0}', space=vmem, size = 0x400, scoped, tag = 'input window, operand 20, single buffered']
    #allocation20 [shape = 'u8[512]{0}', space=vmem, size = 0x400, scoped, tag = 'input window, operand 21, single buffered']
    #allocation21 [shape = 's32[1]{0}', space=sflag, size = 0x4, scoped, tag = 'scoped memory for decoder_forward.1']
    #allocation22 [shape = 'u8[8192]{0}', space=vmem, size = 0x2000, scoped, tag = 'output window, operand 0, single buffered']
    %27 = vsyncpa [#allocation3], 0
    %28 = vsyncpa [#allocation6], 0
    %29 = vsyncpa [#allocation9], 0
    %30 = vsyncpa [#allocation12], 0
    %31 = vsyncpa [#allocation15], 0
    %32 = vsyncpa [#allocation18], 0
    %33 = vsyncpa [#allocation21], 0
    %34 = vsyncpa [#allocation4], 0
    // Predicated region
    $region2: #{decoder_forward.1} parent=1 // pred_check
      _
    $region3: #{decoder_forward.1} parent=1 // pred_check_branch
      %36 = sbr.rel (0) target = $region5
    $region4: #{decoder_forward.1} parent=1 // pred_region
      _
    $region5: #{decoder_forward.1} parent=1 // pred_fallthru
      _
    // Predicated region
    $region6: #{decoder_forward.1} parent=1 // pred_check
      _
    $region7: #{decoder_forward.1} parent=1 // pred_check_branch
      %38 = sbr.rel (0) target = $region9
    $region8: #{decoder_forward.1} parent=1 // pred_region
      _
    $region9: #{decoder_forward.1} parent=1 // pred_fallthru
      _
    // Predicated region
    $region10: #{decoder_forward.1} parent=1 // pred_check
      _
    $region11: #{decoder_forward.1} parent=1 // pred_check_branch
      %40 = sbr.rel (0) target = $region13
    $region12: #{decoder_forward.1} parent=1 // pred_region
      _
    $region13: #{decoder_forward.1} parent=1 // pred_fallthru
      _
    // Predicated region
    $region14: #{decoder_forward.1} parent=1 // pred_check
      _
    $region15: #{decoder_forward.1} parent=1 // pred_check_branch
      %42 = sbr.rel (0) target = $region17
    $region16: #{decoder_forward.1} parent=1 // pred_region
      _
    $region17: #{decoder_forward.1} parent=1 // pred_fallthru
      _
    // Predicated region
    $region18: #{decoder_forward.1} parent=1 // pred_check
      _
    $region19: #{decoder_forward.1} parent=1 // pred_check_branch
      %44 = sbr.rel (0) target = $region21
    $region20: #{decoder_forward.1} parent=1 // pred_region
      _
    $region21: #{decoder_forward.1} parent=1 // pred_fallthru
      _
    // Predicated region
    $region22: #{decoder_forward.1} parent=1 // pred_check
      _
    $region23: #{decoder_forward.1} parent=1 // pred_check_branch
      %46 = sbr.rel (0) target = $region25
    $region24: #{decoder_forward.1} parent=1 // pred_region
      %s48 = ssub.s32 32, 32
      %49 = vsyncadd [#allocation3], %s48
      %s50 = sshll.u32 [#allocation2], 4
      %s51 = int_to_ptr.vmem [resolvable:$true] %s50
      %56 = dma.hbm_to_vmem [thread:$0]  %s5, 32, %s51, [#allocation3], 16, 16, 1
    $region25: #{decoder_forward.1} parent=1 // pred_fallthru
      _
    // Predicated region
    $region26: #{decoder_forward.1} parent=1 // pred_check
      _
    $region27: #{decoder_forward.1} parent=1 // pred_check_branch
      %58 = sbr.rel (0) target = $region29
    $region28: #{decoder_forward.1} parent=1 // pred_region
      _
    $region29: #{decoder_forward.1} parent=1 // pred_fallthru
      _
    // Predicated region
    $region30: #{decoder_forward.1} parent=1 // pred_check
      _
    $region31: #{decoder_forward.1} parent=1 // pred_check_branch
      %60 = sbr.rel (0) target = $region33
    $region32: #{decoder_forward.1} parent=1 // pred_region
      %s62 = ssub.s32 32, 32
      %63 = vsyncadd [#allocation6], %s62
      %s64 = sshll.u32 [#allocation5], 4
      %s65 = int_to_ptr.vmem [resolvable:$true] %s64
      %70 = dma.hbm_to_vmem [thread:$0]  %s7, 32, %s65, [#allocation6], 16, 16, 1
    $region33: #{decoder_forward.1} parent=1 // pred_fallthru
      _
    // Predicated region
    $region34: #{decoder_forward.1} parent=1 // pred_check
      _
    $region35: #{decoder_forward.1} parent=1 // pred_check_branch
      %72 = sbr.rel (0) target = $region37
    $region36: #{decoder_forward.1} parent=1 // pred_region
      _
    $region37: #{decoder_forward.1} parent=1 // pred_fallthru
      _
    // Predicated region
    $region38: #{decoder_forward.1} parent=1 // pred_check
      _
    $region39: #{decoder_forward.1} parent=1 // pred_check_branch
      %74 = sbr.rel (0) target = $region41
    $region40: #{decoder_forward.1} parent=1 // pred_region
      %s76 = ssub.s32 32, 32
      %77 = vsyncadd [#allocation6], %s76
      %s78 = sshll.u32 [#allocation7], 4
      %s79 = int_to_ptr.vmem [resolvable:$true] %s78
      %84 = dma.hbm_to_vmem [thread:$0]  %s9, 32, %s79, [#allocation6], 16, 16, 1
    $region41: #{decoder_forward.1} parent=1 // pred_fallthru
      _
    // Predicated region
    $region42: #{decoder_forward.1} parent=1 // pred_check
      _
    $region43: #{decoder_forward.1} parent=1 // pred_check_branch
      %86 = sbr.rel (0) target = $region45
    $region44: #{decoder_forward.1} parent=1 // pred_region
      %s88 = ssub.s32 1024, 1024
      %89 = vsyncadd [#allocation9], %s88
      %s90 = sshll.u32 [#allocation8], 4
      %s91 = int_to_ptr.vmem [resolvable:$true] %s90
      %96 = dma.hbm_to_vmem [thread:$0]  %s10, 1024, %s91, [#allocation9], 128, 128, 8
    $region45: #{decoder_forward.1} parent=1 // pred_fallthru
      _
    // Predicated region
    $region46: #{decoder_forward.1} parent=1 // pred_check
      _
    $region47: #{decoder_forward.1} parent=1 // pred_check_branch
      %98 = sbr.rel (0) target = $region49
    $region48: #{decoder_forward.1} parent=1 // pred_region
      %s100 = ssub.s32 32, 32
      %101 = vsyncadd [#allocation9], %s100
      %s102 = sshll.u32 [#allocation10], 4
      %s103 = int_to_ptr.vmem [resolvable:$true] %s102
      %108 = dma.hbm_to_vmem [thread:$0]  %s11, 32, %s103, [#allocation9], 16, 16, 1
    $region49: #{decoder_forward.1} parent=1 // pred_fallthru
      _
    // Predicated region
    $region50: #{decoder_forward.1} parent=1 // pred_check
      _
    $region51: #{decoder_forward.1} parent=1 // pred_check_branch
      %110 = sbr.rel (0) target = $region53
    $region52: #{decoder_forward.1} parent=1 // pred_region
      %s112 = ssub.s32 1024, 1024
      %113 = vsyncadd [#allocation12], %s112
      %s114 = sshll.u32 [#allocation11], 4
      %s115 = int_to_ptr.vmem [resolvable:$true] %s114
      %120 = dma.hbm_to_vmem [thread:$0]  %s12, 1024, %s115, [#allocation12], 128, 128, 8
    $region53: #{decoder_forward.1} parent=1 // pred_fallthru
      _
    // Predicated region
    $region54: #{decoder_forward.1} parent=1 // pred_check
      _
    $region55: #{decoder_forward.1} parent=1 // pred_check_branch
      %122 = sbr.rel (0) target = $region57
    $region56: #{decoder_forward.1} parent=1 // pred_region
      %s124 = ssub.s32 32, 32
      %125 = vsyncadd [#allocation12], %s124
      %s126 = sshll.u32 [#allocation13], 4
      %s127 = int_to_ptr.vmem [resolvable:$true] %s126
      %132 = dma.hbm_to_vmem [thread:$0]  %s13, 32, %s127, [#allocation12], 16, 16, 1
    $region57: #{decoder_forward.1} parent=1 // pred_fallthru
      _
    // Predicated region
    $region58: #{decoder_forward.1} parent=1 // pred_check
      _
    $region59: #{decoder_forward.1} parent=1 // pred_check_branch
      %134 = sbr.rel (0) target = $region61
    $region60: #{decoder_forward.1} parent=1 // pred_region
      %s136 = ssub.s32 1024, 1024
      %137 = vsyncadd [#allocation15], %s136
      %s138 = sshll.u32 [#allocation14], 4
      %s139 = int_to_ptr.vmem [resolvable:$true] %s138
      %144 = dma.hbm_to_vmem [thread:$0]  %s14, 1024, %s139, [#allocation15], 128, 128, 8
    $region61: #{decoder_forward.1} parent=1 // pred_fallthru
      _
    // Predicated region
    $region62: #{decoder_forward.1} parent=1 // pred_check
      _
    $region63: #{decoder_forward.1} parent=1 // pred_check_branch
      %146 = sbr.rel (0) target = $region65
    $region64: #{decoder_forward.1} parent=1 // pred_region
      %s148 = ssub.s32 32, 32
      %149 = vsyncadd [#allocation15], %s148
      %s150 = sshll.u32 [#allocation16], 4
      %s151 = int_to_ptr.vmem [resolvable:$true] %s150
      %156 = dma.hbm_to_vmem [thread:$0]  %s15, 32, %s151, [#allocation15], 16, 16, 1
    $region65: #{decoder_forward.1} parent=1 // pred_fallthru
      _
    // Predicated region
    $region66: #{decoder_forward.1} parent=1 // pred_check
      _
    $region67: #{decoder_forward.1} parent=1 // pred_check_branch
      %158 = sbr.rel (0) target = $region69
    $region68: #{decoder_forward.1} parent=1 // pred_region
      _
    $region69: #{decoder_forward.1} parent=1 // pred_fallthru
      _
    // Predicated region
    $region70: #{decoder_forward.1} parent=1 // pred_check
      _
    $region71: #{decoder_forward.1} parent=1 // pred_check_branch
      %160 = sbr.rel (0) target = $region73
    $region72: #{decoder_forward.1} parent=1 // pred_region
      %s162 = ssub.s32 32, 32
      %163 = vsyncadd [#allocation18], %s162
      %s164 = sshll.u32 [#allocation17], 4
      %s165 = int_to_ptr.vmem [resolvable:$true] %s164
      %170 = dma.hbm_to_vmem [thread:$0]  %s17, 32, %s165, [#allocation18], 16, 16, 1
    $region73: #{decoder_forward.1} parent=1 // pred_fallthru
      _
    // Predicated region
    $region74: #{decoder_forward.1} parent=1 // pred_check
      _
    $region75: #{decoder_forward.1} parent=1 // pred_check_branch
      %172 = sbr.rel (0) target = $region77
    $region76: #{decoder_forward.1} parent=1 // pred_region
      _
    $region77: #{decoder_forward.1} parent=1 // pred_fallthru
      _
    // Predicated region
    $region78: #{decoder_forward.1} parent=1 // pred_check
      _
    $region79: #{decoder_forward.1} parent=1 // pred_check_branch
      %174 = sbr.rel (0) target = $region81
    $region80: #{decoder_forward.1} parent=1 // pred_region
      _
    $region81: #{decoder_forward.1} parent=1 // pred_fallthru
      _
    // Predicated region
    $region82: #{decoder_forward.1} parent=1 // pred_check
      _
    $region83: #{decoder_forward.1} parent=1 // pred_check_branch
      %176 = sbr.rel (0) target = $region85
    $region84: #{decoder_forward.1} parent=1 // pred_region
      %s178 = ssub.s32 16, 16
      %179 = vsyncadd [#allocation18], %s178
      %s181 = sshll.u32 [#allocation19], 4
      %s182 = int_to_ptr.vmem [resolvable:$true] %s181
      %184 = dma.hbm_to_vmem [thread:$0]  %s20, 16, %s182, [#allocation18]
    $region85: #{decoder_forward.1} parent=1 // pred_fallthru
      _
    // Predicated region
    $region86: #{decoder_forward.1} parent=1 // pred_check
      _
    $region87: #{decoder_forward.1} parent=1 // pred_check_branch
      %186 = sbr.rel (0) target = $region89
    $region88: #{decoder_forward.1} parent=1 // pred_region
      %s188 = ssub.s32 16, 16
      %189 = vsyncadd [#allocation21], %s188
      %s191 = sshll.u32 [#allocation20], 4
      %s192 = int_to_ptr.vmem [resolvable:$true] %s191
      %194 = dma.hbm_to_vmem [thread:$0]  %s21, 16, %s192, [#allocation21]
    $region89: #{decoder_forward.1} parent=1 // pred_fallthru
      _
    // Predicated region
    $region90: #{decoder_forward.1} parent=1 // pred_check
      _
    $region91: #{decoder_forward.1} parent=1 // pred_check_branch
      %196 = sbr.rel (0) target = $region93
    $region92: #{decoder_forward.1} parent=1 // pred_region
      %197 = dma.done [#allocation3], 32
    $region93: #{decoder_forward.1} parent=1 // pred_fallthru
      _
    // Predicated region
    $region94: #{decoder_forward.1} parent=1 // pred_check
      _
    $region95: #{decoder_forward.1} parent=1 // pred_check_branch
      %199 = sbr.rel (0) target = $region97
    $region96: #{decoder_forward.1} parent=1 // pred_region
      %200 = dma.done [#allocation6], 32
    $region97: #{decoder_forward.1} parent=1 // pred_fallthru
      _
    // Predicated region
    $region98: #{decoder_forward.1} parent=1 // pred_check
      _
    $region99: #{decoder_forward.1} parent=1 // pred_check_branch
      %202 = sbr.rel (0) target = $region101
    $region100: #{decoder_forward.1} parent=1 // pred_region
      %203 = dma.done [#allocation6], 32
    $region101: #{decoder_forward.1} parent=1 // pred_fallthru
      _
    // Predicated region
    $region102: #{decoder_forward.1} parent=1 // pred_check
      _
    $region103: #{decoder_forward.1} parent=1 // pred_check_branch
      %205 = sbr.rel (0) target = $region105
    $region104: #{decoder_forward.1} parent=1 // pred_region
      %206 = dma.done [#allocation9], 1024
    $region105: #{decoder_forward.1} parent=1 // pred_fallthru
      _
    // Predicated region
    $region106: #{decoder_forward.1} parent=1 // pred_check
      _
    $region107: #{decoder_forward.1} parent=1 // pred_check_branch
      %208 = sbr.rel (0) target = $region109
    $region108: #{decoder_forward.1} parent=1 // pred_region
      %209 = dma.done [#allocation9], 32
    $region109: #{decoder_forward.1} parent=1 // pred_fallthru
      _
    // Predicated region
    $region110: #{decoder_forward.1} parent=1 // pred_check
      _
    $region111: #{decoder_forward.1} parent=1 // pred_check_branch
      %211 = sbr.rel (0) target = $region113
    $region112: #{decoder_forward.1} parent=1 // pred_region
      %212 = dma.done [#allocation12], 1024
    $region113: #{decoder_forward.1} parent=1 // pred_fallthru
      _
    // Predicated region
    $region114: #{decoder_forward.1} parent=1 // pred_check
      _
    $region115: #{decoder_forward.1} parent=1 // pred_check_branch
      %214 = sbr.rel (0) target = $region117
    $region116: #{decoder_forward.1} parent=1 // pred_region
      %215 = dma.done [#allocation12], 32
    $region117: #{decoder_forward.1} parent=1 // pred_fallthru
      _
    // Predicated region
    $region118: #{decoder_forward.1} parent=1 // pred_check
      _
    $region119: #{decoder_forward.1} parent=1 // pred_check_branch
      %217 = sbr.rel (0) target = $region121
    $region120: #{decoder_forward.1} parent=1 // pred_region
      %218 = dma.done [#allocation15], 1024
    $region121: #{decoder_forward.1} parent=1 // pred_fallthru
      _
    // Predicated region
    $region122: #{decoder_forward.1} parent=1 // pred_check
      _
    $region123: #{decoder_forward.1} parent=1 // pred_check_branch
      %220 = sbr.rel (0) target = $region125
    $region124: #{decoder_forward.1} parent=1 // pred_region
      %221 = dma.done [#allocation15], 32
    $region125: #{decoder_forward.1} parent=1 // pred_fallthru
      _
    // Predicated region
    $region126: #{decoder_forward.1} parent=1 // pred_check
      _
    $region127: #{decoder_forward.1} parent=1 // pred_check_branch
      %223 = sbr.rel (0) target = $region129
    $region128: #{decoder_forward.1} parent=1 // pred_region
      %224 = dma.done [#allocation18], 32
    $region129: #{decoder_forward.1} parent=1 // pred_fallthru
      _
    // Predicated region
    $region130: #{decoder_forward.1} parent=1 // pred_check
      _
    $region131: #{decoder_forward.1} parent=1 // pred_check_branch
      %226 = sbr.rel (0) target = $region133
    $region132: #{decoder_forward.1} parent=1 // pred_region
      %227 = dma.done [#allocation18], 16
    $region133: #{decoder_forward.1} parent=1 // pred_fallthru
      _
    // Predicated region
    $region134: #{decoder_forward.1} parent=1 // pred_check
      _
    $region135: #{decoder_forward.1} parent=1 // pred_check_branch
      %229 = sbr.rel (0) target = $region137
    $region136: #{decoder_forward.1} parent=1 // pred_region
      %230 = dma.done [#allocation21], 16
    $region137: #{decoder_forward.1} parent=1 // pred_fallthru
      _
    %v231 = vld [vmem:[%s2] sm:$0xff]
    %v232 = vld [vmem:[%s2 + $0x8] sm:$0xff]
    %v233 = vsub.f32 %v231, 1.0
    %v234 = vsub.f32 %v232, 1.0
    %v235 = vmul.f32 %v233, 1e+09
    %v236 = vmul.f32 %v234, 1e+09
    %v237 = vld [vmem:[%s3] sm:$0x1]
    %v238 = vld [vmem:[%s3 + $0x1] sm:$0x1]
    %v239 = vsub.f32 %v237, 1.0
    %v240 = vsub.f32 %v238, 1.0
    %v241 = vmul.f32 %v239, 1e+09
    %v242 = vmul.f32 %v240, 1e+09
    %v245 = vlaneseq
    %v246 = vshrl.u32 %v245, 7
    %v247 = vsub.s32 0, %v246
    %v248 = vrot.slane %v241, %v247
    %v249 = vlaneseq
    %v250 = vshrl.u32 %v249, 7
    %v251 = vsub.s32 0, %v250
    %v252 = vrot.slane %v242, %v251
    %v255 = vld [vmem:[%s0] sm:$0xff]
    %v256 = vld [vmem:[%s0 + $0x8] sm:$0xff]
    %v257 = vld [vmem:[%s1] sm:$0xff]
    %v258 = vld [vmem:[%s1 + $0x8] sm:$0xff]
    %v259 = vld [vmem:[%s18] sm:$0x7]
    %v260 = vld [vmem:[%s19] sm:$0x7]
    %vm261 = vcmask 261120
    %v262 = vsel %vm261, %v255, 0.0
    %263 = vadd.xlane.f32.xlu0 %v262
    %v264 = vpop.xlane.xlu0 %263
    %v265 = vsel %vm261, %v256, 0.0
    %266 = vadd.xlane.f32.xlu0 %v265
    %v267 = vpop.xlane.xlu0 %266
    %v268 = vrcp.pop 32.0
    %v269 = vmul.f32 %v264, %v268
    %v270 = vmul.f32 %v267, %v268
    %v271 = vsub.f32 %v255, %v269
    %v272 = vsub.f32 %v256, %v270
    %v273 = vmul.f32 %v271, %v271
    %v274 = vmul.f32 %v272, %v272
    %v275 = vsel %vm261, %v273, 0.0
    %276 = vadd.xlane.f32.xlu0 %v275
    %v277 = vpop.xlane.xlu0 %276
    %v278 = vsel %vm261, %v274, 0.0
    %279 = vadd.xlane.f32.xlu0 %v278
    %v280 = vpop.xlane.xlu0 %279
    %v281 = vmul.f32 %v277, 0.032258064
    %v282 = vmul.f32 %v280, 0.032258064
    %v283 = vrsqrt.pop %v281
    %v284 = vmul.f32 %v281, %v283
    %vm285 = vcmp.eq.f32.partialorder %v281, inf
    %v286 = vsel %vm285, %v281, %v284
    %vm287 = vcmp.eq.f32.partialorder %v281, 0.0
    %v288 = vand.u32 %v281, 2147483648
    %v289 = vsel %vm287, %v288, %v286
    %v290 = vrsqrt.pop %v282
    %v291 = vmul.f32 %v282, %v290
    %vm292 = vcmp.eq.f32.partialorder %v282, inf
    %v293 = vsel %vm292, %v282, %v291
    %vm294 = vcmp.eq.f32.partialorder %v282, 0.0
    %v295 = vand.u32 %v282, 2147483648
    %v296 = vsel %vm294, %v295, %v293
    %v297 = vadd.f32 %v289, 1e-06
    %v298 = vadd.f32 %v296, 1e-06
    %v299 = vrcp.pop %v297
    %v300 = vrcp.pop %v298
    %v301 = vmul.f32 %v271, %v299
    %v302 = vmul.f32 %v272, %v300
    %v303 = vlaneseq
    %v304 = vshrl.u32 %v303, 7
    %v305 = vsub.s32 0, %v304
    %v306 = vrot.slane %v259, %v305
    %v307 = vmul.f32 %v301, %v306
    %v308 = vmul.f32 %v302, %v306
    %v309 = vlaneseq
    %v310 = vshrl.u32 %v309, 7
    %v311 = vsub.s32 0, %v310
    %v312 = vrot.slane %v260, %v311
    %v313 = vadd.f32 %v307, %v312
    %v314 = vadd.f32 %v308, %v312
    %v315 = vld [vmem:[%s4] sm:$0xff]
    %v316 = vld [vmem:[%s4 + $0x8] sm:$0xff]
    %v317 = vld [vmem:[%s4 + $0x10] sm:$0xff]
    %v318 = vld [vmem:[%s4 + $0x18] sm:$0xff]
    %v319 = vld [vmem:[#allocation2] sm:$0x1]
    %v321 = vlaneseq
    %v322 = vshrl.u32 %v321, 7
    %v323 = vsub.s32 0, %v322
    %v324 = vrot.slane %v319, %v323
    %v327 = vsel %vm261, %v313, 0
    %v330 = vsel %vm261, %v314, 0
    %332 = vmatprep.subr.mxu0 0.0
    %333 = vmatpush1.msra.mxu0 %v315
    %334 = vmatprep.subr.mxu0 0.0
    %335 = vmatpush1.msra.mxu0 %v316
    %336 = vmatprep.subr.mxu0 0.0
    %337 = vmatpush1.msra.mxu0 %v317
    %338 = vmatprep.subr.mxu0 0.0
    %339 = vmatpush1.msra.mxu0 %v318
    %340 = vmatprep.subr.mxu0 0.0
    %341 = vmatpush1.msra.mxu0 0.0
    %342 = vmatprep.subr.mxu0 0.0
    %343 = vmatpush1.msra.mxu0 0.0
    %344 = vmatprep.subr.mxu0 0.0
    %345 = vmatpush1.msra.mxu0 0.0
    %346 = vmatprep.subr.mxu0 0.0
    %347 = vmatpush1.msra.mxu0 0.0
    %348 = vmatprep.subr.mxu0 0.0
    %349 = vmatpush1.msra.mxu0 0.0
    %350 = vmatprep.subr.mxu0 0.0
    %351 = vmatpush1.msra.mxu0 0.0
    %352 = vmatprep.subr.mxu0 0.0
    %353 = vmatpush1.msra.mxu0 0.0
    %354 = vmatprep.subr.mxu0 0.0
    %355 = vmatpush1.msra.mxu0 0.0
    %356 = vmatprep.subr.mxu0 0.0
    %357 = vmatpush1.msra.mxu0 0.0
    %358 = vmatprep.subr.mxu0 0.0
    %359 = vmatpush1.msra.mxu0 0.0
    %360 = vmatprep.subr.mxu0 0.0
    %361 = vmatpush1.msra.mxu0 0.0
    %362 = vmatprep.subr.mxu0 0.0
    %363 = vmatpush1.msra.mxu0 0.0
    %364 = vmatprep.subr.mxu0 0.0
    %365 = vmatpush1.msra.mxu0 0.0
    %366 = vmatprep.subr.mxu0 0.0
    %367 = vmatpush1.msra.mxu0 0.0
    %368 = vmatprep.subr.mxu0 0.0
    %369 = vmatpush1.msra.mxu0 0.0
    %370 = vmatprep.subr.mxu0 0.0
    %371 = vmatpush1.msra.mxu0 0.0
    %372 = vmatprep.subr.mxu0 0.0
    %373 = vmatpush1.msra.mxu0 0.0
    %374 = vmatprep.subr.mxu0 0.0
    %375 = vmatpush1.msra.mxu0 0.0
    %376 = vmatprep.subr.mxu0 0.0
    %377 = vmatpush1.msra.mxu0 0.0
    %378 = vmatprep.subr.mxu0 0.0
    %379 = vmatpush1.msra.mxu0 0.0
    %380 = vmatprep.subr.mxu0 0.0
    %381 = vmatpush1.msra.mxu0 0.0
    %382 = vmatprep.subr.mxu0 0.0
    %383 = vmatpush1.msra.mxu0 0.0
    %384 = vmatprep.subr.mxu0 0.0
    %385 = vmatpush1.msra.mxu0 0.0
    %386 = vmatprep.subr.mxu0 0.0
    %387 = vmatpush1.msra.mxu0 0.0
    %388 = vmatprep.subr.mxu0 0.0
    %389 = vmatpush1.msra.mxu0 0.0
    %390 = vmatprep.subr.mxu0 0.0
    %391 = vmatpush1.msra.mxu0 0.0
    %392 = vmatprep.subr.mxu0 0.0
    %393 = vmatpush1.msra.mxu0 0.0
    %394 = vmatprep.subr.mxu0 0.0
    %395 = vmatpush1.msra.mxu0 0.0
    %396 = vmatprep.mubr.f32.mxu0 0.0
    %397 = vmatmul.mubr.f32.gmra.mrb[0].mxu0 %v327
    %v398 = vpop.f32.mrb[0].mxu0
    %v399 = vadd.f32 %v324, %v398
    %v400 = vpop.f32.mrb[0].mxu0
    %401 = vmatprep.mubr.f32.mxu0 0.0
    %402 = vmatmul.mubr.f32.gmra.mrb[0].mxu0 %v330
    %v403 = vpop.f32.mrb[0].mxu0
    %v404 = vadd.f32 %v324, %v403
    %v405 = vpop.f32.mrb[0].mxu0
    %406 = vdwg.mxu0
    %v407 = vld [vmem:[%s6] sm:$0xff]
    %v408 = vld [vmem:[%s6 + $0x8] sm:$0xff]
    %v409 = vld [vmem:[%s6 + $0x10] sm:$0xff]
    %v410 = vld [vmem:[%s6 + $0x18] sm:$0xff]
    %v411 = vld [vmem:[#allocation5] sm:$0x1]
    %v413 = vlaneseq
    %v414 = vshrl.u32 %v413, 7
    %v415 = vsub.s32 0, %v414
    %v416 = vrot.slane %v411, %v415
    %v418 = vadd.f32 %v255, %v416
    %v419 = vadd.f32 %v256, %v416
    %421 = vrot.lane.b32.xlu0 %v399, 96
    %v422 = vpop.permute.xlu0 %421
    %vm423 = vcmask 64512
    %v424 = vsel %vm423, %v399, 0
    %v426 = vsel %vm423, %v422, 0
    %428 = vmatprep.subr.mxu0 0.0
    %429 = vmatpush1.xpose.msra.mxu0 %v426
    %430 = vmatprep.subr.mxu0 0.0
    %431 = vmatpush1.xpose.msra.mxu0 0.0
    %432 = vmatprep.subr.mxu0 0.0
    %433 = vmatpush1.xpose.msra.mxu0 0.0
    %434 = vmatprep.subr.mxu0 0.0
    %435 = vmatpush1.xpose.msra.mxu0 0.0
    %436 = vmatprep.subr.mxu0 0.0
    %437 = vmatpush1.xpose.msra.mxu0 0.0
    %438 = vmatprep.subr.mxu0 0.0
    %439 = vmatpush1.xpose.msra.mxu0 0.0
    %440 = vmatprep.subr.mxu0 0.0
    %441 = vmatpush1.xpose.msra.mxu0 0.0
    %442 = vmatprep.subr.mxu0 0.0
    %443 = vmatpush1.xpose.msra.mxu0 0.0
    %444 = vmatprep.subr.mxu0 0.0
    %445 = vmatpush1.xpose.msra.mxu0 0.0
    %446 = vmatprep.subr.mxu0 0.0
    %447 = vmatpush1.xpose.msra.mxu0 0.0
    %448 = vmatprep.subr.mxu0 0.0
    %449 = vmatpush1.xpose.msra.mxu0 0.0
    %450 = vmatprep.subr.mxu0 0.0
    %451 = vmatpush1.xpose.msra.mxu0 0.0
    %452 = vmatprep.subr.mxu0 0.0
    %453 = vmatpush1.xpose.msra.mxu0 0.0
    %454 = vmatprep.subr.mxu0 0.0
    %455 = vmatpush1.xpose.msra.mxu0 0.0
    %456 = vmatprep.subr.mxu0 0.0
    %457 = vmatpush1.xpose.msra.mxu0 0.0
    %458 = vmatprep.subr.mxu0 0.0
    %459 = vmatpush1.xpose.msra.mxu0 0.0
    %460 = vmatprep.subr.mxu0 0.0
    %461 = vmatpush1.xpose.msra.mxu0 0.0
    %462 = vmatprep.subr.mxu0 0.0
    %463 = vmatpush1.xpose.msra.mxu0 0.0
    %464 = vmatprep.subr.mxu0 0.0
    %465 = vmatpush1.xpose.msra.mxu0 0.0
    %466 = vmatprep.subr.mxu0 0.0
    %467 = vmatpush1.xpose.msra.mxu0 0.0
    %468 = vmatprep.subr.mxu0 0.0
    %469 = vmatpush1.xpose.msra.mxu0 0.0
    %470 = vmatprep.subr.mxu0 0.0
    %471 = vmatpush1.xpose.msra.mxu0 0.0
    %472 = vmatprep.subr.mxu0 0.0
    %473 = vmatpush1.xpose.msra.mxu0 0.0
    %474 = vmatprep.subr.mxu0 0.0
    %475 = vmatpush1.xpose.msra.mxu0 0.0
    %476 = vmatprep.subr.mxu0 0.0
    %477 = vmatpush1.xpose.msra.mxu0 0.0
    %478 = vmatprep.subr.mxu0 0.0
    %479 = vmatpush1.xpose.msra.mxu0 0.0
    %480 = vmatprep.subr.mxu0 0.0
    %481 = vmatpush1.xpose.msra.mxu0 0.0
    %482 = vmatprep.subr.mxu0 0.0
    %483 = vmatpush1.xpose.msra.mxu0 0.0
    %484 = vmatprep.subr.mxu0 0.0
    %485 = vmatpush1.xpose.msra.mxu0 0.0
    %486 = vmatprep.subr.mxu0 0.0
    %487 = vmatpush1.xpose.msra.mxu0 0.0
    %488 = vmatprep.subr.mxu0 0.0
    %489 = vmatpush1.xpose.msra.mxu0 0.0
    %490 = vmatprep.subr.mxu0 0.0
    %491 = vmatpush1.xpose.msra.mxu0 0.0
    %492 = vmatprep.mubr.f32.mxu0 0.0
    %493 = vmatmul.mubr.f32.gmra.mrb[0].mxu0 %v424
    %v494 = vpop.f32.mrb[0].mxu0
    %v495 = vadd.f32 %v235, %v494
    %v496 = vpop.f32.mrb[0].mxu0
    %497 = vdwg.mxu0
    %499 = vrot.lane.b32.xlu0 %v404, 96
    %v500 = vpop.permute.xlu0 %499
    %v501 = vsel %vm423, %v404, 0
    %v503 = vsel %vm423, %v500, 0
    %505 = vmatprep.subr.mxu0 0.0
    %506 = vmatpush1.xpose.msra.mxu0 %v503
    %507 = vmatprep.subr.mxu0 0.0
    %508 = vmatpush1.xpose.msra.mxu0 0.0
    %509 = vmatprep.subr.mxu0 0.0
    %510 = vmatpush1.xpose.msra.mxu0 0.0
    %511 = vmatprep.subr.mxu0 0.0
    %512 = vmatpush1.xpose.msra.mxu0 0.0
    %513 = vmatprep.subr.mxu0 0.0
    %514 = vmatpush1.xpose.msra.mxu0 0.0
    %515 = vmatprep.subr.mxu0 0.0
    %516 = vmatpush1.xpose.msra.mxu0 0.0
    %517 = vmatprep.subr.mxu0 0.0
    %518 = vmatpush1.xpose.msra.mxu0 0.0
    %519 = vmatprep.subr.mxu0 0.0
    %520 = vmatpush1.xpose.msra.mxu0 0.0
    %521 = vmatprep.subr.mxu0 0.0
    %522 = vmatpush1.xpose.msra.mxu0 0.0
    %523 = vmatprep.subr.mxu0 0.0
    %524 = vmatpush1.xpose.msra.mxu0 0.0
    %525 = vmatprep.subr.mxu0 0.0
    %526 = vmatpush1.xpose.msra.mxu0 0.0
    %527 = vmatprep.subr.mxu0 0.0
    %528 = vmatpush1.xpose.msra.mxu0 0.0
    %529 = vmatprep.subr.mxu0 0.0
    %530 = vmatpush1.xpose.msra.mxu0 0.0
    %531 = vmatprep.subr.mxu0 0.0
    %532 = vmatpush1.xpose.msra.mxu0 0.0
    %533 = vmatprep.subr.mxu0 0.0
    %534 = vmatpush1.xpose.msra.mxu0 0.0
    %535 = vmatprep.subr.mxu0 0.0
    %536 = vmatpush1.xpose.msra.mxu0 0.0
    %537 = vmatprep.subr.mxu0 0.0
    %538 = vmatpush1.xpose.msra.mxu0 0.0
    %539 = vmatprep.subr.mxu0 0.0
    %540 = vmatpush1.xpose.msra.mxu0 0.0
    %541 = vmatprep.subr.mxu0 0.0
    %542 = vmatpush1.xpose.msra.mxu0 0.0
    %543 = vmatprep.subr.mxu0 0.0
    %544 = vmatpush1.xpose.msra.mxu0 0.0
    %545 = vmatprep.subr.mxu0 0.0
    %546 = vmatpush1.xpose.msra.mxu0 0.0
    %547 = vmatprep.subr.mxu0 0.0
    %548 = vmatpush1.xpose.msra.mxu0 0.0
    %549 = vmatprep.subr.mxu0 0.0
    %550 = vmatpush1.xpose.msra.mxu0 0.0
    %551 = vmatprep.subr.mxu0 0.0
    %552 = vmatpush1.xpose.msra.mxu0 0.0
    %553 = vmatprep.subr.mxu0 0.0
    %554 = vmatpush1.xpose.msra.mxu0 0.0
    %555 = vmatprep.subr.mxu0 0.0
    %556 = vmatpush1.xpose.msra.mxu0 0.0
    %557 = vmatprep.subr.mxu0 0.0
    %558 = vmatpush1.xpose.msra.mxu0 0.0
    %559 = vmatprep.subr.mxu0 0.0
    %560 = vmatpush1.xpose.msra.mxu0 0.0
    %561 = vmatprep.subr.mxu0 0.0
    %562 = vmatpush1.xpose.msra.mxu0 0.0
    %563 = vmatprep.subr.mxu0 0.0
    %564 = vmatpush1.xpose.msra.mxu0 0.0
    %565 = vmatprep.subr.mxu0 0.0
    %566 = vmatpush1.xpose.msra.mxu0 0.0
    %567 = vmatprep.subr.mxu0 0.0
    %568 = vmatpush1.xpose.msra.mxu0 0.0
    %569 = vmatprep.mubr.f32.mxu0 0.0
    %570 = vmatmul.mubr.f32.gmra.mrb[0].mxu0 %v501
    %v571 = vpop.f32.mrb[0].mxu0
    %v572 = vadd.f32 %v236, %v571
    %v573 = vpop.f32.mrb[0].mxu0
    %574 = vdwg.mxu0
    %v575 = vsel %vm423, %v495, -inf
    %576 = vmax.xlane.f32.xlu0 %v575
    %v577 = vpop.xlane.xlu0 %576
    %v578 = vsel %vm423, %v572, -inf
    %579 = vmax.xlane.f32.xlu0 %v578
    %v580 = vpop.xlane.xlu0 %579
    %v581 = vsub.f32 %v495, %v577
    %v582 = vsub.f32 %v572, %v580
    %v583 = vmul.f32 %v581, 1.442695
    %v584 = vpow.pop %v583
    %v585 = vmul.f32 %v582, 1.442695
    %v586 = vpow.pop %v585
    %v587 = vsel %vm423, %v584, 0.0
    %588 = vadd.xlane.f32.xlu0 %v587
    %v589 = vpop.xlane.xlu0 %588
    %v590 = vsel %vm423, %v586, 0.0
    %591 = vadd.xlane.f32.xlu0 %v590
    %v592 = vpop.xlane.xlu0 %591
    %v593 = vrcp.pop %v589
    %v594 = vrcp.pop %v592
    %v595 = vmul.f32 %v584, %v593
    %v596 = vmul.f32 %v586, %v594
    %597 = vrot.lane.b32.xlu0 %v399, 64
    %v598 = vpop.permute.xlu0 %597
    %v601 = vsel %vm423, %v595, 0
    %603 = vmatprep.subr.mxu0 0.0
    %604 = vmatpush1.msra.mxu0 %v598
    %605 = vmatprep.subr.mxu0 0.0
    %606 = vmatpush1.msra.mxu0 0.0
    %607 = vmatprep.subr.mxu0 0.0
    %608 = vmatpush1.msra.mxu0 0.0
    %609 = vmatprep.subr.mxu0 0.0
    %610 = vmatpush1.msra.mxu0 0.0
    %611 = vmatprep.subr.mxu0 0.0
    %612 = vmatpush1.msra.mxu0 0.0
    %613 = vmatprep.subr.mxu0 0.0
    %614 = vmatpush1.msra.mxu0 0.0
    %615 = vmatprep.subr.mxu0 0.0
    %616 = vmatpush1.msra.mxu0 0.0
    %617 = vmatprep.subr.mxu0 0.0
    %618 = vmatpush1.msra.mxu0 0.0
    %619 = vmatprep.subr.mxu0 0.0
    %620 = vmatpush1.msra.mxu0 0.0
    %621 = vmatprep.subr.mxu0 0.0
    %622 = vmatpush1.msra.mxu0 0.0
    %623 = vmatprep.subr.mxu0 0.0
    %624 = vmatpush1.msra.mxu0 0.0
    %625 = vmatprep.subr.mxu0 0.0
    %626 = vmatpush1.msra.mxu0 0.0
    %627 = vmatprep.subr.mxu0 0.0
    %628 = vmatpush1.msra.mxu0 0.0
    %629 = vmatprep.subr.mxu0 0.0
    %630 = vmatpush1.msra.mxu0 0.0
    %631 = vmatprep.subr.mxu0 0.0
    %632 = vmatpush1.msra.mxu0 0.0
    %633 = vmatprep.subr.mxu0 0.0
    %634 = vmatpush1.msra.mxu0 0.0
    %635 = vmatprep.subr.mxu0 0.0
    %636 = vmatpush1.msra.mxu0 0.0
    %637 = vmatprep.subr.mxu0 0.0
    %638 = vmatpush1.msra.mxu0 0.0
    %639 = vmatprep.subr.mxu0 0.0
    %640 = vmatpush1.msra.mxu0 0.0
    %641 = vmatprep.subr.mxu0 0.0
    %642 = vmatpush1.msra.mxu0 0.0
    %643 = vmatprep.subr.mxu0 0.0
    %644 = vmatpush1.msra.mxu0 0.0
    %645 = vmatprep.subr.mxu0 0.0
    %646 = vmatpush1.msra.mxu0 0.0
    %647 = vmatprep.subr.mxu0 0.0
    %648 = vmatpush1.msra.mxu0 0.0
    %649 = vmatprep.subr.mxu0 0.0
    %650 = vmatpush1.msra.mxu0 0.0
    %651 = vmatprep.subr.mxu0 0.0
    %652 = vmatpush1.msra.mxu0 0.0
    %653 = vmatprep.subr.mxu0 0.0
    %654 = vmatpush1.msra.mxu0 0.0
    %655 = vmatprep.subr.mxu0 0.0
    %656 = vmatpush1.msra.mxu0 0.0
    %657 = vmatprep.subr.mxu0 0.0
    %658 = vmatpush1.msra.mxu0 0.0
    %659 = vmatprep.subr.mxu0 0.0
    %660 = vmatpush1.msra.mxu0 0.0
    %661 = vmatprep.subr.mxu0 0.0
    %662 = vmatpush1.msra.mxu0 0.0
    %663 = vmatprep.subr.mxu0 0.0
    %664 = vmatpush1.msra.mxu0 0.0
    %665 = vmatprep.subr.mxu0 0.0
    %666 = vmatpush1.msra.mxu0 0.0
    %667 = vmatprep.mubr.f32.mxu0 0.0
    %668 = vmatmul.mubr.f32.gmra.mrb[0].mxu0 %v601
    %v669 = vpop.f32.mrb[0].mxu0
    %v670 = vadd.f32 0.0, %v669
    %v671 = vpop.f32.mrb[0].mxu0
    %672 = vdwg.mxu0
    %673 = vrot.lane.b32.xlu0 %v404, 64
    %v674 = vpop.permute.xlu0 %673
    %v677 = vsel %vm423, %v596, 0
    %679 = vmatprep.subr.mxu0 0.0
    %680 = vmatpush1.msra.mxu0 %v674
    %681 = vmatprep.subr.mxu0 0.0
    %682 = vmatpush1.msra.mxu0 0.0
    %683 = vmatprep.subr.mxu0 0.0
    %684 = vmatpush1.msra.mxu0 0.0
    %685 = vmatprep.subr.mxu0 0.0
    %686 = vmatpush1.msra.mxu0 0.0
    %687 = vmatprep.subr.mxu0 0.0
    %688 = vmatpush1.msra.mxu0 0.0
    %689 = vmatprep.subr.mxu0 0.0
    %690 = vmatpush1.msra.mxu0 0.0
    %691 = vmatprep.subr.mxu0 0.0
    %692 = vmatpush1.msra.mxu0 0.0
    %693 = vmatprep.subr.mxu0 0.0
    %694 = vmatpush1.msra.mxu0 0.0
    %695 = vmatprep.subr.mxu0 0.0
    %696 = vmatpush1.msra.mxu0 0.0
    %697 = vmatprep.subr.mxu0 0.0
    %698 = vmatpush1.msra.mxu0 0.0
    %699 = vmatprep.subr.mxu0 0.0
    %700 = vmatpush1.msra.mxu0 0.0
    %701 = vmatprep.subr.mxu0 0.0
    %702 = vmatpush1.msra.mxu0 0.0
    %703 = vmatprep.subr.mxu0 0.0
    %704 = vmatpush1.msra.mxu0 0.0
    %705 = vmatprep.subr.mxu0 0.0
    %706 = vmatpush1.msra.mxu0 0.0
    %707 = vmatprep.subr.mxu0 0.0
    %708 = vmatpush1.msra.mxu0 0.0
    %709 = vmatprep.subr.mxu0 0.0
    %710 = vmatpush1.msra.mxu0 0.0
    %711 = vmatprep.subr.mxu0 0.0
    %712 = vmatpush1.msra.mxu0 0.0
    %713 = vmatprep.subr.mxu0 0.0
    %714 = vmatpush1.msra.mxu0 0.0
    %715 = vmatprep.subr.mxu0 0.0
    %716 = vmatpush1.msra.mxu0 0.0
    %717 = vmatprep.subr.mxu0 0.0
    %718 = vmatpush1.msra.mxu0 0.0
    %719 = vmatprep.subr.mxu0 0.0
    %720 = vmatpush1.msra.mxu0 0.0
    %721 = vmatprep.subr.mxu0 0.0
    %722 = vmatpush1.msra.mxu0 0.0
    %723 = vmatprep.subr.mxu0 0.0
    %724 = vmatpush1.msra.mxu0 0.0
    %725 = vmatprep.subr.mxu0 0.0
    %726 = vmatpush1.msra.mxu0 0.0
    %727 = vmatprep.subr.mxu0 0.0
    %728 = vmatpush1.msra.mxu0 0.0
    %729 = vmatprep.subr.mxu0 0.0
    %730 = vmatpush1.msra.mxu0 0.0
    %731 = vmatprep.subr.mxu0 0.0
    %732 = vmatpush1.msra.mxu0 0.0
    %733 = vmatprep.subr.mxu0 0.0
    %734 = vmatpush1.msra.mxu0 0.0
    %735 = vmatprep.subr.mxu0 0.0
    %736 = vmatpush1.msra.mxu0 0.0
    %737 = vmatprep.subr.mxu0 0.0
    %738 = vmatpush1.msra.mxu0 0.0
    %739 = vmatprep.subr.mxu0 0.0
    %740 = vmatpush1.msra.mxu0 0.0
    %741 = vmatprep.subr.mxu0 0.0
    %742 = vmatpush1.msra.mxu0 0.0
    %743 = vmatprep.mubr.f32.mxu0 0.0
    %744 = vmatmul.mubr.f32.gmra.mrb[0].mxu0 %v677
    %v745 = vpop.f32.mrb[0].mxu0
    %v746 = vadd.f32 0.0, %v745
    %v747 = vpop.f32.mrb[0].mxu0
    %748 = vdwg.mxu0
    %v750 = vsel %vm423, %v670, 0
    %v753 = vsel %vm423, %v746, 0
    %755 = vmatprep.subr.mxu0 0.0
    %756 = vmatpush1.msra.mxu0 %v407
    %757 = vmatprep.subr.mxu0 0.0
    %758 = vmatpush1.msra.mxu0 0.0
    %759 = vmatprep.subr.mxu0 0.0
    %760 = vmatpush1.msra.mxu0 0.0
    %761 = vmatprep.subr.mxu0 0.0
    %762 = vmatpush1.msra.mxu0 0.0
    %763 = vmatprep.subr.mxu0 0.0
    %764 = vmatpush1.msra.mxu0 0.0
    %765 = vmatprep.subr.mxu0 0.0
    %766 = vmatpush1.msra.mxu0 0.0
    %767 = vmatprep.subr.mxu0 0.0
    %768 = vmatpush1.msra.mxu0 0.0
    %769 = vmatprep.subr.mxu0 0.0
    %770 = vmatpush1.msra.mxu0 0.0
    %771 = vmatprep.subr.mxu0 0.0
    %772 = vmatpush1.msra.mxu0 0.0
    %773 = vmatprep.subr.mxu0 0.0
    %774 = vmatpush1.msra.mxu0 0.0
    %775 = vmatprep.subr.mxu0 0.0
    %776 = vmatpush1.msra.mxu0 0.0
    %777 = vmatprep.subr.mxu0 0.0
    %778 = vmatpush1.msra.mxu0 0.0
    %779 = vmatprep.subr.mxu0 0.0
    %780 = vmatpush1.msra.mxu0 0.0
    %781 = vmatprep.subr.mxu0 0.0
    %782 = vmatpush1.msra.mxu0 0.0
    %783 = vmatprep.subr.mxu0 0.0
    %784 = vmatpush1.msra.mxu0 0.0
    %785 = vmatprep.subr.mxu0 0.0
    %786 = vmatpush1.msra.mxu0 0.0
    %787 = vmatprep.subr.mxu0 0.0
    %788 = vmatpush1.msra.mxu0 0.0
    %789 = vmatprep.subr.mxu0 0.0
    %790 = vmatpush1.msra.mxu0 0.0
    %791 = vmatprep.subr.mxu0 0.0
    %792 = vmatpush1.msra.mxu0 0.0
    %793 = vmatprep.subr.mxu0 0.0
    %794 = vmatpush1.msra.mxu0 0.0
    %795 = vmatprep.subr.mxu0 0.0
    %796 = vmatpush1.msra.mxu0 0.0
    %797 = vmatprep.subr.mxu0 0.0
    %798 = vmatpush1.msra.mxu0 0.0
    %799 = vmatprep.subr.mxu0 0.0
    %800 = vmatpush1.msra.mxu0 0.0
    %801 = vmatprep.subr.mxu0 0.0
    %802 = vmatpush1.msra.mxu0 0.0
    %803 = vmatprep.subr.mxu0 0.0
    %804 = vmatpush1.msra.mxu0 0.0
    %805 = vmatprep.subr.mxu0 0.0
    %806 = vmatpush1.msra.mxu0 0.0
    %807 = vmatprep.subr.mxu0 0.0
    %808 = vmatpush1.msra.mxu0 0.0
    %809 = vmatprep.subr.mxu0 0.0
    %810 = vmatpush1.msra.mxu0 0.0
    %811 = vmatprep.subr.mxu0 0.0
    %812 = vmatpush1.msra.mxu0 0.0
    %813 = vmatprep.subr.mxu0 0.0
    %814 = vmatpush1.msra.mxu0 0.0
    %815 = vmatprep.subr.mxu0 0.0
    %816 = vmatpush1.msra.mxu0 0.0
    %817 = vmatprep.subr.mxu0 0.0
    %818 = vmatpush1.msra.mxu0 0.0
    %819 = vmatprep.mubr.f32.mxu0 0.0
    %820 = vmatmul.mubr.f32.gmra.mrb[0].mxu0 %v750
    %v821 = vpop.f32.mrb[0].mxu0
    %v822 = vadd.f32 0.0, %v821
    %v823 = vpop.f32.mrb[0].mxu0
    %824 = vmatprep.mubr.f32.mxu0 0.0
    %825 = vmatmul.mubr.f32.gmra.mrb[0].mxu0 %v753
    %v826 = vpop.f32.mrb[0].mxu0
    %v827 = vadd.f32 0.0, %v826
    %v828 = vpop.f32.mrb[0].mxu0
    %829 = vdwg.mxu0
    %v830 = vadd.f32 %v418, %v822
    %v831 = vadd.f32 %v419, %v827
    %832 = vrot.lane.b32.xlu0 %v399, 120
    %v833 = vpop.permute.xlu0 %832
    %834 = vrot.lane.b32.xlu0 %v399, 88
    %v835 = vpop.permute.xlu0 %834
    %v836 = vsel %vm423, %v833, 0
    %v838 = vsel %vm423, %v835, 0
    %840 = vmatprep.subr.mxu0 0.0
    %841 = vmatpush1.xpose.msra.mxu0 %v838
    %842 = vmatprep.subr.mxu0 0.0
    %843 = vmatpush1.xpose.msra.mxu0 0.0
    %844 = vmatprep.subr.mxu0 0.0
    %845 = vmatpush1.xpose.msra.mxu0 0.0
    %846 = vmatprep.subr.mxu0 0.0
    %847 = vmatpush1.xpose.msra.mxu0 0.0
    %848 = vmatprep.subr.mxu0 0.0
    %849 = vmatpush1.xpose.msra.mxu0 0.0
    %850 = vmatprep.subr.mxu0 0.0
    %851 = vmatpush1.xpose.msra.mxu0 0.0
    %852 = vmatprep.subr.mxu0 0.0
    %853 = vmatpush1.xpose.msra.mxu0 0.0
    %854 = vmatprep.subr.mxu0 0.0
    %855 = vmatpush1.xpose.msra.mxu0 0.0
    %856 = vmatprep.subr.mxu0 0.0
    %857 = vmatpush1.xpose.msra.mxu0 0.0
    %858 = vmatprep.subr.mxu0 0.0
    %859 = vmatpush1.xpose.msra.mxu0 0.0
    %860 = vmatprep.subr.mxu0 0.0
    %861 = vmatpush1.xpose.msra.mxu0 0.0
    %862 = vmatprep.subr.mxu0 0.0
    %863 = vmatpush1.xpose.msra.mxu0 0.0
    %864 = vmatprep.subr.mxu0 0.0
    %865 = vmatpush1.xpose.msra.mxu0 0.0
    %866 = vmatprep.subr.mxu0 0.0
    %867 = vmatpush1.xpose.msra.mxu0 0.0
    %868 = vmatprep.subr.mxu0 0.0
    %869 = vmatpush1.xpose.msra.mxu0 0.0
    %870 = vmatprep.subr.mxu0 0.0
    %871 = vmatpush1.xpose.msra.mxu0 0.0
    %872 = vmatprep.subr.mxu0 0.0
    %873 = vmatpush1.xpose.msra.mxu0 0.0
    %874 = vmatprep.subr.mxu0 0.0
    %875 = vmatpush1.xpose.msra.mxu0 0.0
    %876 = vmatprep.subr.mxu0 0.0
    %877 = vmatpush1.xpose.msra.mxu0 0.0
    %878 = vmatprep.subr.mxu0 0.0
    %879 = vmatpush1.xpose.msra.mxu0 0.0
    %880 = vmatprep.subr.mxu0 0.0
    %881 = vmatpush1.xpose.msra.mxu0 0.0
    %882 = vmatprep.subr.mxu0 0.0
    %883 = vmatpush1.xpose.msra.mxu0 0.0
    %884 = vmatprep.subr.mxu0 0.0
    %885 = vmatpush1.xpose.msra.mxu0 0.0
    %886 = vmatprep.subr.mxu0 0.0
    %887 = vmatpush1.xpose.msra.mxu0 0.0
    %888 = vmatprep.subr.mxu0 0.0
    %889 = vmatpush1.xpose.msra.mxu0 0.0
    %890 = vmatprep.subr.mxu0 0.0
    %891 = vmatpush1.xpose.msra.mxu0 0.0
    %892 = vmatprep.subr.mxu0 0.0
    %893 = vmatpush1.xpose.msra.mxu0 0.0
    %894 = vmatprep.subr.mxu0 0.0
    %895 = vmatpush1.xpose.msra.mxu0 0.0
    %896 = vmatprep.subr.mxu0 0.0
    %897 = vmatpush1.xpose.msra.mxu0 0.0
    %898 = vmatprep.subr.mxu0 0.0
    %899 = vmatpush1.xpose.msra.mxu0 0.0
    %900 = vmatprep.subr.mxu0 0.0
    %901 = vmatpush1.xpose.msra.mxu0 0.0
    %902 = vmatprep.subr.mxu0 0.0
    %903 = vmatpush1.xpose.msra.mxu0 0.0
    %904 = vmatprep.mubr.f32.mxu0 0.0
    %905 = vmatmul.mubr.f32.gmra.mrb[0].mxu0 %v836
    %v906 = vpop.f32.mrb[0].mxu0
    %v907 = vadd.f32 %v235, %v906
    %v908 = vpop.f32.mrb[0].mxu0
    %909 = vdwg.mxu0
    %910 = vrot.lane.b32.xlu0 %v404, 120
    %v911 = vpop.permute.xlu0 %910
    %912 = vrot.lane.b32.xlu0 %v404, 88
    %v913 = vpop.permute.xlu0 %912
    %v914 = vsel %vm423, %v911, 0
    %v916 = vsel %vm423, %v913, 0
    %918 = vmatprep.subr.mxu0 0.0
    %919 = vmatpush1.xpose.msra.mxu0 %v916
    %920 = vmatprep.subr.mxu0 0.0
    %921 = vmatpush1.xpose.msra.mxu0 0.0
    %922 = vmatprep.subr.mxu0 0.0
    %923 = vmatpush1.xpose.msra.mxu0 0.0
    %924 = vmatprep.subr.mxu0 0.0
    %925 = vmatpush1.xpose.msra.mxu0 0.0
    %926 = vmatprep.subr.mxu0 0.0
    %927 = vmatpush1.xpose.msra.mxu0 0.0
    %928 = vmatprep.subr.mxu0 0.0
    %929 = vmatpush1.xpose.msra.mxu0 0.0
    %930 = vmatprep.subr.mxu0 0.0
    %931 = vmatpush1.xpose.msra.mxu0 0.0
    %932 = vmatprep.subr.mxu0 0.0
    %933 = vmatpush1.xpose.msra.mxu0 0.0
    %934 = vmatprep.subr.mxu0 0.0
    %935 = vmatpush1.xpose.msra.mxu0 0.0
    %936 = vmatprep.subr.mxu0 0.0
    %937 = vmatpush1.xpose.msra.mxu0 0.0
    %938 = vmatprep.subr.mxu0 0.0
    %939 = vmatpush1.xpose.msra.mxu0 0.0
    %940 = vmatprep.subr.mxu0 0.0
    %941 = vmatpush1.xpose.msra.mxu0 0.0
    %942 = vmatprep.subr.mxu0 0.0
    %943 = vmatpush1.xpose.msra.mxu0 0.0
    %944 = vmatprep.subr.mxu0 0.0
    %945 = vmatpush1.xpose.msra.mxu0 0.0
    %946 = vmatprep.subr.mxu0 0.0
    %947 = vmatpush1.xpose.msra.mxu0 0.0
    %948 = vmatprep.subr.mxu0 0.0
    %949 = vmatpush1.xpose.msra.mxu0 0.0
    %950 = vmatprep.subr.mxu0 0.0
    %951 = vmatpush1.xpose.msra.mxu0 0.0
    %952 = vmatprep.subr.mxu0 0.0
    %953 = vmatpush1.xpose.msra.mxu0 0.0
    %954 = vmatprep.subr.mxu0 0.0
    %955 = vmatpush1.xpose.msra.mxu0 0.0
    %956 = vmatprep.subr.mxu0 0.0
    %957 = vmatpush1.xpose.msra.mxu0 0.0
    %958 = vmatprep.subr.mxu0 0.0
    %959 = vmatpush1.xpose.msra.mxu0 0.0
    %960 = vmatprep.subr.mxu0 0.0
    %961 = vmatpush1.xpose.msra.mxu0 0.0
    %962 = vmatprep.subr.mxu0 0.0
    %963 = vmatpush1.xpose.msra.mxu0 0.0
    %964 = vmatprep.subr.mxu0 0.0
    %965 = vmatpush1.xpose.msra.mxu0 0.0
    %966 = vmatprep.subr.mxu0 0.0
    %967 = vmatpush1.xpose.msra.mxu0 0.0
    %968 = vmatprep.subr.mxu0 0.0
    %969 = vmatpush1.xpose.msra.mxu0 0.0
    %970 = vmatprep.subr.mxu0 0.0
    %971 = vmatpush1.xpose.msra.mxu0 0.0
    %972 = vmatprep.subr.mxu0 0.0
    %973 = vmatpush1.xpose.msra.mxu0 0.0
    %974 = vmatprep.subr.mxu0 0.0
    %975 = vmatpush1.xpose.msra.mxu0 0.0
    %976 = vmatprep.subr.mxu0 0.0
    %977 = vmatpush1.xpose.msra.mxu0 0.0
    %978 = vmatprep.subr.mxu0 0.0
    %979 = vmatpush1.xpose.msra.mxu0 0.0
    %980 = vmatprep.subr.mxu0 0.0
    %981 = vmatpush1.xpose.msra.mxu0 0.0
    %982 = vmatprep.mubr.f32.mxu0 0.0
    %983 = vmatmul.mubr.f32.gmra.mrb[0].mxu0 %v914
    %v984 = vpop.f32.mrb[0].mxu0
    %v985 = vadd.f32 %v236, %v984
    %v986 = vpop.f32.mrb[0].mxu0
    %987 = vdwg.mxu0
    %v988 = vsel %vm423, %v907, -inf
    %989 = vmax.xlane.f32.xlu0 %v988
    %v990 = vpop.xlane.xlu0 %989
    %v991 = vsel %vm423, %v985, -inf
    %992 = vmax.xlane.f32.xlu0 %v991
    %v993 = vpop.xlane.xlu0 %992
    %v994 = vsub.f32 %v907, %v990
    %v995 = vsub.f32 %v985, %v993
    %v996 = vmul.f32 %v994, 1.442695
    %v997 = vpow.pop %v996
    %v998 = vmul.f32 %v995, 1.442695
    %v999 = vpow.pop %v998
    %v1000 = vsel %vm423, %v997, 0.0
    %1001 = vadd.xlane.f32.xlu0 %v1000
    %v1002 = vpop.xlane.xlu0 %1001
    %v1003 = vsel %vm423, %v999, 0.0
    %1004 = vadd.xlane.f32.xlu0 %v1003
    %v1005 = vpop.xlane.xlu0 %1004
    %v1006 = vrcp.pop %v1002
    %v1007 = vrcp.pop %v1005
    %v1008 = vmul.f32 %v997, %v1006
    %v1009 = vmul.f32 %v999, %v1007
    %1010 = vrot.lane.b32.xlu0 %v399, 56
    %v1011 = vpop.permute.xlu0 %1010
    %v1014 = vsel %vm423, %v1008, 0
    %1016 = vmatprep.subr.mxu0 0.0
    %1017 = vmatpush1.msra.mxu0 %v1011
    %1018 = vmatprep.subr.mxu0 0.0
    %1019 = vmatpush1.msra.mxu0 0.0
    %1020 = vmatprep.subr.mxu0 0.0
    %1021 = vmatpush1.msra.mxu0 0.0
    %1022 = vmatprep.subr.mxu0 0.0
    %1023 = vmatpush1.msra.mxu0 0.0
    %1024 = vmatprep.subr.mxu0 0.0
    %1025 = vmatpush1.msra.mxu0 0.0
    %1026 = vmatprep.subr.mxu0 0.0
    %1027 = vmatpush1.msra.mxu0 0.0
    %1028 = vmatprep.subr.mxu0 0.0
    %1029 = vmatpush1.msra.mxu0 0.0
    %1030 = vmatprep.subr.mxu0 0.0
    %1031 = vmatpush1.msra.mxu0 0.0
    %1032 = vmatprep.subr.mxu0 0.0
    %1033 = vmatpush1.msra.mxu0 0.0
    %1034 = vmatprep.subr.mxu0 0.0
    %1035 = vmatpush1.msra.mxu0 0.0
    %1036 = vmatprep.subr.mxu0 0.0
    %1037 = vmatpush1.msra.mxu0 0.0
    %1038 = vmatprep.subr.mxu0 0.0
    %1039 = vmatpush1.msra.mxu0 0.0
    %1040 = vmatprep.subr.mxu0 0.0
    %1041 = vmatpush1.msra.mxu0 0.0
    %1042 = vmatprep.subr.mxu0 0.0
    %1043 = vmatpush1.msra.mxu0 0.0
    %1044 = vmatprep.subr.mxu0 0.0
    %1045 = vmatpush1.msra.mxu0 0.0
    %1046 = vmatprep.subr.mxu0 0.0
    %1047 = vmatpush1.msra.mxu0 0.0
    %1048 = vmatprep.subr.mxu0 0.0
    %1049 = vmatpush1.msra.mxu0 0.0
    %1050 = vmatprep.subr.mxu0 0.0
    %1051 = vmatpush1.msra.mxu0 0.0
    %1052 = vmatprep.subr.mxu0 0.0
    %1053 = vmatpush1.msra.mxu0 0.0
    %1054 = vmatprep.subr.mxu0 0.0
    %1055 = vmatpush1.msra.mxu0 0.0
    %1056 = vmatprep.subr.mxu0 0.0
    %1057 = vmatpush1.msra.mxu0 0.0
    %1058 = vmatprep.subr.mxu0 0.0
    %1059 = vmatpush1.msra.mxu0 0.0
    %1060 = vmatprep.subr.mxu0 0.0
    %1061 = vmatpush1.msra.mxu0 0.0
    %1062 = vmatprep.subr.mxu0 0.0
    %1063 = vmatpush1.msra.mxu0 0.0
    %1064 = vmatprep.subr.mxu0 0.0
    %1065 = vmatpush1.msra.mxu0 0.0
    %1066 = vmatprep.subr.mxu0 0.0
    %1067 = vmatpush1.msra.mxu0 0.0
    %1068 = vmatprep.subr.mxu0 0.0
    %1069 = vmatpush1.msra.mxu0 0.0
    %1070 = vmatprep.subr.mxu0 0.0
    %1071 = vmatpush1.msra.mxu0 0.0
    %1072 = vmatprep.subr.mxu0 0.0
    %1073 = vmatpush1.msra.mxu0 0.0
    %1074 = vmatprep.subr.mxu0 0.0
    %1075 = vmatpush1.msra.mxu0 0.0
    %1076 = vmatprep.subr.mxu0 0.0
    %1077 = vmatpush1.msra.mxu0 0.0
    %1078 = vmatprep.subr.mxu0 0.0
    %1079 = vmatpush1.msra.mxu0 0.0
    %1080 = vmatprep.mubr.f32.mxu0 0.0
    %1081 = vmatmul.mubr.f32.gmra.mrb[0].mxu0 %v1014
    %v1082 = vpop.f32.mrb[0].mxu0
    %v1083 = vadd.f32 0.0, %v1082
    %v1084 = vpop.f32.mrb[0].mxu0
    %1085 = vdwg.mxu0
    %1086 = vrot.lane.b32.xlu0 %v404, 56
    %v1087 = vpop.permute.xlu0 %1086
    %v1090 = vsel %vm423, %v1009, 0
    %1092 = vmatprep.subr.mxu0 0.0
    %1093 = vmatpush1.msra.mxu0 %v1087
    %1094 = vmatprep.subr.mxu0 0.0
    %1095 = vmatpush1.msra.mxu0 0.0
    %1096 = vmatprep.subr.mxu0 0.0
    %1097 = vmatpush1.msra.mxu0 0.0
    %1098 = vmatprep.subr.mxu0 0.0
    %1099 = vmatpush1.msra.mxu0 0.0
    %1100 = vmatprep.subr.mxu0 0.0
    %1101 = vmatpush1.msra.mxu0 0.0
    %1102 = vmatprep.subr.mxu0 0.0
    %1103 = vmatpush1.msra.mxu0 0.0
    %1104 = vmatprep.subr.mxu0 0.0
    %1105 = vmatpush1.msra.mxu0 0.0
    %1106 = vmatprep.subr.mxu0 0.0
    %1107 = vmatpush1.msra.mxu0 0.0
    %1108 = vmatprep.subr.mxu0 0.0
    %1109 = vmatpush1.msra.mxu0 0.0
    %1110 = vmatprep.subr.mxu0 0.0
    %1111 = vmatpush1.msra.mxu0 0.0
    %1112 = vmatprep.subr.mxu0 0.0
    %1113 = vmatpush1.msra.mxu0 0.0
    %1114 = vmatprep.subr.mxu0 0.0
    %1115 = vmatpush1.msra.mxu0 0.0
    %1116 = vmatprep.subr.mxu0 0.0
    %1117 = vmatpush1.msra.mxu0 0.0
    %1118 = vmatprep.subr.mxu0 0.0
    %1119 = vmatpush1.msra.mxu0 0.0
    %1120 = vmatprep.subr.mxu0 0.0
    %1121 = vmatpush1.msra.mxu0 0.0
    %1122 = vmatprep.subr.mxu0 0.0
    %1123 = vmatpush1.msra.mxu0 0.0
    %1124 = vmatprep.subr.mxu0 0.0
    %1125 = vmatpush1.msra.mxu0 0.0
    %1126 = vmatprep.subr.mxu0 0.0
    %1127 = vmatpush1.msra.mxu0 0.0
    %1128 = vmatprep.subr.mxu0 0.0
    %1129 = vmatpush1.msra.mxu0 0.0
    %1130 = vmatprep.subr.mxu0 0.0
    %1131 = vmatpush1.msra.mxu0 0.0
    %1132 = vmatprep.subr.mxu0 0.0
    %1133 = vmatpush1.msra.mxu0 0.0
    %1134 = vmatprep.subr.mxu0 0.0
    %1135 = vmatpush1.msra.mxu0 0.0
    %1136 = vmatprep.subr.mxu0 0.0
    %1137 = vmatpush1.msra.mxu0 0.0
    %1138 = vmatprep.subr.mxu0 0.0
    %1139 = vmatpush1.msra.mxu0 0.0
    %1140 = vmatprep.subr.mxu0 0.0
    %1141 = vmatpush1.msra.mxu0 0.0
    %1142 = vmatprep.subr.mxu0 0.0
    %1143 = vmatpush1.msra.mxu0 0.0
    %1144 = vmatprep.subr.mxu0 0.0
    %1145 = vmatpush1.msra.mxu0 0.0
    %1146 = vmatprep.subr.mxu0 0.0
    %1147 = vmatpush1.msra.mxu0 0.0
    %1148 = vmatprep.subr.mxu0 0.0
    %1149 = vmatpush1.msra.mxu0 0.0
    %1150 = vmatprep.subr.mxu0 0.0
    %1151 = vmatpush1.msra.mxu0 0.0
    %1152 = vmatprep.subr.mxu0 0.0
    %1153 = vmatpush1.msra.mxu0 0.0
    %1154 = vmatprep.subr.mxu0 0.0
    %1155 = vmatpush1.msra.mxu0 0.0
    %1156 = vmatprep.mubr.f32.mxu0 0.0
    %1157 = vmatmul.mubr.f32.gmra.mrb[0].mxu0 %v1090
    %v1158 = vpop.f32.mrb[0].mxu0
    %v1159 = vadd.f32 0.0, %v1158
    %v1160 = vpop.f32.mrb[0].mxu0
    %1161 = vdwg.mxu0
    %v1163 = vsel %vm423, %v1083, 0
    %v1166 = vsel %vm423, %v1159, 0
    %1168 = vmatprep.subr.mxu0 0.0
    %1169 = vmatpush1.msra.mxu0 %v408
    %1170 = vmatprep.subr.mxu0 0.0
    %1171 = vmatpush1.msra.mxu0 0.0
    %1172 = vmatprep.subr.mxu0 0.0
    %1173 = vmatpush1.msra.mxu0 0.0
    %1174 = vmatprep.subr.mxu0 0.0
    %1175 = vmatpush1.msra.mxu0 0.0
    %1176 = vmatprep.subr.mxu0 0.0
    %1177 = vmatpush1.msra.mxu0 0.0
    %1178 = vmatprep.subr.mxu0 0.0
    %1179 = vmatpush1.msra.mxu0 0.0
    %1180 = vmatprep.subr.mxu0 0.0
    %1181 = vmatpush1.msra.mxu0 0.0
    %1182 = vmatprep.subr.mxu0 0.0
    %1183 = vmatpush1.msra.mxu0 0.0
    %1184 = vmatprep.subr.mxu0 0.0
    %1185 = vmatpush1.msra.mxu0 0.0
    %1186 = vmatprep.subr.mxu0 0.0
    %1187 = vmatpush1.msra.mxu0 0.0
    %1188 = vmatprep.subr.mxu0 0.0
    %1189 = vmatpush1.msra.mxu0 0.0
    %1190 = vmatprep.subr.mxu0 0.0
    %1191 = vmatpush1.msra.mxu0 0.0
    %1192 = vmatprep.subr.mxu0 0.0
    %1193 = vmatpush1.msra.mxu0 0.0
    %1194 = vmatprep.subr.mxu0 0.0
    %1195 = vmatpush1.msra.mxu0 0.0
    %1196 = vmatprep.subr.mxu0 0.0
    %1197 = vmatpush1.msra.mxu0 0.0
    %1198 = vmatprep.subr.mxu0 0.0
    %1199 = vmatpush1.msra.mxu0 0.0
    %1200 = vmatprep.subr.mxu0 0.0
    %1201 = vmatpush1.msra.mxu0 0.0
    %1202 = vmatprep.subr.mxu0 0.0
    %1203 = vmatpush1.msra.mxu0 0.0
    %1204 = vmatprep.subr.mxu0 0.0
    %1205 = vmatpush1.msra.mxu0 0.0
    %1206 = vmatprep.subr.mxu0 0.0
    %1207 = vmatpush1.msra.mxu0 0.0
    %1208 = vmatprep.subr.mxu0 0.0
    %1209 = vmatpush1.msra.mxu0 0.0
    %1210 = vmatprep.subr.mxu0 0.0
    %1211 = vmatpush1.msra.mxu0 0.0
    %1212 = vmatprep.subr.mxu0 0.0
    %1213 = vmatpush1.msra.mxu0 0.0
    %1214 = vmatprep.subr.mxu0 0.0
    %1215 = vmatpush1.msra.mxu0 0.0
    %1216 = vmatprep.subr.mxu0 0.0
    %1217 = vmatpush1.msra.mxu0 0.0
    %1218 = vmatprep.subr.mxu0 0.0
    %1219 = vmatpush1.msra.mxu0 0.0
    %1220 = vmatprep.subr.mxu0 0.0
    %1221 = vmatpush1.msra.mxu0 0.0
    %1222 = vmatprep.subr.mxu0 0.0
    %1223 = vmatpush1.msra.mxu0 0.0
    %1224 = vmatprep.subr.mxu0 0.0
    %1225 = vmatpush1.msra.mxu0 0.0
    %1226 = vmatprep.subr.mxu0 0.0
    %1227 = vmatpush1.msra.mxu0 0.0
    %1228 = vmatprep.subr.mxu0 0.0
    %1229 = vmatpush1.msra.mxu0 0.0
    %1230 = vmatprep.subr.mxu0 0.0
    %1231 = vmatpush1.msra.mxu0 0.0
    %1232 = vmatprep.mubr.f32.mxu0 0.0
    %1233 = vmatmul.mubr.f32.gmra.mrb[0].mxu0 %v1163
    %v1234 = vpop.f32.mrb[0].mxu0
    %v1235 = vadd.f32 0.0, %v1234
    %v1236 = vpop.f32.mrb[0].mxu0
    %1237 = vmatprep.mubr.f32.mxu0 0.0
    %1238 = vmatmul.mubr.f32.gmra.mrb[0].mxu0 %v1166
    %v1239 = vpop.f32.mrb[0].mxu0
    %v1240 = vadd.f32 0.0, %v1239
    %v1241 = vpop.f32.mrb[0].mxu0
    %1242 = vdwg.mxu0
    %v1243 = vadd.f32 %v830, %v1235
    %v1244 = vadd.f32 %v831, %v1240
    %1245 = vrot.lane.b32.xlu0 %v399, 112
    %v1246 = vpop.permute.xlu0 %1245
    %1247 = vrot.lane.b32.xlu0 %v399, 80
    %v1248 = vpop.permute.xlu0 %1247
    %v1249 = vsel %vm423, %v1246, 0
    %v1251 = vsel %vm423, %v1248, 0
    %1253 = vmatprep.subr.mxu0 0.0
    %1254 = vmatpush1.xpose.msra.mxu0 %v1251
    %1255 = vmatprep.subr.mxu0 0.0
    %1256 = vmatpush1.xpose.msra.mxu0 0.0
    %1257 = vmatprep.subr.mxu0 0.0
    %1258 = vmatpush1.xpose.msra.mxu0 0.0
    %1259 = vmatprep.subr.mxu0 0.0
    %1260 = vmatpush1.xpose.msra.mxu0 0.0
    %1261 = vmatprep.subr.mxu0 0.0
    %1262 = vmatpush1.xpose.msra.mxu0 0.0
    %1263 = vmatprep.subr.mxu0 0.0
    %1264 = vmatpush1.xpose.msra.mxu0 0.0
    %1265 = vmatprep.subr.mxu0 0.0
    %1266 = vmatpush1.xpose.msra.mxu0 0.0
    %1267 = vmatprep.subr.mxu0 0.0
    %1268 = vmatpush1.xpose.msra.mxu0 0.0
    %1269 = vmatprep.subr.mxu0 0.0
    %1270 = vmatpush1.xpose.msra.mxu0 0.0
    %1271 = vmatprep.subr.mxu0 0.0
    %1272 = vmatpush1.xpose.msra.mxu0 0.0
    %1273 = vmatprep.subr.mxu0 0.0
    %1274 = vmatpush1.xpose.msra.mxu0 0.0
    %1275 = vmatprep.subr.mxu0 0.0
    %1276 = vmatpush1.xpose.msra.mxu0 0.0
    %1277 = vmatprep.subr.mxu0 0.0
    %1278 = vmatpush1.xpose.msra.mxu0 0.0
    %1279 = vmatprep.subr.mxu0 0.0
    %1280 = vmatpush1.xpose.msra.mxu0 0.0
    %1281 = vmatprep.subr.mxu0 0.0
    %1282 = vmatpush1.xpose.msra.mxu0 0.0
    %1283 = vmatprep.subr.mxu0 0.0
    %1284 = vmatpush1.xpose.msra.mxu0 0.0
    %1285 = vmatprep.subr.mxu0 0.0
    %1286 = vmatpush1.xpose.msra.mxu0 0.0
    %1287 = vmatprep.subr.mxu0 0.0
    %1288 = vmatpush1.xpose.msra.mxu0 0.0
    %1289 = vmatprep.subr.mxu0 0.0
    %1290 = vmatpush1.xpose.msra.mxu0 0.0
    %1291 = vmatprep.subr.mxu0 0.0
    %1292 = vmatpush1.xpose.msra.mxu0 0.0
    %1293 = vmatprep.subr.mxu0 0.0
    %1294 = vmatpush1.xpose.msra.mxu0 0.0
    %1295 = vmatprep.subr.mxu0 0.0
    %1296 = vmatpush1.xpose.msra.mxu0 0.0
    %1297 = vmatprep.subr.mxu0 0.0
    %1298 = vmatpush1.xpose.msra.mxu0 0.0
    %1299 = vmatprep.subr.mxu0 0.0
    %1300 = vmatpush1.xpose.msra.mxu0 0.0
    %1301 = vmatprep.subr.mxu0 0.0
    %1302 = vmatpush1.xpose.msra.mxu0 0.0
    %1303 = vmatprep.subr.mxu0 0.0
    %1304 = vmatpush1.xpose.msra.mxu0 0.0
    %1305 = vmatprep.subr.mxu0 0.0
    %1306 = vmatpush1.xpose.msra.mxu0 0.0
    %1307 = vmatprep.subr.mxu0 0.0
    %1308 = vmatpush1.xpose.msra.mxu0 0.0
    %1309 = vmatprep.subr.mxu0 0.0
    %1310 = vmatpush1.xpose.msra.mxu0 0.0
    %1311 = vmatprep.subr.mxu0 0.0
    %1312 = vmatpush1.xpose.msra.mxu0 0.0
    %1313 = vmatprep.subr.mxu0 0.0
    %1314 = vmatpush1.xpose.msra.mxu0 0.0
    %1315 = vmatprep.subr.mxu0 0.0
    %1316 = vmatpush1.xpose.msra.mxu0 0.0
    %1317 = vmatprep.mubr.f32.mxu0 0.0
    %1318 = vmatmul.mubr.f32.gmra.mrb[0].mxu0 %v1249
    %v1319 = vpop.f32.mrb[0].mxu0
    %v1320 = vadd.f32 %v235, %v1319
    %v1321 = vpop.f32.mrb[0].mxu0
    %1322 = vdwg.mxu0
    %1323 = vrot.lane.b32.xlu0 %v404, 112
    %v1324 = vpop.permute.xlu0 %1323
    %1325 = vrot.lane.b32.xlu0 %v404, 80
    %v1326 = vpop.permute.xlu0 %1325
    %v1327 = vsel %vm423, %v1324, 0
    %v1329 = vsel %vm423, %v1326, 0
    %1331 = vmatprep.subr.mxu0 0.0
    %1332 = vmatpush1.xpose.msra.mxu0 %v1329
    %1333 = vmatprep.subr.mxu0 0.0
    %1334 = vmatpush1.xpose.msra.mxu0 0.0
    %1335 = vmatprep.subr.mxu0 0.0
    %1336 = vmatpush1.xpose.msra.mxu0 0.0
    %1337 = vmatprep.subr.mxu0 0.0
    %1338 = vmatpush1.xpose.msra.mxu0 0.0
    %1339 = vmatprep.subr.mxu0 0.0
    %1340 = vmatpush1.xpose.msra.mxu0 0.0
    %1341 = vmatprep.subr.mxu0 0.0
    %1342 = vmatpush1.xpose.msra.mxu0 0.0
    %1343 = vmatprep.subr.mxu0 0.0
    %1344 = vmatpush1.xpose.msra.mxu0 0.0
    %1345 = vmatprep.subr.mxu0 0.0
    %1346 = vmatpush1.xpose.msra.mxu0 0.0
    %1347 = vmatprep.subr.mxu0 0.0
    %1348 = vmatpush1.xpose.msra.mxu0 0.0
    %1349 = vmatprep.subr.mxu0 0.0
    %1350 = vmatpush1.xpose.msra.mxu0 0.0
    %1351 = vmatprep.subr.mxu0 0.0
    %1352 = vmatpush1.xpose.msra.mxu0 0.0
    %1353 = vmatprep.subr.mxu0 0.0
    %1354 = vmatpush1.xpose.msra.mxu0 0.0
    %1355 = vmatprep.subr.mxu0 0.0
    %1356 = vmatpush1.xpose.msra.mxu0 0.0
    %1357 = vmatprep.subr.mxu0 0.0
    %1358 = vmatpush1.xpose.msra.mxu0 0.0
    %1359 = vmatprep.subr.mxu0 0.0
    %1360 = vmatpush1.xpose.msra.mxu0 0.0
    %1361 = vmatprep.subr.mxu0 0.0
    %1362 = vmatpush1.xpose.msra.mxu0 0.0
    %1363 = vmatprep.subr.mxu0 0.0
    %1364 = vmatpush1.xpose.msra.mxu0 0.0
    %1365 = vmatprep.subr.mxu0 0.0
    %1366 = vmatpush1.xpose.msra.mxu0 0.0
    %1367 = vmatprep.subr.mxu0 0.0
    %1368 = vmatpush1.xpose.msra.mxu0 0.0
    %1369 = vmatprep.subr.mxu0 0.0
    %1370 = vmatpush1.xpose.msra.mxu0 0.0
    %1371 = vmatprep.subr.mxu0 0.0
    %1372 = vmatpush1.xpose.msra.mxu0 0.0
    %1373 = vmatprep.subr.mxu0 0.0
    %1374 = vmatpush1.xpose.msra.mxu0 0.0
    %1375 = vmatprep.subr.mxu0 0.0
    %1376 = vmatpush1.xpose.msra.mxu0 0.0
    %1377 = vmatprep.subr.mxu0 0.0
    %1378 = vmatpush1.xpose.msra.mxu0 0.0
    %1379 = vmatprep.subr.mxu0 0.0
    %1380 = vmatpush1.xpose.msra.mxu0 0.0
    %1381 = vmatprep.subr.mxu0 0.0
    %1382 = vmatpush1.xpose.msra.mxu0 0.0
    %1383 = vmatprep.subr.mxu0 0.0
    %1384 = vmatpush1.xpose.msra.mxu0 0.0
    %1385 = vmatprep.subr.mxu0 0.0
    %1386 = vmatpush1.xpose.msra.mxu0 0.0
    %1387 = vmatprep.subr.mxu0 0.0
    %1388 = vmatpush1.xpose.msra.mxu0 0.0
    %1389 = vmatprep.subr.mxu0 0.0
    %1390 = vmatpush1.xpose.msra.mxu0 0.0
    %1391 = vmatprep.subr.mxu0 0.0
    %1392 = vmatpush1.xpose.msra.mxu0 0.0
    %1393 = vmatprep.subr.mxu0 0.0
    %1394 = vmatpush1.xpose.msra.mxu0 0.0
    %1395 = vmatprep.mubr.f32.mxu0 0.0
    %1396 = vmatmul.mubr.f32.gmra.mrb[0].mxu0 %v1327
    %v1397 = vpop.f32.mrb[0].mxu0
    %v1398 = vadd.f32 %v236, %v1397
    %v1399 = vpop.f32.mrb[0].mxu0
    %1400 = vdwg.mxu0
    %v1401 = vsel %vm423, %v1320, -inf
    %1402 = vmax.xlane.f32.xlu0 %v1401
    %v1403 = vpop.xlane.xlu0 %1402
    %v1404 = vsel %vm423, %v1398, -inf
    %1405 = vmax.xlane.f32.xlu0 %v1404
    %v1406 = vpop.xlane.xlu0 %1405
    %v1407 = vsub.f32 %v1320, %v1403
    %v1408 = vsub.f32 %v1398, %v1406
    %v1409 = vmul.f32 %v1407, 1.442695
    %v1410 = vpow.pop %v1409
    %v1411 = vmul.f32 %v1408, 1.442695
    %v1412 = vpow.pop %v1411
    %v1413 = vsel %vm423, %v1410, 0.0
    %1414 = vadd.xlane.f32.xlu0 %v1413
    %v1415 = vpop.xlane.xlu0 %1414
    %v1416 = vsel %vm423, %v1412, 0.0
    %1417 = vadd.xlane.f32.xlu0 %v1416
    %v1418 = vpop.xlane.xlu0 %1417
    %v1419 = vrcp.pop %v1415
    %v1420 = vrcp.pop %v1418
    %v1421 = vmul.f32 %v1410, %v1419
    %v1422 = vmul.f32 %v1412, %v1420
    %1423 = vrot.lane.b32.xlu0 %v399, 48
    %v1424 = vpop.permute.xlu0 %1423
    %v1427 = vsel %vm423, %v1421, 0
    %1429 = vmatprep.subr.mxu0 0.0
    %1430 = vmatpush1.msra.mxu0 %v1424
    %1431 = vmatprep.subr.mxu0 0.0
    %1432 = vmatpush1.msra.mxu0 0.0
    %1433 = vmatprep.subr.mxu0 0.0
    %1434 = vmatpush1.msra.mxu0 0.0
    %1435 = vmatprep.subr.mxu0 0.0
    %1436 = vmatpush1.msra.mxu0 0.0
    %1437 = vmatprep.subr.mxu0 0.0
    %1438 = vmatpush1.msra.mxu0 0.0
    %1439 = vmatprep.subr.mxu0 0.0
    %1440 = vmatpush1.msra.mxu0 0.0
    %1441 = vmatprep.subr.mxu0 0.0
    %1442 = vmatpush1.msra.mxu0 0.0
    %1443 = vmatprep.subr.mxu0 0.0
    %1444 = vmatpush1.msra.mxu0 0.0
    %1445 = vmatprep.subr.mxu0 0.0
    %1446 = vmatpush1.msra.mxu0 0.0
    %1447 = vmatprep.subr.mxu0 0.0
    %1448 = vmatpush1.msra.mxu0 0.0
    %1449 = vmatprep.subr.mxu0 0.0
    %1450 = vmatpush1.msra.mxu0 0.0
    %1451 = vmatprep.subr.mxu0 0.0
    %1452 = vmatpush1.msra.mxu0 0.0
    %1453 = vmatprep.subr.mxu0 0.0
    %1454 = vmatpush1.msra.mxu0 0.0
    %1455 = vmatprep.subr.mxu0 0.0
    %1456 = vmatpush1.msra.mxu0 0.0
    %1457 = vmatprep.subr.mxu0 0.0
    %1458 = vmatpush1.msra.mxu0 0.0
    %1459 = vmatprep.subr.mxu0 0.0
    %1460 = vmatpush1.msra.mxu0 0.0
    %1461 = vmatprep.subr.mxu0 0.0
    %1462 = vmatpush1.msra.mxu0 0.0
    %1463 = vmatprep.subr.mxu0 0.0
    %1464 = vmatpush1.msra.mxu0 0.0
    %1465 = vmatprep.subr.mxu0 0.0
    %1466 = vmatpush1.msra.mxu0 0.0
    %1467 = vmatprep.subr.mxu0 0.0
    %1468 = vmatpush1.msra.mxu0 0.0
    %1469 = vmatprep.subr.mxu0 0.0
    %1470 = vmatpush1.msra.mxu0 0.0
    %1471 = vmatprep.subr.mxu0 0.0
    %1472 = vmatpush1.msra.mxu0 0.0
    %1473 = vmatprep.subr.mxu0 0.0
    %1474 = vmatpush1.msra.mxu0 0.0
    %1475 = vmatprep.subr.mxu0 0.0
    %1476 = vmatpush1.msra.mxu0 0.0
    %1477 = vmatprep.subr.mxu0 0.0
    %1478 = vmatpush1.msra.mxu0 0.0
    %1479 = vmatprep.subr.mxu0 0.0
    %1480 = vmatpush1.msra.mxu0 0.0
    %1481 = vmatprep.subr.mxu0 0.0
    %1482 = vmatpush1.msra.mxu0 0.0
    %1483 = vmatprep.subr.mxu0 0.0
    %1484 = vmatpush1.msra.mxu0 0.0
    %1485 = vmatprep.subr.mxu0 0.0
    %1486 = vmatpush1.msra.mxu0 0.0
    %1487 = vmatprep.subr.mxu0 0.0
    %1488 = vmatpush1.msra.mxu0 0.0
    %1489 = vmatprep.subr.mxu0 0.0
    %1490 = vmatpush1.msra.mxu0 0.0
    %1491 = vmatprep.subr.mxu0 0.0
    %1492 = vmatpush1.msra.mxu0 0.0
    %1493 = vmatprep.mubr.f32.mxu0 0.0
    %1494 = vmatmul.mubr.f32.gmra.mrb[0].mxu0 %v1427
    %v1495 = vpop.f32.mrb[0].mxu0
    %v1496 = vadd.f32 0.0, %v1495
    %v1497 = vpop.f32.mrb[0].mxu0
    %1498 = vdwg.mxu0
    %1499 = vrot.lane.b32.xlu0 %v404, 48
    %v1500 = vpop.permute.xlu0 %1499
    %v1503 = vsel %vm423, %v1422, 0
    %1505 = vmatprep.subr.mxu0 0.0
    %1506 = vmatpush1.msra.mxu0 %v1500
    %1507 = vmatprep.subr.mxu0 0.0
    %1508 = vmatpush1.msra.mxu0 0.0
    %1509 = vmatprep.subr.mxu0 0.0
    %1510 = vmatpush1.msra.mxu0 0.0
    %1511 = vmatprep.subr.mxu0 0.0
    %1512 = vmatpush1.msra.mxu0 0.0
    %1513 = vmatprep.subr.mxu0 0.0
    %1514 = vmatpush1.msra.mxu0 0.0
    %1515 = vmatprep.subr.mxu0 0.0
    %1516 = vmatpush1.msra.mxu0 0.0
    %1517 = vmatprep.subr.mxu0 0.0
    %1518 = vmatpush1.msra.mxu0 0.0
    %1519 = vmatprep.subr.mxu0 0.0
    %1520 = vmatpush1.msra.mxu0 0.0
    %1521 = vmatprep.subr.mxu0 0.0
    %1522 = vmatpush1.msra.mxu0 0.0
    %1523 = vmatprep.subr.mxu0 0.0
    %1524 = vmatpush1.msra.mxu0 0.0
    %1525 = vmatprep.subr.mxu0 0.0
    %1526 = vmatpush1.msra.mxu0 0.0
    %1527 = vmatprep.subr.mxu0 0.0
    %1528 = vmatpush1.msra.mxu0 0.0
    %1529 = vmatprep.subr.mxu0 0.0
    %1530 = vmatpush1.msra.mxu0 0.0
    %1531 = vmatprep.subr.mxu0 0.0
    %1532 = vmatpush1.msra.mxu0 0.0
    %1533 = vmatprep.subr.mxu0 0.0
    %1534 = vmatpush1.msra.mxu0 0.0
    %1535 = vmatprep.subr.mxu0 0.0
    %1536 = vmatpush1.msra.mxu0 0.0
    %1537 = vmatprep.subr.mxu0 0.0
    %1538 = vmatpush1.msra.mxu0 0.0
    %1539 = vmatprep.subr.mxu0 0.0
    %1540 = vmatpush1.msra.mxu0 0.0
    %1541 = vmatprep.subr.mxu0 0.0
    %1542 = vmatpush1.msra.mxu0 0.0
    %1543 = vmatprep.subr.mxu0 0.0
    %1544 = vmatpush1.msra.mxu0 0.0
    %1545 = vmatprep.subr.mxu0 0.0
    %1546 = vmatpush1.msra.mxu0 0.0
    %1547 = vmatprep.subr.mxu0 0.0
    %1548 = vmatpush1.msra.mxu0 0.0
    %1549 = vmatprep.subr.mxu0 0.0
    %1550 = vmatpush1.msra.mxu0 0.0
    %1551 = vmatprep.subr.mxu0 0.0
    %1552 = vmatpush1.msra.mxu0 0.0
    %1553 = vmatprep.subr.mxu0 0.0
    %1554 = vmatpush1.msra.mxu0 0.0
    %1555 = vmatprep.subr.mxu0 0.0
    %1556 = vmatpush1.msra.mxu0 0.0
    %1557 = vmatprep.subr.mxu0 0.0
    %1558 = vmatpush1.msra.mxu0 0.0
    %1559 = vmatprep.subr.mxu0 0.0
    %1560 = vmatpush1.msra.mxu0 0.0
    %1561 = vmatprep.subr.mxu0 0.0
    %1562 = vmatpush1.msra.mxu0 0.0
    %1563 = vmatprep.subr.mxu0 0.0
    %1564 = vmatpush1.msra.mxu0 0.0
    %1565 = vmatprep.subr.mxu0 0.0
    %1566 = vmatpush1.msra.mxu0 0.0
    %1567 = vmatprep.subr.mxu0 0.0
    %1568 = vmatpush1.msra.mxu0 0.0
    %1569 = vmatprep.mubr.f32.mxu0 0.0
    %1570 = vmatmul.mubr.f32.gmra.mrb[0].mxu0 %v1503
    %v1571 = vpop.f32.mrb[0].mxu0
    %v1572 = vadd.f32 0.0, %v1571
    %v1573 = vpop.f32.mrb[0].mxu0
    %1574 = vdwg.mxu0
    %v1576 = vsel %vm423, %v1496, 0
    %v1579 = vsel %vm423, %v1572, 0
    %1581 = vmatprep.subr.mxu0 0.0
    %1582 = vmatpush1.msra.mxu0 %v409
    %1583 = vmatprep.subr.mxu0 0.0
    %1584 = vmatpush1.msra.mxu0 0.0
    %1585 = vmatprep.subr.mxu0 0.0
    %1586 = vmatpush1.msra.mxu0 0.0
    %1587 = vmatprep.subr.mxu0 0.0
    %1588 = vmatpush1.msra.mxu0 0.0
    %1589 = vmatprep.subr.mxu0 0.0
    %1590 = vmatpush1.msra.mxu0 0.0
    %1591 = vmatprep.subr.mxu0 0.0
    %1592 = vmatpush1.msra.mxu0 0.0
    %1593 = vmatprep.subr.mxu0 0.0
    %1594 = vmatpush1.msra.mxu0 0.0
    %1595 = vmatprep.subr.mxu0 0.0
    %1596 = vmatpush1.msra.mxu0 0.0
    %1597 = vmatprep.subr.mxu0 0.0
    %1598 = vmatpush1.msra.mxu0 0.0
    %1599 = vmatprep.subr.mxu0 0.0
    %1600 = vmatpush1.msra.mxu0 0.0
    %1601 = vmatprep.subr.mxu0 0.0
    %1602 = vmatpush1.msra.mxu0 0.0
    %1603 = vmatprep.subr.mxu0 0.0
    %1604 = vmatpush1.msra.mxu0 0.0
    %1605 = vmatprep.subr.mxu0 0.0
    %1606 = vmatpush1.msra.mxu0 0.0
    %1607 = vmatprep.subr.mxu0 0.0
    %1608 = vmatpush1.msra.mxu0 0.0
    %1609 = vmatprep.subr.mxu0 0.0
    %1610 = vmatpush1.msra.mxu0 0.0
    %1611 = vmatprep.subr.mxu0 0.0
    %1612 = vmatpush1.msra.mxu0 0.0
    %1613 = vmatprep.subr.mxu0 0.0
    %1614 = vmatpush1.msra.mxu0 0.0
    %1615 = vmatprep.subr.mxu0 0.0
    %1616 = vmatpush1.msra.mxu0 0.0
    %1617 = vmatprep.subr.mxu0 0.0
    %1618 = vmatpush1.msra.mxu0 0.0
    %1619 = vmatprep.subr.mxu0 0.0
    %1620 = vmatpush1.msra.mxu0 0.0
    %1621 = vmatprep.subr.mxu0 0.0
    %1622 = vmatpush1.msra.mxu0 0.0
    %1623 = vmatprep.subr.mxu0 0.0
    %1624 = vmatpush1.msra.mxu0 0.0
    %1625 = vmatprep.subr.mxu0 0.0
    %1626 = vmatpush1.msra.mxu0 0.0
    %1627 = vmatprep.subr.mxu0 0.0
    %1628 = vmatpush1.msra.mxu0 0.0
    %1629 = vmatprep.subr.mxu0 0.0
    %1630 = vmatpush1.msra.mxu0 0.0
    %1631 = vmatprep.subr.mxu0 0.0
    %1632 = vmatpush1.msra.mxu0 0.0
    %1633 = vmatprep.subr.mxu0 0.0
    %1634 = vmatpush1.msra.mxu0 0.0
    %1635 = vmatprep.subr.mxu0 0.0
    %1636 = vmatpush1.msra.mxu0 0.0
    %1637 = vmatprep.subr.mxu0 0.0
    %1638 = vmatpush1.msra.mxu0 0.0
    %1639 = vmatprep.subr.mxu0 0.0
    %1640 = vmatpush1.msra.mxu0 0.0
    %1641 = vmatprep.subr.mxu0 0.0
    %1642 = vmatpush1.msra.mxu0 0.0
    %1643 = vmatprep.subr.mxu0 0.0
    %1644 = vmatpush1.msra.mxu0 0.0
    %1645 = vmatprep.mubr.f32.mxu0 0.0
    %1646 = vmatmul.mubr.f32.gmra.mrb[0].mxu0 %v1576
    %v1647 = vpop.f32.mrb[0].mxu0
    %v1648 = vadd.f32 0.0, %v1647
    %v1649 = vpop.f32.mrb[0].mxu0
    %1650 = vmatprep.mubr.f32.mxu0 0.0
    %1651 = vmatmul.mubr.f32.gmra.mrb[0].mxu0 %v1579
    %v1652 = vpop.f32.mrb[0].mxu0
    %v1653 = vadd.f32 0.0, %v1652
    %v1654 = vpop.f32.mrb[0].mxu0
    %1655 = vdwg.mxu0
    %v1656 = vadd.f32 %v1243, %v1648
    %v1657 = vadd.f32 %v1244, %v1653
    %1658 = vrot.lane.b32.xlu0 %v399, 104
    %v1659 = vpop.permute.xlu0 %1658
    %1660 = vrot.lane.b32.xlu0 %v399, 72
    %v1661 = vpop.permute.xlu0 %1660
    %v1662 = vsel %vm423, %v1659, 0
    %v1664 = vsel %vm423, %v1661, 0
    %1666 = vmatprep.subr.mxu0 0.0
    %1667 = vmatpush1.xpose.msra.mxu0 %v1664
    %1668 = vmatprep.subr.mxu0 0.0
    %1669 = vmatpush1.xpose.msra.mxu0 0.0
    %1670 = vmatprep.subr.mxu0 0.0
    %1671 = vmatpush1.xpose.msra.mxu0 0.0
    %1672 = vmatprep.subr.mxu0 0.0
    %1673 = vmatpush1.xpose.msra.mxu0 0.0
    %1674 = vmatprep.subr.mxu0 0.0
    %1675 = vmatpush1.xpose.msra.mxu0 0.0
    %1676 = vmatprep.subr.mxu0 0.0
    %1677 = vmatpush1.xpose.msra.mxu0 0.0
    %1678 = vmatprep.subr.mxu0 0.0
    %1679 = vmatpush1.xpose.msra.mxu0 0.0
    %1680 = vmatprep.subr.mxu0 0.0
    %1681 = vmatpush1.xpose.msra.mxu0 0.0
    %1682 = vmatprep.subr.mxu0 0.0
    %1683 = vmatpush1.xpose.msra.mxu0 0.0
    %1684 = vmatprep.subr.mxu0 0.0
    %1685 = vmatpush1.xpose.msra.mxu0 0.0
    %1686 = vmatprep.subr.mxu0 0.0
    %1687 = vmatpush1.xpose.msra.mxu0 0.0
    %1688 = vmatprep.subr.mxu0 0.0
    %1689 = vmatpush1.xpose.msra.mxu0 0.0
    %1690 = vmatprep.subr.mxu0 0.0
    %1691 = vmatpush1.xpose.msra.mxu0 0.0
    %1692 = vmatprep.subr.mxu0 0.0
    %1693 = vmatpush1.xpose.msra.mxu0 0.0
    %1694 = vmatprep.subr.mxu0 0.0
    %1695 = vmatpush1.xpose.msra.mxu0 0.0
    %1696 = vmatprep.subr.mxu0 0.0
    %1697 = vmatpush1.xpose.msra.mxu0 0.0
    %1698 = vmatprep.subr.mxu0 0.0
    %1699 = vmatpush1.xpose.msra.mxu0 0.0
    %1700 = vmatprep.subr.mxu0 0.0
    %1701 = vmatpush1.xpose.msra.mxu0 0.0
    %1702 = vmatprep.subr.mxu0 0.0
    %1703 = vmatpush1.xpose.msra.mxu0 0.0
    %1704 = vmatprep.subr.mxu0 0.0
    %1705 = vmatpush1.xpose.msra.mxu0 0.0
    %1706 = vmatprep.subr.mxu0 0.0
    %1707 = vmatpush1.xpose.msra.mxu0 0.0
    %1708 = vmatprep.subr.mxu0 0.0
    %1709 = vmatpush1.xpose.msra.mxu0 0.0
    %1710 = vmatprep.subr.mxu0 0.0
    %1711 = vmatpush1.xpose.msra.mxu0 0.0
    %1712 = vmatprep.subr.mxu0 0.0
    %1713 = vmatpush1.xpose.msra.mxu0 0.0
    %1714 = vmatprep.subr.mxu0 0.0
    %1715 = vmatpush1.xpose.msra.mxu0 0.0
    %1716 = vmatprep.subr.mxu0 0.0
    %1717 = vmatpush1.xpose.msra.mxu0 0.0
    %1718 = vmatprep.subr.mxu0 0.0
    %1719 = vmatpush1.xpose.msra.mxu0 0.0
    %1720 = vmatprep.subr.mxu0 0.0
    %1721 = vmatpush1.xpose.msra.mxu0 0.0
    %1722 = vmatprep.subr.mxu0 0.0
    %1723 = vmatpush1.xpose.msra.mxu0 0.0
    %1724 = vmatprep.subr.mxu0 0.0
    %1725 = vmatpush1.xpose.msra.mxu0 0.0
    %1726 = vmatprep.subr.mxu0 0.0
    %1727 = vmatpush1.xpose.msra.mxu0 0.0
    %1728 = vmatprep.subr.mxu0 0.0
    %1729 = vmatpush1.xpose.msra.mxu0 0.0
    %1730 = vmatprep.mubr.f32.mxu0 0.0
    %1731 = vmatmul.mubr.f32.gmra.mrb[0].mxu0 %v1662
    %v1732 = vpop.f32.mrb[0].mxu0
    %v1733 = vadd.f32 %v235, %v1732
    %v1734 = vpop.f32.mrb[0].mxu0
    %1735 = vdwg.mxu0
    %1736 = vrot.lane.b32.xlu0 %v404, 104
    %v1737 = vpop.permute.xlu0 %1736
    %1738 = vrot.lane.b32.xlu0 %v404, 72
    %v1739 = vpop.permute.xlu0 %1738
    %v1740 = vsel %vm423, %v1737, 0
    %v1742 = vsel %vm423, %v1739, 0
    %1744 = vmatprep.subr.mxu0 0.0
    %1745 = vmatpush1.xpose.msra.mxu0 %v1742
    %1746 = vmatprep.subr.mxu0 0.0
    %1747 = vmatpush1.xpose.msra.mxu0 0.0
    %1748 = vmatprep.subr.mxu0 0.0
    %1749 = vmatpush1.xpose.msra.mxu0 0.0
    %1750 = vmatprep.subr.mxu0 0.0
    %1751 = vmatpush1.xpose.msra.mxu0 0.0
    %1752 = vmatprep.subr.mxu0 0.0
    %1753 = vmatpush1.xpose.msra.mxu0 0.0
    %1754 = vmatprep.subr.mxu0 0.0
    %1755 = vmatpush1.xpose.msra.mxu0 0.0
    %1756 = vmatprep.subr.mxu0 0.0
    %1757 = vmatpush1.xpose.msra.mxu0 0.0
    %1758 = vmatprep.subr.mxu0 0.0
    %1759 = vmatpush1.xpose.msra.mxu0 0.0
    %1760 = vmatprep.subr.mxu0 0.0
    %1761 = vmatpush1.xpose.msra.mxu0 0.0
    %1762 = vmatprep.subr.mxu0 0.0
    %1763 = vmatpush1.xpose.msra.mxu0 0.0
    %1764 = vmatprep.subr.mxu0 0.0
    %1765 = vmatpush1.xpose.msra.mxu0 0.0
    %1766 = vmatprep.subr.mxu0 0.0
    %1767 = vmatpush1.xpose.msra.mxu0 0.0
    %1768 = vmatprep.subr.mxu0 0.0
    %1769 = vmatpush1.xpose.msra.mxu0 0.0
    %1770 = vmatprep.subr.mxu0 0.0
    %1771 = vmatpush1.xpose.msra.mxu0 0.0
    %1772 = vmatprep.subr.mxu0 0.0
    %1773 = vmatpush1.xpose.msra.mxu0 0.0
    %1774 = vmatprep.subr.mxu0 0.0
    %1775 = vmatpush1.xpose.msra.mxu0 0.0
    %1776 = vmatprep.subr.mxu0 0.0
    %1777 = vmatpush1.xpose.msra.mxu0 0.0
    %1778 = vmatprep.subr.mxu0 0.0
    %1779 = vmatpush1.xpose.msra.mxu0 0.0
    %1780 = vmatprep.subr.mxu0 0.0
    %1781 = vmatpush1.xpose.msra.mxu0 0.0
    %1782 = vmatprep.subr.mxu0 0.0
    %1783 = vmatpush1.xpose.msra.mxu0 0.0
    %1784 = vmatprep.subr.mxu0 0.0
    %1785 = vmatpush1.xpose.msra.mxu0 0.0
    %1786 = vmatprep.subr.mxu0 0.0
    %1787 = vmatpush1.xpose.msra.mxu0 0.0
    %1788 = vmatprep.subr.mxu0 0.0
    %1789 = vmatpush1.xpose.msra.mxu0 0.0
    %1790 = vmatprep.subr.mxu0 0.0
    %1791 = vmatpush1.xpose.msra.mxu0 0.0
    %1792 = vmatprep.subr.mxu0 0.0
    %1793 = vmatpush1.xpose.msra.mxu0 0.0
    %1794 = vmatprep.subr.mxu0 0.0
    %1795 = vmatpush1.xpose.msra.mxu0 0.0
    %1796 = vmatprep.subr.mxu0 0.0
    %1797 = vmatpush1.xpose.msra.mxu0 0.0
    %1798 = vmatprep.subr.mxu0 0.0
    %1799 = vmatpush1.xpose.msra.mxu0 0.0
    %1800 = vmatprep.subr.mxu0 0.0
    %1801 = vmatpush1.xpose.msra.mxu0 0.0
    %1802 = vmatprep.subr.mxu0 0.0
    %1803 = vmatpush1.xpose.msra.mxu0 0.0
    %1804 = vmatprep.subr.mxu0 0.0
    %1805 = vmatpush1.xpose.msra.mxu0 0.0
    %1806 = vmatprep.subr.mxu0 0.0
    %1807 = vmatpush1.xpose.msra.mxu0 0.0
    %1808 = vmatprep.mubr.f32.mxu0 0.0
    %1809 = vmatmul.mubr.f32.gmra.mrb[0].mxu0 %v1740
    %v1810 = vpop.f32.mrb[0].mxu0
    %v1811 = vadd.f32 %v236, %v1810
    %v1812 = vpop.f32.mrb[0].mxu0
    %1813 = vdwg.mxu0
    %v1814 = vsel %vm423, %v1733, -inf
    %1815 = vmax.xlane.f32.xlu0 %v1814
    %v1816 = vpop.xlane.xlu0 %1815
    %v1817 = vsel %vm423, %v1811, -inf
    %1818 = vmax.xlane.f32.xlu0 %v1817
    %v1819 = vpop.xlane.xlu0 %1818
    %v1820 = vsub.f32 %v1733, %v1816
    %v1821 = vsub.f32 %v1811, %v1819
    %v1822 = vmul.f32 %v1820, 1.442695
    %v1823 = vpow.pop %v1822
    %v1824 = vmul.f32 %v1821, 1.442695
    %v1825 = vpow.pop %v1824
    %v1826 = vsel %vm423, %v1823, 0.0
    %1827 = vadd.xlane.f32.xlu0 %v1826
    %v1828 = vpop.xlane.xlu0 %1827
    %v1829 = vsel %vm423, %v1825, 0.0
    %1830 = vadd.xlane.f32.xlu0 %v1829
    %v1831 = vpop.xlane.xlu0 %1830
    %v1832 = vrcp.pop %v1828
    %v1833 = vrcp.pop %v1831
    %v1834 = vmul.f32 %v1823, %v1832
    %v1835 = vmul.f32 %v1825, %v1833
    %1836 = vrot.lane.b32.xlu0 %v399, 40
    %v1837 = vpop.permute.xlu0 %1836
    %v1840 = vsel %vm423, %v1834, 0
    %1842 = vmatprep.subr.mxu0 0.0
    %1843 = vmatpush1.msra.mxu0 %v1837
    %1844 = vmatprep.subr.mxu0 0.0
    %1845 = vmatpush1.msra.mxu0 0.0
    %1846 = vmatprep.subr.mxu0 0.0
    %1847 = vmatpush1.msra.mxu0 0.0
    %1848 = vmatprep.subr.mxu0 0.0
    %1849 = vmatpush1.msra.mxu0 0.0
    %1850 = vmatprep.subr.mxu0 0.0
    %1851 = vmatpush1.msra.mxu0 0.0
    %1852 = vmatprep.subr.mxu0 0.0
    %1853 = vmatpush1.msra.mxu0 0.0
    %1854 = vmatprep.subr.mxu0 0.0
    %1855 = vmatpush1.msra.mxu0 0.0
    %1856 = vmatprep.subr.mxu0 0.0
    %1857 = vmatpush1.msra.mxu0 0.0
    %1858 = vmatprep.subr.mxu0 0.0
    %1859 = vmatpush1.msra.mxu0 0.0
    %1860 = vmatprep.subr.mxu0 0.0
    %1861 = vmatpush1.msra.mxu0 0.0
    %1862 = vmatprep.subr.mxu0 0.0
    %1863 = vmatpush1.msra.mxu0 0.0
    %1864 = vmatprep.subr.mxu0 0.0
    %1865 = vmatpush1.msra.mxu0 0.0
    %1866 = vmatprep.subr.mxu0 0.0
    %1867 = vmatpush1.msra.mxu0 0.0
    %1868 = vmatprep.subr.mxu0 0.0
    %1869 = vmatpush1.msra.mxu0 0.0
    %1870 = vmatprep.subr.mxu0 0.0
    %1871 = vmatpush1.msra.mxu0 0.0
    %1872 = vmatprep.subr.mxu0 0.0
    %1873 = vmatpush1.msra.mxu0 0.0
    %1874 = vmatprep.subr.mxu0 0.0
    %1875 = vmatpush1.msra.mxu0 0.0
    %1876 = vmatprep.subr.mxu0 0.0
    %1877 = vmatpush1.msra.mxu0 0.0
    %1878 = vmatprep.subr.mxu0 0.0
    %1879 = vmatpush1.msra.mxu0 0.0
    %1880 = vmatprep.subr.mxu0 0.0
    %1881 = vmatpush1.msra.mxu0 0.0
    %1882 = vmatprep.subr.mxu0 0.0
    %1883 = vmatpush1.msra.mxu0 0.0
    %1884 = vmatprep.subr.mxu0 0.0
    %1885 = vmatpush1.msra.mxu0 0.0
    %1886 = vmatprep.subr.mxu0 0.0
    %1887 = vmatpush1.msra.mxu0 0.0
    %1888 = vmatprep.subr.mxu0 0.0
    %1889 = vmatpush1.msra.mxu0 0.0
    %1890 = vmatprep.subr.mxu0 0.0
    %1891 = vmatpush1.msra.mxu0 0.0
    %1892 = vmatprep.subr.mxu0 0.0
    %1893 = vmatpush1.msra.mxu0 0.0
    %1894 = vmatprep.subr.mxu0 0.0
    %1895 = vmatpush1.msra.mxu0 0.0
    %1896 = vmatprep.subr.mxu0 0.0
    %1897 = vmatpush1.msra.mxu0 0.0
    %1898 = vmatprep.subr.mxu0 0.0
    %1899 = vmatpush1.msra.mxu0 0.0
    %1900 = vmatprep.subr.mxu0 0.0
    %1901 = vmatpush1.msra.mxu0 0.0
    %1902 = vmatprep.subr.mxu0 0.0
    %1903 = vmatpush1.msra.mxu0 0.0
    %1904 = vmatprep.subr.mxu0 0.0
    %1905 = vmatpush1.msra.mxu0 0.0
    %1906 = vmatprep.mubr.f32.mxu0 0.0
    %1907 = vmatmul.mubr.f32.gmra.mrb[0].mxu0 %v1840
    %v1908 = vpop.f32.mrb[0].mxu0
    %v1909 = vadd.f32 0.0, %v1908
    %v1910 = vpop.f32.mrb[0].mxu0
    %1911 = vdwg.mxu0
    %1912 = vrot.lane.b32.xlu0 %v404, 40
    %v1913 = vpop.permute.xlu0 %1912
    %v1916 = vsel %vm423, %v1835, 0
    %1918 = vmatprep.subr.mxu0 0.0
    %1919 = vmatpush1.msra.mxu0 %v1913
    %1920 = vmatprep.subr.mxu0 0.0
    %1921 = vmatpush1.msra.mxu0 0.0
    %1922 = vmatprep.subr.mxu0 0.0
    %1923 = vmatpush1.msra.mxu0 0.0
    %1924 = vmatprep.subr.mxu0 0.0
    %1925 = vmatpush1.msra.mxu0 0.0
    %1926 = vmatprep.subr.mxu0 0.0
    %1927 = vmatpush1.msra.mxu0 0.0
    %1928 = vmatprep.subr.mxu0 0.0
    %1929 = vmatpush1.msra.mxu0 0.0
    %1930 = vmatprep.subr.mxu0 0.0
    %1931 = vmatpush1.msra.mxu0 0.0
    %1932 = vmatprep.subr.mxu0 0.0
    %1933 = vmatpush1.msra.mxu0 0.0
    %1934 = vmatprep.subr.mxu0 0.0
    %1935 = vmatpush1.msra.mxu0 0.0
    %1936 = vmatprep.subr.mxu0 0.0
    %1937 = vmatpush1.msra.mxu0 0.0
    %1938 = vmatprep.subr.mxu0 0.0
    %1939 = vmatpush1.msra.mxu0 0.0
    %1940 = vmatprep.subr.mxu0 0.0
    %1941 = vmatpush1.msra.mxu0 0.0
    %1942 = vmatprep.subr.mxu0 0.0
    %1943 = vmatpush1.msra.mxu0 0.0
    %1944 = vmatprep.subr.mxu0 0.0
    %1945 = vmatpush1.msra.mxu0 0.0
    %1946 = vmatprep.subr.mxu0 0.0
    %1947 = vmatpush1.msra.mxu0 0.0
    %1948 = vmatprep.subr.mxu0 0.0
    %1949 = vmatpush1.msra.mxu0 0.0
    %1950 = vmatprep.subr.mxu0 0.0
    %1951 = vmatpush1.msra.mxu0 0.0
    %1952 = vmatprep.subr.mxu0 0.0
    %1953 = vmatpush1.msra.mxu0 0.0
    %1954 = vmatprep.subr.mxu0 0.0
    %1955 = vmatpush1.msra.mxu0 0.0
    %1956 = vmatprep.subr.mxu0 0.0
    %1957 = vmatpush1.msra.mxu0 0.0
    %1958 = vmatprep.subr.mxu0 0.0
    %1959 = vmatpush1.msra.mxu0 0.0
    %1960 = vmatprep.subr.mxu0 0.0
    %1961 = vmatpush1.msra.mxu0 0.0
    %1962 = vmatprep.subr.mxu0 0.0
    %1963 = vmatpush1.msra.mxu0 0.0
    %1964 = vmatprep.subr.mxu0 0.0
    %1965 = vmatpush1.msra.mxu0 0.0
    %1966 = vmatprep.subr.mxu0 0.0
    %1967 = vmatpush1.msra.mxu0 0.0
    %1968 = vmatprep.subr.mxu0 0.0
    %1969 = vmatpush1.msra.mxu0 0.0
    %1970 = vmatprep.subr.mxu0 0.0
    %1971 = vmatpush1.msra.mxu0 0.0
    %1972 = vmatprep.subr.mxu0 0.0
    %1973 = vmatpush1.msra.mxu0 0.0
    %1974 = vmatprep.subr.mxu0 0.0
    %1975 = vmatpush1.msra.mxu0 0.0
    %1976 = vmatprep.subr.mxu0 0.0
    %1977 = vmatpush1.msra.mxu0 0.0
    %1978 = vmatprep.subr.mxu0 0.0
    %1979 = vmatpush1.msra.mxu0 0.0
    %1980 = vmatprep.subr.mxu0 0.0
    %1981 = vmatpush1.msra.mxu0 0.0
    %1982 = vmatprep.mubr.f32.mxu0 0.0
    %1983 = vmatmul.mubr.f32.gmra.mrb[0].mxu0 %v1916
    %v1984 = vpop.f32.mrb[0].mxu0
    %v1985 = vadd.f32 0.0, %v1984
    %v1986 = vpop.f32.mrb[0].mxu0
    %1987 = vdwg.mxu0
    %v1989 = vsel %vm423, %v1909, 0
    %v1992 = vsel %vm423, %v1985, 0
    %1994 = vmatprep.subr.mxu0 0.0
    %1995 = vmatpush1.msra.mxu0 %v410
    %1996 = vmatprep.subr.mxu0 0.0
    %1997 = vmatpush1.msra.mxu0 0.0
    %1998 = vmatprep.subr.mxu0 0.0
    %1999 = vmatpush1.msra.mxu0 0.0
    %2000 = vmatprep.subr.mxu0 0.0
    %2001 = vmatpush1.msra.mxu0 0.0
    %2002 = vmatprep.subr.mxu0 0.0
    %2003 = vmatpush1.msra.mxu0 0.0
    %2004 = vmatprep.subr.mxu0 0.0
    %2005 = vmatpush1.msra.mxu0 0.0
    %2006 = vmatprep.subr.mxu0 0.0
    %2007 = vmatpush1.msra.mxu0 0.0
    %2008 = vmatprep.subr.mxu0 0.0
    %2009 = vmatpush1.msra.mxu0 0.0
    %2010 = vmatprep.subr.mxu0 0.0
    %2011 = vmatpush1.msra.mxu0 0.0
    %2012 = vmatprep.subr.mxu0 0.0
    %2013 = vmatpush1.msra.mxu0 0.0
    %2014 = vmatprep.subr.mxu0 0.0
    %2015 = vmatpush1.msra.mxu0 0.0
    %2016 = vmatprep.subr.mxu0 0.0
    %2017 = vmatpush1.msra.mxu0 0.0
    %2018 = vmatprep.subr.mxu0 0.0
    %2019 = vmatpush1.msra.mxu0 0.0
    %2020 = vmatprep.subr.mxu0 0.0
    %2021 = vmatpush1.msra.mxu0 0.0
    %2022 = vmatprep.subr.mxu0 0.0
    %2023 = vmatpush1.msra.mxu0 0.0
    %2024 = vmatprep.subr.mxu0 0.0
    %2025 = vmatpush1.msra.mxu0 0.0
    %2026 = vmatprep.subr.mxu0 0.0
    %2027 = vmatpush1.msra.mxu0 0.0
    %2028 = vmatprep.subr.mxu0 0.0
    %2029 = vmatpush1.msra.mxu0 0.0
    %2030 = vmatprep.subr.mxu0 0.0
    %2031 = vmatpush1.msra.mxu0 0.0
    %2032 = vmatprep.subr.mxu0 0.0
    %2033 = vmatpush1.msra.mxu0 0.0
    %2034 = vmatprep.subr.mxu0 0.0
    %2035 = vmatpush1.msra.mxu0 0.0
    %2036 = vmatprep.subr.mxu0 0.0
    %2037 = vmatpush1.msra.mxu0 0.0
    %2038 = vmatprep.subr.mxu0 0.0
    %2039 = vmatpush1.msra.mxu0 0.0
    %2040 = vmatprep.subr.mxu0 0.0
    %2041 = vmatpush1.msra.mxu0 0.0
    %2042 = vmatprep.subr.mxu0 0.0
    %2043 = vmatpush1.msra.mxu0 0.0
    %2044 = vmatprep.subr.mxu0 0.0
    %2045 = vmatpush1.msra.mxu0 0.0
    %2046 = vmatprep.subr.mxu0 0.0
    %2047 = vmatpush1.msra.mxu0 0.0
    %2048 = vmatprep.subr.mxu0 0.0
    %2049 = vmatpush1.msra.mxu0 0.0
    %2050 = vmatprep.subr.mxu0 0.0
    %2051 = vmatpush1.msra.mxu0 0.0
    %2052 = vmatprep.subr.mxu0 0.0
    %2053 = vmatpush1.msra.mxu0 0.0
    %2054 = vmatprep.subr.mxu0 0.0
    %2055 = vmatpush1.msra.mxu0 0.0
    %2056 = vmatprep.subr.mxu0 0.0
    %2057 = vmatpush1.msra.mxu0 0.0
    %2058 = vmatprep.mubr.f32.mxu0 0.0
    %2059 = vmatmul.mubr.f32.gmra.mrb[0].mxu0 %v1989
    %v2060 = vpop.f32.mrb[0].mxu0
    %v2061 = vadd.f32 0.0, %v2060
    %v2062 = vpop.f32.mrb[0].mxu0
    %2063 = vmatprep.mubr.f32.mxu0 0.0
    %2064 = vmatmul.mubr.f32.gmra.mrb[0].mxu0 %v1992
    %v2065 = vpop.f32.mrb[0].mxu0
    %v2066 = vadd.f32 0.0, %v2065
    %v2067 = vpop.f32.mrb[0].mxu0
    %2068 = vdwg.mxu0
    %v2069 = vadd.f32 %v1656, %v2061
    %v2070 = vadd.f32 %v1657, %v2066
    %v2071 = vsel %vm261, %v2069, 0.0
    %2072 = vadd.xlane.f32.xlu0 %v2071
    %v2073 = vpop.xlane.xlu0 %2072
    %v2074 = vsel %vm261, %v2070, 0.0
    %2075 = vadd.xlane.f32.xlu0 %v2074
    %v2076 = vpop.xlane.xlu0 %2075
    %v2077 = vmul.f32 %v2073, %v268
    %v2078 = vmul.f32 %v2076, %v268
    %v2079 = vsub.f32 %v2069, %v2077
    %v2080 = vsub.f32 %v2070, %v2078
    %v2081 = vmul.f32 %v2079, %v2079
    %v2082 = vmul.f32 %v2080, %v2080
    %v2083 = vsel %vm261, %v2081, 0.0
    %2084 = vadd.xlane.f32.xlu0 %v2083
    %v2085 = vpop.xlane.xlu0 %2084
    %v2086 = vsel %vm261, %v2082, 0.0
    %2087 = vadd.xlane.f32.xlu0 %v2086
    %v2088 = vpop.xlane.xlu0 %2087
    %v2089 = vmul.f32 %v2085, 0.032258064
    %v2090 = vmul.f32 %v2088, 0.032258064
    %v2091 = vrsqrt.pop %v2089
    %v2092 = vmul.f32 %v2089, %v2091
    %vm2093 = vcmp.eq.f32.partialorder %v2089, inf
    %v2094 = vsel %vm2093, %v2089, %v2092
    %vm2095 = vcmp.eq.f32.partialorder %v2089, 0.0
    %v2096 = vand.u32 %v2089, 2147483648
    %v2097 = vsel %vm2095, %v2096, %v2094
    %v2098 = vrsqrt.pop %v2090
    %v2099 = vmul.f32 %v2090, %v2098
    %vm2100 = vcmp.eq.f32.partialorder %v2090, inf
    %v2101 = vsel %vm2100, %v2090, %v2099
    %vm2102 = vcmp.eq.f32.partialorder %v2090, 0.0
    %v2103 = vand.u32 %v2090, 2147483648
    %v2104 = vsel %vm2102, %v2103, %v2101
    %v2105 = vadd.f32 %v2097, 1e-06
    %v2106 = vadd.f32 %v2104, 1e-06
    %v2107 = vrcp.pop %v2105
    %v2108 = vrcp.pop %v2106
    %v2109 = vmul.f32 %v2079, %v2107
    %v2110 = vmul.f32 %v2080, %v2108
    %v2111 = vlaneseq
    %v2112 = vshrl.u32 %v2111, 7
    %v2113 = vsub.s32 1, %v2112
    %v2114 = vrot.slane %v259, %v2113
    %v2115 = vmul.f32 %v2109, %v2114
    %v2116 = vmul.f32 %v2110, %v2114
    %v2117 = vlaneseq
    %v2118 = vshrl.u32 %v2117, 7
    %v2119 = vsub.s32 1, %v2118
    %v2120 = vrot.slane %v260, %v2119
    %v2121 = vadd.f32 %v2115, %v2120
    %v2122 = vadd.f32 %v2116, %v2120
    %v2123 = vld [vmem:[%s8] sm:$0xff]
    %v2124 = vld [vmem:[%s8 + $0x8] sm:$0xff]
    %v2125 = vld [vmem:[%s8 + $0x10] sm:$0xff]
    %v2126 = vld [vmem:[%s8 + $0x18] sm:$0xff]
    %v2127 = vld [vmem:[#allocation7] sm:$0x1]
    %v2129 = vlaneseq
    %v2130 = vshrl.u32 %v2129, 7
    %v2131 = vsub.s32 0, %v2130
    %v2132 = vrot.slane %v2127, %v2131
    %v2135 = vsel %vm261, %v2121, 0
    %v2138 = vsel %vm261, %v2122, 0
    %2140 = vmatprep.subr.mxu0 0.0
    %2141 = vmatpush1.msra.mxu0 %v2123
    %2142 = vmatprep.subr.mxu0 0.0
    %2143 = vmatpush1.msra.mxu0 %v2124
    %2144 = vmatprep.subr.mxu0 0.0
    %2145 = vmatpush1.msra.mxu0 %v2125
    %2146 = vmatprep.subr.mxu0 0.0
    %2147 = vmatpush1.msra.mxu0 %v2126
    %2148 = vmatprep.subr.mxu0 0.0
    %2149 = vmatpush1.msra.mxu0 0.0
    %2150 = vmatprep.subr.mxu0 0.0
    %2151 = vmatpush1.msra.mxu0 0.0
    %2152 = vmatprep.subr.mxu0 0.0
    %2153 = vmatpush1.msra.mxu0 0.0
    %2154 = vmatprep.subr.mxu0 0.0
    %2155 = vmatpush1.msra.mxu0 0.0
    %2156 = vmatprep.subr.mxu0 0.0
    %2157 = vmatpush1.msra.mxu0 0.0
    %2158 = vmatprep.subr.mxu0 0.0
    %2159 = vmatpush1.msra.mxu0 0.0
    %2160 = vmatprep.subr.mxu0 0.0
    %2161 = vmatpush1.msra.mxu0 0.0
    %2162 = vmatprep.subr.mxu0 0.0
    %2163 = vmatpush1.msra.mxu0 0.0
    %2164 = vmatprep.subr.mxu0 0.0
    %2165 = vmatpush1.msra.mxu0 0.0
    %2166 = vmatprep.subr.mxu0 0.0
    %2167 = vmatpush1.msra.mxu0 0.0
    %2168 = vmatprep.subr.mxu0 0.0
    %2169 = vmatpush1.msra.mxu0 0.0
    %2170 = vmatprep.subr.mxu0 0.0
    %2171 = vmatpush1.msra.mxu0 0.0
    %2172 = vmatprep.subr.mxu0 0.0
    %2173 = vmatpush1.msra.mxu0 0.0
    %2174 = vmatprep.subr.mxu0 0.0
    %2175 = vmatpush1.msra.mxu0 0.0
    %2176 = vmatprep.subr.mxu0 0.0
    %2177 = vmatpush1.msra.mxu0 0.0
    %2178 = vmatprep.subr.mxu0 0.0
    %2179 = vmatpush1.msra.mxu0 0.0
    %2180 = vmatprep.subr.mxu0 0.0
    %2181 = vmatpush1.msra.mxu0 0.0
    %2182 = vmatprep.subr.mxu0 0.0
    %2183 = vmatpush1.msra.mxu0 0.0
    %2184 = vmatprep.subr.mxu0 0.0
    %2185 = vmatpush1.msra.mxu0 0.0
    %2186 = vmatprep.subr.mxu0 0.0
    %2187 = vmatpush1.msra.mxu0 0.0
    %2188 = vmatprep.subr.mxu0 0.0
    %2189 = vmatpush1.msra.mxu0 0.0
    %2190 = vmatprep.subr.mxu0 0.0
    %2191 = vmatpush1.msra.mxu0 0.0
    %2192 = vmatprep.subr.mxu0 0.0
    %2193 = vmatpush1.msra.mxu0 0.0
    %2194 = vmatprep.subr.mxu0 0.0
    %2195 = vmatpush1.msra.mxu0 0.0
    %2196 = vmatprep.subr.mxu0 0.0
    %2197 = vmatpush1.msra.mxu0 0.0
    %2198 = vmatprep.subr.mxu0 0.0
    %2199 = vmatpush1.msra.mxu0 0.0
    %2200 = vmatprep.subr.mxu0 0.0
    %2201 = vmatpush1.msra.mxu0 0.0
    %2202 = vmatprep.subr.mxu0 0.0
    %2203 = vmatpush1.msra.mxu0 0.0
    %2204 = vmatprep.mubr.f32.mxu0 0.0
    %2205 = vmatmul.mubr.f32.gmra.mrb[0].mxu0 %v2135
    %v2206 = vpop.f32.mrb[0].mxu0
    %v2207 = vadd.f32 %v2132, %v2206
    %v2208 = vpop.f32.mrb[0].mxu0
    %2209 = vmatprep.mubr.f32.mxu0 0.0
    %2210 = vmatmul.mubr.f32.gmra.mrb[0].mxu0 %v2138
    %v2211 = vpop.f32.mrb[0].mxu0
    %v2212 = vadd.f32 %v2132, %v2211
    %v2213 = vpop.f32.mrb[0].mxu0
    %2214 = vdwg.mxu0
    %v2215 = vld [vmem:[#allocation8] sm:$0xff]
    %v2216 = vld [vmem:[#allocation8 + $0x8] sm:$0xff]
    %v2217 = vld [vmem:[#allocation8 + $0x10] sm:$0xff]
    %v2218 = vld [vmem:[#allocation8 + $0x18] sm:$0xff]
    %v2219 = vld [vmem:[#allocation10] sm:$0x1]
    %v2221 = vlaneseq
    %v2222 = vshrl.u32 %v2221, 7
    %v2223 = vsub.s32 0, %v2222
    %v2224 = vrot.slane %v2219, %v2223
    %v2227 = vsel %vm261, %v257, 0
    %v2230 = vsel %vm261, %v258, 0
    %2232 = vmatprep.subr.mxu0 0.0
    %2233 = vmatpush1.msra.mxu0 %v2215
    %2234 = vmatprep.subr.mxu0 0.0
    %2235 = vmatpush1.msra.mxu0 %v2216
    %2236 = vmatprep.subr.mxu0 0.0
    %2237 = vmatpush1.msra.mxu0 %v2217
    %2238 = vmatprep.subr.mxu0 0.0
    %2239 = vmatpush1.msra.mxu0 %v2218
    %2240 = vmatprep.subr.mxu0 0.0
    %2241 = vmatpush1.msra.mxu0 0.0
    %2242 = vmatprep.subr.mxu0 0.0
    %2243 = vmatpush1.msra.mxu0 0.0
    %2244 = vmatprep.subr.mxu0 0.0
    %2245 = vmatpush1.msra.mxu0 0.0
    %2246 = vmatprep.subr.mxu0 0.0
    %2247 = vmatpush1.msra.mxu0 0.0
    %2248 = vmatprep.subr.mxu0 0.0
    %2249 = vmatpush1.msra.mxu0 0.0
    %2250 = vmatprep.subr.mxu0 0.0
    %2251 = vmatpush1.msra.mxu0 0.0
    %2252 = vmatprep.subr.mxu0 0.0
    %2253 = vmatpush1.msra.mxu0 0.0
    %2254 = vmatprep.subr.mxu0 0.0
    %2255 = vmatpush1.msra.mxu0 0.0
    %2256 = vmatprep.subr.mxu0 0.0
    %2257 = vmatpush1.msra.mxu0 0.0
    %2258 = vmatprep.subr.mxu0 0.0
    %2259 = vmatpush1.msra.mxu0 0.0
    %2260 = vmatprep.subr.mxu0 0.0
    %2261 = vmatpush1.msra.mxu0 0.0
    %2262 = vmatprep.subr.mxu0 0.0
    %2263 = vmatpush1.msra.mxu0 0.0
    %2264 = vmatprep.subr.mxu0 0.0
    %2265 = vmatpush1.msra.mxu0 0.0
    %2266 = vmatprep.subr.mxu0 0.0
    %2267 = vmatpush1.msra.mxu0 0.0
    %2268 = vmatprep.subr.mxu0 0.0
    %2269 = vmatpush1.msra.mxu0 0.0
    %2270 = vmatprep.subr.mxu0 0.0
    %2271 = vmatpush1.msra.mxu0 0.0
    %2272 = vmatprep.subr.mxu0 0.0
    %2273 = vmatpush1.msra.mxu0 0.0
    %2274 = vmatprep.subr.mxu0 0.0
    %2275 = vmatpush1.msra.mxu0 0.0
    %2276 = vmatprep.subr.mxu0 0.0
    %2277 = vmatpush1.msra.mxu0 0.0
    %2278 = vmatprep.subr.mxu0 0.0
    %2279 = vmatpush1.msra.mxu0 0.0
    %2280 = vmatprep.subr.mxu0 0.0
    %2281 = vmatpush1.msra.mxu0 0.0
    %2282 = vmatprep.subr.mxu0 0.0
    %2283 = vmatpush1.msra.mxu0 0.0
    %2284 = vmatprep.subr.mxu0 0.0
    %2285 = vmatpush1.msra.mxu0 0.0
    %2286 = vmatprep.subr.mxu0 0.0
    %2287 = vmatpush1.msra.mxu0 0.0
    %2288 = vmatprep.subr.mxu0 0.0
    %2289 = vmatpush1.msra.mxu0 0.0
    %2290 = vmatprep.subr.mxu0 0.0
    %2291 = vmatpush1.msra.mxu0 0.0
    %2292 = vmatprep.subr.mxu0 0.0
    %2293 = vmatpush1.msra.mxu0 0.0
    %2294 = vmatprep.subr.mxu0 0.0
    %2295 = vmatpush1.msra.mxu0 0.0
    %2296 = vmatprep.mubr.f32.mxu0 0.0
    %2297 = vmatmul.mubr.f32.gmra.mrb[0].mxu0 %v2227
    %v2298 = vpop.f32.mrb[0].mxu0
    %v2299 = vadd.f32 %v2224, %v2298
    %v2300 = vpop.f32.mrb[0].mxu0
    %2301 = vmatprep.mubr.f32.mxu0 0.0
    %2302 = vmatmul.mubr.f32.gmra.mrb[0].mxu0 %v2230
    %v2303 = vpop.f32.mrb[0].mxu0
    %v2304 = vadd.f32 %v2224, %v2303
    %v2305 = vpop.f32.mrb[0].mxu0
    %2306 = vdwg.mxu0
    %v2307 = vld [vmem:[#allocation11] sm:$0xff]
    %v2308 = vld [vmem:[#allocation11 + $0x8] sm:$0xff]
    %v2309 = vld [vmem:[#allocation11 + $0x10] sm:$0xff]
    %v2310 = vld [vmem:[#allocation11 + $0x18] sm:$0xff]
    %v2311 = vld [vmem:[#allocation13] sm:$0x1]
    %v2313 = vlaneseq
    %v2314 = vshrl.u32 %v2313, 7
    %v2315 = vsub.s32 0, %v2314
    %v2316 = vrot.slane %v2311, %v2315
    %v2318 = vadd.f32 %v2069, %v2316
    %v2319 = vadd.f32 %v2070, %v2316
    %v2321 = vsel %vm423, %v2207, 0
    %v2324 = vsel %vm423, %v2299, 0
    %2326 = vmatprep.subr.mxu0 0.0
    %2327 = vmatpush1.xpose.msra.mxu0 %v2324
    %2328 = vmatprep.subr.mxu0 0.0
    %2329 = vmatpush1.xpose.msra.mxu0 0.0
    %2330 = vmatprep.subr.mxu0 0.0
    %2331 = vmatpush1.xpose.msra.mxu0 0.0
    %2332 = vmatprep.subr.mxu0 0.0
    %2333 = vmatpush1.xpose.msra.mxu0 0.0
    %2334 = vmatprep.subr.mxu0 0.0
    %2335 = vmatpush1.xpose.msra.mxu0 0.0
    %2336 = vmatprep.subr.mxu0 0.0
    %2337 = vmatpush1.xpose.msra.mxu0 0.0
    %2338 = vmatprep.subr.mxu0 0.0
    %2339 = vmatpush1.xpose.msra.mxu0 0.0
    %2340 = vmatprep.subr.mxu0 0.0
    %2341 = vmatpush1.xpose.msra.mxu0 0.0
    %2342 = vmatprep.subr.mxu0 0.0
    %2343 = vmatpush1.xpose.msra.mxu0 0.0
    %2344 = vmatprep.subr.mxu0 0.0
    %2345 = vmatpush1.xpose.msra.mxu0 0.0
    %2346 = vmatprep.subr.mxu0 0.0
    %2347 = vmatpush1.xpose.msra.mxu0 0.0
    %2348 = vmatprep.subr.mxu0 0.0
    %2349 = vmatpush1.xpose.msra.mxu0 0.0
    %2350 = vmatprep.subr.mxu0 0.0
    %2351 = vmatpush1.xpose.msra.mxu0 0.0
    %2352 = vmatprep.subr.mxu0 0.0
    %2353 = vmatpush1.xpose.msra.mxu0 0.0
    %2354 = vmatprep.subr.mxu0 0.0
    %2355 = vmatpush1.xpose.msra.mxu0 0.0
    %2356 = vmatprep.subr.mxu0 0.0
    %2357 = vmatpush1.xpose.msra.mxu0 0.0
    %2358 = vmatprep.subr.mxu0 0.0
    %2359 = vmatpush1.xpose.msra.mxu0 0.0
    %2360 = vmatprep.subr.mxu0 0.0
    %2361 = vmatpush1.xpose.msra.mxu0 0.0
    %2362 = vmatprep.subr.mxu0 0.0
    %2363 = vmatpush1.xpose.msra.mxu0 0.0
    %2364 = vmatprep.subr.mxu0 0.0
    %2365 = vmatpush1.xpose.msra.mxu0 0.0
    %2366 = vmatprep.subr.mxu0 0.0
    %2367 = vmatpush1.xpose.msra.mxu0 0.0
    %2368 = vmatprep.subr.mxu0 0.0
    %2369 = vmatpush1.xpose.msra.mxu0 0.0
    %2370 = vmatprep.subr.mxu0 0.0
    %2371 = vmatpush1.xpose.msra.mxu0 0.0
    %2372 = vmatprep.subr.mxu0 0.0
    %2373 = vmatpush1.xpose.msra.mxu0 0.0
    %2374 = vmatprep.subr.mxu0 0.0
    %2375 = vmatpush1.xpose.msra.mxu0 0.0
    %2376 = vmatprep.subr.mxu0 0.0
    %2377 = vmatpush1.xpose.msra.mxu0 0.0
    %2378 = vmatprep.subr.mxu0 0.0
    %2379 = vmatpush1.xpose.msra.mxu0 0.0
    %2380 = vmatprep.subr.mxu0 0.0
    %2381 = vmatpush1.xpose.msra.mxu0 0.0
    %2382 = vmatprep.subr.mxu0 0.0
    %2383 = vmatpush1.xpose.msra.mxu0 0.0
    %2384 = vmatprep.subr.mxu0 0.0
    %2385 = vmatpush1.xpose.msra.mxu0 0.0
    %2386 = vmatprep.subr.mxu0 0.0
    %2387 = vmatpush1.xpose.msra.mxu0 0.0
    %2388 = vmatprep.subr.mxu0 0.0
    %2389 = vmatpush1.xpose.msra.mxu0 0.0
    %2390 = vmatprep.mubr.f32.mxu0 0.0
    %2391 = vmatmul.mubr.f32.gmra.mrb[0].mxu0 %v2321
    %v2392 = vpop.f32.mrb[0].mxu0
    %v2393 = vadd.f32 %v248, %v2392
    %v2394 = vpop.f32.mrb[0].mxu0
    %2395 = vdwg.mxu0
    %v2397 = vsel %vm423, %v2212, 0
    %v2400 = vsel %vm423, %v2304, 0
    %2402 = vmatprep.subr.mxu0 0.0
    %2403 = vmatpush1.xpose.msra.mxu0 %v2400
    %2404 = vmatprep.subr.mxu0 0.0
    %2405 = vmatpush1.xpose.msra.mxu0 0.0
    %2406 = vmatprep.subr.mxu0 0.0
    %2407 = vmatpush1.xpose.msra.mxu0 0.0
    %2408 = vmatprep.subr.mxu0 0.0
    %2409 = vmatpush1.xpose.msra.mxu0 0.0
    %2410 = vmatprep.subr.mxu0 0.0
    %2411 = vmatpush1.xpose.msra.mxu0 0.0
    %2412 = vmatprep.subr.mxu0 0.0
    %2413 = vmatpush1.xpose.msra.mxu0 0.0
    %2414 = vmatprep.subr.mxu0 0.0
    %2415 = vmatpush1.xpose.msra.mxu0 0.0
    %2416 = vmatprep.subr.mxu0 0.0
    %2417 = vmatpush1.xpose.msra.mxu0 0.0
    %2418 = vmatprep.subr.mxu0 0.0
    %2419 = vmatpush1.xpose.msra.mxu0 0.0
    %2420 = vmatprep.subr.mxu0 0.0
    %2421 = vmatpush1.xpose.msra.mxu0 0.0
    %2422 = vmatprep.subr.mxu0 0.0
    %2423 = vmatpush1.xpose.msra.mxu0 0.0
    %2424 = vmatprep.subr.mxu0 0.0
    %2425 = vmatpush1.xpose.msra.mxu0 0.0
    %2426 = vmatprep.subr.mxu0 0.0
    %2427 = vmatpush1.xpose.msra.mxu0 0.0
    %2428 = vmatprep.subr.mxu0 0.0
    %2429 = vmatpush1.xpose.msra.mxu0 0.0
    %2430 = vmatprep.subr.mxu0 0.0
    %2431 = vmatpush1.xpose.msra.mxu0 0.0
    %2432 = vmatprep.subr.mxu0 0.0
    %2433 = vmatpush1.xpose.msra.mxu0 0.0
    %2434 = vmatprep.subr.mxu0 0.0
    %2435 = vmatpush1.xpose.msra.mxu0 0.0
    %2436 = vmatprep.subr.mxu0 0.0
    %2437 = vmatpush1.xpose.msra.mxu0 0.0
    %2438 = vmatprep.subr.mxu0 0.0
    %2439 = vmatpush1.xpose.msra.mxu0 0.0
    %2440 = vmatprep.subr.mxu0 0.0
    %2441 = vmatpush1.xpose.msra.mxu0 0.0
    %2442 = vmatprep.subr.mxu0 0.0
    %2443 = vmatpush1.xpose.msra.mxu0 0.0
    %2444 = vmatprep.subr.mxu0 0.0
    %2445 = vmatpush1.xpose.msra.mxu0 0.0
    %2446 = vmatprep.subr.mxu0 0.0
    %2447 = vmatpush1.xpose.msra.mxu0 0.0
    %2448 = vmatprep.subr.mxu0 0.0
    %2449 = vmatpush1.xpose.msra.mxu0 0.0
    %2450 = vmatprep.subr.mxu0 0.0
    %2451 = vmatpush1.xpose.msra.mxu0 0.0
    %2452 = vmatprep.subr.mxu0 0.0
    %2453 = vmatpush1.xpose.msra.mxu0 0.0
    %2454 = vmatprep.subr.mxu0 0.0
    %2455 = vmatpush1.xpose.msra.mxu0 0.0
    %2456 = vmatprep.subr.mxu0 0.0
    %2457 = vmatpush1.xpose.msra.mxu0 0.0
    %2458 = vmatprep.subr.mxu0 0.0
    %2459 = vmatpush1.xpose.msra.mxu0 0.0
    %2460 = vmatprep.subr.mxu0 0.0
    %2461 = vmatpush1.xpose.msra.mxu0 0.0
    %2462 = vmatprep.subr.mxu0 0.0
    %2463 = vmatpush1.xpose.msra.mxu0 0.0
    %2464 = vmatprep.subr.mxu0 0.0
    %2465 = vmatpush1.xpose.msra.mxu0 0.0
    %2466 = vmatprep.mubr.f32.mxu0 0.0
    %2467 = vmatmul.mubr.f32.gmra.mrb[0].mxu0 %v2397
    %v2468 = vpop.f32.mrb[0].mxu0
    %v2469 = vadd.f32 %v252, %v2468
    %v2470 = vpop.f32.mrb[0].mxu0
    %2471 = vdwg.mxu0
    %v2472 = vsel %vm423, %v2393, -inf
    %2473 = vmax.xlane.f32.xlu0 %v2472
    %v2474 = vpop.xlane.xlu0 %2473
    %v2475 = vsel %vm423, %v2469, -inf
    %2476 = vmax.xlane.f32.xlu0 %v2475
    %v2477 = vpop.xlane.xlu0 %2476
    %v2478 = vsub.f32 %v2393, %v2474
    %v2479 = vsub.f32 %v2469, %v2477
    %v2480 = vmul.f32 %v2478, 1.442695
    %v2481 = vpow.pop %v2480
    %v2482 = vmul.f32 %v2479, 1.442695
    %v2483 = vpow.pop %v2482
    %v2484 = vsel %vm423, %v2481, 0.0
    %2485 = vadd.xlane.f32.xlu0 %v2484
    %v2486 = vpop.xlane.xlu0 %2485
    %v2487 = vsel %vm423, %v2483, 0.0
    %2488 = vadd.xlane.f32.xlu0 %v2487
    %v2489 = vpop.xlane.xlu0 %2488
    %v2490 = vrcp.pop %v2486
    %v2491 = vrcp.pop %v2489
    %v2492 = vmul.f32 %v2481, %v2490
    %v2493 = vmul.f32 %v2483, %v2491
    %2494 = vrot.lane.b32.xlu0 %v2299, 96
    %v2495 = vpop.permute.xlu0 %2494
    %v2498 = vsel %vm423, %v2492, 0
    %2500 = vmatprep.subr.mxu0 0.0
    %2501 = vmatpush1.msra.mxu0 %v2495
    %2502 = vmatprep.subr.mxu0 0.0
    %2503 = vmatpush1.msra.mxu0 0.0
    %2504 = vmatprep.subr.mxu0 0.0
    %2505 = vmatpush1.msra.mxu0 0.0
    %2506 = vmatprep.subr.mxu0 0.0
    %2507 = vmatpush1.msra.mxu0 0.0
    %2508 = vmatprep.subr.mxu0 0.0
    %2509 = vmatpush1.msra.mxu0 0.0
    %2510 = vmatprep.subr.mxu0 0.0
    %2511 = vmatpush1.msra.mxu0 0.0
    %2512 = vmatprep.subr.mxu0 0.0
    %2513 = vmatpush1.msra.mxu0 0.0
    %2514 = vmatprep.subr.mxu0 0.0
    %2515 = vmatpush1.msra.mxu0 0.0
    %2516 = vmatprep.subr.mxu0 0.0
    %2517 = vmatpush1.msra.mxu0 0.0
    %2518 = vmatprep.subr.mxu0 0.0
    %2519 = vmatpush1.msra.mxu0 0.0
    %2520 = vmatprep.subr.mxu0 0.0
    %2521 = vmatpush1.msra.mxu0 0.0
    %2522 = vmatprep.subr.mxu0 0.0
    %2523 = vmatpush1.msra.mxu0 0.0
    %2524 = vmatprep.subr.mxu0 0.0
    %2525 = vmatpush1.msra.mxu0 0.0
    %2526 = vmatprep.subr.mxu0 0.0
    %2527 = vmatpush1.msra.mxu0 0.0
    %2528 = vmatprep.subr.mxu0 0.0
    %2529 = vmatpush1.msra.mxu0 0.0
    %2530 = vmatprep.subr.mxu0 0.0
    %2531 = vmatpush1.msra.mxu0 0.0
    %2532 = vmatprep.subr.mxu0 0.0
    %2533 = vmatpush1.msra.mxu0 0.0
    %2534 = vmatprep.subr.mxu0 0.0
    %2535 = vmatpush1.msra.mxu0 0.0
    %2536 = vmatprep.subr.mxu0 0.0
    %2537 = vmatpush1.msra.mxu0 0.0
    %2538 = vmatprep.subr.mxu0 0.0
    %2539 = vmatpush1.msra.mxu0 0.0
    %2540 = vmatprep.subr.mxu0 0.0
    %2541 = vmatpush1.msra.mxu0 0.0
    %2542 = vmatprep.subr.mxu0 0.0
    %2543 = vmatpush1.msra.mxu0 0.0
    %2544 = vmatprep.subr.mxu0 0.0
    %2545 = vmatpush1.msra.mxu0 0.0
    %2546 = vmatprep.subr.mxu0 0.0
    %2547 = vmatpush1.msra.mxu0 0.0
    %2548 = vmatprep.subr.mxu0 0.0
    %2549 = vmatpush1.msra.mxu0 0.0
    %2550 = vmatprep.subr.mxu0 0.0
    %2551 = vmatpush1.msra.mxu0 0.0
    %2552 = vmatprep.subr.mxu0 0.0
    %2553 = vmatpush1.msra.mxu0 0.0
    %2554 = vmatprep.subr.mxu0 0.0
    %2555 = vmatpush1.msra.mxu0 0.0
    %2556 = vmatprep.subr.mxu0 0.0
    %2557 = vmatpush1.msra.mxu0 0.0
    %2558 = vmatprep.subr.mxu0 0.0
    %2559 = vmatpush1.msra.mxu0 0.0
    %2560 = vmatprep.subr.mxu0 0.0
    %2561 = vmatpush1.msra.mxu0 0.0
    %2562 = vmatprep.subr.mxu0 0.0
    %2563 = vmatpush1.msra.mxu0 0.0
    %2564 = vmatprep.mubr.f32.mxu0 0.0
    %2565 = vmatmul.mubr.f32.gmra.mrb[0].mxu0 %v2498
    %v2566 = vpop.f32.mrb[0].mxu0
    %v2567 = vadd.f32 0.0, %v2566
    %v2568 = vpop.f32.mrb[0].mxu0
    %2569 = vdwg.mxu0
    %2570 = vrot.lane.b32.xlu0 %v2304, 96
    %v2571 = vpop.permute.xlu0 %2570
    %v2574 = vsel %vm423, %v2493, 0
    %2576 = vmatprep.subr.mxu0 0.0
    %2577 = vmatpush1.msra.mxu0 %v2571
    %2578 = vmatprep.subr.mxu0 0.0
    %2579 = vmatpush1.msra.mxu0 0.0
    %2580 = vmatprep.subr.mxu0 0.0
    %2581 = vmatpush1.msra.mxu0 0.0
    %2582 = vmatprep.subr.mxu0 0.0
    %2583 = vmatpush1.msra.mxu0 0.0
    %2584 = vmatprep.subr.mxu0 0.0
    %2585 = vmatpush1.msra.mxu0 0.0
    %2586 = vmatprep.subr.mxu0 0.0
    %2587 = vmatpush1.msra.mxu0 0.0
    %2588 = vmatprep.subr.mxu0 0.0
    %2589 = vmatpush1.msra.mxu0 0.0
    %2590 = vmatprep.subr.mxu0 0.0
    %2591 = vmatpush1.msra.mxu0 0.0
    %2592 = vmatprep.subr.mxu0 0.0
    %2593 = vmatpush1.msra.mxu0 0.0
    %2594 = vmatprep.subr.mxu0 0.0
    %2595 = vmatpush1.msra.mxu0 0.0
    %2596 = vmatprep.subr.mxu0 0.0
    %2597 = vmatpush1.msra.mxu0 0.0
    %2598 = vmatprep.subr.mxu0 0.0
    %2599 = vmatpush1.msra.mxu0 0.0
    %2600 = vmatprep.subr.mxu0 0.0
    %2601 = vmatpush1.msra.mxu0 0.0
    %2602 = vmatprep.subr.mxu0 0.0
    %2603 = vmatpush1.msra.mxu0 0.0
    %2604 = vmatprep.subr.mxu0 0.0
    %2605 = vmatpush1.msra.mxu0 0.0
    %2606 = vmatprep.subr.mxu0 0.0
    %2607 = vmatpush1.msra.mxu0 0.0
    %2608 = vmatprep.subr.mxu0 0.0
    %2609 = vmatpush1.msra.mxu0 0.0
    %2610 = vmatprep.subr.mxu0 0.0
    %2611 = vmatpush1.msra.mxu0 0.0
    %2612 = vmatprep.subr.mxu0 0.0
    %2613 = vmatpush1.msra.mxu0 0.0
    %2614 = vmatprep.subr.mxu0 0.0
    %2615 = vmatpush1.msra.mxu0 0.0
    %2616 = vmatprep.subr.mxu0 0.0
    %2617 = vmatpush1.msra.mxu0 0.0
    %2618 = vmatprep.subr.mxu0 0.0
    %2619 = vmatpush1.msra.mxu0 0.0
    %2620 = vmatprep.subr.mxu0 0.0
    %2621 = vmatpush1.msra.mxu0 0.0
    %2622 = vmatprep.subr.mxu0 0.0
    %2623 = vmatpush1.msra.mxu0 0.0
    %2624 = vmatprep.subr.mxu0 0.0
    %2625 = vmatpush1.msra.mxu0 0.0
    %2626 = vmatprep.subr.mxu0 0.0
    %2627 = vmatpush1.msra.mxu0 0.0
    %2628 = vmatprep.subr.mxu0 0.0
    %2629 = vmatpush1.msra.mxu0 0.0
    %2630 = vmatprep.subr.mxu0 0.0
    %2631 = vmatpush1.msra.mxu0 0.0
    %2632 = vmatprep.subr.mxu0 0.0
    %2633 = vmatpush1.msra.mxu0 0.0
    %2634 = vmatprep.subr.mxu0 0.0
    %2635 = vmatpush1.msra.mxu0 0.0
    %2636 = vmatprep.subr.mxu0 0.0
    %2637 = vmatpush1.msra.mxu0 0.0
    %2638 = vmatprep.subr.mxu0 0.0
    %2639 = vmatpush1.msra.mxu0 0.0
    %2640 = vmatprep.mubr.f32.mxu0 0.0
    %2641 = vmatmul.mubr.f32.gmra.mrb[0].mxu0 %v2574
    %v2642 = vpop.f32.mrb[0].mxu0
    %v2643 = vadd.f32 0.0, %v2642
    %v2644 = vpop.f32.mrb[0].mxu0
    %2645 = vdwg.mxu0
    %v2647 = vsel %vm423, %v2567, 0
    %v2650 = vsel %vm423, %v2643, 0
    %2652 = vmatprep.subr.mxu0 0.0
    %2653 = vmatpush1.msra.mxu0 %v2307
    %2654 = vmatprep.subr.mxu0 0.0
    %2655 = vmatpush1.msra.mxu0 0.0
    %2656 = vmatprep.subr.mxu0 0.0
    %2657 = vmatpush1.msra.mxu0 0.0
    %2658 = vmatprep.subr.mxu0 0.0
    %2659 = vmatpush1.msra.mxu0 0.0
    %2660 = vmatprep.subr.mxu0 0.0
    %2661 = vmatpush1.msra.mxu0 0.0
    %2662 = vmatprep.subr.mxu0 0.0
    %2663 = vmatpush1.msra.mxu0 0.0
    %2664 = vmatprep.subr.mxu0 0.0
    %2665 = vmatpush1.msra.mxu0 0.0
    %2666 = vmatprep.subr.mxu0 0.0
    %2667 = vmatpush1.msra.mxu0 0.0
    %2668 = vmatprep.subr.mxu0 0.0
    %2669 = vmatpush1.msra.mxu0 0.0
    %2670 = vmatprep.subr.mxu0 0.0
    %2671 = vmatpush1.msra.mxu0 0.0
    %2672 = vmatprep.subr.mxu0 0.0
    %2673 = vmatpush1.msra.mxu0 0.0
    %2674 = vmatprep.subr.mxu0 0.0
    %2675 = vmatpush1.msra.mxu0 0.0
    %2676 = vmatprep.subr.mxu0 0.0
    %2677 = vmatpush1.msra.mxu0 0.0
    %2678 = vmatprep.subr.mxu0 0.0
    %2679 = vmatpush1.msra.mxu0 0.0
    %2680 = vmatprep.subr.mxu0 0.0
    %2681 = vmatpush1.msra.mxu0 0.0
    %2682 = vmatprep.subr.mxu0 0.0
    %2683 = vmatpush1.msra.mxu0 0.0
    %2684 = vmatprep.subr.mxu0 0.0
    %2685 = vmatpush1.msra.mxu0 0.0
    %2686 = vmatprep.subr.mxu0 0.0
    %2687 = vmatpush1.msra.mxu0 0.0
    %2688 = vmatprep.subr.mxu0 0.0
    %2689 = vmatpush1.msra.mxu0 0.0
    %2690 = vmatprep.subr.mxu0 0.0
    %2691 = vmatpush1.msra.mxu0 0.0
    %2692 = vmatprep.subr.mxu0 0.0
    %2693 = vmatpush1.msra.mxu0 0.0
    %2694 = vmatprep.subr.mxu0 0.0
    %2695 = vmatpush1.msra.mxu0 0.0
    %2696 = vmatprep.subr.mxu0 0.0
    %2697 = vmatpush1.msra.mxu0 0.0
    %2698 = vmatprep.subr.mxu0 0.0
    %2699 = vmatpush1.msra.mxu0 0.0
    %2700 = vmatprep.subr.mxu0 0.0
    %2701 = vmatpush1.msra.mxu0 0.0
    %2702 = vmatprep.subr.mxu0 0.0
    %2703 = vmatpush1.msra.mxu0 0.0
    %2704 = vmatprep.subr.mxu0 0.0
    %2705 = vmatpush1.msra.mxu0 0.0
    %2706 = vmatprep.subr.mxu0 0.0
    %2707 = vmatpush1.msra.mxu0 0.0
    %2708 = vmatprep.subr.mxu0 0.0
    %2709 = vmatpush1.msra.mxu0 0.0
    %2710 = vmatprep.subr.mxu0 0.0
    %2711 = vmatpush1.msra.mxu0 0.0
    %2712 = vmatprep.subr.mxu0 0.0
    %2713 = vmatpush1.msra.mxu0 0.0
    %2714 = vmatprep.subr.mxu0 0.0
    %2715 = vmatpush1.msra.mxu0 0.0
    %2716 = vmatprep.mubr.f32.mxu0 0.0
    %2717 = vmatmul.mubr.f32.gmra.mrb[0].mxu0 %v2647
    %v2718 = vpop.f32.mrb[0].mxu0
    %v2719 = vadd.f32 0.0, %v2718
    %v2720 = vpop.f32.mrb[0].mxu0
    %2721 = vmatprep.mubr.f32.mxu0 0.0
    %2722 = vmatmul.mubr.f32.gmra.mrb[0].mxu0 %v2650
    %v2723 = vpop.f32.mrb[0].mxu0
    %v2724 = vadd.f32 0.0, %v2723
    %v2725 = vpop.f32.mrb[0].mxu0
    %2726 = vdwg.mxu0
    %v2727 = vadd.f32 %v2318, %v2719
    %v2728 = vadd.f32 %v2319, %v2724
    %2729 = vrot.lane.b32.xlu0 %v2207, 120
    %v2730 = vpop.permute.xlu0 %2729
    %2731 = vrot.lane.b32.xlu0 %v2299, 120
    %v2732 = vpop.permute.xlu0 %2731
    %v2733 = vsel %vm423, %v2730, 0
    %v2735 = vsel %vm423, %v2732, 0
    %2737 = vmatprep.subr.mxu0 0.0
    %2738 = vmatpush1.xpose.msra.mxu0 %v2735
    %2739 = vmatprep.subr.mxu0 0.0
    %2740 = vmatpush1.xpose.msra.mxu0 0.0
    %2741 = vmatprep.subr.mxu0 0.0
    %2742 = vmatpush1.xpose.msra.mxu0 0.0
    %2743 = vmatprep.subr.mxu0 0.0
    %2744 = vmatpush1.xpose.msra.mxu0 0.0
    %2745 = vmatprep.subr.mxu0 0.0
    %2746 = vmatpush1.xpose.msra.mxu0 0.0
    %2747 = vmatprep.subr.mxu0 0.0
    %2748 = vmatpush1.xpose.msra.mxu0 0.0
    %2749 = vmatprep.subr.mxu0 0.0
    %2750 = vmatpush1.xpose.msra.mxu0 0.0
    %2751 = vmatprep.subr.mxu0 0.0
    %2752 = vmatpush1.xpose.msra.mxu0 0.0
    %2753 = vmatprep.subr.mxu0 0.0
    %2754 = vmatpush1.xpose.msra.mxu0 0.0
    %2755 = vmatprep.subr.mxu0 0.0
    %2756 = vmatpush1.xpose.msra.mxu0 0.0
    %2757 = vmatprep.subr.mxu0 0.0
    %2758 = vmatpush1.xpose.msra.mxu0 0.0
    %2759 = vmatprep.subr.mxu0 0.0
    %2760 = vmatpush1.xpose.msra.mxu0 0.0
    %2761 = vmatprep.subr.mxu0 0.0
    %2762 = vmatpush1.xpose.msra.mxu0 0.0
    %2763 = vmatprep.subr.mxu0 0.0
    %2764 = vmatpush1.xpose.msra.mxu0 0.0
    %2765 = vmatprep.subr.mxu0 0.0
    %2766 = vmatpush1.xpose.msra.mxu0 0.0
    %2767 = vmatprep.subr.mxu0 0.0
    %2768 = vmatpush1.xpose.msra.mxu0 0.0
    %2769 = vmatprep.subr.mxu0 0.0
    %2770 = vmatpush1.xpose.msra.mxu0 0.0
    %2771 = vmatprep.subr.mxu0 0.0
    %2772 = vmatpush1.xpose.msra.mxu0 0.0
    %2773 = vmatprep.subr.mxu0 0.0
    %2774 = vmatpush1.xpose.msra.mxu0 0.0
    %2775 = vmatprep.subr.mxu0 0.0
    %2776 = vmatpush1.xpose.msra.mxu0 0.0
    %2777 = vmatprep.subr.mxu0 0.0
    %2778 = vmatpush1.xpose.msra.mxu0 0.0
    %2779 = vmatprep.subr.mxu0 0.0
    %2780 = vmatpush1.xpose.msra.mxu0 0.0
    %2781 = vmatprep.subr.mxu0 0.0
    %2782 = vmatpush1.xpose.msra.mxu0 0.0
    %2783 = vmatprep.subr.mxu0 0.0
    %2784 = vmatpush1.xpose.msra.mxu0 0.0
    %2785 = vmatprep.subr.mxu0 0.0
    %2786 = vmatpush1.xpose.msra.mxu0 0.0
    %2787 = vmatprep.subr.mxu0 0.0
    %2788 = vmatpush1.xpose.msra.mxu0 0.0
    %2789 = vmatprep.subr.mxu0 0.0
    %2790 = vmatpush1.xpose.msra.mxu0 0.0
    %2791 = vmatprep.subr.mxu0 0.0
    %2792 = vmatpush1.xpose.msra.mxu0 0.0
    %2793 = vmatprep.subr.mxu0 0.0
    %2794 = vmatpush1.xpose.msra.mxu0 0.0
    %2795 = vmatprep.subr.mxu0 0.0
    %2796 = vmatpush1.xpose.msra.mxu0 0.0
    %2797 = vmatprep.subr.mxu0 0.0
    %2798 = vmatpush1.xpose.msra.mxu0 0.0
    %2799 = vmatprep.subr.mxu0 0.0
    %2800 = vmatpush1.xpose.msra.mxu0 0.0
    %2801 = vmatprep.mubr.f32.mxu0 0.0
    %2802 = vmatmul.mubr.f32.gmra.mrb[0].mxu0 %v2733
    %v2803 = vpop.f32.mrb[0].mxu0
    %v2804 = vadd.f32 %v248, %v2803
    %v2805 = vpop.f32.mrb[0].mxu0
    %2806 = vdwg.mxu0
    %2807 = vrot.lane.b32.xlu0 %v2212, 120
    %v2808 = vpop.permute.xlu0 %2807
    %2809 = vrot.lane.b32.xlu0 %v2304, 120
    %v2810 = vpop.permute.xlu0 %2809
    %v2811 = vsel %vm423, %v2808, 0
    %v2813 = vsel %vm423, %v2810, 0
    %2815 = vmatprep.subr.mxu0 0.0
    %2816 = vmatpush1.xpose.msra.mxu0 %v2813
    %2817 = vmatprep.subr.mxu0 0.0
    %2818 = vmatpush1.xpose.msra.mxu0 0.0
    %2819 = vmatprep.subr.mxu0 0.0
    %2820 = vmatpush1.xpose.msra.mxu0 0.0
    %2821 = vmatprep.subr.mxu0 0.0
    %2822 = vmatpush1.xpose.msra.mxu0 0.0
    %2823 = vmatprep.subr.mxu0 0.0
    %2824 = vmatpush1.xpose.msra.mxu0 0.0
    %2825 = vmatprep.subr.mxu0 0.0
    %2826 = vmatpush1.xpose.msra.mxu0 0.0
    %2827 = vmatprep.subr.mxu0 0.0
    %2828 = vmatpush1.xpose.msra.mxu0 0.0
    %2829 = vmatprep.subr.mxu0 0.0
    %2830 = vmatpush1.xpose.msra.mxu0 0.0
    %2831 = vmatprep.subr.mxu0 0.0
    %2832 = vmatpush1.xpose.msra.mxu0 0.0
    %2833 = vmatprep.subr.mxu0 0.0
    %2834 = vmatpush1.xpose.msra.mxu0 0.0
    %2835 = vmatprep.subr.mxu0 0.0
    %2836 = vmatpush1.xpose.msra.mxu0 0.0
    %2837 = vmatprep.subr.mxu0 0.0
    %2838 = vmatpush1.xpose.msra.mxu0 0.0
    %2839 = vmatprep.subr.mxu0 0.0
    %2840 = vmatpush1.xpose.msra.mxu0 0.0
    %2841 = vmatprep.subr.mxu0 0.0
    %2842 = vmatpush1.xpose.msra.mxu0 0.0
    %2843 = vmatprep.subr.mxu0 0.0
    %2844 = vmatpush1.xpose.msra.mxu0 0.0
    %2845 = vmatprep.subr.mxu0 0.0
    %2846 = vmatpush1.xpose.msra.mxu0 0.0
    %2847 = vmatprep.subr.mxu0 0.0
    %2848 = vmatpush1.xpose.msra.mxu0 0.0
    %2849 = vmatprep.subr.mxu0 0.0
    %2850 = vmatpush1.xpose.msra.mxu0 0.0
    %2851 = vmatprep.subr.mxu0 0.0
    %2852 = vmatpush1.xpose.msra.mxu0 0.0
    %2853 = vmatprep.subr.mxu0 0.0
    %2854 = vmatpush1.xpose.msra.mxu0 0.0
    %2855 = vmatprep.subr.mxu0 0.0
    %2856 = vmatpush1.xpose.msra.mxu0 0.0
    %2857 = vmatprep.subr.mxu0 0.0
    %2858 = vmatpush1.xpose.msra.mxu0 0.0
    %2859 = vmatprep.subr.mxu0 0.0
    %2860 = vmatpush1.xpose.msra.mxu0 0.0
    %2861 = vmatprep.subr.mxu0 0.0
    %2862 = vmatpush1.xpose.msra.mxu0 0.0
    %2863 = vmatprep.subr.mxu0 0.0
    %2864 = vmatpush1.xpose.msra.mxu0 0.0
    %2865 = vmatprep.subr.mxu0 0.0
    %2866 = vmatpush1.xpose.msra.mxu0 0.0
    %2867 = vmatprep.subr.mxu0 0.0
    %2868 = vmatpush1.xpose.msra.mxu0 0.0
    %2869 = vmatprep.subr.mxu0 0.0
    %2870 = vmatpush1.xpose.msra.mxu0 0.0
    %2871 = vmatprep.subr.mxu0 0.0
    %2872 = vmatpush1.xpose.msra.mxu0 0.0
    %2873 = vmatprep.subr.mxu0 0.0
    %2874 = vmatpush1.xpose.msra.mxu0 0.0
    %2875 = vmatprep.subr.mxu0 0.0
    %2876 = vmatpush1.xpose.msra.mxu0 0.0
    %2877 = vmatprep.subr.mxu0 0.0
    %2878 = vmatpush1.xpose.msra.mxu0 0.0
    %2879 = vmatprep.mubr.f32.mxu0 0.0
    %2880 = vmatmul.mubr.f32.gmra.mrb[0].mxu0 %v2811
    %v2881 = vpop.f32.mrb[0].mxu0
    %v2882 = vadd.f32 %v252, %v2881
    %v2883 = vpop.f32.mrb[0].mxu0
    %2884 = vdwg.mxu0
    %v2885 = vsel %vm423, %v2804, -inf
    %2886 = vmax.xlane.f32.xlu0 %v2885
    %v2887 = vpop.xlane.xlu0 %2886
    %v2888 = vsel %vm423, %v2882, -inf
    %2889 = vmax.xlane.f32.xlu0 %v2888
    %v2890 = vpop.xlane.xlu0 %2889
    %v2891 = vsub.f32 %v2804, %v2887
    %v2892 = vsub.f32 %v2882, %v2890
    %v2893 = vmul.f32 %v2891, 1.442695
    %v2894 = vpow.pop %v2893
    %v2895 = vmul.f32 %v2892, 1.442695
    %v2896 = vpow.pop %v2895
    %v2897 = vsel %vm423, %v2894, 0.0
    %2898 = vadd.xlane.f32.xlu0 %v2897
    %v2899 = vpop.xlane.xlu0 %2898
    %v2900 = vsel %vm423, %v2896, 0.0
    %2901 = vadd.xlane.f32.xlu0 %v2900
    %v2902 = vpop.xlane.xlu0 %2901
    %v2903 = vrcp.pop %v2899
    %v2904 = vrcp.pop %v2902
    %v2905 = vmul.f32 %v2894, %v2903
    %v2906 = vmul.f32 %v2896, %v2904
    %2907 = vrot.lane.b32.xlu0 %v2299, 88
    %v2908 = vpop.permute.xlu0 %2907
    %v2911 = vsel %vm423, %v2905, 0
    %2913 = vmatprep.subr.mxu0 0.0
    %2914 = vmatpush1.msra.mxu0 %v2908
    %2915 = vmatprep.subr.mxu0 0.0
    %2916 = vmatpush1.msra.mxu0 0.0
    %2917 = vmatprep.subr.mxu0 0.0
    %2918 = vmatpush1.msra.mxu0 0.0
    %2919 = vmatprep.subr.mxu0 0.0
    %2920 = vmatpush1.msra.mxu0 0.0
    %2921 = vmatprep.subr.mxu0 0.0
    %2922 = vmatpush1.msra.mxu0 0.0
    %2923 = vmatprep.subr.mxu0 0.0
    %2924 = vmatpush1.msra.mxu0 0.0
    %2925 = vmatprep.subr.mxu0 0.0
    %2926 = vmatpush1.msra.mxu0 0.0
    %2927 = vmatprep.subr.mxu0 0.0
    %2928 = vmatpush1.msra.mxu0 0.0
    %2929 = vmatprep.subr.mxu0 0.0
    %2930 = vmatpush1.msra.mxu0 0.0
    %2931 = vmatprep.subr.mxu0 0.0
    %2932 = vmatpush1.msra.mxu0 0.0
    %2933 = vmatprep.subr.mxu0 0.0
    %2934 = vmatpush1.msra.mxu0 0.0
    %2935 = vmatprep.subr.mxu0 0.0
    %2936 = vmatpush1.msra.mxu0 0.0
    %2937 = vmatprep.subr.mxu0 0.0
    %2938 = vmatpush1.msra.mxu0 0.0
    %2939 = vmatprep.subr.mxu0 0.0
    %2940 = vmatpush1.msra.mxu0 0.0
    %2941 = vmatprep.subr.mxu0 0.0
    %2942 = vmatpush1.msra.mxu0 0.0
    %2943 = vmatprep.subr.mxu0 0.0
    %2944 = vmatpush1.msra.mxu0 0.0
    %2945 = vmatprep.subr.mxu0 0.0
    %2946 = vmatpush1.msra.mxu0 0.0
    %2947 = vmatprep.subr.mxu0 0.0
    %2948 = vmatpush1.msra.mxu0 0.0
    %2949 = vmatprep.subr.mxu0 0.0
    %2950 = vmatpush1.msra.mxu0 0.0
    %2951 = vmatprep.subr.mxu0 0.0
    %2952 = vmatpush1.msra.mxu0 0.0
    %2953 = vmatprep.subr.mxu0 0.0
    %2954 = vmatpush1.msra.mxu0 0.0
    %2955 = vmatprep.subr.mxu0 0.0
    %2956 = vmatpush1.msra.mxu0 0.0
    %2957 = vmatprep.subr.mxu0 0.0
    %2958 = vmatpush1.msra.mxu0 0.0
    %2959 = vmatprep.subr.mxu0 0.0
    %2960 = vmatpush1.msra.mxu0 0.0
    %2961 = vmatprep.subr.mxu0 0.0
    %2962 = vmatpush1.msra.mxu0 0.0
    %2963 = vmatprep.subr.mxu0 0.0
    %2964 = vmatpush1.msra.mxu0 0.0
    %2965 = vmatprep.subr.mxu0 0.0
    %2966 = vmatpush1.msra.mxu0 0.0
    %2967 = vmatprep.subr.mxu0 0.0
    %2968 = vmatpush1.msra.mxu0 0.0
    %2969 = vmatprep.subr.mxu0 0.0
    %2970 = vmatpush1.msra.mxu0 0.0
    %2971 = vmatprep.subr.mxu0 0.0
    %2972 = vmatpush1.msra.mxu0 0.0
    %2973 = vmatprep.subr.mxu0 0.0
    %2974 = vmatpush1.msra.mxu0 0.0
    %2975 = vmatprep.subr.mxu0 0.0
    %2976 = vmatpush1.msra.mxu0 0.0
    %2977 = vmatprep.mubr.f32.mxu0 0.0
    %2978 = vmatmul.mubr.f32.gmra.mrb[0].mxu0 %v2911
    %v2979 = vpop.f32.mrb[0].mxu0
    %v2980 = vadd.f32 0.0, %v2979
    %v2981 = vpop.f32.mrb[0].mxu0
    %2982 = vdwg.mxu0
    %2983 = vrot.lane.b32.xlu0 %v2304, 88
    %v2984 = vpop.permute.xlu0 %2983
    %v2987 = vsel %vm423, %v2906, 0
    %2989 = vmatprep.subr.mxu0 0.0
    %2990 = vmatpush1.msra.mxu0 %v2984
    %2991 = vmatprep.subr.mxu0 0.0
    %2992 = vmatpush1.msra.mxu0 0.0
    %2993 = vmatprep.subr.mxu0 0.0
    %2994 = vmatpush1.msra.mxu0 0.0
    %2995 = vmatprep.subr.mxu0 0.0
    %2996 = vmatpush1.msra.mxu0 0.0
    %2997 = vmatprep.subr.mxu0 0.0
    %2998 = vmatpush1.msra.mxu0 0.0
    %2999 = vmatprep.subr.mxu0 0.0
    %3000 = vmatpush1.msra.mxu0 0.0
    %3001 = vmatprep.subr.mxu0 0.0
    %3002 = vmatpush1.msra.mxu0 0.0
    %3003 = vmatprep.subr.mxu0 0.0
    %3004 = vmatpush1.msra.mxu0 0.0
    %3005 = vmatprep.subr.mxu0 0.0
    %3006 = vmatpush1.msra.mxu0 0.0
    %3007 = vmatprep.subr.mxu0 0.0
    %3008 = vmatpush1.msra.mxu0 0.0
    %3009 = vmatprep.subr.mxu0 0.0
    %3010 = vmatpush1.msra.mxu0 0.0
    %3011 = vmatprep.subr.mxu0 0.0
    %3012 = vmatpush1.msra.mxu0 0.0
    %3013 = vmatprep.subr.mxu0 0.0
    %3014 = vmatpush1.msra.mxu0 0.0
    %3015 = vmatprep.subr.mxu0 0.0
    %3016 = vmatpush1.msra.mxu0 0.0
    %3017 = vmatprep.subr.mxu0 0.0
    %3018 = vmatpush1.msra.mxu0 0.0
    %3019 = vmatprep.subr.mxu0 0.0
    %3020 = vmatpush1.msra.mxu0 0.0
    %3021 = vmatprep.subr.mxu0 0.0
    %3022 = vmatpush1.msra.mxu0 0.0
    %3023 = vmatprep.subr.mxu0 0.0
    %3024 = vmatpush1.msra.mxu0 0.0
    %3025 = vmatprep.subr.mxu0 0.0
    %3026 = vmatpush1.msra.mxu0 0.0
    %3027 = vmatprep.subr.mxu0 0.0
    %3028 = vmatpush1.msra.mxu0 0.0
    %3029 = vmatprep.subr.mxu0 0.0
    %3030 = vmatpush1.msra.mxu0 0.0
    %3031 = vmatprep.subr.mxu0 0.0
    %3032 = vmatpush1.msra.mxu0 0.0
    %3033 = vmatprep.subr.mxu0 0.0
    %3034 = vmatpush1.msra.mxu0 0.0
    %3035 = vmatprep.subr.mxu0 0.0
    %3036 = vmatpush1.msra.mxu0 0.0
    %3037 = vmatprep.subr.mxu0 0.0
    %3038 = vmatpush1.msra.mxu0 0.0
    %3039 = vmatprep.subr.mxu0 0.0
    %3040 = vmatpush1.msra.mxu0 0.0
    %3041 = vmatprep.subr.mxu0 0.0
    %3042 = vmatpush1.msra.mxu0 0.0
    %3043 = vmatprep.subr.mxu0 0.0
    %3044 = vmatpush1.msra.mxu0 0.0
    %3045 = vmatprep.subr.mxu0 0.0
    %3046 = vmatpush1.msra.mxu0 0.0
    %3047 = vmatprep.subr.mxu0 0.0
    %3048 = vmatpush1.msra.mxu0 0.0
    %3049 = vmatprep.subr.mxu0 0.0
    %3050 = vmatpush1.msra.mxu0 0.0
    %3051 = vmatprep.subr.mxu0 0.0
    %3052 = vmatpush1.msra.mxu0 0.0
    %3053 = vmatprep.mubr.f32.mxu0 0.0
    %3054 = vmatmul.mubr.f32.gmra.mrb[0].mxu0 %v2987
    %v3055 = vpop.f32.mrb[0].mxu0
    %v3056 = vadd.f32 0.0, %v3055
    %v3057 = vpop.f32.mrb[0].mxu0
    %3058 = vdwg.mxu0
    %v3060 = vsel %vm423, %v2980, 0
    %v3063 = vsel %vm423, %v3056, 0
    %3065 = vmatprep.subr.mxu0 0.0
    %3066 = vmatpush1.msra.mxu0 %v2308
    %3067 = vmatprep.subr.mxu0 0.0
    %3068 = vmatpush1.msra.mxu0 0.0
    %3069 = vmatprep.subr.mxu0 0.0
    %3070 = vmatpush1.msra.mxu0 0.0
    %3071 = vmatprep.subr.mxu0 0.0
    %3072 = vmatpush1.msra.mxu0 0.0
    %3073 = vmatprep.subr.mxu0 0.0
    %3074 = vmatpush1.msra.mxu0 0.0
    %3075 = vmatprep.subr.mxu0 0.0
    %3076 = vmatpush1.msra.mxu0 0.0
    %3077 = vmatprep.subr.mxu0 0.0
    %3078 = vmatpush1.msra.mxu0 0.0
    %3079 = vmatprep.subr.mxu0 0.0
    %3080 = vmatpush1.msra.mxu0 0.0
    %3081 = vmatprep.subr.mxu0 0.0
    %3082 = vmatpush1.msra.mxu0 0.0
    %3083 = vmatprep.subr.mxu0 0.0
    %3084 = vmatpush1.msra.mxu0 0.0
    %3085 = vmatprep.subr.mxu0 0.0
    %3086 = vmatpush1.msra.mxu0 0.0
    %3087 = vmatprep.subr.mxu0 0.0
    %3088 = vmatpush1.msra.mxu0 0.0
    %3089 = vmatprep.subr.mxu0 0.0
    %3090 = vmatpush1.msra.mxu0 0.0
    %3091 = vmatprep.subr.mxu0 0.0
    %3092 = vmatpush1.msra.mxu0 0.0
    %3093 = vmatprep.subr.mxu0 0.0
    %3094 = vmatpush1.msra.mxu0 0.0
    %3095 = vmatprep.subr.mxu0 0.0
    %3096 = vmatpush1.msra.mxu0 0.0
    %3097 = vmatprep.subr.mxu0 0.0
    %3098 = vmatpush1.msra.mxu0 0.0
    %3099 = vmatprep.subr.mxu0 0.0
    %3100 = vmatpush1.msra.mxu0 0.0
    %3101 = vmatprep.subr.mxu0 0.0
    %3102 = vmatpush1.msra.mxu0 0.0
    %3103 = vmatprep.subr.mxu0 0.0
    %3104 = vmatpush1.msra.mxu0 0.0
    %3105 = vmatprep.subr.mxu0 0.0
    %3106 = vmatpush1.msra.mxu0 0.0
    %3107 = vmatprep.subr.mxu0 0.0
    %3108 = vmatpush1.msra.mxu0 0.0
    %3109 = vmatprep.subr.mxu0 0.0
    %3110 = vmatpush1.msra.mxu0 0.0
    %3111 = vmatprep.subr.mxu0 0.0
    %3112 = vmatpush1.msra.mxu0 0.0
    %3113 = vmatprep.subr.mxu0 0.0
    %3114 = vmatpush1.msra.mxu0 0.0
    %3115 = vmatprep.subr.mxu0 0.0
    %3116 = vmatpush1.msra.mxu0 0.0
    %3117 = vmatprep.subr.mxu0 0.0
    %3118 = vmatpush1.msra.mxu0 0.0
    %3119 = vmatprep.subr.mxu0 0.0
    %3120 = vmatpush1.msra.mxu0 0.0
    %3121 = vmatprep.subr.mxu0 0.0
    %3122 = vmatpush1.msra.mxu0 0.0
    %3123 = vmatprep.subr.mxu0 0.0
    %3124 = vmatpush1.msra.mxu0 0.0
    %3125 = vmatprep.subr.mxu0 0.0
    %3126 = vmatpush1.msra.mxu0 0.0
    %3127 = vmatprep.subr.mxu0 0.0
    %3128 = vmatpush1.msra.mxu0 0.0
    %3129 = vmatprep.mubr.f32.mxu0 0.0
    %3130 = vmatmul.mubr.f32.gmra.mrb[0].mxu0 %v3060
    %v3131 = vpop.f32.mrb[0].mxu0
    %v3132 = vadd.f32 0.0, %v3131
    %v3133 = vpop.f32.mrb[0].mxu0
    %3134 = vmatprep.mubr.f32.mxu0 0.0
    %3135 = vmatmul.mubr.f32.gmra.mrb[0].mxu0 %v3063
    %v3136 = vpop.f32.mrb[0].mxu0
    %v3137 = vadd.f32 0.0, %v3136
    %v3138 = vpop.f32.mrb[0].mxu0
    %3139 = vdwg.mxu0
    %v3140 = vadd.f32 %v2727, %v3132
    %v3141 = vadd.f32 %v2728, %v3137
    %3142 = vrot.lane.b32.xlu0 %v2207, 112
    %v3143 = vpop.permute.xlu0 %3142
    %3144 = vrot.lane.b32.xlu0 %v2299, 112
    %v3145 = vpop.permute.xlu0 %3144
    %v3146 = vsel %vm423, %v3143, 0
    %v3148 = vsel %vm423, %v3145, 0
    %3150 = vmatprep.subr.mxu0 0.0
    %3151 = vmatpush1.xpose.msra.mxu0 %v3148
    %3152 = vmatprep.subr.mxu0 0.0
    %3153 = vmatpush1.xpose.msra.mxu0 0.0
    %3154 = vmatprep.subr.mxu0 0.0
    %3155 = vmatpush1.xpose.msra.mxu0 0.0
    %3156 = vmatprep.subr.mxu0 0.0
    %3157 = vmatpush1.xpose.msra.mxu0 0.0
    %3158 = vmatprep.subr.mxu0 0.0
    %3159 = vmatpush1.xpose.msra.mxu0 0.0
    %3160 = vmatprep.subr.mxu0 0.0
    %3161 = vmatpush1.xpose.msra.mxu0 0.0
    %3162 = vmatprep.subr.mxu0 0.0
    %3163 = vmatpush1.xpose.msra.mxu0 0.0
    %3164 = vmatprep.subr.mxu0 0.0
    %3165 = vmatpush1.xpose.msra.mxu0 0.0
    %3166 = vmatprep.subr.mxu0 0.0
    %3167 = vmatpush1.xpose.msra.mxu0 0.0
    %3168 = vmatprep.subr.mxu0 0.0
    %3169 = vmatpush1.xpose.msra.mxu0 0.0
    %3170 = vmatprep.subr.mxu0 0.0
    %3171 = vmatpush1.xpose.msra.mxu0 0.0
    %3172 = vmatprep.subr.mxu0 0.0
    %3173 = vmatpush1.xpose.msra.mxu0 0.0
    %3174 = vmatprep.subr.mxu0 0.0
    %3175 = vmatpush1.xpose.msra.mxu0 0.0
    %3176 = vmatprep.subr.mxu0 0.0
    %3177 = vmatpush1.xpose.msra.mxu0 0.0
    %3178 = vmatprep.subr.mxu0 0.0
    %3179 = vmatpush1.xpose.msra.mxu0 0.0
    %3180 = vmatprep.subr.mxu0 0.0
    %3181 = vmatpush1.xpose.msra.mxu0 0.0
    %3182 = vmatprep.subr.mxu0 0.0
    %3183 = vmatpush1.xpose.msra.mxu0 0.0
    %3184 = vmatprep.subr.mxu0 0.0
    %3185 = vmatpush1.xpose.msra.mxu0 0.0
    %3186 = vmatprep.subr.mxu0 0.0
    %3187 = vmatpush1.xpose.msra.mxu0 0.0
    %3188 = vmatprep.subr.mxu0 0.0
    %3189 = vmatpush1.xpose.msra.mxu0 0.0
    %3190 = vmatprep.subr.mxu0 0.0
    %3191 = vmatpush1.xpose.msra.mxu0 0.0
    %3192 = vmatprep.subr.mxu0 0.0
    %3193 = vmatpush1.xpose.msra.mxu0 0.0
    %3194 = vmatprep.subr.mxu0 0.0
    %3195 = vmatpush1.xpose.msra.mxu0 0.0
    %3196 = vmatprep.subr.mxu0 0.0
    %3197 = vmatpush1.xpose.msra.mxu0 0.0
    %3198 = vmatprep.subr.mxu0 0.0
    %3199 = vmatpush1.xpose.msra.mxu0 0.0
    %3200 = vmatprep.subr.mxu0 0.0
    %3201 = vmatpush1.xpose.msra.mxu0 0.0
    %3202 = vmatprep.subr.mxu0 0.0
    %3203 = vmatpush1.xpose.msra.mxu0 0.0
    %3204 = vmatprep.subr.mxu0 0.0
    %3205 = vmatpush1.xpose.msra.mxu0 0.0
    %3206 = vmatprep.subr.mxu0 0.0
    %3207 = vmatpush1.xpose.msra.mxu0 0.0
    %3208 = vmatprep.subr.mxu0 0.0
    %3209 = vmatpush1.xpose.msra.mxu0 0.0
    %3210 = vmatprep.subr.mxu0 0.0
    %3211 = vmatpush1.xpose.msra.mxu0 0.0
    %3212 = vmatprep.subr.mxu0 0.0
    %3213 = vmatpush1.xpose.msra.mxu0 0.0
    %3214 = vmatprep.mubr.f32.mxu0 0.0
    %3215 = vmatmul.mubr.f32.gmra.mrb[0].mxu0 %v3146
    %v3216 = vpop.f32.mrb[0].mxu0
    %v3217 = vadd.f32 %v248, %v3216
    %v3218 = vpop.f32.mrb[0].mxu0
    %3219 = vdwg.mxu0
    %3220 = vrot.lane.b32.xlu0 %v2212, 112
    %v3221 = vpop.permute.xlu0 %3220
    %3222 = vrot.lane.b32.xlu0 %v2304, 112
    %v3223 = vpop.permute.xlu0 %3222
    %v3224 = vsel %vm423, %v3221, 0
    %v3226 = vsel %vm423, %v3223, 0
    %3228 = vmatprep.subr.mxu0 0.0
    %3229 = vmatpush1.xpose.msra.mxu0 %v3226
    %3230 = vmatprep.subr.mxu0 0.0
    %3231 = vmatpush1.xpose.msra.mxu0 0.0
    %3232 = vmatprep.subr.mxu0 0.0
    %3233 = vmatpush1.xpose.msra.mxu0 0.0
    %3234 = vmatprep.subr.mxu0 0.0
    %3235 = vmatpush1.xpose.msra.mxu0 0.0
    %3236 = vmatprep.subr.mxu0 0.0
    %3237 = vmatpush1.xpose.msra.mxu0 0.0
    %3238 = vmatprep.subr.mxu0 0.0
    %3239 = vmatpush1.xpose.msra.mxu0 0.0
    %3240 = vmatprep.subr.mxu0 0.0
    %3241 = vmatpush1.xpose.msra.mxu0 0.0
    %3242 = vmatprep.subr.mxu0 0.0
    %3243 = vmatpush1.xpose.msra.mxu0 0.0
    %3244 = vmatprep.subr.mxu0 0.0
    %3245 = vmatpush1.xpose.msra.mxu0 0.0
    %3246 = vmatprep.subr.mxu0 0.0
    %3247 = vmatpush1.xpose.msra.mxu0 0.0
    %3248 = vmatprep.subr.mxu0 0.0
    %3249 = vmatpush1.xpose.msra.mxu0 0.0
    %3250 = vmatprep.subr.mxu0 0.0
    %3251 = vmatpush1.xpose.msra.mxu0 0.0
    %3252 = vmatprep.subr.mxu0 0.0
    %3253 = vmatpush1.xpose.msra.mxu0 0.0
    %3254 = vmatprep.subr.mxu0 0.0
    %3255 = vmatpush1.xpose.msra.mxu0 0.0
    %3256 = vmatprep.subr.mxu0 0.0
    %3257 = vmatpush1.xpose.msra.mxu0 0.0
    %3258 = vmatprep.subr.mxu0 0.0
    %3259 = vmatpush1.xpose.msra.mxu0 0.0
    %3260 = vmatprep.subr.mxu0 0.0
    %3261 = vmatpush1.xpose.msra.mxu0 0.0
    %3262 = vmatprep.subr.mxu0 0.0
    %3263 = vmatpush1.xpose.msra.mxu0 0.0
    %3264 = vmatprep.subr.mxu0 0.0
    %3265 = vmatpush1.xpose.msra.mxu0 0.0
    %3266 = vmatprep.subr.mxu0 0.0
    %3267 = vmatpush1.xpose.msra.mxu0 0.0
    %3268 = vmatprep.subr.mxu0 0.0
    %3269 = vmatpush1.xpose.msra.mxu0 0.0
    %3270 = vmatprep.subr.mxu0 0.0
    %3271 = vmatpush1.xpose.msra.mxu0 0.0
    %3272 = vmatprep.subr.mxu0 0.0
    %3273 = vmatpush1.xpose.msra.mxu0 0.0
    %3274 = vmatprep.subr.mxu0 0.0
    %3275 = vmatpush1.xpose.msra.mxu0 0.0
    %3276 = vmatprep.subr.mxu0 0.0
    %3277 = vmatpush1.xpose.msra.mxu0 0.0
    %3278 = vmatprep.subr.mxu0 0.0
    %3279 = vmatpush1.xpose.msra.mxu0 0.0
    %3280 = vmatprep.subr.mxu0 0.0
    %3281 = vmatpush1.xpose.msra.mxu0 0.0
    %3282 = vmatprep.subr.mxu0 0.0
    %3283 = vmatpush1.xpose.msra.mxu0 0.0
    %3284 = vmatprep.subr.mxu0 0.0
    %3285 = vmatpush1.xpose.msra.mxu0 0.0
    %3286 = vmatprep.subr.mxu0 0.0
    %3287 = vmatpush1.xpose.msra.mxu0 0.0
    %3288 = vmatprep.subr.mxu0 0.0
    %3289 = vmatpush1.xpose.msra.mxu0 0.0
    %3290 = vmatprep.subr.mxu0 0.0
    %3291 = vmatpush1.xpose.msra.mxu0 0.0
    %3292 = vmatprep.mubr.f32.mxu0 0.0
    %3293 = vmatmul.mubr.f32.gmra.mrb[0].mxu0 %v3224
    %v3294 = vpop.f32.mrb[0].mxu0
    %v3295 = vadd.f32 %v252, %v3294
    %v3296 = vpop.f32.mrb[0].mxu0
    %3297 = vdwg.mxu0
    %v3298 = vsel %vm423, %v3217, -inf
    %3299 = vmax.xlane.f32.xlu0 %v3298
    %v3300 = vpop.xlane.xlu0 %3299
    %v3301 = vsel %vm423, %v3295, -inf
    %3302 = vmax.xlane.f32.xlu0 %v3301
    %v3303 = vpop.xlane.xlu0 %3302
    %v3304 = vsub.f32 %v3217, %v3300
    %v3305 = vsub.f32 %v3295, %v3303
    %v3306 = vmul.f32 %v3304, 1.442695
    %v3307 = vpow.pop %v3306
    %v3308 = vmul.f32 %v3305, 1.442695
    %v3309 = vpow.pop %v3308
    %v3310 = vsel %vm423, %v3307, 0.0
    %3311 = vadd.xlane.f32.xlu0 %v3310
    %v3312 = vpop.xlane.xlu0 %3311
    %v3313 = vsel %vm423, %v3309, 0.0
    %3314 = vadd.xlane.f32.xlu0 %v3313
    %v3315 = vpop.xlane.xlu0 %3314
    %v3316 = vrcp.pop %v3312
    %v3317 = vrcp.pop %v3315
    %v3318 = vmul.f32 %v3307, %v3316
    %v3319 = vmul.f32 %v3309, %v3317
    %3320 = vrot.lane.b32.xlu0 %v2299, 80
    %v3321 = vpop.permute.xlu0 %3320
    %v3324 = vsel %vm423, %v3318, 0
    %3326 = vmatprep.subr.mxu0 0.0
    %3327 = vmatpush1.msra.mxu0 %v3321
    %3328 = vmatprep.subr.mxu0 0.0
    %3329 = vmatpush1.msra.mxu0 0.0
    %3330 = vmatprep.subr.mxu0 0.0
    %3331 = vmatpush1.msra.mxu0 0.0
    %3332 = vmatprep.subr.mxu0 0.0
    %3333 = vmatpush1.msra.mxu0 0.0
    %3334 = vmatprep.subr.mxu0 0.0
    %3335 = vmatpush1.msra.mxu0 0.0
    %3336 = vmatprep.subr.mxu0 0.0
    %3337 = vmatpush1.msra.mxu0 0.0
    %3338 = vmatprep.subr.mxu0 0.0
    %3339 = vmatpush1.msra.mxu0 0.0
    %3340 = vmatprep.subr.mxu0 0.0
    %3341 = vmatpush1.msra.mxu0 0.0
    %3342 = vmatprep.subr.mxu0 0.0
    %3343 = vmatpush1.msra.mxu0 0.0
    %3344 = vmatprep.subr.mxu0 0.0
    %3345 = vmatpush1.msra.mxu0 0.0
    %3346 = vmatprep.subr.mxu0 0.0
    %3347 = vmatpush1.msra.mxu0 0.0
    %3348 = vmatprep.subr.mxu0 0.0
    %3349 = vmatpush1.msra.mxu0 0.0
    %3350 = vmatprep.subr.mxu0 0.0
    %3351 = vmatpush1.msra.mxu0 0.0
    %3352 = vmatprep.subr.mxu0 0.0
    %3353 = vmatpush1.msra.mxu0 0.0
    %3354 = vmatprep.subr.mxu0 0.0
    %3355 = vmatpush1.msra.mxu0 0.0
    %3356 = vmatprep.subr.mxu0 0.0
    %3357 = vmatpush1.msra.mxu0 0.0
    %3358 = vmatprep.subr.mxu0 0.0
    %3359 = vmatpush1.msra.mxu0 0.0
    %3360 = vmatprep.subr.mxu0 0.0
    %3361 = vmatpush1.msra.mxu0 0.0
    %3362 = vmatprep.subr.mxu0 0.0
    %3363 = vmatpush1.msra.mxu0 0.0
    %3364 = vmatprep.subr.mxu0 0.0
    %3365 = vmatpush1.msra.mxu0 0.0
    %3366 = vmatprep.subr.mxu0 0.0
    %3367 = vmatpush1.msra.mxu0 0.0
    %3368 = vmatprep.subr.mxu0 0.0
    %3369 = vmatpush1.msra.mxu0 0.0
    %3370 = vmatprep.subr.mxu0 0.0
    %3371 = vmatpush1.msra.mxu0 0.0
    %3372 = vmatprep.subr.mxu0 0.0
    %3373 = vmatpush1.msra.mxu0 0.0
    %3374 = vmatprep.subr.mxu0 0.0
    %3375 = vmatpush1.msra.mxu0 0.0
    %3376 = vmatprep.subr.mxu0 0.0
    %3377 = vmatpush1.msra.mxu0 0.0
    %3378 = vmatprep.subr.mxu0 0.0
    %3379 = vmatpush1.msra.mxu0 0.0
    %3380 = vmatprep.subr.mxu0 0.0
    %3381 = vmatpush1.msra.mxu0 0.0
    %3382 = vmatprep.subr.mxu0 0.0
    %3383 = vmatpush1.msra.mxu0 0.0
    %3384 = vmatprep.subr.mxu0 0.0
    %3385 = vmatpush1.msra.mxu0 0.0
    %3386 = vmatprep.subr.mxu0 0.0
    %3387 = vmatpush1.msra.mxu0 0.0
    %3388 = vmatprep.subr.mxu0 0.0
    %3389 = vmatpush1.msra.mxu0 0.0
    %3390 = vmatprep.mubr.f32.mxu0 0.0
    %3391 = vmatmul.mubr.f32.gmra.mrb[0].mxu0 %v3324
    %v3392 = vpop.f32.mrb[0].mxu0
    %v3393 = vadd.f32 0.0, %v3392
    %v3394 = vpop.f32.mrb[0].mxu0
    %3395 = vdwg.mxu0
    %3396 = vrot.lane.b32.xlu0 %v2304, 80
    %v3397 = vpop.permute.xlu0 %3396
    %v3400 = vsel %vm423, %v3319, 0
    %3402 = vmatprep.subr.mxu0 0.0
    %3403 = vmatpush1.msra.mxu0 %v3397
    %3404 = vmatprep.subr.mxu0 0.0
    %3405 = vmatpush1.msra.mxu0 0.0
    %3406 = vmatprep.subr.mxu0 0.0
    %3407 = vmatpush1.msra.mxu0 0.0
    %3408 = vmatprep.subr.mxu0 0.0
    %3409 = vmatpush1.msra.mxu0 0.0
    %3410 = vmatprep.subr.mxu0 0.0
    %3411 = vmatpush1.msra.mxu0 0.0
    %3412 = vmatprep.subr.mxu0 0.0
    %3413 = vmatpush1.msra.mxu0 0.0
    %3414 = vmatprep.subr.mxu0 0.0
    %3415 = vmatpush1.msra.mxu0 0.0
    %3416 = vmatprep.subr.mxu0 0.0
    %3417 = vmatpush1.msra.mxu0 0.0
    %3418 = vmatprep.subr.mxu0 0.0
    %3419 = vmatpush1.msra.mxu0 0.0
    %3420 = vmatprep.subr.mxu0 0.0
    %3421 = vmatpush1.msra.mxu0 0.0
    %3422 = vmatprep.subr.mxu0 0.0
    %3423 = vmatpush1.msra.mxu0 0.0
    %3424 = vmatprep.subr.mxu0 0.0
    %3425 = vmatpush1.msra.mxu0 0.0
    %3426 = vmatprep.subr.mxu0 0.0
    %3427 = vmatpush1.msra.mxu0 0.0
    %3428 = vmatprep.subr.mxu0 0.0
    %3429 = vmatpush1.msra.mxu0 0.0
    %3430 = vmatprep.subr.mxu0 0.0
    %3431 = vmatpush1.msra.mxu0 0.0
    %3432 = vmatprep.subr.mxu0 0.0
    %3433 = vmatpush1.msra.mxu0 0.0
    %3434 = vmatprep.subr.mxu0 0.0
    %3435 = vmatpush1.msra.mxu0 0.0
    %3436 = vmatprep.subr.mxu0 0.0
    %3437 = vmatpush1.msra.mxu0 0.0
    %3438 = vmatprep.subr.mxu0 0.0
    %3439 = vmatpush1.msra.mxu0 0.0
    %3440 = vmatprep.subr.mxu0 0.0
    %3441 = vmatpush1.msra.mxu0 0.0
    %3442 = vmatprep.subr.mxu0 0.0
    %3443 = vmatpush1.msra.mxu0 0.0
    %3444 = vmatprep.subr.mxu0 0.0
    %3445 = vmatpush1.msra.mxu0 0.0
    %3446 = vmatprep.subr.mxu0 0.0
    %3447 = vmatpush1.msra.mxu0 0.0
    %3448 = vmatprep.subr.mxu0 0.0
    %3449 = vmatpush1.msra.mxu0 0.0
    %3450 = vmatprep.subr.mxu0 0.0
    %3451 = vmatpush1.msra.mxu0 0.0
    %3452 = vmatprep.subr.mxu0 0.0
    %3453 = vmatpush1.msra.mxu0 0.0
    %3454 = vmatprep.subr.mxu0 0.0
    %3455 = vmatpush1.msra.mxu0 0.0
    %3456 = vmatprep.subr.mxu0 0.0
    %3457 = vmatpush1.msra.mxu0 0.0
    %3458 = vmatprep.subr.mxu0 0.0
    %3459 = vmatpush1.msra.mxu0 0.0
    %3460 = vmatprep.subr.mxu0 0.0
    %3461 = vmatpush1.msra.mxu0 0.0
    %3462 = vmatprep.subr.mxu0 0.0
    %3463 = vmatpush1.msra.mxu0 0.0
    %3464 = vmatprep.subr.mxu0 0.0
    %3465 = vmatpush1.msra.mxu0 0.0
    %3466 = vmatprep.mubr.f32.mxu0 0.0
    %3467 = vmatmul.mubr.f32.gmra.mrb[0].mxu0 %v3400
    %v3468 = vpop.f32.mrb[0].mxu0
    %v3469 = vadd.f32 0.0, %v3468
    %v3470 = vpop.f32.mrb[0].mxu0
    %3471 = vdwg.mxu0
    %v3473 = vsel %vm423, %v3393, 0
    %v3476 = vsel %vm423, %v3469, 0
    %3478 = vmatprep.subr.mxu0 0.0
    %3479 = vmatpush1.msra.mxu0 %v2309
    %3480 = vmatprep.subr.mxu0 0.0
    %3481 = vmatpush1.msra.mxu0 0.0
    %3482 = vmatprep.subr.mxu0 0.0
    %3483 = vmatpush1.msra.mxu0 0.0
    %3484 = vmatprep.subr.mxu0 0.0
    %3485 = vmatpush1.msra.mxu0 0.0
    %3486 = vmatprep.subr.mxu0 0.0
    %3487 = vmatpush1.msra.mxu0 0.0
    %3488 = vmatprep.subr.mxu0 0.0
    %3489 = vmatpush1.msra.mxu0 0.0
    %3490 = vmatprep.subr.mxu0 0.0
    %3491 = vmatpush1.msra.mxu0 0.0
    %3492 = vmatprep.subr.mxu0 0.0
    %3493 = vmatpush1.msra.mxu0 0.0
    %3494 = vmatprep.subr.mxu0 0.0
    %3495 = vmatpush1.msra.mxu0 0.0
    %3496 = vmatprep.subr.mxu0 0.0
    %3497 = vmatpush1.msra.mxu0 0.0
    %3498 = vmatprep.subr.mxu0 0.0
    %3499 = vmatpush1.msra.mxu0 0.0
    %3500 = vmatprep.subr.mxu0 0.0
    %3501 = vmatpush1.msra.mxu0 0.0
    %3502 = vmatprep.subr.mxu0 0.0
    %3503 = vmatpush1.msra.mxu0 0.0
    %3504 = vmatprep.subr.mxu0 0.0
    %3505 = vmatpush1.msra.mxu0 0.0
    %3506 = vmatprep.subr.mxu0 0.0
    %3507 = vmatpush1.msra.mxu0 0.0
    %3508 = vmatprep.subr.mxu0 0.0
    %3509 = vmatpush1.msra.mxu0 0.0
    %3510 = vmatprep.subr.mxu0 0.0
    %3511 = vmatpush1.msra.mxu0 0.0
    %3512 = vmatprep.subr.mxu0 0.0
    %3513 = vmatpush1.msra.mxu0 0.0
    %3514 = vmatprep.subr.mxu0 0.0
    %3515 = vmatpush1.msra.mxu0 0.0
    %3516 = vmatprep.subr.mxu0 0.0
    %3517 = vmatpush1.msra.mxu0 0.0
    %3518 = vmatprep.subr.mxu0 0.0
    %3519 = vmatpush1.msra.mxu0 0.0
    %3520 = vmatprep.subr.mxu0 0.0
    %3521 = vmatpush1.msra.mxu0 0.0
    %3522 = vmatprep.subr.mxu0 0.0
    %3523 = vmatpush1.msra.mxu0 0.0
    %3524 = vmatprep.subr.mxu0 0.0
    %3525 = vmatpush1.msra.mxu0 0.0
    %3526 = vmatprep.subr.mxu0 0.0
    %3527 = vmatpush1.msra.mxu0 0.0
    %3528 = vmatprep.subr.mxu0 0.0
    %3529 = vmatpush1.msra.mxu0 0.0
    %3530 = vmatprep.subr.mxu0 0.0
    %3531 = vmatpush1.msra.mxu0 0.0
    %3532 = vmatprep.subr.mxu0 0.0
    %3533 = vmatpush1.msra.mxu0 0.0
    %3534 = vmatprep.subr.mxu0 0.0
    %3535 = vmatpush1.msra.mxu0 0.0
    %3536 = vmatprep.subr.mxu0 0.0
    %3537 = vmatpush1.msra.mxu0 0.0
    %3538 = vmatprep.subr.mxu0 0.0
    %3539 = vmatpush1.msra.mxu0 0.0
    %3540 = vmatprep.subr.mxu0 0.0
    %3541 = vmatpush1.msra.mxu0 0.0
    %3542 = vmatprep.mubr.f32.mxu0 0.0
    %3543 = vmatmul.mubr.f32.gmra.mrb[0].mxu0 %v3473
    %v3544 = vpop.f32.mrb[0].mxu0
    %v3545 = vadd.f32 0.0, %v3544
    %v3546 = vpop.f32.mrb[0].mxu0
    %3547 = vmatprep.mubr.f32.mxu0 0.0
    %3548 = vmatmul.mubr.f32.gmra.mrb[0].mxu0 %v3476
    %v3549 = vpop.f32.mrb[0].mxu0
    %v3550 = vadd.f32 0.0, %v3549
    %v3551 = vpop.f32.mrb[0].mxu0
    %3552 = vdwg.mxu0
    %v3553 = vadd.f32 %v3140, %v3545
    %v3554 = vadd.f32 %v3141, %v3550
    %3555 = vrot.lane.b32.xlu0 %v2207, 104
    %v3556 = vpop.permute.xlu0 %3555
    %3557 = vrot.lane.b32.xlu0 %v2299, 104
    %v3558 = vpop.permute.xlu0 %3557
    %v3559 = vsel %vm423, %v3556, 0
    %v3561 = vsel %vm423, %v3558, 0
    %3563 = vmatprep.subr.mxu0 0.0
    %3564 = vmatpush1.xpose.msra.mxu0 %v3561
    %3565 = vmatprep.subr.mxu0 0.0
    %3566 = vmatpush1.xpose.msra.mxu0 0.0
    %3567 = vmatprep.subr.mxu0 0.0
    %3568 = vmatpush1.xpose.msra.mxu0 0.0
    %3569 = vmatprep.subr.mxu0 0.0
    %3570 = vmatpush1.xpose.msra.mxu0 0.0
    %3571 = vmatprep.subr.mxu0 0.0
    %3572 = vmatpush1.xpose.msra.mxu0 0.0
    %3573 = vmatprep.subr.mxu0 0.0
    %3574 = vmatpush1.xpose.msra.mxu0 0.0
    %3575 = vmatprep.subr.mxu0 0.0
    %3576 = vmatpush1.xpose.msra.mxu0 0.0
    %3577 = vmatprep.subr.mxu0 0.0
    %3578 = vmatpush1.xpose.msra.mxu0 0.0
    %3579 = vmatprep.subr.mxu0 0.0
    %3580 = vmatpush1.xpose.msra.mxu0 0.0
    %3581 = vmatprep.subr.mxu0 0.0
    %3582 = vmatpush1.xpose.msra.mxu0 0.0
    %3583 = vmatprep.subr.mxu0 0.0
    %3584 = vmatpush1.xpose.msra.mxu0 0.0
    %3585 = vmatprep.subr.mxu0 0.0
    %3586 = vmatpush1.xpose.msra.mxu0 0.0
    %3587 = vmatprep.subr.mxu0 0.0
    %3588 = vmatpush1.xpose.msra.mxu0 0.0
    %3589 = vmatprep.subr.mxu0 0.0
    %3590 = vmatpush1.xpose.msra.mxu0 0.0
    %3591 = vmatprep.subr.mxu0 0.0
    %3592 = vmatpush1.xpose.msra.mxu0 0.0
    %3593 = vmatprep.subr.mxu0 0.0
    %3594 = vmatpush1.xpose.msra.mxu0 0.0
    %3595 = vmatprep.subr.mxu0 0.0
    %3596 = vmatpush1.xpose.msra.mxu0 0.0
    %3597 = vmatprep.subr.mxu0 0.0
    %3598 = vmatpush1.xpose.msra.mxu0 0.0
    %3599 = vmatprep.subr.mxu0 0.0
    %3600 = vmatpush1.xpose.msra.mxu0 0.0
    %3601 = vmatprep.subr.mxu0 0.0
    %3602 = vmatpush1.xpose.msra.mxu0 0.0
    %3603 = vmatprep.subr.mxu0 0.0
    %3604 = vmatpush1.xpose.msra.mxu0 0.0
    %3605 = vmatprep.subr.mxu0 0.0
    %3606 = vmatpush1.xpose.msra.mxu0 0.0
    %3607 = vmatprep.subr.mxu0 0.0
    %3608 = vmatpush1.xpose.msra.mxu0 0.0
    %3609 = vmatprep.subr.mxu0 0.0
    %3610 = vmatpush1.xpose.msra.mxu0 0.0
    %3611 = vmatprep.subr.mxu0 0.0
    %3612 = vmatpush1.xpose.msra.mxu0 0.0
    %3613 = vmatprep.subr.mxu0 0.0
    %3614 = vmatpush1.xpose.msra.mxu0 0.0
    %3615 = vmatprep.subr.mxu0 0.0
    %3616 = vmatpush1.xpose.msra.mxu0 0.0
    %3617 = vmatprep.subr.mxu0 0.0
    %3618 = vmatpush1.xpose.msra.mxu0 0.0
    %3619 = vmatprep.subr.mxu0 0.0
    %3620 = vmatpush1.xpose.msra.mxu0 0.0
    %3621 = vmatprep.subr.mxu0 0.0
    %3622 = vmatpush1.xpose.msra.mxu0 0.0
    %3623 = vmatprep.subr.mxu0 0.0
    %3624 = vmatpush1.xpose.msra.mxu0 0.0
    %3625 = vmatprep.subr.mxu0 0.0
    %3626 = vmatpush1.xpose.msra.mxu0 0.0
    %3627 = vmatprep.mubr.f32.mxu0 0.0
    %3628 = vmatmul.mubr.f32.gmra.mrb[0].mxu0 %v3559
    %v3629 = vpop.f32.mrb[0].mxu0
    %v3630 = vadd.f32 %v248, %v3629
    %v3631 = vpop.f32.mrb[0].mxu0
    %3632 = vdwg.mxu0
    %3633 = vrot.lane.b32.xlu0 %v2212, 104
    %v3634 = vpop.permute.xlu0 %3633
    %3635 = vrot.lane.b32.xlu0 %v2304, 104
    %v3636 = vpop.permute.xlu0 %3635
    %v3637 = vsel %vm423, %v3634, 0
    %v3639 = vsel %vm423, %v3636, 0
    %3641 = vmatprep.subr.mxu0 0.0
    %3642 = vmatpush1.xpose.msra.mxu0 %v3639
    %3643 = vmatprep.subr.mxu0 0.0
    %3644 = vmatpush1.xpose.msra.mxu0 0.0
    %3645 = vmatprep.subr.mxu0 0.0
    %3646 = vmatpush1.xpose.msra.mxu0 0.0
    %3647 = vmatprep.subr.mxu0 0.0
    %3648 = vmatpush1.xpose.msra.mxu0 0.0
    %3649 = vmatprep.subr.mxu0 0.0
    %3650 = vmatpush1.xpose.msra.mxu0 0.0
    %3651 = vmatprep.subr.mxu0 0.0
    %3652 = vmatpush1.xpose.msra.mxu0 0.0
    %3653 = vmatprep.subr.mxu0 0.0
    %3654 = vmatpush1.xpose.msra.mxu0 0.0
    %3655 = vmatprep.subr.mxu0 0.0
    %3656 = vmatpush1.xpose.msra.mxu0 0.0
    %3657 = vmatprep.subr.mxu0 0.0
    %3658 = vmatpush1.xpose.msra.mxu0 0.0
    %3659 = vmatprep.subr.mxu0 0.0
    %3660 = vmatpush1.xpose.msra.mxu0 0.0
    %3661 = vmatprep.subr.mxu0 0.0
    %3662 = vmatpush1.xpose.msra.mxu0 0.0
    %3663 = vmatprep.subr.mxu0 0.0
    %3664 = vmatpush1.xpose.msra.mxu0 0.0
    %3665 = vmatprep.subr.mxu0 0.0
    %3666 = vmatpush1.xpose.msra.mxu0 0.0
    %3667 = vmatprep.subr.mxu0 0.0
    %3668 = vmatpush1.xpose.msra.mxu0 0.0
    %3669 = vmatprep.subr.mxu0 0.0
    %3670 = vmatpush1.xpose.msra.mxu0 0.0
    %3671 = vmatprep.subr.mxu0 0.0
    %3672 = vmatpush1.xpose.msra.mxu0 0.0
    %3673 = vmatprep.subr.mxu0 0.0
    %3674 = vmatpush1.xpose.msra.mxu0 0.0
    %3675 = vmatprep.subr.mxu0 0.0
    %3676 = vmatpush1.xpose.msra.mxu0 0.0
    %3677 = vmatprep.subr.mxu0 0.0
    %3678 = vmatpush1.xpose.msra.mxu0 0.0
    %3679 = vmatprep.subr.mxu0 0.0
    %3680 = vmatpush1.xpose.msra.mxu0 0.0
    %3681 = vmatprep.subr.mxu0 0.0
    %3682 = vmatpush1.xpose.msra.mxu0 0.0
    %3683 = vmatprep.subr.mxu0 0.0
    %3684 = vmatpush1.xpose.msra.mxu0 0.0
    %3685 = vmatprep.subr.mxu0 0.0
    %3686 = vmatpush1.xpose.msra.mxu0 0.0
    %3687 = vmatprep.subr.mxu0 0.0
    %3688 = vmatpush1.xpose.msra.mxu0 0.0
    %3689 = vmatprep.subr.mxu0 0.0
    %3690 = vmatpush1.xpose.msra.mxu0 0.0
    %3691 = vmatprep.subr.mxu0 0.0
    %3692 = vmatpush1.xpose.msra.mxu0 0.0
    %3693 = vmatprep.subr.mxu0 0.0
    %3694 = vmatpush1.xpose.msra.mxu0 0.0
    %3695 = vmatprep.subr.mxu0 0.0
    %3696 = vmatpush1.xpose.msra.mxu0 0.0
    %3697 = vmatprep.subr.mxu0 0.0
    %3698 = vmatpush1.xpose.msra.mxu0 0.0
    %3699 = vmatprep.subr.mxu0 0.0
    %3700 = vmatpush1.xpose.msra.mxu0 0.0
    %3701 = vmatprep.subr.mxu0 0.0
    %3702 = vmatpush1.xpose.msra.mxu0 0.0
    %3703 = vmatprep.subr.mxu0 0.0
    %3704 = vmatpush1.xpose.msra.mxu0 0.0
    %3705 = vmatprep.mubr.f32.mxu0 0.0
    %3706 = vmatmul.mubr.f32.gmra.mrb[0].mxu0 %v3637
    %v3707 = vpop.f32.mrb[0].mxu0
    %v3708 = vadd.f32 %v252, %v3707
    %v3709 = vpop.f32.mrb[0].mxu0
    %3710 = vdwg.mxu0
    %v3711 = vsel %vm423, %v3630, -inf
    %3712 = vmax.xlane.f32.xlu0 %v3711
    %v3713 = vpop.xlane.xlu0 %3712
    %v3714 = vsel %vm423, %v3708, -inf
    %3715 = vmax.xlane.f32.xlu0 %v3714
    %v3716 = vpop.xlane.xlu0 %3715
    %v3717 = vsub.f32 %v3630, %v3713
    %v3718 = vsub.f32 %v3708, %v3716
    %v3719 = vmul.f32 %v3717, 1.442695
    %v3720 = vpow.pop %v3719
    %v3721 = vmul.f32 %v3718, 1.442695
    %v3722 = vpow.pop %v3721
    %v3723 = vsel %vm423, %v3720, 0.0
    %3724 = vadd.xlane.f32.xlu0 %v3723
    %v3725 = vpop.xlane.xlu0 %3724
    %v3726 = vsel %vm423, %v3722, 0.0
    %3727 = vadd.xlane.f32.xlu0 %v3726
    %v3728 = vpop.xlane.xlu0 %3727
    %v3729 = vrcp.pop %v3725
    %v3730 = vrcp.pop %v3728
    %v3731 = vmul.f32 %v3720, %v3729
    %v3732 = vmul.f32 %v3722, %v3730
    %3733 = vrot.lane.b32.xlu0 %v2299, 72
    %v3734 = vpop.permute.xlu0 %3733
    %v3737 = vsel %vm423, %v3731, 0
    %3739 = vmatprep.subr.mxu0 0.0
    %3740 = vmatpush1.msra.mxu0 %v3734
    %3741 = vmatprep.subr.mxu0 0.0
    %3742 = vmatpush1.msra.mxu0 0.0
    %3743 = vmatprep.subr.mxu0 0.0
    %3744 = vmatpush1.msra.mxu0 0.0
    %3745 = vmatprep.subr.mxu0 0.0
    %3746 = vmatpush1.msra.mxu0 0.0
    %3747 = vmatprep.subr.mxu0 0.0
    %3748 = vmatpush1.msra.mxu0 0.0
    %3749 = vmatprep.subr.mxu0 0.0
    %3750 = vmatpush1.msra.mxu0 0.0
    %3751 = vmatprep.subr.mxu0 0.0
    %3752 = vmatpush1.msra.mxu0 0.0
    %3753 = vmatprep.subr.mxu0 0.0
    %3754 = vmatpush1.msra.mxu0 0.0
    %3755 = vmatprep.subr.mxu0 0.0
    %3756 = vmatpush1.msra.mxu0 0.0
    %3757 = vmatprep.subr.mxu0 0.0
    %3758 = vmatpush1.msra.mxu0 0.0
    %3759 = vmatprep.subr.mxu0 0.0
    %3760 = vmatpush1.msra.mxu0 0.0
    %3761 = vmatprep.subr.mxu0 0.0
    %3762 = vmatpush1.msra.mxu0 0.0
    %3763 = vmatprep.subr.mxu0 0.0
    %3764 = vmatpush1.msra.mxu0 0.0
    %3765 = vmatprep.subr.mxu0 0.0
    %3766 = vmatpush1.msra.mxu0 0.0
    %3767 = vmatprep.subr.mxu0 0.0
    %3768 = vmatpush1.msra.mxu0 0.0
    %3769 = vmatprep.subr.mxu0 0.0
    %3770 = vmatpush1.msra.mxu0 0.0
    %3771 = vmatprep.subr.mxu0 0.0
    %3772 = vmatpush1.msra.mxu0 0.0
    %3773 = vmatprep.subr.mxu0 0.0
    %3774 = vmatpush1.msra.mxu0 0.0
    %3775 = vmatprep.subr.mxu0 0.0
    %3776 = vmatpush1.msra.mxu0 0.0
    %3777 = vmatprep.subr.mxu0 0.0
    %3778 = vmatpush1.msra.mxu0 0.0
    %3779 = vmatprep.subr.mxu0 0.0
    %3780 = vmatpush1.msra.mxu0 0.0
    %3781 = vmatprep.subr.mxu0 0.0
    %3782 = vmatpush1.msra.mxu0 0.0
    %3783 = vmatprep.subr.mxu0 0.0
    %3784 = vmatpush1.msra.mxu0 0.0
    %3785 = vmatprep.subr.mxu0 0.0
    %3786 = vmatpush1.msra.mxu0 0.0
    %3787 = vmatprep.subr.mxu0 0.0
    %3788 = vmatpush1.msra.mxu0 0.0
    %3789 = vmatprep.subr.mxu0 0.0
    %3790 = vmatpush1.msra.mxu0 0.0
    %3791 = vmatprep.subr.mxu0 0.0
    %3792 = vmatpush1.msra.mxu0 0.0
    %3793 = vmatprep.subr.mxu0 0.0
    %3794 = vmatpush1.msra.mxu0 0.0
    %3795 = vmatprep.subr.mxu0 0.0
    %3796 = vmatpush1.msra.mxu0 0.0
    %3797 = vmatprep.subr.mxu0 0.0
    %3798 = vmatpush1.msra.mxu0 0.0
    %3799 = vmatprep.subr.mxu0 0.0
    %3800 = vmatpush1.msra.mxu0 0.0
    %3801 = vmatprep.subr.mxu0 0.0
    %3802 = vmatpush1.msra.mxu0 0.0
    %3803 = vmatprep.mubr.f32.mxu0 0.0
    %3804 = vmatmul.mubr.f32.gmra.mrb[0].mxu0 %v3737
    %v3805 = vpop.f32.mrb[0].mxu0
    %v3806 = vadd.f32 0.0, %v3805
    %v3807 = vpop.f32.mrb[0].mxu0
    %3808 = vdwg.mxu0
    %3809 = vrot.lane.b32.xlu0 %v2304, 72
    %v3810 = vpop.permute.xlu0 %3809
    %v3813 = vsel %vm423, %v3732, 0
    %3815 = vmatprep.subr.mxu0 0.0
    %3816 = vmatpush1.msra.mxu0 %v3810
    %3817 = vmatprep.subr.mxu0 0.0
    %3818 = vmatpush1.msra.mxu0 0.0
    %3819 = vmatprep.subr.mxu0 0.0
    %3820 = vmatpush1.msra.mxu0 0.0
    %3821 = vmatprep.subr.mxu0 0.0
    %3822 = vmatpush1.msra.mxu0 0.0
    %3823 = vmatprep.subr.mxu0 0.0
    %3824 = vmatpush1.msra.mxu0 0.0
    %3825 = vmatprep.subr.mxu0 0.0
    %3826 = vmatpush1.msra.mxu0 0.0
    %3827 = vmatprep.subr.mxu0 0.0
    %3828 = vmatpush1.msra.mxu0 0.0
    %3829 = vmatprep.subr.mxu0 0.0
    %3830 = vmatpush1.msra.mxu0 0.0
    %3831 = vmatprep.subr.mxu0 0.0
    %3832 = vmatpush1.msra.mxu0 0.0
    %3833 = vmatprep.subr.mxu0 0.0
    %3834 = vmatpush1.msra.mxu0 0.0
    %3835 = vmatprep.subr.mxu0 0.0
    %3836 = vmatpush1.msra.mxu0 0.0
    %3837 = vmatprep.subr.mxu0 0.0
    %3838 = vmatpush1.msra.mxu0 0.0
    %3839 = vmatprep.subr.mxu0 0.0
    %3840 = vmatpush1.msra.mxu0 0.0
    %3841 = vmatprep.subr.mxu0 0.0
    %3842 = vmatpush1.msra.mxu0 0.0
    %3843 = vmatprep.subr.mxu0 0.0
    %3844 = vmatpush1.msra.mxu0 0.0
    %3845 = vmatprep.subr.mxu0 0.0
    %3846 = vmatpush1.msra.mxu0 0.0
    %3847 = vmatprep.subr.mxu0 0.0
    %3848 = vmatpush1.msra.mxu0 0.0
    %3849 = vmatprep.subr.mxu0 0.0
    %3850 = vmatpush1.msra.mxu0 0.0
    %3851 = vmatprep.subr.mxu0 0.0
    %3852 = vmatpush1.msra.mxu0 0.0
    %3853 = vmatprep.subr.mxu0 0.0
    %3854 = vmatpush1.msra.mxu0 0.0
    %3855 = vmatprep.subr.mxu0 0.0
    %3856 = vmatpush1.msra.mxu0 0.0
    %3857 = vmatprep.subr.mxu0 0.0
    %3858 = vmatpush1.msra.mxu0 0.0
    %3859 = vmatprep.subr.mxu0 0.0
    %3860 = vmatpush1.msra.mxu0 0.0
    %3861 = vmatprep.subr.mxu0 0.0
    %3862 = vmatpush1.msra.mxu0 0.0
    %3863 = vmatprep.subr.mxu0 0.0
    %3864 = vmatpush1.msra.mxu0 0.0
    %3865 = vmatprep.subr.mxu0 0.0
    %3866 = vmatpush1.msra.mxu0 0.0
    %3867 = vmatprep.subr.mxu0 0.0
    %3868 = vmatpush1.msra.mxu0 0.0
    %3869 = vmatprep.subr.mxu0 0.0
    %3870 = vmatpush1.msra.mxu0 0.0
    %3871 = vmatprep.subr.mxu0 0.0
    %3872 = vmatpush1.msra.mxu0 0.0
    %3873 = vmatprep.subr.mxu0 0.0
    %3874 = vmatpush1.msra.mxu0 0.0
    %3875 = vmatprep.subr.mxu0 0.0
    %3876 = vmatpush1.msra.mxu0 0.0
    %3877 = vmatprep.subr.mxu0 0.0
    %3878 = vmatpush1.msra.mxu0 0.0
    %3879 = vmatprep.mubr.f32.mxu0 0.0
    %3880 = vmatmul.mubr.f32.gmra.mrb[0].mxu0 %v3813
    %v3881 = vpop.f32.mrb[0].mxu0
    %v3882 = vadd.f32 0.0, %v3881
    %v3883 = vpop.f32.mrb[0].mxu0
    %3884 = vdwg.mxu0
    %v3886 = vsel %vm423, %v3806, 0
    %v3889 = vsel %vm423, %v3882, 0
    %3891 = vmatprep.subr.mxu0 0.0
    %3892 = vmatpush1.msra.mxu0 %v2310
    %3893 = vmatprep.subr.mxu0 0.0
    %3894 = vmatpush1.msra.mxu0 0.0
    %3895 = vmatprep.subr.mxu0 0.0
    %3896 = vmatpush1.msra.mxu0 0.0
    %3897 = vmatprep.subr.mxu0 0.0
    %3898 = vmatpush1.msra.mxu0 0.0
    %3899 = vmatprep.subr.mxu0 0.0
    %3900 = vmatpush1.msra.mxu0 0.0
    %3901 = vmatprep.subr.mxu0 0.0
    %3902 = vmatpush1.msra.mxu0 0.0
    %3903 = vmatprep.subr.mxu0 0.0
    %3904 = vmatpush1.msra.mxu0 0.0
    %3905 = vmatprep.subr.mxu0 0.0
    %3906 = vmatpush1.msra.mxu0 0.0
    %3907 = vmatprep.subr.mxu0 0.0
    %3908 = vmatpush1.msra.mxu0 0.0
    %3909 = vmatprep.subr.mxu0 0.0
    %3910 = vmatpush1.msra.mxu0 0.0
    %3911 = vmatprep.subr.mxu0 0.0
    %3912 = vmatpush1.msra.mxu0 0.0
    %3913 = vmatprep.subr.mxu0 0.0
    %3914 = vmatpush1.msra.mxu0 0.0
    %3915 = vmatprep.subr.mxu0 0.0
    %3916 = vmatpush1.msra.mxu0 0.0
    %3917 = vmatprep.subr.mxu0 0.0
    %3918 = vmatpush1.msra.mxu0 0.0
    %3919 = vmatprep.subr.mxu0 0.0
    %3920 = vmatpush1.msra.mxu0 0.0
    %3921 = vmatprep.subr.mxu0 0.0
    %3922 = vmatpush1.msra.mxu0 0.0
    %3923 = vmatprep.subr.mxu0 0.0
    %3924 = vmatpush1.msra.mxu0 0.0
    %3925 = vmatprep.subr.mxu0 0.0
    %3926 = vmatpush1.msra.mxu0 0.0
    %3927 = vmatprep.subr.mxu0 0.0
    %3928 = vmatpush1.msra.mxu0 0.0
    %3929 = vmatprep.subr.mxu0 0.0
    %3930 = vmatpush1.msra.mxu0 0.0
    %3931 = vmatprep.subr.mxu0 0.0
    %3932 = vmatpush1.msra.mxu0 0.0
    %3933 = vmatprep.subr.mxu0 0.0
    %3934 = vmatpush1.msra.mxu0 0.0
    %3935 = vmatprep.subr.mxu0 0.0
    %3936 = vmatpush1.msra.mxu0 0.0
    %3937 = vmatprep.subr.mxu0 0.0
    %3938 = vmatpush1.msra.mxu0 0.0
    %3939 = vmatprep.subr.mxu0 0.0
    %3940 = vmatpush1.msra.mxu0 0.0
    %3941 = vmatprep.subr.mxu0 0.0
    %3942 = vmatpush1.msra.mxu0 0.0
    %3943 = vmatprep.subr.mxu0 0.0
    %3944 = vmatpush1.msra.mxu0 0.0
    %3945 = vmatprep.subr.mxu0 0.0
    %3946 = vmatpush1.msra.mxu0 0.0
    %3947 = vmatprep.subr.mxu0 0.0
    %3948 = vmatpush1.msra.mxu0 0.0
    %3949 = vmatprep.subr.mxu0 0.0
    %3950 = vmatpush1.msra.mxu0 0.0
    %3951 = vmatprep.subr.mxu0 0.0
    %3952 = vmatpush1.msra.mxu0 0.0
    %3953 = vmatprep.subr.mxu0 0.0
    %3954 = vmatpush1.msra.mxu0 0.0
    %3955 = vmatprep.mubr.f32.mxu0 0.0
    %3956 = vmatmul.mubr.f32.gmra.mrb[0].mxu0 %v3886
    %v3957 = vpop.f32.mrb[0].mxu0
    %v3958 = vadd.f32 0.0, %v3957
    %v3959 = vpop.f32.mrb[0].mxu0
    %3960 = vmatprep.mubr.f32.mxu0 0.0
    %3961 = vmatmul.mubr.f32.gmra.mrb[0].mxu0 %v3889
    %v3962 = vpop.f32.mrb[0].mxu0
    %v3963 = vadd.f32 0.0, %v3962
    %v3964 = vpop.f32.mrb[0].mxu0
    %3965 = vdwg.mxu0
    %v3966 = vadd.f32 %v3553, %v3958
    %v3967 = vadd.f32 %v3554, %v3963
    %v3968 = vsel %vm261, %v3966, 0.0
    %3969 = vadd.xlane.f32.xlu0 %v3968
    %v3970 = vpop.xlane.xlu0 %3969
    %v3971 = vsel %vm261, %v3967, 0.0
    %3972 = vadd.xlane.f32.xlu0 %v3971
    %v3973 = vpop.xlane.xlu0 %3972
    %v3974 = vmul.f32 %v3970, %v268
    %v3975 = vmul.f32 %v3973, %v268
    %v3976 = vsub.f32 %v3966, %v3974
    %v3977 = vsub.f32 %v3967, %v3975
    %v3978 = vmul.f32 %v3976, %v3976
    %v3979 = vmul.f32 %v3977, %v3977
    %v3980 = vsel %vm261, %v3978, 0.0
    %3981 = vadd.xlane.f32.xlu0 %v3980
    %v3982 = vpop.xlane.xlu0 %3981
    %v3983 = vsel %vm261, %v3979, 0.0
    %3984 = vadd.xlane.f32.xlu0 %v3983
    %v3985 = vpop.xlane.xlu0 %3984
    %v3986 = vmul.f32 %v3982, 0.032258064
    %v3987 = vmul.f32 %v3985, 0.032258064
    %v3988 = vrsqrt.pop %v3986
    %v3989 = vmul.f32 %v3986, %v3988
    %vm3990 = vcmp.eq.f32.partialorder %v3986, inf
    %v3991 = vsel %vm3990, %v3986, %v3989
    %vm3992 = vcmp.eq.f32.partialorder %v3986, 0.0
    %v3993 = vand.u32 %v3986, 2147483648
    %v3994 = vsel %vm3992, %v3993, %v3991
    %v3995 = vrsqrt.pop %v3987
    %v3996 = vmul.f32 %v3987, %v3995
    %vm3997 = vcmp.eq.f32.partialorder %v3987, inf
    %v3998 = vsel %vm3997, %v3987, %v3996
    %vm3999 = vcmp.eq.f32.partialorder %v3987, 0.0
    %v4000 = vand.u32 %v3987, 2147483648
    %v4001 = vsel %vm3999, %v4000, %v3998
    %v4002 = vadd.f32 %v3994, 1e-06
    %v4003 = vadd.f32 %v4001, 1e-06
    %v4004 = vrcp.pop %v4002
    %v4005 = vrcp.pop %v4003
    %v4006 = vmul.f32 %v3976, %v4004
    %v4007 = vmul.f32 %v3977, %v4005
    %v4008 = vlaneseq
    %v4009 = vshrl.u32 %v4008, 7
    %v4010 = vsub.s32 2, %v4009
    %v4011 = vrot.slane %v259, %v4010
    %v4012 = vmul.f32 %v4006, %v4011
    %v4013 = vmul.f32 %v4007, %v4011
    %v4014 = vlaneseq
    %v4015 = vshrl.u32 %v4014, 7
    %v4016 = vsub.s32 2, %v4015
    %v4017 = vrot.slane %v260, %v4016
    %v4018 = vadd.f32 %v4012, %v4017
    %v4019 = vadd.f32 %v4013, %v4017
    %v4020 = vld [vmem:[#allocation14] sm:$0xff]
    %v4021 = vld [vmem:[#allocation14 + $0x8] sm:$0xff]
    %v4022 = vld [vmem:[#allocation14 + $0x10] sm:$0xff]
    %v4023 = vld [vmem:[#allocation14 + $0x18] sm:$0xff]
    %v4024 = vld [vmem:[#allocation16] sm:$0x1]
    %v4026 = vlaneseq
    %v4027 = vshrl.u32 %v4026, 7
    %v4028 = vsub.s32 0, %v4027
    %v4029 = vrot.slane %v4024, %v4028
    %v4032 = vsel %vm261, %v4018, 0
    %v4035 = vsel %vm261, %v4019, 0
    %4037 = vmatprep.subr.mxu0 0.0
    %4038 = vmatpush1.msra.mxu0 %v4020
    %4039 = vmatprep.subr.mxu0 0.0
    %4040 = vmatpush1.msra.mxu0 %v4021
    %4041 = vmatprep.subr.mxu0 0.0
    %4042 = vmatpush1.msra.mxu0 %v4022
    %4043 = vmatprep.subr.mxu0 0.0
    %4044 = vmatpush1.msra.mxu0 %v4023
    %4045 = vmatprep.subr.mxu0 0.0
    %4046 = vmatpush1.msra.mxu0 0.0
    %4047 = vmatprep.subr.mxu0 0.0
    %4048 = vmatpush1.msra.mxu0 0.0
    %4049 = vmatprep.subr.mxu0 0.0
    %4050 = vmatpush1.msra.mxu0 0.0
    %4051 = vmatprep.subr.mxu0 0.0
    %4052 = vmatpush1.msra.mxu0 0.0
    %4053 = vmatprep.subr.mxu0 0.0
    %4054 = vmatpush1.msra.mxu0 0.0
    %4055 = vmatprep.subr.mxu0 0.0
    %4056 = vmatpush1.msra.mxu0 0.0
    %4057 = vmatprep.subr.mxu0 0.0
    %4058 = vmatpush1.msra.mxu0 0.0
    %4059 = vmatprep.subr.mxu0 0.0
    %4060 = vmatpush1.msra.mxu0 0.0
    %4061 = vmatprep.subr.mxu0 0.0
    %4062 = vmatpush1.msra.mxu0 0.0
    %4063 = vmatprep.subr.mxu0 0.0
    %4064 = vmatpush1.msra.mxu0 0.0
    %4065 = vmatprep.subr.mxu0 0.0
    %4066 = vmatpush1.msra.mxu0 0.0
    %4067 = vmatprep.subr.mxu0 0.0
    %4068 = vmatpush1.msra.mxu0 0.0
    %4069 = vmatprep.subr.mxu0 0.0
    %4070 = vmatpush1.msra.mxu0 0.0
    %4071 = vmatprep.subr.mxu0 0.0
    %4072 = vmatpush1.msra.mxu0 0.0
    %4073 = vmatprep.subr.mxu0 0.0
    %4074 = vmatpush1.msra.mxu0 0.0
    %4075 = vmatprep.subr.mxu0 0.0
    %4076 = vmatpush1.msra.mxu0 0.0
    %4077 = vmatprep.subr.mxu0 0.0
    %4078 = vmatpush1.msra.mxu0 0.0
    %4079 = vmatprep.subr.mxu0 0.0
    %4080 = vmatpush1.msra.mxu0 0.0
    %4081 = vmatprep.subr.mxu0 0.0
    %4082 = vmatpush1.msra.mxu0 0.0
    %4083 = vmatprep.subr.mxu0 0.0
    %4084 = vmatpush1.msra.mxu0 0.0
    %4085 = vmatprep.subr.mxu0 0.0
    %4086 = vmatpush1.msra.mxu0 0.0
    %4087 = vmatprep.subr.mxu0 0.0
    %4088 = vmatpush1.msra.mxu0 0.0
    %4089 = vmatprep.subr.mxu0 0.0
    %4090 = vmatpush1.msra.mxu0 0.0
    %4091 = vmatprep.subr.mxu0 0.0
    %4092 = vmatpush1.msra.mxu0 0.0
    %4093 = vmatprep.subr.mxu0 0.0
    %4094 = vmatpush1.msra.mxu0 0.0
    %4095 = vmatprep.subr.mxu0 0.0
    %4096 = vmatpush1.msra.mxu0 0.0
    %4097 = vmatprep.subr.mxu0 0.0
    %4098 = vmatpush1.msra.mxu0 0.0
    %4099 = vmatprep.subr.mxu0 0.0
    %4100 = vmatpush1.msra.mxu0 0.0
    %4101 = vmatprep.mubr.f32.mxu0 0.0
    %4102 = vmatmul.mubr.f32.gmra.mrb[0].mxu0 %v4032
    %v4103 = vpop.f32.mrb[0].mxu0
    %v4104 = vadd.f32 %v4029, %v4103
    %v4105 = vpop.f32.mrb[0].mxu0
    %4106 = vmatprep.mubr.f32.mxu0 0.0
    %4107 = vmatmul.mubr.f32.gmra.mrb[0].mxu0 %v4035
    %v4108 = vpop.f32.mrb[0].mxu0
    %v4109 = vadd.f32 %v4029, %v4108
    %v4110 = vpop.f32.mrb[0].mxu0
    %4111 = vdwg.mxu0
    %v4112 = vmax.f32 %v4104, 0.0
    %v4113 = vmax.f32 %v4109, 0.0
    %v4114 = vld [vmem:[%s16] sm:$0xff]
    %v4115 = vld [vmem:[%s16 + $0x8] sm:$0xff]
    %v4116 = vld [vmem:[%s16 + $0x10] sm:$0xff]
    %v4117 = vld [vmem:[%s16 + $0x18] sm:$0xff]
    %v4118 = vld [vmem:[%s16 + $0x20] sm:$0xff]
    %v4119 = vld [vmem:[%s16 + $0x28] sm:$0xff]
    %v4120 = vld [vmem:[%s16 + $0x30] sm:$0xff]
    %v4121 = vld [vmem:[%s16 + $0x38] sm:$0xff]
    %vm4122 = vcmask 523264
    %v4124 = vsel %vm4122, %v4112, 0
    %v4127 = vsel %vm4122, %v4113, 0
    %4129 = vmatprep.subr.mxu0 0.0
    %4130 = vmatpush1.msra.mxu0 %v4114
    %4131 = vmatprep.subr.mxu0 0.0
    %4132 = vmatpush1.msra.mxu0 %v4115
    %4133 = vmatprep.subr.mxu0 0.0
    %4134 = vmatpush1.msra.mxu0 %v4116
    %4135 = vmatprep.subr.mxu0 0.0
    %4136 = vmatpush1.msra.mxu0 %v4117
    %4137 = vmatprep.subr.mxu0 0.0
    %4138 = vmatpush1.msra.mxu0 %v4118
    %4139 = vmatprep.subr.mxu0 0.0
    %4140 = vmatpush1.msra.mxu0 %v4119
    %4141 = vmatprep.subr.mxu0 0.0
    %4142 = vmatpush1.msra.mxu0 %v4120
    %4143 = vmatprep.subr.mxu0 0.0
    %4144 = vmatpush1.msra.mxu0 %v4121
    %4145 = vmatprep.subr.mxu0 0.0
    %4146 = vmatpush1.msra.mxu0 0.0
    %4147 = vmatprep.subr.mxu0 0.0
    %4148 = vmatpush1.msra.mxu0 0.0
    %4149 = vmatprep.subr.mxu0 0.0
    %4150 = vmatpush1.msra.mxu0 0.0
    %4151 = vmatprep.subr.mxu0 0.0
    %4152 = vmatpush1.msra.mxu0 0.0
    %4153 = vmatprep.subr.mxu0 0.0
    %4154 = vmatpush1.msra.mxu0 0.0
    %4155 = vmatprep.subr.mxu0 0.0
    %4156 = vmatpush1.msra.mxu0 0.0
    %4157 = vmatprep.subr.mxu0 0.0
    %4158 = vmatpush1.msra.mxu0 0.0
    %4159 = vmatprep.subr.mxu0 0.0
    %4160 = vmatpush1.msra.mxu0 0.0
    %4161 = vmatprep.subr.mxu0 0.0
    %4162 = vmatpush1.msra.mxu0 0.0
    %4163 = vmatprep.subr.mxu0 0.0
    %4164 = vmatpush1.msra.mxu0 0.0
    %4165 = vmatprep.subr.mxu0 0.0
    %4166 = vmatpush1.msra.mxu0 0.0
    %4167 = vmatprep.subr.mxu0 0.0
    %4168 = vmatpush1.msra.mxu0 0.0
    %4169 = vmatprep.subr.mxu0 0.0
    %4170 = vmatpush1.msra.mxu0 0.0
    %4171 = vmatprep.subr.mxu0 0.0
    %4172 = vmatpush1.msra.mxu0 0.0
    %4173 = vmatprep.subr.mxu0 0.0
    %4174 = vmatpush1.msra.mxu0 0.0
    %4175 = vmatprep.subr.mxu0 0.0
    %4176 = vmatpush1.msra.mxu0 0.0
    %4177 = vmatprep.subr.mxu0 0.0
    %4178 = vmatpush1.msra.mxu0 0.0
    %4179 = vmatprep.subr.mxu0 0.0
    %4180 = vmatpush1.msra.mxu0 0.0
    %4181 = vmatprep.subr.mxu0 0.0
    %4182 = vmatpush1.msra.mxu0 0.0
    %4183 = vmatprep.subr.mxu0 0.0
    %4184 = vmatpush1.msra.mxu0 0.0
    %4185 = vmatprep.subr.mxu0 0.0
    %4186 = vmatpush1.msra.mxu0 0.0
    %4187 = vmatprep.subr.mxu0 0.0
    %4188 = vmatpush1.msra.mxu0 0.0
    %4189 = vmatprep.subr.mxu0 0.0
    %4190 = vmatpush1.msra.mxu0 0.0
    %4191 = vmatprep.subr.mxu0 0.0
    %4192 = vmatpush1.msra.mxu0 0.0
    %4193 = vmatprep.mubr.f32.mxu0 0.0
    %4194 = vmatmul.mubr.f32.gmra.mrb[0].mxu0 %v4124
    %v4195 = vpop.f32.mrb[0].mxu0
    %v4196 = vadd.f32 0.0, %v4195
    %v4197 = vpop.f32.mrb[0].mxu0
    %4198 = vmatprep.mubr.f32.mxu0 0.0
    %4199 = vmatmul.mubr.f32.gmra.mrb[0].mxu0 %v4127
    %v4200 = vpop.f32.mrb[0].mxu0
    %v4201 = vadd.f32 0.0, %v4200
    %v4202 = vpop.f32.mrb[0].mxu0
    %4203 = vdwg.mxu0
    %v4204 = vadd.f32 %v3966, %v4196
    %v4205 = vadd.f32 %v3967, %v4201
    %v4206 = vld [vmem:[#allocation17] sm:$0x1]
    %v4208 = vlaneseq
    %v4209 = vshrl.u32 %v4208, 7
    %v4210 = vsub.s32 0, %v4209
    %v4211 = vrot.slane %v4206, %v4210
    %v4213 = vadd.f32 %v4204, %v4211
    %v4214 = vadd.f32 %v4205, %v4211
    %s4215 = scalar_lea.vmem %s18, 4
    %v4216 = vld [vmem:[%s4215] sm:$0x7]
    %s4217 = scalar_lea.vmem %s19, 4
    %v4218 = vld [vmem:[%s4217] sm:$0x7]
    %v4219 = vsel %vm261, %v4213, 0.0
    %4220 = vadd.xlane.f32.xlu0 %v4219
    %v4221 = vpop.xlane.xlu0 %4220
    %v4222 = vsel %vm261, %v4214, 0.0
    %4223 = vadd.xlane.f32.xlu0 %v4222
    %v4224 = vpop.xlane.xlu0 %4223
    %v4225 = vmul.f32 %v4221, %v268
    %v4226 = vmul.f32 %v4224, %v268
    %v4227 = vsub.f32 %v4213, %v4225
    %v4228 = vsub.f32 %v4214, %v4226
    %v4229 = vmul.f32 %v4227, %v4227
    %v4230 = vmul.f32 %v4228, %v4228
    %v4231 = vsel %vm261, %v4229, 0.0
    %4232 = vadd.xlane.f32.xlu0 %v4231
    %v4233 = vpop.xlane.xlu0 %4232
    %v4234 = vsel %vm261, %v4230, 0.0
    %4235 = vadd.xlane.f32.xlu0 %v4234
    %v4236 = vpop.xlane.xlu0 %4235
    %v4237 = vmul.f32 %v4233, 0.032258064
    %v4238 = vmul.f32 %v4236, 0.032258064
    %v4239 = vrsqrt.pop %v4237
    %v4240 = vmul.f32 %v4237, %v4239
    %vm4241 = vcmp.eq.f32.partialorder %v4237, inf
    %v4242 = vsel %vm4241, %v4237, %v4240
    %vm4243 = vcmp.eq.f32.partialorder %v4237, 0.0
    %v4244 = vand.u32 %v4237, 2147483648
    %v4245 = vsel %vm4243, %v4244, %v4242
    %v4246 = vrsqrt.pop %v4238
    %v4247 = vmul.f32 %v4238, %v4246
    %vm4248 = vcmp.eq.f32.partialorder %v4238, inf
    %v4249 = vsel %vm4248, %v4238, %v4247
    %vm4250 = vcmp.eq.f32.partialorder %v4238, 0.0
    %v4251 = vand.u32 %v4238, 2147483648
    %v4252 = vsel %vm4250, %v4251, %v4249
    %v4253 = vadd.f32 %v4245, 1e-06
    %v4254 = vadd.f32 %v4252, 1e-06
    %v4255 = vrcp.pop %v4253
    %v4256 = vrcp.pop %v4254
    %v4257 = vmul.f32 %v4227, %v4255
    %v4258 = vmul.f32 %v4228, %v4256
    %v4259 = vlaneseq
    %v4260 = vshrl.u32 %v4259, 7
    %v4261 = vsub.s32 0, %v4260
    %v4262 = vrot.slane %v4216, %v4261
    %v4263 = vmul.f32 %v4257, %v4262
    %v4264 = vmul.f32 %v4258, %v4262
    %v4265 = vlaneseq
    %v4266 = vshrl.u32 %v4265, 7
    %v4267 = vsub.s32 0, %v4266
    %v4268 = vrot.slane %v4218, %v4267
    %v4269 = vadd.f32 %v4263, %v4268
    %v4270 = vadd.f32 %v4264, %v4268
    %s4271 = scalar_lea.vmem %s4, 32
    %v4272 = vld [vmem:[%s4271] sm:$0xff]
    %v4273 = vld [vmem:[%s4271 + $0x8] sm:$0xff]
    %v4274 = vld [vmem:[%s4271 + $0x10] sm:$0xff]
    %v4275 = vld [vmem:[%s4271 + $0x18] sm:$0xff]
    %s4276 = scalar_lea.vmem [#allocation2], 1
    %v4277 = vld [vmem:[%s4276] sm:$0x1]
    %v4279 = vlaneseq
    %v4280 = vshrl.u32 %v4279, 7
    %v4281 = vsub.s32 0, %v4280
    %v4282 = vrot.slane %v4277, %v4281
    %v4285 = vsel %vm261, %v4269, 0
    %v4288 = vsel %vm261, %v4270, 0
    %4290 = vmatprep.subr.mxu0 0.0
    %4291 = vmatpush1.msra.mxu0 %v4272
    %4292 = vmatprep.subr.mxu0 0.0
    %4293 = vmatpush1.msra.mxu0 %v4273
    %4294 = vmatprep.subr.mxu0 0.0
    %4295 = vmatpush1.msra.mxu0 %v4274
    %4296 = vmatprep.subr.mxu0 0.0
    %4297 = vmatpush1.msra.mxu0 %v4275
    %4298 = vmatprep.subr.mxu0 0.0
    %4299 = vmatpush1.msra.mxu0 0.0
    %4300 = vmatprep.subr.mxu0 0.0
    %4301 = vmatpush1.msra.mxu0 0.0
    %4302 = vmatprep.subr.mxu0 0.0
    %4303 = vmatpush1.msra.mxu0 0.0
    %4304 = vmatprep.subr.mxu0 0.0
    %4305 = vmatpush1.msra.mxu0 0.0
    %4306 = vmatprep.subr.mxu0 0.0
    %4307 = vmatpush1.msra.mxu0 0.0
    %4308 = vmatprep.subr.mxu0 0.0
    %4309 = vmatpush1.msra.mxu0 0.0
    %4310 = vmatprep.subr.mxu0 0.0
    %4311 = vmatpush1.msra.mxu0 0.0
    %4312 = vmatprep.subr.mxu0 0.0
    %4313 = vmatpush1.msra.mxu0 0.0
    %4314 = vmatprep.subr.mxu0 0.0
    %4315 = vmatpush1.msra.mxu0 0.0
    %4316 = vmatprep.subr.mxu0 0.0
    %4317 = vmatpush1.msra.mxu0 0.0
    %4318 = vmatprep.subr.mxu0 0.0
    %4319 = vmatpush1.msra.mxu0 0.0
    %4320 = vmatprep.subr.mxu0 0.0
    %4321 = vmatpush1.msra.mxu0 0.0
    %4322 = vmatprep.subr.mxu0 0.0
    %4323 = vmatpush1.msra.mxu0 0.0
    %4324 = vmatprep.subr.mxu0 0.0
    %4325 = vmatpush1.msra.mxu0 0.0
    %4326 = vmatprep.subr.mxu0 0.0
    %4327 = vmatpush1.msra.mxu0 0.0
    %4328 = vmatprep.subr.mxu0 0.0
    %4329 = vmatpush1.msra.mxu0 0.0
    %4330 = vmatprep.subr.mxu0 0.0
    %4331 = vmatpush1.msra.mxu0 0.0
    %4332 = vmatprep.subr.mxu0 0.0
    %4333 = vmatpush1.msra.mxu0 0.0
    %4334 = vmatprep.subr.mxu0 0.0
    %4335 = vmatpush1.msra.mxu0 0.0
    %4336 = vmatprep.subr.mxu0 0.0
    %4337 = vmatpush1.msra.mxu0 0.0
    %4338 = vmatprep.subr.mxu0 0.0
    %4339 = vmatpush1.msra.mxu0 0.0
    %4340 = vmatprep.subr.mxu0 0.0
    %4341 = vmatpush1.msra.mxu0 0.0
    %4342 = vmatprep.subr.mxu0 0.0
    %4343 = vmatpush1.msra.mxu0 0.0
    %4344 = vmatprep.subr.mxu0 0.0
    %4345 = vmatpush1.msra.mxu0 0.0
    %4346 = vmatprep.subr.mxu0 0.0
    %4347 = vmatpush1.msra.mxu0 0.0
    %4348 = vmatprep.subr.mxu0 0.0
    %4349 = vmatpush1.msra.mxu0 0.0
    %4350 = vmatprep.subr.mxu0 0.0
    %4351 = vmatpush1.msra.mxu0 0.0
    %4352 = vmatprep.subr.mxu0 0.0
    %4353 = vmatpush1.msra.mxu0 0.0
    %4354 = vmatprep.mubr.f32.mxu0 0.0
    %4355 = vmatmul.mubr.f32.gmra.mrb[0].mxu0 %v4285
    %v4356 = vpop.f32.mrb[0].mxu0
    %v4357 = vadd.f32 %v4282, %v4356
    %v4358 = vpop.f32.mrb[0].mxu0
    %4359 = vmatprep.mubr.f32.mxu0 0.0
    %4360 = vmatmul.mubr.f32.gmra.mrb[0].mxu0 %v4288
    %v4361 = vpop.f32.mrb[0].mxu0
    %v4362 = vadd.f32 %v4282, %v4361
    %v4363 = vpop.f32.mrb[0].mxu0
    %4364 = vdwg.mxu0
    %s4365 = scalar_lea.vmem %s6, 32
    %v4366 = vld [vmem:[%s4365] sm:$0xff]
    %v4367 = vld [vmem:[%s4365 + $0x8] sm:$0xff]
    %v4368 = vld [vmem:[%s4365 + $0x10] sm:$0xff]
    %v4369 = vld [vmem:[%s4365 + $0x18] sm:$0xff]
    %s4370 = scalar_lea.vmem [#allocation5], 1
    %v4371 = vld [vmem:[%s4370] sm:$0x1]
    %v4373 = vlaneseq
    %v4374 = vshrl.u32 %v4373, 7
    %v4375 = vsub.s32 0, %v4374
    %v4376 = vrot.slane %v4371, %v4375
    %v4378 = vadd.f32 %v4213, %v4376
    %v4379 = vadd.f32 %v4214, %v4376
    %4381 = vrot.lane.b32.xlu0 %v4357, 96
    %v4382 = vpop.permute.xlu0 %4381
    %v4383 = vsel %vm423, %v4357, 0
    %v4385 = vsel %vm423, %v4382, 0
    %4387 = vmatprep.subr.mxu0 0.0
    %4388 = vmatpush1.xpose.msra.mxu0 %v4385
    %4389 = vmatprep.subr.mxu0 0.0
    %4390 = vmatpush1.xpose.msra.mxu0 0.0
    %4391 = vmatprep.subr.mxu0 0.0
    %4392 = vmatpush1.xpose.msra.mxu0 0.0
    %4393 = vmatprep.subr.mxu0 0.0
    %4394 = vmatpush1.xpose.msra.mxu0 0.0
    %4395 = vmatprep.subr.mxu0 0.0
    %4396 = vmatpush1.xpose.msra.mxu0 0.0
    %4397 = vmatprep.subr.mxu0 0.0
    %4398 = vmatpush1.xpose.msra.mxu0 0.0
    %4399 = vmatprep.subr.mxu0 0.0
    %4400 = vmatpush1.xpose.msra.mxu0 0.0
    %4401 = vmatprep.subr.mxu0 0.0
    %4402 = vmatpush1.xpose.msra.mxu0 0.0
    %4403 = vmatprep.subr.mxu0 0.0
    %4404 = vmatpush1.xpose.msra.mxu0 0.0
    %4405 = vmatprep.subr.mxu0 0.0
    %4406 = vmatpush1.xpose.msra.mxu0 0.0
    %4407 = vmatprep.subr.mxu0 0.0
    %4408 = vmatpush1.xpose.msra.mxu0 0.0
    %4409 = vmatprep.subr.mxu0 0.0
    %4410 = vmatpush1.xpose.msra.mxu0 0.0
    %4411 = vmatprep.subr.mxu0 0.0
    %4412 = vmatpush1.xpose.msra.mxu0 0.0
    %4413 = vmatprep.subr.mxu0 0.0
    %4414 = vmatpush1.xpose.msra.mxu0 0.0
    %4415 = vmatprep.subr.mxu0 0.0
    %4416 = vmatpush1.xpose.msra.mxu0 0.0
    %4417 = vmatprep.subr.mxu0 0.0
    %4418 = vmatpush1.xpose.msra.mxu0 0.0
    %4419 = vmatprep.subr.mxu0 0.0
    %4420 = vmatpush1.xpose.msra.mxu0 0.0
    %4421 = vmatprep.subr.mxu0 0.0
    %4422 = vmatpush1.xpose.msra.mxu0 0.0
    %4423 = vmatprep.subr.mxu0 0.0
    %4424 = vmatpush1.xpose.msra.mxu0 0.0
    %4425 = vmatprep.subr.mxu0 0.0
    %4426 = vmatpush1.xpose.msra.mxu0 0.0
    %4427 = vmatprep.subr.mxu0 0.0
    %4428 = vmatpush1.xpose.msra.mxu0 0.0
    %4429 = vmatprep.subr.mxu0 0.0
    %4430 = vmatpush1.xpose.msra.mxu0 0.0
    %4431 = vmatprep.subr.mxu0 0.0
    %4432 = vmatpush1.xpose.msra.mxu0 0.0
    %4433 = vmatprep.subr.mxu0 0.0
    %4434 = vmatpush1.xpose.msra.mxu0 0.0
    %4435 = vmatprep.subr.mxu0 0.0
    %4436 = vmatpush1.xpose.msra.mxu0 0.0
    %4437 = vmatprep.subr.mxu0 0.0
    %4438 = vmatpush1.xpose.msra.mxu0 0.0
    %4439 = vmatprep.subr.mxu0 0.0
    %4440 = vmatpush1.xpose.msra.mxu0 0.0
    %4441 = vmatprep.subr.mxu0 0.0
    %4442 = vmatpush1.xpose.msra.mxu0 0.0
    %4443 = vmatprep.subr.mxu0 0.0
    %4444 = vmatpush1.xpose.msra.mxu0 0.0
    %4445 = vmatprep.subr.mxu0 0.0
    %4446 = vmatpush1.xpose.msra.mxu0 0.0
    %4447 = vmatprep.subr.mxu0 0.0
    %4448 = vmatpush1.xpose.msra.mxu0 0.0
    %4449 = vmatprep.subr.mxu0 0.0
    %4450 = vmatpush1.xpose.msra.mxu0 0.0
    %4451 = vmatprep.mubr.f32.mxu0 0.0
    %4452 = vmatmul.mubr.f32.gmra.mrb[0].mxu0 %v4383
    %v4453 = vpop.f32.mrb[0].mxu0
    %v4454 = vadd.f32 %v235, %v4453
    %v4455 = vpop.f32.mrb[0].mxu0
    %4456 = vdwg.mxu0
    %4458 = vrot.lane.b32.xlu0 %v4362, 96
    %v4459 = vpop.permute.xlu0 %4458
    %v4460 = vsel %vm423, %v4362, 0
    %v4462 = vsel %vm423, %v4459, 0
    %4464 = vmatprep.subr.mxu0 0.0
    %4465 = vmatpush1.xpose.msra.mxu0 %v4462
    %4466 = vmatprep.subr.mxu0 0.0
    %4467 = vmatpush1.xpose.msra.mxu0 0.0
    %4468 = vmatprep.subr.mxu0 0.0
    %4469 = vmatpush1.xpose.msra.mxu0 0.0
    %4470 = vmatprep.subr.mxu0 0.0
    %4471 = vmatpush1.xpose.msra.mxu0 0.0
    %4472 = vmatprep.subr.mxu0 0.0
    %4473 = vmatpush1.xpose.msra.mxu0 0.0
    %4474 = vmatprep.subr.mxu0 0.0
    %4475 = vmatpush1.xpose.msra.mxu0 0.0
    %4476 = vmatprep.subr.mxu0 0.0
    %4477 = vmatpush1.xpose.msra.mxu0 0.0
    %4478 = vmatprep.subr.mxu0 0.0
    %4479 = vmatpush1.xpose.msra.mxu0 0.0
    %4480 = vmatprep.subr.mxu0 0.0
    %4481 = vmatpush1.xpose.msra.mxu0 0.0
    %4482 = vmatprep.subr.mxu0 0.0
    %4483 = vmatpush1.xpose.msra.mxu0 0.0
    %4484 = vmatprep.subr.mxu0 0.0
    %4485 = vmatpush1.xpose.msra.mxu0 0.0
    %4486 = vmatprep.subr.mxu0 0.0
    %4487 = vmatpush1.xpose.msra.mxu0 0.0
    %4488 = vmatprep.subr.mxu0 0.0
    %4489 = vmatpush1.xpose.msra.mxu0 0.0
    %4490 = vmatprep.subr.mxu0 0.0
    %4491 = vmatpush1.xpose.msra.mxu0 0.0
    %4492 = vmatprep.subr.mxu0 0.0
    %4493 = vmatpush1.xpose.msra.mxu0 0.0
    %4494 = vmatprep.subr.mxu0 0.0
    %4495 = vmatpush1.xpose.msra.mxu0 0.0
    %4496 = vmatprep.subr.mxu0 0.0
    %4497 = vmatpush1.xpose.msra.mxu0 0.0
    %4498 = vmatprep.subr.mxu0 0.0
    %4499 = vmatpush1.xpose.msra.mxu0 0.0
    %4500 = vmatprep.subr.mxu0 0.0
    %4501 = vmatpush1.xpose.msra.mxu0 0.0
    %4502 = vmatprep.subr.mxu0 0.0
    %4503 = vmatpush1.xpose.msra.mxu0 0.0
    %4504 = vmatprep.subr.mxu0 0.0
    %4505 = vmatpush1.xpose.msra.mxu0 0.0
    %4506 = vmatprep.subr.mxu0 0.0
    %4507 = vmatpush1.xpose.msra.mxu0 0.0
    %4508 = vmatprep.subr.mxu0 0.0
    %4509 = vmatpush1.xpose.msra.mxu0 0.0
    %4510 = vmatprep.subr.mxu0 0.0
    %4511 = vmatpush1.xpose.msra.mxu0 0.0
    %4512 = vmatprep.subr.mxu0 0.0
    %4513 = vmatpush1.xpose.msra.mxu0 0.0
    %4514 = vmatprep.subr.mxu0 0.0
    %4515 = vmatpush1.xpose.msra.mxu0 0.0
    %4516 = vmatprep.subr.mxu0 0.0
    %4517 = vmatpush1.xpose.msra.mxu0 0.0
    %4518 = vmatprep.subr.mxu0 0.0
    %4519 = vmatpush1.xpose.msra.mxu0 0.0
    %4520 = vmatprep.subr.mxu0 0.0
    %4521 = vmatpush1.xpose.msra.mxu0 0.0
    %4522 = vmatprep.subr.mxu0 0.0
    %4523 = vmatpush1.xpose.msra.mxu0 0.0
    %4524 = vmatprep.subr.mxu0 0.0
    %4525 = vmatpush1.xpose.msra.mxu0 0.0
    %4526 = vmatprep.subr.mxu0 0.0
    %4527 = vmatpush1.xpose.msra.mxu0 0.0
    %4528 = vmatprep.mubr.f32.mxu0 0.0
    %4529 = vmatmul.mubr.f32.gmra.mrb[0].mxu0 %v4460
    %v4530 = vpop.f32.mrb[0].mxu0
    %v4531 = vadd.f32 %v236, %v4530
    %v4532 = vpop.f32.mrb[0].mxu0
    %4533 = vdwg.mxu0
    %v4534 = vsel %vm423, %v4454, -inf
    %4535 = vmax.xlane.f32.xlu0 %v4534
    %v4536 = vpop.xlane.xlu0 %4535
    %v4537 = vsel %vm423, %v4531, -inf
    %4538 = vmax.xlane.f32.xlu0 %v4537
    %v4539 = vpop.xlane.xlu0 %4538
    %v4540 = vsub.f32 %v4454, %v4536
    %v4541 = vsub.f32 %v4531, %v4539
    %v4542 = vmul.f32 %v4540, 1.442695
    %v4543 = vpow.pop %v4542
    %v4544 = vmul.f32 %v4541, 1.442695
    %v4545 = vpow.pop %v4544
    %v4546 = vsel %vm423, %v4543, 0.0
    %4547 = vadd.xlane.f32.xlu0 %v4546
    %v4548 = vpop.xlane.xlu0 %4547
    %v4549 = vsel %vm423, %v4545, 0.0
    %4550 = vadd.xlane.f32.xlu0 %v4549
    %v4551 = vpop.xlane.xlu0 %4550
    %v4552 = vrcp.pop %v4548
    %v4553 = vrcp.pop %v4551
    %v4554 = vmul.f32 %v4543, %v4552
    %v4555 = vmul.f32 %v4545, %v4553
    %4556 = vrot.lane.b32.xlu0 %v4357, 64
    %v4557 = vpop.permute.xlu0 %4556
    %v4560 = vsel %vm423, %v4554, 0
    %4562 = vmatprep.subr.mxu0 0.0
    %4563 = vmatpush1.msra.mxu0 %v4557
    %4564 = vmatprep.subr.mxu0 0.0
    %4565 = vmatpush1.msra.mxu0 0.0
    %4566 = vmatprep.subr.mxu0 0.0
    %4567 = vmatpush1.msra.mxu0 0.0
    %4568 = vmatprep.subr.mxu0 0.0
    %4569 = vmatpush1.msra.mxu0 0.0
    %4570 = vmatprep.subr.mxu0 0.0
    %4571 = vmatpush1.msra.mxu0 0.0
    %4572 = vmatprep.subr.mxu0 0.0
    %4573 = vmatpush1.msra.mxu0 0.0
    %4574 = vmatprep.subr.mxu0 0.0
    %4575 = vmatpush1.msra.mxu0 0.0
    %4576 = vmatprep.subr.mxu0 0.0
    %4577 = vmatpush1.msra.mxu0 0.0
    %4578 = vmatprep.subr.mxu0 0.0
    %4579 = vmatpush1.msra.mxu0 0.0
    %4580 = vmatprep.subr.mxu0 0.0
    %4581 = vmatpush1.msra.mxu0 0.0
    %4582 = vmatprep.subr.mxu0 0.0
    %4583 = vmatpush1.msra.mxu0 0.0
    %4584 = vmatprep.subr.mxu0 0.0
    %4585 = vmatpush1.msra.mxu0 0.0
    %4586 = vmatprep.subr.mxu0 0.0
    %4587 = vmatpush1.msra.mxu0 0.0
    %4588 = vmatprep.subr.mxu0 0.0
    %4589 = vmatpush1.msra.mxu0 0.0
    %4590 = vmatprep.subr.mxu0 0.0
    %4591 = vmatpush1.msra.mxu0 0.0
    %4592 = vmatprep.subr.mxu0 0.0
    %4593 = vmatpush1.msra.mxu0 0.0
    %4594 = vmatprep.subr.mxu0 0.0
    %4595 = vmatpush1.msra.mxu0 0.0
    %4596 = vmatprep.subr.mxu0 0.0
    %4597 = vmatpush1.msra.mxu0 0.0
    %4598 = vmatprep.subr.mxu0 0.0
    %4599 = vmatpush1.msra.mxu0 0.0
    %4600 = vmatprep.subr.mxu0 0.0
    %4601 = vmatpush1.msra.mxu0 0.0
    %4602 = vmatprep.subr.mxu0 0.0
    %4603 = vmatpush1.msra.mxu0 0.0
    %4604 = vmatprep.subr.mxu0 0.0
    %4605 = vmatpush1.msra.mxu0 0.0
    %4606 = vmatprep.subr.mxu0 0.0
    %4607 = vmatpush1.msra.mxu0 0.0
    %4608 = vmatprep.subr.mxu0 0.0
    %4609 = vmatpush1.msra.mxu0 0.0
    %4610 = vmatprep.subr.mxu0 0.0
    %4611 = vmatpush1.msra.mxu0 0.0
    %4612 = vmatprep.subr.mxu0 0.0
    %4613 = vmatpush1.msra.mxu0 0.0
    %4614 = vmatprep.subr.mxu0 0.0
    %4615 = vmatpush1.msra.mxu0 0.0
    %4616 = vmatprep.subr.mxu0 0.0
    %4617 = vmatpush1.msra.mxu0 0.0
    %4618 = vmatprep.subr.mxu0 0.0
    %4619 = vmatpush1.msra.mxu0 0.0
    %4620 = vmatprep.subr.mxu0 0.0
    %4621 = vmatpush1.msra.mxu0 0.0
    %4622 = vmatprep.subr.mxu0 0.0
    %4623 = vmatpush1.msra.mxu0 0.0
    %4624 = vmatprep.subr.mxu0 0.0
    %4625 = vmatpush1.msra.mxu0 0.0
    %4626 = vmatprep.mubr.f32.mxu0 0.0
    %4627 = vmatmul.mubr.f32.gmra.mrb[0].mxu0 %v4560
    %v4628 = vpop.f32.mrb[0].mxu0
    %v4629 = vadd.f32 0.0, %v4628
    %v4630 = vpop.f32.mrb[0].mxu0
    %4631 = vdwg.mxu0
    %4632 = vrot.lane.b32.xlu0 %v4362, 64
    %v4633 = vpop.permute.xlu0 %4632
    %v4636 = vsel %vm423, %v4555, 0
    %4638 = vmatprep.subr.mxu0 0.0
    %4639 = vmatpush1.msra.mxu0 %v4633
    %4640 = vmatprep.subr.mxu0 0.0
    %4641 = vmatpush1.msra.mxu0 0.0
    %4642 = vmatprep.subr.mxu0 0.0
    %4643 = vmatpush1.msra.mxu0 0.0
    %4644 = vmatprep.subr.mxu0 0.0
    %4645 = vmatpush1.msra.mxu0 0.0
    %4646 = vmatprep.subr.mxu0 0.0
    %4647 = vmatpush1.msra.mxu0 0.0
    %4648 = vmatprep.subr.mxu0 0.0
    %4649 = vmatpush1.msra.mxu0 0.0
    %4650 = vmatprep.subr.mxu0 0.0
    %4651 = vmatpush1.msra.mxu0 0.0
    %4652 = vmatprep.subr.mxu0 0.0
    %4653 = vmatpush1.msra.mxu0 0.0
    %4654 = vmatprep.subr.mxu0 0.0
    %4655 = vmatpush1.msra.mxu0 0.0
    %4656 = vmatprep.subr.mxu0 0.0
    %4657 = vmatpush1.msra.mxu0 0.0
    %4658 = vmatprep.subr.mxu0 0.0
    %4659 = vmatpush1.msra.mxu0 0.0
    %4660 = vmatprep.subr.mxu0 0.0
    %4661 = vmatpush1.msra.mxu0 0.0
    %4662 = vmatprep.subr.mxu0 0.0
    %4663 = vmatpush1.msra.mxu0 0.0
    %4664 = vmatprep.subr.mxu0 0.0
    %4665 = vmatpush1.msra.mxu0 0.0
    %4666 = vmatprep.subr.mxu0 0.0
    %4667 = vmatpush1.msra.mxu0 0.0
    %4668 = vmatprep.subr.mxu0 0.0
    %4669 = vmatpush1.msra.mxu0 0.0
    %4670 = vmatprep.subr.mxu0 0.0
    %4671 = vmatpush1.msra.mxu0 0.0
    %4672 = vmatprep.subr.mxu0 0.0
    %4673 = vmatpush1.msra.mxu0 0.0
    %4674 = vmatprep.subr.mxu0 0.0
    %4675 = vmatpush1.msra.mxu0 0.0
    %4676 = vmatprep.subr.mxu0 0.0
    %4677 = vmatpush1.msra.mxu0 0.0
    %4678 = vmatprep.subr.mxu0 0.0
    %4679 = vmatpush1.msra.mxu0 0.0
    %4680 = vmatprep.subr.mxu0 0.0
    %4681 = vmatpush1.msra.mxu0 0.0
    %4682 = vmatprep.subr.mxu0 0.0
    %4683 = vmatpush1.msra.mxu0 0.0
    %4684 = vmatprep.subr.mxu0 0.0
    %4685 = vmatpush1.msra.mxu0 0.0
    %4686 = vmatprep.subr.mxu0 0.0
    %4687 = vmatpush1.msra.mxu0 0.0
    %4688 = vmatprep.subr.mxu0 0.0
    %4689 = vmatpush1.msra.mxu0 0.0
    %4690 = vmatprep.subr.mxu0 0.0
    %4691 = vmatpush1.msra.mxu0 0.0
    %4692 = vmatprep.subr.mxu0 0.0
    %4693 = vmatpush1.msra.mxu0 0.0
    %4694 = vmatprep.subr.mxu0 0.0
    %4695 = vmatpush1.msra.mxu0 0.0
    %4696 = vmatprep.subr.mxu0 0.0
    %4697 = vmatpush1.msra.mxu0 0.0
    %4698 = vmatprep.subr.mxu0 0.0
    %4699 = vmatpush1.msra.mxu0 0.0
    %4700 = vmatprep.subr.mxu0 0.0
    %4701 = vmatpush1.msra.mxu0 0.0
    %4702 = vmatprep.mubr.f32.mxu0 0.0
    %4703 = vmatmul.mubr.f32.gmra.mrb[0].mxu0 %v4636
    %v4704 = vpop.f32.mrb[0].mxu0
    %v4705 = vadd.f32 0.0, %v4704
    %v4706 = vpop.f32.mrb[0].mxu0
    %4707 = vdwg.mxu0
    %v4709 = vsel %vm423, %v4629, 0
    %v4712 = vsel %vm423, %v4705, 0
    %4714 = vmatprep.subr.mxu0 0.0
    %4715 = vmatpush1.msra.mxu0 %v4366
    %4716 = vmatprep.subr.mxu0 0.0
    %4717 = vmatpush1.msra.mxu0 0.0
    %4718 = vmatprep.subr.mxu0 0.0
    %4719 = vmatpush1.msra.mxu0 0.0
    %4720 = vmatprep.subr.mxu0 0.0
    %4721 = vmatpush1.msra.mxu0 0.0
    %4722 = vmatprep.subr.mxu0 0.0
    %4723 = vmatpush1.msra.mxu0 0.0
    %4724 = vmatprep.subr.mxu0 0.0
    %4725 = vmatpush1.msra.mxu0 0.0
    %4726 = vmatprep.subr.mxu0 0.0
    %4727 = vmatpush1.msra.mxu0 0.0
    %4728 = vmatprep.subr.mxu0 0.0
    %4729 = vmatpush1.msra.mxu0 0.0
    %4730 = vmatprep.subr.mxu0 0.0
    %4731 = vmatpush1.msra.mxu0 0.0
    %4732 = vmatprep.subr.mxu0 0.0
    %4733 = vmatpush1.msra.mxu0 0.0
    %4734 = vmatprep.subr.mxu0 0.0
    %4735 = vmatpush1.msra.mxu0 0.0
    %4736 = vmatprep.subr.mxu0 0.0
    %4737 = vmatpush1.msra.mxu0 0.0
    %4738 = vmatprep.subr.mxu0 0.0
    %4739 = vmatpush1.msra.mxu0 0.0
    %4740 = vmatprep.subr.mxu0 0.0
    %4741 = vmatpush1.msra.mxu0 0.0
    %4742 = vmatprep.subr.mxu0 0.0
    %4743 = vmatpush1.msra.mxu0 0.0
    %4744 = vmatprep.subr.mxu0 0.0
    %4745 = vmatpush1.msra.mxu0 0.0
    %4746 = vmatprep.subr.mxu0 0.0
    %4747 = vmatpush1.msra.mxu0 0.0
    %4748 = vmatprep.subr.mxu0 0.0
    %4749 = vmatpush1.msra.mxu0 0.0
    %4750 = vmatprep.subr.mxu0 0.0
    %4751 = vmatpush1.msra.mxu0 0.0
    %4752 = vmatprep.subr.mxu0 0.0
    %4753 = vmatpush1.msra.mxu0 0.0
    %4754 = vmatprep.subr.mxu0 0.0
    %4755 = vmatpush1.msra.mxu0 0.0
    %4756 = vmatprep.subr.mxu0 0.0
    %4757 = vmatpush1.msra.mxu0 0.0
    %4758 = vmatprep.subr.mxu0 0.0
    %4759 = vmatpush1.msra.mxu0 0.0
    %4760 = vmatprep.subr.mxu0 0.0
    %4761 = vmatpush1.msra.mxu0 0.0
    %4762 = vmatprep.subr.mxu0 0.0
    %4763 = vmatpush1.msra.mxu0 0.0
    %4764 = vmatprep.subr.mxu0 0.0
    %4765 = vmatpush1.msra.mxu0 0.0
    %4766 = vmatprep.subr.mxu0 0.0
    %4767 = vmatpush1.msra.mxu0 0.0
    %4768 = vmatprep.subr.mxu0 0.0
    %4769 = vmatpush1.msra.mxu0 0.0
    %4770 = vmatprep.subr.mxu0 0.0
    %4771 = vmatpush1.msra.mxu0 0.0
    %4772 = vmatprep.subr.mxu0 0.0
    %4773 = vmatpush1.msra.mxu0 0.0
    %4774 = vmatprep.subr.mxu0 0.0
    %4775 = vmatpush1.msra.mxu0 0.0
    %4776 = vmatprep.subr.mxu0 0.0
    %4777 = vmatpush1.msra.mxu0 0.0
    %4778 = vmatprep.mubr.f32.mxu0 0.0
    %4779 = vmatmul.mubr.f32.gmra.mrb[0].mxu0 %v4709
    %v4780 = vpop.f32.mrb[0].mxu0
    %v4781 = vadd.f32 0.0, %v4780
    %v4782 = vpop.f32.mrb[0].mxu0
    %4783 = vmatprep.mubr.f32.mxu0 0.0
    %4784 = vmatmul.mubr.f32.gmra.mrb[0].mxu0 %v4712
    %v4785 = vpop.f32.mrb[0].mxu0
    %v4786 = vadd.f32 0.0, %v4785
    %v4787 = vpop.f32.mrb[0].mxu0
    %4788 = vdwg.mxu0
    %v4789 = vadd.f32 %v4378, %v4781
    %v4790 = vadd.f32 %v4379, %v4786
    %4791 = vrot.lane.b32.xlu0 %v4357, 120
    %v4792 = vpop.permute.xlu0 %4791
    %4793 = vrot.lane.b32.xlu0 %v4357, 88
    %v4794 = vpop.permute.xlu0 %4793
    %v4795 = vsel %vm423, %v4792, 0
    %v4797 = vsel %vm423, %v4794, 0
    %4799 = vmatprep.subr.mxu0 0.0
    %4800 = vmatpush1.xpose.msra.mxu0 %v4797
    %4801 = vmatprep.subr.mxu0 0.0
    %4802 = vmatpush1.xpose.msra.mxu0 0.0
    %4803 = vmatprep.subr.mxu0 0.0
    %4804 = vmatpush1.xpose.msra.mxu0 0.0
    %4805 = vmatprep.subr.mxu0 0.0
    %4806 = vmatpush1.xpose.msra.mxu0 0.0
    %4807 = vmatprep.subr.mxu0 0.0
    %4808 = vmatpush1.xpose.msra.mxu0 0.0
    %4809 = vmatprep.subr.mxu0 0.0
    %4810 = vmatpush1.xpose.msra.mxu0 0.0
    %4811 = vmatprep.subr.mxu0 0.0
    %4812 = vmatpush1.xpose.msra.mxu0 0.0
    %4813 = vmatprep.subr.mxu0 0.0
    %4814 = vmatpush1.xpose.msra.mxu0 0.0
    %4815 = vmatprep.subr.mxu0 0.0
    %4816 = vmatpush1.xpose.msra.mxu0 0.0
    %4817 = vmatprep.subr.mxu0 0.0
    %4818 = vmatpush1.xpose.msra.mxu0 0.0
    %4819 = vmatprep.subr.mxu0 0.0
    %4820 = vmatpush1.xpose.msra.mxu0 0.0
    %4821 = vmatprep.subr.mxu0 0.0
    %4822 = vmatpush1.xpose.msra.mxu0 0.0
    %4823 = vmatprep.subr.mxu0 0.0
    %4824 = vmatpush1.xpose.msra.mxu0 0.0
    %4825 = vmatprep.subr.mxu0 0.0
    %4826 = vmatpush1.xpose.msra.mxu0 0.0
    %4827 = vmatprep.subr.mxu0 0.0
    %4828 = vmatpush1.xpose.msra.mxu0 0.0
    %4829 = vmatprep.subr.mxu0 0.0
    %4830 = vmatpush1.xpose.msra.mxu0 0.0
    %4831 = vmatprep.subr.mxu0 0.0
    %4832 = vmatpush1.xpose.msra.mxu0 0.0
    %4833 = vmatprep.subr.mxu0 0.0
    %4834 = vmatpush1.xpose.msra.mxu0 0.0
    %4835 = vmatprep.subr.mxu0 0.0
    %4836 = vmatpush1.xpose.msra.mxu0 0.0
    %4837 = vmatprep.subr.mxu0 0.0
    %4838 = vmatpush1.xpose.msra.mxu0 0.0
    %4839 = vmatprep.subr.mxu0 0.0
    %4840 = vmatpush1.xpose.msra.mxu0 0.0
    %4841 = vmatprep.subr.mxu0 0.0
    %4842 = vmatpush1.xpose.msra.mxu0 0.0
    %4843 = vmatprep.subr.mxu0 0.0
    %4844 = vmatpush1.xpose.msra.mxu0 0.0
    %4845 = vmatprep.subr.mxu0 0.0
    %4846 = vmatpush1.xpose.msra.mxu0 0.0
    %4847 = vmatprep.subr.mxu0 0.0
    %4848 = vmatpush1.xpose.msra.mxu0 0.0
    %4849 = vmatprep.subr.mxu0 0.0
    %4850 = vmatpush1.xpose.msra.mxu0 0.0
    %4851 = vmatprep.subr.mxu0 0.0
    %4852 = vmatpush1.xpose.msra.mxu0 0.0
    %4853 = vmatprep.subr.mxu0 0.0
    %4854 = vmatpush1.xpose.msra.mxu0 0.0
    %4855 = vmatprep.subr.mxu0 0.0
    %4856 = vmatpush1.xpose.msra.mxu0 0.0
    %4857 = vmatprep.subr.mxu0 0.0
    %4858 = vmatpush1.xpose.msra.mxu0 0.0
    %4859 = vmatprep.subr.mxu0 0.0
    %4860 = vmatpush1.xpose.msra.mxu0 0.0
    %4861 = vmatprep.subr.mxu0 0.0
    %4862 = vmatpush1.xpose.msra.mxu0 0.0
    %4863 = vmatprep.mubr.f32.mxu0 0.0
    %4864 = vmatmul.mubr.f32.gmra.mrb[0].mxu0 %v4795
    %v4865 = vpop.f32.mrb[0].mxu0
    %v4866 = vadd.f32 %v235, %v4865
    %v4867 = vpop.f32.mrb[0].mxu0
    %4868 = vdwg.mxu0
    %4869 = vrot.lane.b32.xlu0 %v4362, 120
    %v4870 = vpop.permute.xlu0 %4869
    %4871 = vrot.lane.b32.xlu0 %v4362, 88
    %v4872 = vpop.permute.xlu0 %4871
    %v4873 = vsel %vm423, %v4870, 0
    %v4875 = vsel %vm423, %v4872, 0
    %4877 = vmatprep.subr.mxu0 0.0
    %4878 = vmatpush1.xpose.msra.mxu0 %v4875
    %4879 = vmatprep.subr.mxu0 0.0
    %4880 = vmatpush1.xpose.msra.mxu0 0.0
    %4881 = vmatprep.subr.mxu0 0.0
    %4882 = vmatpush1.xpose.msra.mxu0 0.0
    %4883 = vmatprep.subr.mxu0 0.0
    %4884 = vmatpush1.xpose.msra.mxu0 0.0
    %4885 = vmatprep.subr.mxu0 0.0
    %4886 = vmatpush1.xpose.msra.mxu0 0.0
    %4887 = vmatprep.subr.mxu0 0.0
    %4888 = vmatpush1.xpose.msra.mxu0 0.0
    %4889 = vmatprep.subr.mxu0 0.0
    %4890 = vmatpush1.xpose.msra.mxu0 0.0
    %4891 = vmatprep.subr.mxu0 0.0
    %4892 = vmatpush1.xpose.msra.mxu0 0.0
    %4893 = vmatprep.subr.mxu0 0.0
    %4894 = vmatpush1.xpose.msra.mxu0 0.0
    %4895 = vmatprep.subr.mxu0 0.0
    %4896 = vmatpush1.xpose.msra.mxu0 0.0
    %4897 = vmatprep.subr.mxu0 0.0
    %4898 = vmatpush1.xpose.msra.mxu0 0.0
    %4899 = vmatprep.subr.mxu0 0.0
    %4900 = vmatpush1.xpose.msra.mxu0 0.0
    %4901 = vmatprep.subr.mxu0 0.0
    %4902 = vmatpush1.xpose.msra.mxu0 0.0
    %4903 = vmatprep.subr.mxu0 0.0
    %4904 = vmatpush1.xpose.msra.mxu0 0.0
    %4905 = vmatprep.subr.mxu0 0.0
    %4906 = vmatpush1.xpose.msra.mxu0 0.0
    %4907 = vmatprep.subr.mxu0 0.0
    %4908 = vmatpush1.xpose.msra.mxu0 0.0
    %4909 = vmatprep.subr.mxu0 0.0
    %4910 = vmatpush1.xpose.msra.mxu0 0.0
    %4911 = vmatprep.subr.mxu0 0.0
    %4912 = vmatpush1.xpose.msra.mxu0 0.0
    %4913 = vmatprep.subr.mxu0 0.0
    %4914 = vmatpush1.xpose.msra.mxu0 0.0
    %4915 = vmatprep.subr.mxu0 0.0
    %4916 = vmatpush1.xpose.msra.mxu0 0.0
    %4917 = vmatprep.subr.mxu0 0.0
    %4918 = vmatpush1.xpose.msra.mxu0 0.0
    %4919 = vmatprep.subr.mxu0 0.0
    %4920 = vmatpush1.xpose.msra.mxu0 0.0
    %4921 = vmatprep.subr.mxu0 0.0
    %4922 = vmatpush1.xpose.msra.mxu0 0.0
    %4923 = vmatprep.subr.mxu0 0.0
    %4924 = vmatpush1.xpose.msra.mxu0 0.0
    %4925 = vmatprep.subr.mxu0 0.0
    %4926 = vmatpush1.xpose.msra.mxu0 0.0
    %4927 = vmatprep.subr.mxu0 0.0
    %4928 = vmatpush1.xpose.msra.mxu0 0.0
    %4929 = vmatprep.subr.mxu0 0.0
    %4930 = vmatpush1.xpose.msra.mxu0 0.0
    %4931 = vmatprep.subr.mxu0 0.0
    %4932 = vmatpush1.xpose.msra.mxu0 0.0
    %4933 = vmatprep.subr.mxu0 0.0
    %4934 = vmatpush1.xpose.msra.mxu0 0.0
    %4935 = vmatprep.subr.mxu0 0.0
    %4936 = vmatpush1.xpose.msra.mxu0 0.0
    %4937 = vmatprep.subr.mxu0 0.0
    %4938 = vmatpush1.xpose.msra.mxu0 0.0
    %4939 = vmatprep.subr.mxu0 0.0
    %4940 = vmatpush1.xpose.msra.mxu0 0.0
    %4941 = vmatprep.mubr.f32.mxu0 0.0
    %4942 = vmatmul.mubr.f32.gmra.mrb[0].mxu0 %v4873
    %v4943 = vpop.f32.mrb[0].mxu0
    %v4944 = vadd.f32 %v236, %v4943
    %v4945 = vpop.f32.mrb[0].mxu0
    %4946 = vdwg.mxu0
    %v4947 = vsel %vm423, %v4866, -inf
    %4948 = vmax.xlane.f32.xlu0 %v4947
    %v4949 = vpop.xlane.xlu0 %4948
    %v4950 = vsel %vm423, %v4944, -inf
    %4951 = vmax.xlane.f32.xlu0 %v4950
    %v4952 = vpop.xlane.xlu0 %4951
    %v4953 = vsub.f32 %v4866, %v4949
    %v4954 = vsub.f32 %v4944, %v4952
    %v4955 = vmul.f32 %v4953, 1.442695
    %v4956 = vpow.pop %v4955
    %v4957 = vmul.f32 %v4954, 1.442695
    %v4958 = vpow.pop %v4957
    %v4959 = vsel %vm423, %v4956, 0.0
    %4960 = vadd.xlane.f32.xlu0 %v4959
    %v4961 = vpop.xlane.xlu0 %4960
    %v4962 = vsel %vm423, %v4958, 0.0
    %4963 = vadd.xlane.f32.xlu0 %v4962
    %v4964 = vpop.xlane.xlu0 %4963
    %v4965 = vrcp.pop %v4961
    %v4966 = vrcp.pop %v4964
    %v4967 = vmul.f32 %v4956, %v4965
    %v4968 = vmul.f32 %v4958, %v4966
    %4969 = vrot.lane.b32.xlu0 %v4357, 56
    %v4970 = vpop.permute.xlu0 %4969
    %v4973 = vsel %vm423, %v4967, 0
    %4975 = vmatprep.subr.mxu0 0.0
    %4976 = vmatpush1.msra.mxu0 %v4970
    %4977 = vmatprep.subr.mxu0 0.0
    %4978 = vmatpush1.msra.mxu0 0.0
    %4979 = vmatprep.subr.mxu0 0.0
    %4980 = vmatpush1.msra.mxu0 0.0
    %4981 = vmatprep.subr.mxu0 0.0
    %4982 = vmatpush1.msra.mxu0 0.0
    %4983 = vmatprep.subr.mxu0 0.0
    %4984 = vmatpush1.msra.mxu0 0.0
    %4985 = vmatprep.subr.mxu0 0.0
    %4986 = vmatpush1.msra.mxu0 0.0
    %4987 = vmatprep.subr.mxu0 0.0
    %4988 = vmatpush1.msra.mxu0 0.0
    %4989 = vmatprep.subr.mxu0 0.0
    %4990 = vmatpush1.msra.mxu0 0.0
    %4991 = vmatprep.subr.mxu0 0.0
    %4992 = vmatpush1.msra.mxu0 0.0
    %4993 = vmatprep.subr.mxu0 0.0
    %4994 = vmatpush1.msra.mxu0 0.0
    %4995 = vmatprep.subr.mxu0 0.0
    %4996 = vmatpush1.msra.mxu0 0.0
    %4997 = vmatprep.subr.mxu0 0.0
    %4998 = vmatpush1.msra.mxu0 0.0
    %4999 = vmatprep.subr.mxu0 0.0
    %5000 = vmatpush1.msra.mxu0 0.0
    %5001 = vmatprep.subr.mxu0 0.0
    %5002 = vmatpush1.msra.mxu0 0.0
    %5003 = vmatprep.subr.mxu0 0.0
    %5004 = vmatpush1.msra.mxu0 0.0
    %5005 = vmatprep.subr.mxu0 0.0
    %5006 = vmatpush1.msra.mxu0 0.0
    %5007 = vmatprep.subr.mxu0 0.0
    %5008 = vmatpush1.msra.mxu0 0.0
    %5009 = vmatprep.subr.mxu0 0.0
    %5010 = vmatpush1.msra.mxu0 0.0
    %5011 = vmatprep.subr.mxu0 0.0
    %5012 = vmatpush1.msra.mxu0 0.0
    %5013 = vmatprep.subr.mxu0 0.0
    %5014 = vmatpush1.msra.mxu0 0.0
    %5015 = vmatprep.subr.mxu0 0.0
    %5016 = vmatpush1.msra.mxu0 0.0
    %5017 = vmatprep.subr.mxu0 0.0
    %5018 = vmatpush1.msra.mxu0 0.0
    %5019 = vmatprep.subr.mxu0 0.0
    %5020 = vmatpush1.msra.mxu0 0.0
    %5021 = vmatprep.subr.mxu0 0.0
    %5022 = vmatpush1.msra.mxu0 0.0
    %5023 = vmatprep.subr.mxu0 0.0
    %5024 = vmatpush1.msra.mxu0 0.0
    %5025 = vmatprep.subr.mxu0 0.0
    %5026 = vmatpush1.msra.mxu0 0.0
    %5027 = vmatprep.subr.mxu0 0.0
    %5028 = vmatpush1.msra.mxu0 0.0
    %5029 = vmatprep.subr.mxu0 0.0
    %5030 = vmatpush1.msra.mxu0 0.0
    %5031 = vmatprep.subr.mxu0 0.0
    %5032 = vmatpush1.msra.mxu0 0.0
    %5033 = vmatprep.subr.mxu0 0.0
    %5034 = vmatpush1.msra.mxu0 0.0
    %5035 = vmatprep.subr.mxu0 0.0
    %5036 = vmatpush1.msra.mxu0 0.0
    %5037 = vmatprep.subr.mxu0 0.0
    %5038 = vmatpush1.msra.mxu0 0.0
    %5039 = vmatprep.mubr.f32.mxu0 0.0
    %5040 = vmatmul.mubr.f32.gmra.mrb[0].mxu0 %v4973
    %v5041 = vpop.f32.mrb[0].mxu0
    %v5042 = vadd.f32 0.0, %v5041
    %v5043 = vpop.f32.mrb[0].mxu0
    %5044 = vdwg.mxu0
    %5045 = vrot.lane.b32.xlu0 %v4362, 56
    %v5046 = vpop.permute.xlu0 %5045
    %v5049 = vsel %vm423, %v4968, 0
    %5051 = vmatprep.subr.mxu0 0.0
    %5052 = vmatpush1.msra.mxu0 %v5046
    %5053 = vmatprep.subr.mxu0 0.0
    %5054 = vmatpush1.msra.mxu0 0.0
    %5055 = vmatprep.subr.mxu0 0.0
    %5056 = vmatpush1.msra.mxu0 0.0
    %5057 = vmatprep.subr.mxu0 0.0
    %5058 = vmatpush1.msra.mxu0 0.0
    %5059 = vmatprep.subr.mxu0 0.0
    %5060 = vmatpush1.msra.mxu0 0.0
    %5061 = vmatprep.subr.mxu0 0.0
    %5062 = vmatpush1.msra.mxu0 0.0
    %5063 = vmatprep.subr.mxu0 0.0
    %5064 = vmatpush1.msra.mxu0 0.0
    %5065 = vmatprep.subr.mxu0 0.0
    %5066 = vmatpush1.msra.mxu0 0.0
    %5067 = vmatprep.subr.mxu0 0.0
    %5068 = vmatpush1.msra.mxu0 0.0
    %5069 = vmatprep.subr.mxu0 0.0
    %5070 = vmatpush1.msra.mxu0 0.0
    %5071 = vmatprep.subr.mxu0 0.0
    %5072 = vmatpush1.msra.mxu0 0.0
    %5073 = vmatprep.subr.mxu0 0.0
    %5074 = vmatpush1.msra.mxu0 0.0
    %5075 = vmatprep.subr.mxu0 0.0
    %5076 = vmatpush1.msra.mxu0 0.0
    %5077 = vmatprep.subr.mxu0 0.0
    %5078 = vmatpush1.msra.mxu0 0.0
    %5079 = vmatprep.subr.mxu0 0.0
    %5080 = vmatpush1.msra.mxu0 0.0
    %5081 = vmatprep.subr.mxu0 0.0
    %5082 = vmatpush1.msra.mxu0 0.0
    %5083 = vmatprep.subr.mxu0 0.0
    %5084 = vmatpush1.msra.mxu0 0.0
    %5085 = vmatprep.subr.mxu0 0.0
    %5086 = vmatpush1.msra.mxu0 0.0
    %5087 = vmatprep.subr.mxu0 0.0
    %5088 = vmatpush1.msra.mxu0 0.0
    %5089 = vmatprep.subr.mxu0 0.0
    %5090 = vmatpush1.msra.mxu0 0.0
    %5091 = vmatprep.subr.mxu0 0.0
    %5092 = vmatpush1.msra.mxu0 0.0
    %5093 = vmatprep.subr.mxu0 0.0
    %5094 = vmatpush1.msra.mxu0 0.0
    %5095 = vmatprep.subr.mxu0 0.0
    %5096 = vmatpush1.msra.mxu0 0.0
    %5097 = vmatprep.subr.mxu0 0.0
    %5098 = vmatpush1.msra.mxu0 0.0
    %5099 = vmatprep.subr.mxu0 0.0
    %5100 = vmatpush1.msra.mxu0 0.0
    %5101 = vmatprep.subr.mxu0 0.0
    %5102 = vmatpush1.msra.mxu0 0.0
    %5103 = vmatprep.subr.mxu0 0.0
    %5104 = vmatpush1.msra.mxu0 0.0
    %5105 = vmatprep.subr.mxu0 0.0
    %5106 = vmatpush1.msra.mxu0 0.0
    %5107 = vmatprep.subr.mxu0 0.0
    %5108 = vmatpush1.msra.mxu0 0.0
    %5109 = vmatprep.subr.mxu0 0.0
    %5110 = vmatpush1.msra.mxu0 0.0
    %5111 = vmatprep.subr.mxu0 0.0
    %5112 = vmatpush1.msra.mxu0 0.0
    %5113 = vmatprep.subr.mxu0 0.0
    %5114 = vmatpush1.msra.mxu0 0.0
    %5115 = vmatprep.mubr.f32.mxu0 0.0
    %5116 = vmatmul.mubr.f32.gmra.mrb[0].mxu0 %v5049
    %v5117 = vpop.f32.mrb[0].mxu0
    %v5118 = vadd.f32 0.0, %v5117
    %v5119 = vpop.f32.mrb[0].mxu0
    %5120 = vdwg.mxu0
    %v5122 = vsel %vm423, %v5042, 0
    %v5125 = vsel %vm423, %v5118, 0
    %5127 = vmatprep.subr.mxu0 0.0
    %5128 = vmatpush1.msra.mxu0 %v4367
    %5129 = vmatprep.subr.mxu0 0.0
    %5130 = vmatpush1.msra.mxu0 0.0
    %5131 = vmatprep.subr.mxu0 0.0
    %5132 = vmatpush1.msra.mxu0 0.0
    %5133 = vmatprep.subr.mxu0 0.0
    %5134 = vmatpush1.msra.mxu0 0.0
    %5135 = vmatprep.subr.mxu0 0.0
    %5136 = vmatpush1.msra.mxu0 0.0
    %5137 = vmatprep.subr.mxu0 0.0
    %5138 = vmatpush1.msra.mxu0 0.0
    %5139 = vmatprep.subr.mxu0 0.0
    %5140 = vmatpush1.msra.mxu0 0.0
    %5141 = vmatprep.subr.mxu0 0.0
    %5142 = vmatpush1.msra.mxu0 0.0
    %5143 = vmatprep.subr.mxu0 0.0
    %5144 = vmatpush1.msra.mxu0 0.0
    %5145 = vmatprep.subr.mxu0 0.0
    %5146 = vmatpush1.msra.mxu0 0.0
    %5147 = vmatprep.subr.mxu0 0.0
    %5148 = vmatpush1.msra.mxu0 0.0
    %5149 = vmatprep.subr.mxu0 0.0
    %5150 = vmatpush1.msra.mxu0 0.0
    %5151 = vmatprep.subr.mxu0 0.0
    %5152 = vmatpush1.msra.mxu0 0.0
    %5153 = vmatprep.subr.mxu0 0.0
    %5154 = vmatpush1.msra.mxu0 0.0
    %5155 = vmatprep.subr.mxu0 0.0
    %5156 = vmatpush1.msra.mxu0 0.0
    %5157 = vmatprep.subr.mxu0 0.0
    %5158 = vmatpush1.msra.mxu0 0.0
    %5159 = vmatprep.subr.mxu0 0.0
    %5160 = vmatpush1.msra.mxu0 0.0
    %5161 = vmatprep.subr.mxu0 0.0
    %5162 = vmatpush1.msra.mxu0 0.0
    %5163 = vmatprep.subr.mxu0 0.0
    %5164 = vmatpush1.msra.mxu0 0.0
    %5165 = vmatprep.subr.mxu0 0.0
    %5166 = vmatpush1.msra.mxu0 0.0
    %5167 = vmatprep.subr.mxu0 0.0
    %5168 = vmatpush1.msra.mxu0 0.0
    %5169 = vmatprep.subr.mxu0 0.0
    %5170 = vmatpush1.msra.mxu0 0.0
    %5171 = vmatprep.subr.mxu0 0.0
    %5172 = vmatpush1.msra.mxu0 0.0
    %5173 = vmatprep.subr.mxu0 0.0
    %5174 = vmatpush1.msra.mxu0 0.0
    %5175 = vmatprep.subr.mxu0 0.0
    %5176 = vmatpush1.msra.mxu0 0.0
    %5177 = vmatprep.subr.mxu0 0.0
    %5178 = vmatpush1.msra.mxu0 0.0
    %5179 = vmatprep.subr.mxu0 0.0
    %5180 = vmatpush1.msra.mxu0 0.0
    %5181 = vmatprep.subr.mxu0 0.0
    %5182 = vmatpush1.msra.mxu0 0.0
    %5183 = vmatprep.subr.mxu0 0.0
    %5184 = vmatpush1.msra.mxu0 0.0
    %5185 = vmatprep.subr.mxu0 0.0
    %5186 = vmatpush1.msra.mxu0 0.0
    %5187 = vmatprep.subr.mxu0 0.0
    %5188 = vmatpush1.msra.mxu0 0.0
    %5189 = vmatprep.subr.mxu0 0.0
    %5190 = vmatpush1.msra.mxu0 0.0
    %5191 = vmatprep.mubr.f32.mxu0 0.0
    %5192 = vmatmul.mubr.f32.gmra.mrb[0].mxu0 %v5122
    %v5193 = vpop.f32.mrb[0].mxu0
    %v5194 = vadd.f32 0.0, %v5193
    %v5195 = vpop.f32.mrb[0].mxu0
    %5196 = vmatprep.mubr.f32.mxu0 0.0
    %5197 = vmatmul.mubr.f32.gmra.mrb[0].mxu0 %v5125
    %v5198 = vpop.f32.mrb[0].mxu0
    %v5199 = vadd.f32 0.0, %v5198
    %v5200 = vpop.f32.mrb[0].mxu0
    %5201 = vdwg.mxu0
    %v5202 = vadd.f32 %v4789, %v5194
    %v5203 = vadd.f32 %v4790, %v5199
    %5204 = vrot.lane.b32.xlu0 %v4357, 112
    %v5205 = vpop.permute.xlu0 %5204
    %5206 = vrot.lane.b32.xlu0 %v4357, 80
    %v5207 = vpop.permute.xlu0 %5206
    %v5208 = vsel %vm423, %v5205, 0
    %v5210 = vsel %vm423, %v5207, 0
    %5212 = vmatprep.subr.mxu0 0.0
    %5213 = vmatpush1.xpose.msra.mxu0 %v5210
    %5214 = vmatprep.subr.mxu0 0.0
    %5215 = vmatpush1.xpose.msra.mxu0 0.0
    %5216 = vmatprep.subr.mxu0 0.0
    %5217 = vmatpush1.xpose.msra.mxu0 0.0
    %5218 = vmatprep.subr.mxu0 0.0
    %5219 = vmatpush1.xpose.msra.mxu0 0.0
    %5220 = vmatprep.subr.mxu0 0.0
    %5221 = vmatpush1.xpose.msra.mxu0 0.0
    %5222 = vmatprep.subr.mxu0 0.0
    %5223 = vmatpush1.xpose.msra.mxu0 0.0
    %5224 = vmatprep.subr.mxu0 0.0
    %5225 = vmatpush1.xpose.msra.mxu0 0.0
    %5226 = vmatprep.subr.mxu0 0.0
    %5227 = vmatpush1.xpose.msra.mxu0 0.0
    %5228 = vmatprep.subr.mxu0 0.0
    %5229 = vmatpush1.xpose.msra.mxu0 0.0
    %5230 = vmatprep.subr.mxu0 0.0
    %5231 = vmatpush1.xpose.msra.mxu0 0.0
    %5232 = vmatprep.subr.mxu0 0.0
    %5233 = vmatpush1.xpose.msra.mxu0 0.0
    %5234 = vmatprep.subr.mxu0 0.0
    %5235 = vmatpush1.xpose.msra.mxu0 0.0
    %5236 = vmatprep.subr.mxu0 0.0
    %5237 = vmatpush1.xpose.msra.mxu0 0.0
    %5238 = vmatprep.subr.mxu0 0.0
    %5239 = vmatpush1.xpose.msra.mxu0 0.0
    %5240 = vmatprep.subr.mxu0 0.0
    %5241 = vmatpush1.xpose.msra.mxu0 0.0
    %5242 = vmatprep.subr.mxu0 0.0
    %5243 = vmatpush1.xpose.msra.mxu0 0.0
    %5244 = vmatprep.subr.mxu0 0.0
    %5245 = vmatpush1.xpose.msra.mxu0 0.0
    %5246 = vmatprep.subr.mxu0 0.0
    %5247 = vmatpush1.xpose.msra.mxu0 0.0
    %5248 = vmatprep.subr.mxu0 0.0
    %5249 = vmatpush1.xpose.msra.mxu0 0.0
    %5250 = vmatprep.subr.mxu0 0.0
    %5251 = vmatpush1.xpose.msra.mxu0 0.0
    %5252 = vmatprep.subr.mxu0 0.0
    %5253 = vmatpush1.xpose.msra.mxu0 0.0
    %5254 = vmatprep.subr.mxu0 0.0
    %5255 = vmatpush1.xpose.msra.mxu0 0.0
    %5256 = vmatprep.subr.mxu0 0.0
    %5257 = vmatpush1.xpose.msra.mxu0 0.0
    %5258 = vmatprep.subr.mxu0 0.0
    %5259 = vmatpush1.xpose.msra.mxu0 0.0
    %5260 = vmatprep.subr.mxu0 0.0
    %5261 = vmatpush1.xpose.msra.mxu0 0.0
    %5262 = vmatprep.subr.mxu0 0.0
    %5263 = vmatpush1.xpose.msra.mxu0 0.0
    %5264 = vmatprep.subr.mxu0 0.0
    %5265 = vmatpush1.xpose.msra.mxu0 0.0
    %5266 = vmatprep.subr.mxu0 0.0
    %5267 = vmatpush1.xpose.msra.mxu0 0.0
    %5268 = vmatprep.subr.mxu0 0.0
    %5269 = vmatpush1.xpose.msra.mxu0 0.0
    %5270 = vmatprep.subr.mxu0 0.0
    %5271 = vmatpush1.xpose.msra.mxu0 0.0
    %5272 = vmatprep.subr.mxu0 0.0
    %5273 = vmatpush1.xpose.msra.mxu0 0.0
    %5274 = vmatprep.subr.mxu0 0.0
    %5275 = vmatpush1.xpose.msra.mxu0 0.0
    %5276 = vmatprep.mubr.f32.mxu0 0.0
    %5277 = vmatmul.mubr.f32.gmra.mrb[0].mxu0 %v5208
    %v5278 = vpop.f32.mrb[0].mxu0
    %v5279 = vadd.f32 %v235, %v5278
    %v5280 = vpop.f32.mrb[0].mxu0
    %5281 = vdwg.mxu0
    %5282 = vrot.lane.b32.xlu0 %v4362, 112
    %v5283 = vpop.permute.xlu0 %5282
    %5284 = vrot.lane.b32.xlu0 %v4362, 80
    %v5285 = vpop.permute.xlu0 %5284
    %v5286 = vsel %vm423, %v5283, 0
    %v5288 = vsel %vm423, %v5285, 0
    %5290 = vmatprep.subr.mxu0 0.0
    %5291 = vmatpush1.xpose.msra.mxu0 %v5288
    %5292 = vmatprep.subr.mxu0 0.0
    %5293 = vmatpush1.xpose.msra.mxu0 0.0
    %5294 = vmatprep.subr.mxu0 0.0
    %5295 = vmatpush1.xpose.msra.mxu0 0.0
    %5296 = vmatprep.subr.mxu0 0.0
    %5297 = vmatpush1.xpose.msra.mxu0 0.0
    %5298 = vmatprep.subr.mxu0 0.0
    %5299 = vmatpush1.xpose.msra.mxu0 0.0
    %5300 = vmatprep.subr.mxu0 0.0
    %5301 = vmatpush1.xpose.msra.mxu0 0.0
    %5302 = vmatprep.subr.mxu0 0.0
    %5303 = vmatpush1.xpose.msra.mxu0 0.0
    %5304 = vmatprep.subr.mxu0 0.0
    %5305 = vmatpush1.xpose.msra.mxu0 0.0
    %5306 = vmatprep.subr.mxu0 0.0
    %5307 = vmatpush1.xpose.msra.mxu0 0.0
    %5308 = vmatprep.subr.mxu0 0.0
    %5309 = vmatpush1.xpose.msra.mxu0 0.0
    %5310 = vmatprep.subr.mxu0 0.0
    %5311 = vmatpush1.xpose.msra.mxu0 0.0
    %5312 = vmatprep.subr.mxu0 0.0
    %5313 = vmatpush1.xpose.msra.mxu0 0.0
    %5314 = vmatprep.subr.mxu0 0.0
    %5315 = vmatpush1.xpose.msra.mxu0 0.0
    %5316 = vmatprep.subr.mxu0 0.0
    %5317 = vmatpush1.xpose.msra.mxu0 0.0
    %5318 = vmatprep.subr.mxu0 0.0
    %5319 = vmatpush1.xpose.msra.mxu0 0.0
    %5320 = vmatprep.subr.mxu0 0.0
    %5321 = vmatpush1.xpose.msra.mxu0 0.0
    %5322 = vmatprep.subr.mxu0 0.0
    %5323 = vmatpush1.xpose.msra.mxu0 0.0
    %5324 = vmatprep.subr.mxu0 0.0
    %5325 = vmatpush1.xpose.msra.mxu0 0.0
    %5326 = vmatprep.subr.mxu0 0.0
    %5327 = vmatpush1.xpose.msra.mxu0 0.0
    %5328 = vmatprep.subr.mxu0 0.0
    %5329 = vmatpush1.xpose.msra.mxu0 0.0
    %5330 = vmatprep.subr.mxu0 0.0
    %5331 = vmatpush1.xpose.msra.mxu0 0.0
    %5332 = vmatprep.subr.mxu0 0.0
    %5333 = vmatpush1.xpose.msra.mxu0 0.0
    %5334 = vmatprep.subr.mxu0 0.0
    %5335 = vmatpush1.xpose.msra.mxu0 0.0
    %5336 = vmatprep.subr.mxu0 0.0
    %5337 = vmatpush1.xpose.msra.mxu0 0.0
    %5338 = vmatprep.subr.mxu0 0.0
    %5339 = vmatpush1.xpose.msra.mxu0 0.0
    %5340 = vmatprep.subr.mxu0 0.0
    %5341 = vmatpush1.xpose.msra.mxu0 0.0
    %5342 = vmatprep.subr.mxu0 0.0
    %5343 = vmatpush1.xpose.msra.mxu0 0.0
    %5344 = vmatprep.subr.mxu0 0.0
    %5345 = vmatpush1.xpose.msra.mxu0 0.0
    %5346 = vmatprep.subr.mxu0 0.0
    %5347 = vmatpush1.xpose.msra.mxu0 0.0
    %5348 = vmatprep.subr.mxu0 0.0
    %5349 = vmatpush1.xpose.msra.mxu0 0.0
    %5350 = vmatprep.subr.mxu0 0.0
    %5351 = vmatpush1.xpose.msra.mxu0 0.0
    %5352 = vmatprep.subr.mxu0 0.0
    %5353 = vmatpush1.xpose.msra.mxu0 0.0
    %5354 = vmatprep.mubr.f32.mxu0 0.0
    %5355 = vmatmul.mubr.f32.gmra.mrb[0].mxu0 %v5286
    %v5356 = vpop.f32.mrb[0].mxu0
    %v5357 = vadd.f32 %v236, %v5356
    %v5358 = vpop.f32.mrb[0].mxu0
    %5359 = vdwg.mxu0
    %v5360 = vsel %vm423, %v5279, -inf
    %5361 = vmax.xlane.f32.xlu0 %v5360
    %v5362 = vpop.xlane.xlu0 %5361
    %v5363 = vsel %vm423, %v5357, -inf
    %5364 = vmax.xlane.f32.xlu0 %v5363
    %v5365 = vpop.xlane.xlu0 %5364
    %v5366 = vsub.f32 %v5279, %v5362
    %v5367 = vsub.f32 %v5357, %v5365
    %v5368 = vmul.f32 %v5366, 1.442695
    %v5369 = vpow.pop %v5368
    %v5370 = vmul.f32 %v5367, 1.442695
    %v5371 = vpow.pop %v5370
    %v5372 = vsel %vm423, %v5369, 0.0
    %5373 = vadd.xlane.f32.xlu0 %v5372
    %v5374 = vpop.xlane.xlu0 %5373
    %v5375 = vsel %vm423, %v5371, 0.0
    %5376 = vadd.xlane.f32.xlu0 %v5375
    %v5377 = vpop.xlane.xlu0 %5376
    %v5378 = vrcp.pop %v5374
    %v5379 = vrcp.pop %v5377
    %v5380 = vmul.f32 %v5369, %v5378
    %v5381 = vmul.f32 %v5371, %v5379
    %5382 = vrot.lane.b32.xlu0 %v4357, 48
    %v5383 = vpop.permute.xlu0 %5382
    %v5386 = vsel %vm423, %v5380, 0
    %5388 = vmatprep.subr.mxu0 0.0
    %5389 = vmatpush1.msra.mxu0 %v5383
    %5390 = vmatprep.subr.mxu0 0.0
    %5391 = vmatpush1.msra.mxu0 0.0
    %5392 = vmatprep.subr.mxu0 0.0
    %5393 = vmatpush1.msra.mxu0 0.0
    %5394 = vmatprep.subr.mxu0 0.0
    %5395 = vmatpush1.msra.mxu0 0.0
    %5396 = vmatprep.subr.mxu0 0.0
    %5397 = vmatpush1.msra.mxu0 0.0
    %5398 = vmatprep.subr.mxu0 0.0
    %5399 = vmatpush1.msra.mxu0 0.0
    %5400 = vmatprep.subr.mxu0 0.0
    %5401 = vmatpush1.msra.mxu0 0.0
    %5402 = vmatprep.subr.mxu0 0.0
    %5403 = vmatpush1.msra.mxu0 0.0
    %5404 = vmatprep.subr.mxu0 0.0
    %5405 = vmatpush1.msra.mxu0 0.0
    %5406 = vmatprep.subr.mxu0 0.0
    %5407 = vmatpush1.msra.mxu0 0.0
    %5408 = vmatprep.subr.mxu0 0.0
    %5409 = vmatpush1.msra.mxu0 0.0
    %5410 = vmatprep.subr.mxu0 0.0
    %5411 = vmatpush1.msra.mxu0 0.0
    %5412 = vmatprep.subr.mxu0 0.0
    %5413 = vmatpush1.msra.mxu0 0.0
    %5414 = vmatprep.subr.mxu0 0.0
    %5415 = vmatpush1.msra.mxu0 0.0
    %5416 = vmatprep.subr.mxu0 0.0
    %5417 = vmatpush1.msra.mxu0 0.0
    %5418 = vmatprep.subr.mxu0 0.0
    %5419 = vmatpush1.msra.mxu0 0.0
    %5420 = vmatprep.subr.mxu0 0.0
    %5421 = vmatpush1.msra.mxu0 0.0
    %5422 = vmatprep.subr.mxu0 0.0
    %5423 = vmatpush1.msra.mxu0 0.0
    %5424 = vmatprep.subr.mxu0 0.0
    %5425 = vmatpush1.msra.mxu0 0.0
    %5426 = vmatprep.subr.mxu0 0.0
    %5427 = vmatpush1.msra.mxu0 0.0
    %5428 = vmatprep.subr.mxu0 0.0
    %5429 = vmatpush1.msra.mxu0 0.0
    %5430 = vmatprep.subr.mxu0 0.0
    %5431 = vmatpush1.msra.mxu0 0.0
    %5432 = vmatprep.subr.mxu0 0.0
    %5433 = vmatpush1.msra.mxu0 0.0
    %5434 = vmatprep.subr.mxu0 0.0
    %5435 = vmatpush1.msra.mxu0 0.0
    %5436 = vmatprep.subr.mxu0 0.0
    %5437 = vmatpush1.msra.mxu0 0.0
    %5438 = vmatprep.subr.mxu0 0.0
    %5439 = vmatpush1.msra.mxu0 0.0
    %5440 = vmatprep.subr.mxu0 0.0
    %5441 = vmatpush1.msra.mxu0 0.0
    %5442 = vmatprep.subr.mxu0 0.0
    %5443 = vmatpush1.msra.mxu0 0.0
    %5444 = vmatprep.subr.mxu0 0.0
    %5445 = vmatpush1.msra.mxu0 0.0
    %5446 = vmatprep.subr.mxu0 0.0
    %5447 = vmatpush1.msra.mxu0 0.0
    %5448 = vmatprep.subr.mxu0 0.0
    %5449 = vmatpush1.msra.mxu0 0.0
    %5450 = vmatprep.subr.mxu0 0.0
    %5451 = vmatpush1.msra.mxu0 0.0
    %5452 = vmatprep.mubr.f32.mxu0 0.0
    %5453 = vmatmul.mubr.f32.gmra.mrb[0].mxu0 %v5386
    %v5454 = vpop.f32.mrb[0].mxu0
    %v5455 = vadd.f32 0.0, %v5454
    %v5456 = vpop.f32.mrb[0].mxu0
    %5457 = vdwg.mxu0
    %5458 = vrot.lane.b32.xlu0 %v4362, 48
    %v5459 = vpop.permute.xlu0 %5458
    %v5462 = vsel %vm423, %v5381, 0
    %5464 = vmatprep.subr.mxu0 0.0
    %5465 = vmatpush1.msra.mxu0 %v5459
    %5466 = vmatprep.subr.mxu0 0.0
    %5467 = vmatpush1.msra.mxu0 0.0
    %5468 = vmatprep.subr.mxu0 0.0
    %5469 = vmatpush1.msra.mxu0 0.0
    %5470 = vmatprep.subr.mxu0 0.0
    %5471 = vmatpush1.msra.mxu0 0.0
    %5472 = vmatprep.subr.mxu0 0.0
    %5473 = vmatpush1.msra.mxu0 0.0
    %5474 = vmatprep.subr.mxu0 0.0
    %5475 = vmatpush1.msra.mxu0 0.0
    %5476 = vmatprep.subr.mxu0 0.0
    %5477 = vmatpush1.msra.mxu0 0.0
    %5478 = vmatprep.subr.mxu0 0.0
    %5479 = vmatpush1.msra.mxu0 0.0
    %5480 = vmatprep.subr.mxu0 0.0
    %5481 = vmatpush1.msra.mxu0 0.0
    %5482 = vmatprep.subr.mxu0 0.0
    %5483 = vmatpush1.msra.mxu0 0.0
    %5484 = vmatprep.subr.mxu0 0.0
    %5485 = vmatpush1.msra.mxu0 0.0
    %5486 = vmatprep.subr.mxu0 0.0
    %5487 = vmatpush1.msra.mxu0 0.0
    %5488 = vmatprep.subr.mxu0 0.0
    %5489 = vmatpush1.msra.mxu0 0.0
    %5490 = vmatprep.subr.mxu0 0.0
    %5491 = vmatpush1.msra.mxu0 0.0
    %5492 = vmatprep.subr.mxu0 0.0
    %5493 = vmatpush1.msra.mxu0 0.0
    %5494 = vmatprep.subr.mxu0 0.0
    %5495 = vmatpush1.msra.mxu0 0.0
    %5496 = vmatprep.subr.mxu0 0.0
    %5497 = vmatpush1.msra.mxu0 0.0
    %5498 = vmatprep.subr.mxu0 0.0
    %5499 = vmatpush1.msra.mxu0 0.0
    %5500 = vmatprep.subr.mxu0 0.0
    %5501 = vmatpush1.msra.mxu0 0.0
    %5502 = vmatprep.subr.mxu0 0.0
    %5503 = vmatpush1.msra.mxu0 0.0
    %5504 = vmatprep.subr.mxu0 0.0
    %5505 = vmatpush1.msra.mxu0 0.0
    %5506 = vmatprep.subr.mxu0 0.0
    %5507 = vmatpush1.msra.mxu0 0.0
    %5508 = vmatprep.subr.mxu0 0.0
    %5509 = vmatpush1.msra.mxu0 0.0
    %5510 = vmatprep.subr.mxu0 0.0
    %5511 = vmatpush1.msra.mxu0 0.0
    %5512 = vmatprep.subr.mxu0 0.0
    %5513 = vmatpush1.msra.mxu0 0.0
    %5514 = vmatprep.subr.mxu0 0.0
    %5515 = vmatpush1.msra.mxu0 0.0
    %5516 = vmatprep.subr.mxu0 0.0
    %5517 = vmatpush1.msra.mxu0 0.0
    %5518 = vmatprep.subr.mxu0 0.0
    %5519 = vmatpush1.msra.mxu0 0.0
    %5520 = vmatprep.subr.mxu0 0.0
    %5521 = vmatpush1.msra.mxu0 0.0
    %5522 = vmatprep.subr.mxu0 0.0
    %5523 = vmatpush1.msra.mxu0 0.0
    %5524 = vmatprep.subr.mxu0 0.0
    %5525 = vmatpush1.msra.mxu0 0.0
    %5526 = vmatprep.subr.mxu0 0.0
    %5527 = vmatpush1.msra.mxu0 0.0
    %5528 = vmatprep.mubr.f32.mxu0 0.0
    %5529 = vmatmul.mubr.f32.gmra.mrb[0].mxu0 %v5462
    %v5530 = vpop.f32.mrb[0].mxu0
    %v5531 = vadd.f32 0.0, %v5530
    %v5532 = vpop.f32.mrb[0].mxu0
    %5533 = vdwg.mxu0
    %v5535 = vsel %vm423, %v5455, 0
    %v5538 = vsel %vm423, %v5531, 0
    %5540 = vmatprep.subr.mxu0 0.0
    %5541 = vmatpush1.msra.mxu0 %v4368
    %5542 = vmatprep.subr.mxu0 0.0
    %5543 = vmatpush1.msra.mxu0 0.0
    %5544 = vmatprep.subr.mxu0 0.0
    %5545 = vmatpush1.msra.mxu0 0.0
    %5546 = vmatprep.subr.mxu0 0.0
    %5547 = vmatpush1.msra.mxu0 0.0
    %5548 = vmatprep.subr.mxu0 0.0
    %5549 = vmatpush1.msra.mxu0 0.0
    %5550 = vmatprep.subr.mxu0 0.0
    %5551 = vmatpush1.msra.mxu0 0.0
    %5552 = vmatprep.subr.mxu0 0.0
    %5553 = vmatpush1.msra.mxu0 0.0
    %5554 = vmatprep.subr.mxu0 0.0
    %5555 = vmatpush1.msra.mxu0 0.0
    %5556 = vmatprep.subr.mxu0 0.0
    %5557 = vmatpush1.msra.mxu0 0.0
    %5558 = vmatprep.subr.mxu0 0.0
    %5559 = vmatpush1.msra.mxu0 0.0
    %5560 = vmatprep.subr.mxu0 0.0
    %5561 = vmatpush1.msra.mxu0 0.0
    %5562 = vmatprep.subr.mxu0 0.0
    %5563 = vmatpush1.msra.mxu0 0.0
    %5564 = vmatprep.subr.mxu0 0.0
    %5565 = vmatpush1.msra.mxu0 0.0
    %5566 = vmatprep.subr.mxu0 0.0
    %5567 = vmatpush1.msra.mxu0 0.0
    %5568 = vmatprep.subr.mxu0 0.0
    %5569 = vmatpush1.msra.mxu0 0.0
    %5570 = vmatprep.subr.mxu0 0.0
    %5571 = vmatpush1.msra.mxu0 0.0
    %5572 = vmatprep.subr.mxu0 0.0
    %5573 = vmatpush1.msra.mxu0 0.0
    %5574 = vmatprep.subr.mxu0 0.0
    %5575 = vmatpush1.msra.mxu0 0.0
    %5576 = vmatprep.subr.mxu0 0.0
    %5577 = vmatpush1.msra.mxu0 0.0
    %5578 = vmatprep.subr.mxu0 0.0
    %5579 = vmatpush1.msra.mxu0 0.0
    %5580 = vmatprep.subr.mxu0 0.0
    %5581 = vmatpush1.msra.mxu0 0.0
    %5582 = vmatprep.subr.mxu0 0.0
    %5583 = vmatpush1.msra.mxu0 0.0
    %5584 = vmatprep.subr.mxu0 0.0
    %5585 = vmatpush1.msra.mxu0 0.0
    %5586 = vmatprep.subr.mxu0 0.0
    %5587 = vmatpush1.msra.mxu0 0.0
    %5588 = vmatprep.subr.mxu0 0.0
    %5589 = vmatpush1.msra.mxu0 0.0
    %5590 = vmatprep.subr.mxu0 0.0
    %5591 = vmatpush1.msra.mxu0 0.0
    %5592 = vmatprep.subr.mxu0 0.0
    %5593 = vmatpush1.msra.mxu0 0.0
    %5594 = vmatprep.subr.mxu0 0.0
    %5595 = vmatpush1.msra.mxu0 0.0
    %5596 = vmatprep.subr.mxu0 0.0
    %5597 = vmatpush1.msra.mxu0 0.0
    %5598 = vmatprep.subr.mxu0 0.0
    %5599 = vmatpush1.msra.mxu0 0.0
    %5600 = vmatprep.subr.mxu0 0.0
    %5601 = vmatpush1.msra.mxu0 0.0
    %5602 = vmatprep.subr.mxu0 0.0
    %5603 = vmatpush1.msra.mxu0 0.0
    %5604 = vmatprep.mubr.f32.mxu0 0.0
    %5605 = vmatmul.mubr.f32.gmra.mrb[0].mxu0 %v5535
    %v5606 = vpop.f32.mrb[0].mxu0
    %v5607 = vadd.f32 0.0, %v5606
    %v5608 = vpop.f32.mrb[0].mxu0
    %5609 = vmatprep.mubr.f32.mxu0 0.0
    %5610 = vmatmul.mubr.f32.gmra.mrb[0].mxu0 %v5538
    %v5611 = vpop.f32.mrb[0].mxu0
    %v5612 = vadd.f32 0.0, %v5611
    %v5613 = vpop.f32.mrb[0].mxu0
    %5614 = vdwg.mxu0
    %v5615 = vadd.f32 %v5202, %v5607
    %v5616 = vadd.f32 %v5203, %v5612
    %5617 = vrot.lane.b32.xlu0 %v4357, 104
    %v5618 = vpop.permute.xlu0 %5617
    %5619 = vrot.lane.b32.xlu0 %v4357, 72
    %v5620 = vpop.permute.xlu0 %5619
    %v5621 = vsel %vm423, %v5618, 0
    %v5623 = vsel %vm423, %v5620, 0
    %5625 = vmatprep.subr.mxu0 0.0
    %5626 = vmatpush1.xpose.msra.mxu0 %v5623
    %5627 = vmatprep.subr.mxu0 0.0
    %5628 = vmatpush1.xpose.msra.mxu0 0.0
    %5629 = vmatprep.subr.mxu0 0.0
    %5630 = vmatpush1.xpose.msra.mxu0 0.0
    %5631 = vmatprep.subr.mxu0 0.0
    %5632 = vmatpush1.xpose.msra.mxu0 0.0
    %5633 = vmatprep.subr.mxu0 0.0
    %5634 = vmatpush1.xpose.msra.mxu0 0.0
    %5635 = vmatprep.subr.mxu0 0.0
    %5636 = vmatpush1.xpose.msra.mxu0 0.0
    %5637 = vmatprep.subr.mxu0 0.0
    %5638 = vmatpush1.xpose.msra.mxu0 0.0
    %5639 = vmatprep.subr.mxu0 0.0
    %5640 = vmatpush1.xpose.msra.mxu0 0.0
    %5641 = vmatprep.subr.mxu0 0.0
    %5642 = vmatpush1.xpose.msra.mxu0 0.0
    %5643 = vmatprep.subr.mxu0 0.0
    %5644 = vmatpush1.xpose.msra.mxu0 0.0
    %5645 = vmatprep.subr.mxu0 0.0
    %5646 = vmatpush1.xpose.msra.mxu0 0.0
    %5647 = vmatprep.subr.mxu0 0.0
    %5648 = vmatpush1.xpose.msra.mxu0 0.0
    %5649 = vmatprep.subr.mxu0 0.0
    %5650 = vmatpush1.xpose.msra.mxu0 0.0
    %5651 = vmatprep.subr.mxu0 0.0
    %5652 = vmatpush1.xpose.msra.mxu0 0.0
    %5653 = vmatprep.subr.mxu0 0.0
    %5654 = vmatpush1.xpose.msra.mxu0 0.0
    %5655 = vmatprep.subr.mxu0 0.0
    %5656 = vmatpush1.xpose.msra.mxu0 0.0
    %5657 = vmatprep.subr.mxu0 0.0
    %5658 = vmatpush1.xpose.msra.mxu0 0.0
    %5659 = vmatprep.subr.mxu0 0.0
    %5660 = vmatpush1.xpose.msra.mxu0 0.0
    %5661 = vmatprep.subr.mxu0 0.0
    %5662 = vmatpush1.xpose.msra.mxu0 0.0
    %5663 = vmatprep.subr.mxu0 0.0
    %5664 = vmatpush1.xpose.msra.mxu0 0.0
    %5665 = vmatprep.subr.mxu0 0.0
    %5666 = vmatpush1.xpose.msra.mxu0 0.0
    %5667 = vmatprep.subr.mxu0 0.0
    %5668 = vmatpush1.xpose.msra.mxu0 0.0
    %5669 = vmatprep.subr.mxu0 0.0
    %5670 = vmatpush1.xpose.msra.mxu0 0.0
    %5671 = vmatprep.subr.mxu0 0.0
    %5672 = vmatpush1.xpose.msra.mxu0 0.0
    %5673 = vmatprep.subr.mxu0 0.0
    %5674 = vmatpush1.xpose.msra.mxu0 0.0
    %5675 = vmatprep.subr.mxu0 0.0
    %5676 = vmatpush1.xpose.msra.mxu0 0.0
    %5677 = vmatprep.subr.mxu0 0.0
    %5678 = vmatpush1.xpose.msra.mxu0 0.0
    %5679 = vmatprep.subr.mxu0 0.0
    %5680 = vmatpush1.xpose.msra.mxu0 0.0
    %5681 = vmatprep.subr.mxu0 0.0
    %5682 = vmatpush1.xpose.msra.mxu0 0.0
    %5683 = vmatprep.subr.mxu0 0.0
    %5684 = vmatpush1.xpose.msra.mxu0 0.0
    %5685 = vmatprep.subr.mxu0 0.0
    %5686 = vmatpush1.xpose.msra.mxu0 0.0
    %5687 = vmatprep.subr.mxu0 0.0
    %5688 = vmatpush1.xpose.msra.mxu0 0.0
    %5689 = vmatprep.mubr.f32.mxu0 0.0
    %5690 = vmatmul.mubr.f32.gmra.mrb[0].mxu0 %v5621
    %v5691 = vpop.f32.mrb[0].mxu0
    %v5692 = vadd.f32 %v235, %v5691
    %v5693 = vpop.f32.mrb[0].mxu0
    %5694 = vdwg.mxu0
    %5695 = vrot.lane.b32.xlu0 %v4362, 104
    %v5696 = vpop.permute.xlu0 %5695
    %5697 = vrot.lane.b32.xlu0 %v4362, 72
    %v5698 = vpop.permute.xlu0 %5697
    %v5699 = vsel %vm423, %v5696, 0
    %v5701 = vsel %vm423, %v5698, 0
    %5703 = vmatprep.subr.mxu0 0.0
    %5704 = vmatpush1.xpose.msra.mxu0 %v5701
    %5705 = vmatprep.subr.mxu0 0.0
    %5706 = vmatpush1.xpose.msra.mxu0 0.0
    %5707 = vmatprep.subr.mxu0 0.0
    %5708 = vmatpush1.xpose.msra.mxu0 0.0
    %5709 = vmatprep.subr.mxu0 0.0
    %5710 = vmatpush1.xpose.msra.mxu0 0.0
    %5711 = vmatprep.subr.mxu0 0.0
    %5712 = vmatpush1.xpose.msra.mxu0 0.0
    %5713 = vmatprep.subr.mxu0 0.0
    %5714 = vmatpush1.xpose.msra.mxu0 0.0
    %5715 = vmatprep.subr.mxu0 0.0
    %5716 = vmatpush1.xpose.msra.mxu0 0.0
    %5717 = vmatprep.subr.mxu0 0.0
    %5718 = vmatpush1.xpose.msra.mxu0 0.0
    %5719 = vmatprep.subr.mxu0 0.0
    %5720 = vmatpush1.xpose.msra.mxu0 0.0
    %5721 = vmatprep.subr.mxu0 0.0
    %5722 = vmatpush1.xpose.msra.mxu0 0.0
    %5723 = vmatprep.subr.mxu0 0.0
    %5724 = vmatpush1.xpose.msra.mxu0 0.0
    %5725 = vmatprep.subr.mxu0 0.0
    %5726 = vmatpush1.xpose.msra.mxu0 0.0
    %5727 = vmatprep.subr.mxu0 0.0
    %5728 = vmatpush1.xpose.msra.mxu0 0.0
    %5729 = vmatprep.subr.mxu0 0.0
    %5730 = vmatpush1.xpose.msra.mxu0 0.0
    %5731 = vmatprep.subr.mxu0 0.0
    %5732 = vmatpush1.xpose.msra.mxu0 0.0
    %5733 = vmatprep.subr.mxu0 0.0
    %5734 = vmatpush1.xpose.msra.mxu0 0.0
    %5735 = vmatprep.subr.mxu0 0.0
    %5736 = vmatpush1.xpose.msra.mxu0 0.0
    %5737 = vmatprep.subr.mxu0 0.0
    %5738 = vmatpush1.xpose.msra.mxu0 0.0
    %5739 = vmatprep.subr.mxu0 0.0
    %5740 = vmatpush1.xpose.msra.mxu0 0.0
    %5741 = vmatprep.subr.mxu0 0.0
    %5742 = vmatpush1.xpose.msra.mxu0 0.0
    %5743 = vmatprep.subr.mxu0 0.0
    %5744 = vmatpush1.xpose.msra.mxu0 0.0
    %5745 = vmatprep.subr.mxu0 0.0
    %5746 = vmatpush1.xpose.msra.mxu0 0.0
    %5747 = vmatprep.subr.mxu0 0.0
    %5748 = vmatpush1.xpose.msra.mxu0 0.0
    %5749 = vmatprep.subr.mxu0 0.0
    %5750 = vmatpush1.xpose.msra.mxu0 0.0
    %5751 = vmatprep.subr.mxu0 0.0
    %5752 = vmatpush1.xpose.msra.mxu0 0.0
    %5753 = vmatprep.subr.mxu0 0.0
    %5754 = vmatpush1.xpose.msra.mxu0 0.0
    %5755 = vmatprep.subr.mxu0 0.0
    %5756 = vmatpush1.xpose.msra.mxu0 0.0
    %5757 = vmatprep.subr.mxu0 0.0
    %5758 = vmatpush1.xpose.msra.mxu0 0.0
    %5759 = vmatprep.subr.mxu0 0.0
    %5760 = vmatpush1.xpose.msra.mxu0 0.0
    %5761 = vmatprep.subr.mxu0 0.0
    %5762 = vmatpush1.xpose.msra.mxu0 0.0
    %5763 = vmatprep.subr.mxu0 0.0
    %5764 = vmatpush1.xpose.msra.mxu0 0.0
    %5765 = vmatprep.subr.mxu0 0.0
    %5766 = vmatpush1.xpose.msra.mxu0 0.0
    %5767 = vmatprep.mubr.f32.mxu0 0.0
    %5768 = vmatmul.mubr.f32.gmra.mrb[0].mxu0 %v5699
    %v5769 = vpop.f32.mrb[0].mxu0
    %v5770 = vadd.f32 %v236, %v5769
    %v5771 = vpop.f32.mrb[0].mxu0
    %5772 = vdwg.mxu0
    %v5773 = vsel %vm423, %v5692, -inf
    %5774 = vmax.xlane.f32.xlu0 %v5773
    %v5775 = vpop.xlane.xlu0 %5774
    %v5776 = vsel %vm423, %v5770, -inf
    %5777 = vmax.xlane.f32.xlu0 %v5776
    %v5778 = vpop.xlane.xlu0 %5777
    %v5779 = vsub.f32 %v5692, %v5775
    %v5780 = vsub.f32 %v5770, %v5778
    %v5781 = vmul.f32 %v5779, 1.442695
    %v5782 = vpow.pop %v5781
    %v5783 = vmul.f32 %v5780, 1.442695
    %v5784 = vpow.pop %v5783
    %v5785 = vsel %vm423, %v5782, 0.0
    %5786 = vadd.xlane.f32.xlu0 %v5785
    %v5787 = vpop.xlane.xlu0 %5786
    %v5788 = vsel %vm423, %v5784, 0.0
    %5789 = vadd.xlane.f32.xlu0 %v5788
    %v5790 = vpop.xlane.xlu0 %5789
    %v5791 = vrcp.pop %v5787
    %v5792 = vrcp.pop %v5790
    %v5793 = vmul.f32 %v5782, %v5791
    %v5794 = vmul.f32 %v5784, %v5792
    %5795 = vrot.lane.b32.xlu0 %v4357, 40
    %v5796 = vpop.permute.xlu0 %5795
    %v5799 = vsel %vm423, %v5793, 0
    %5801 = vmatprep.subr.mxu0 0.0
    %5802 = vmatpush1.msra.mxu0 %v5796
    %5803 = vmatprep.subr.mxu0 0.0
    %5804 = vmatpush1.msra.mxu0 0.0
    %5805 = vmatprep.subr.mxu0 0.0
    %5806 = vmatpush1.msra.mxu0 0.0
    %5807 = vmatprep.subr.mxu0 0.0
    %5808 = vmatpush1.msra.mxu0 0.0
    %5809 = vmatprep.subr.mxu0 0.0
    %5810 = vmatpush1.msra.mxu0 0.0
    %5811 = vmatprep.subr.mxu0 0.0
    %5812 = vmatpush1.msra.mxu0 0.0
    %5813 = vmatprep.subr.mxu0 0.0
    %5814 = vmatpush1.msra.mxu0 0.0
    %5815 = vmatprep.subr.mxu0 0.0
    %5816 = vmatpush1.msra.mxu0 0.0
    %5817 = vmatprep.subr.mxu0 0.0
    %5818 = vmatpush1.msra.mxu0 0.0
    %5819 = vmatprep.subr.mxu0 0.0
    %5820 = vmatpush1.msra.mxu0 0.0
    %5821 = vmatprep.subr.mxu0 0.0
    %5822 = vmatpush1.msra.mxu0 0.0
    %5823 = vmatprep.subr.mxu0 0.0
    %5824 = vmatpush1.msra.mxu0 0.0
    %5825 = vmatprep.subr.mxu0 0.0
    %5826 = vmatpush1.msra.mxu0 0.0
    %5827 = vmatprep.subr.mxu0 0.0
    %5828 = vmatpush1.msra.mxu0 0.0
    %5829 = vmatprep.subr.mxu0 0.0
    %5830 = vmatpush1.msra.mxu0 0.0
    %5831 = vmatprep.subr.mxu0 0.0
    %5832 = vmatpush1.msra.mxu0 0.0
    %5833 = vmatprep.subr.mxu0 0.0
    %5834 = vmatpush1.msra.mxu0 0.0
    %5835 = vmatprep.subr.mxu0 0.0
    %5836 = vmatpush1.msra.mxu0 0.0
    %5837 = vmatprep.subr.mxu0 0.0
    %5838 = vmatpush1.msra.mxu0 0.0
    %5839 = vmatprep.subr.mxu0 0.0
    %5840 = vmatpush1.msra.mxu0 0.0
    %5841 = vmatprep.subr.mxu0 0.0
    %5842 = vmatpush1.msra.mxu0 0.0
    %5843 = vmatprep.subr.mxu0 0.0
    %5844 = vmatpush1.msra.mxu0 0.0
    %5845 = vmatprep.subr.mxu0 0.0
    %5846 = vmatpush1.msra.mxu0 0.0
    %5847 = vmatprep.subr.mxu0 0.0
    %5848 = vmatpush1.msra.mxu0 0.0
    %5849 = vmatprep.subr.mxu0 0.0
    %5850 = vmatpush1.msra.mxu0 0.0
    %5851 = vmatprep.subr.mxu0 0.0
    %5852 = vmatpush1.msra.mxu0 0.0
    %5853 = vmatprep.subr.mxu0 0.0
    %5854 = vmatpush1.msra.mxu0 0.0
    %5855 = vmatprep.subr.mxu0 0.0
    %5856 = vmatpush1.msra.mxu0 0.0
    %5857 = vmatprep.subr.mxu0 0.0
    %5858 = vmatpush1.msra.mxu0 0.0
    %5859 = vmatprep.subr.mxu0 0.0
    %5860 = vmatpush1.msra.mxu0 0.0
    %5861 = vmatprep.subr.mxu0 0.0
    %5862 = vmatpush1.msra.mxu0 0.0
    %5863 = vmatprep.subr.mxu0 0.0
    %5864 = vmatpush1.msra.mxu0 0.0
    %5865 = vmatprep.mubr.f32.mxu0 0.0
    %5866 = vmatmul.mubr.f32.gmra.mrb[0].mxu0 %v5799
    %v5867 = vpop.f32.mrb[0].mxu0
    %v5868 = vadd.f32 0.0, %v5867
    %v5869 = vpop.f32.mrb[0].mxu0
    %5870 = vdwg.mxu0
    %5871 = vrot.lane.b32.xlu0 %v4362, 40
    %v5872 = vpop.permute.xlu0 %5871
    %v5875 = vsel %vm423, %v5794, 0
    %5877 = vmatprep.subr.mxu0 0.0
    %5878 = vmatpush1.msra.mxu0 %v5872
    %5879 = vmatprep.subr.mxu0 0.0
    %5880 = vmatpush1.msra.mxu0 0.0
    %5881 = vmatprep.subr.mxu0 0.0
    %5882 = vmatpush1.msra.mxu0 0.0
    %5883 = vmatprep.subr.mxu0 0.0
    %5884 = vmatpush1.msra.mxu0 0.0
    %5885 = vmatprep.subr.mxu0 0.0
    %5886 = vmatpush1.msra.mxu0 0.0
    %5887 = vmatprep.subr.mxu0 0.0
    %5888 = vmatpush1.msra.mxu0 0.0
    %5889 = vmatprep.subr.mxu0 0.0
    %5890 = vmatpush1.msra.mxu0 0.0
    %5891 = vmatprep.subr.mxu0 0.0
    %5892 = vmatpush1.msra.mxu0 0.0
    %5893 = vmatprep.subr.mxu0 0.0
    %5894 = vmatpush1.msra.mxu0 0.0
    %5895 = vmatprep.subr.mxu0 0.0
    %5896 = vmatpush1.msra.mxu0 0.0
    %5897 = vmatprep.subr.mxu0 0.0
    %5898 = vmatpush1.msra.mxu0 0.0
    %5899 = vmatprep.subr.mxu0 0.0
    %5900 = vmatpush1.msra.mxu0 0.0
    %5901 = vmatprep.subr.mxu0 0.0
    %5902 = vmatpush1.msra.mxu0 0.0
    %5903 = vmatprep.subr.mxu0 0.0
    %5904 = vmatpush1.msra.mxu0 0.0
    %5905 = vmatprep.subr.mxu0 0.0
    %5906 = vmatpush1.msra.mxu0 0.0
    %5907 = vmatprep.subr.mxu0 0.0
    %5908 = vmatpush1.msra.mxu0 0.0
    %5909 = vmatprep.subr.mxu0 0.0
    %5910 = vmatpush1.msra.mxu0 0.0
    %5911 = vmatprep.subr.mxu0 0.0
    %5912 = vmatpush1.msra.mxu0 0.0
    %5913 = vmatprep.subr.mxu0 0.0
    %5914 = vmatpush1.msra.mxu0 0.0
    %5915 = vmatprep.subr.mxu0 0.0
    %5916 = vmatpush1.msra.mxu0 0.0
    %5917 = vmatprep.subr.mxu0 0.0
    %5918 = vmatpush1.msra.mxu0 0.0
    %5919 = vmatprep.subr.mxu0 0.0
    %5920 = vmatpush1.msra.mxu0 0.0
    %5921 = vmatprep.subr.mxu0 0.0
    %5922 = vmatpush1.msra.mxu0 0.0
    %5923 = vmatprep.subr.mxu0 0.0
    %5924 = vmatpush1.msra.mxu0 0.0
    %5925 = vmatprep.subr.mxu0 0.0
    %5926 = vmatpush1.msra.mxu0 0.0
    %5927 = vmatprep.subr.mxu0 0.0
    %5928 = vmatpush1.msra.mxu0 0.0
    %5929 = vmatprep.subr.mxu0 0.0
    %5930 = vmatpush1.msra.mxu0 0.0
    %5931 = vmatprep.subr.mxu0 0.0
    %5932 = vmatpush1.msra.mxu0 0.0
    %5933 = vmatprep.subr.mxu0 0.0
    %5934 = vmatpush1.msra.mxu0 0.0
    %5935 = vmatprep.subr.mxu0 0.0
    %5936 = vmatpush1.msra.mxu0 0.0
    %5937 = vmatprep.subr.mxu0 0.0
    %5938 = vmatpush1.msra.mxu0 0.0
    %5939 = vmatprep.subr.mxu0 0.0
    %5940 = vmatpush1.msra.mxu0 0.0
    %5941 = vmatprep.mubr.f32.mxu0 0.0
    %5942 = vmatmul.mubr.f32.gmra.mrb[0].mxu0 %v5875
    %v5943 = vpop.f32.mrb[0].mxu0
    %v5944 = vadd.f32 0.0, %v5943
    %v5945 = vpop.f32.mrb[0].mxu0
    %5946 = vdwg.mxu0
    %v5948 = vsel %vm423, %v5868, 0
    %v5951 = vsel %vm423, %v5944, 0
    %5953 = vmatprep.subr.mxu0 0.0
    %5954 = vmatpush1.msra.mxu0 %v4369
    %5955 = vmatprep.subr.mxu0 0.0
    %5956 = vmatpush1.msra.mxu0 0.0
    %5957 = vmatprep.subr.mxu0 0.0
    %5958 = vmatpush1.msra.mxu0 0.0
    %5959 = vmatprep.subr.mxu0 0.0
    %5960 = vmatpush1.msra.mxu0 0.0
    %5961 = vmatprep.subr.mxu0 0.0
    %5962 = vmatpush1.msra.mxu0 0.0
    %5963 = vmatprep.subr.mxu0 0.0
    %5964 = vmatpush1.msra.mxu0 0.0
    %5965 = vmatprep.subr.mxu0 0.0
    %5966 = vmatpush1.msra.mxu0 0.0
    %5967 = vmatprep.subr.mxu0 0.0
    %5968 = vmatpush1.msra.mxu0 0.0
    %5969 = vmatprep.subr.mxu0 0.0
    %5970 = vmatpush1.msra.mxu0 0.0
    %5971 = vmatprep.subr.mxu0 0.0
    %5972 = vmatpush1.msra.mxu0 0.0
    %5973 = vmatprep.subr.mxu0 0.0
    %5974 = vmatpush1.msra.mxu0 0.0
    %5975 = vmatprep.subr.mxu0 0.0
    %5976 = vmatpush1.msra.mxu0 0.0
    %5977 = vmatprep.subr.mxu0 0.0
    %5978 = vmatpush1.msra.mxu0 0.0
    %5979 = vmatprep.subr.mxu0 0.0
    %5980 = vmatpush1.msra.mxu0 0.0
    %5981 = vmatprep.subr.mxu0 0.0
    %5982 = vmatpush1.msra.mxu0 0.0
    %5983 = vmatprep.subr.mxu0 0.0
    %5984 = vmatpush1.msra.mxu0 0.0
    %5985 = vmatprep.subr.mxu0 0.0
    %5986 = vmatpush1.msra.mxu0 0.0
    %5987 = vmatprep.subr.mxu0 0.0
    %5988 = vmatpush1.msra.mxu0 0.0
    %5989 = vmatprep.subr.mxu0 0.0
    %5990 = vmatpush1.msra.mxu0 0.0
    %5991 = vmatprep.subr.mxu0 0.0
    %5992 = vmatpush1.msra.mxu0 0.0
    %5993 = vmatprep.subr.mxu0 0.0
    %5994 = vmatpush1.msra.mxu0 0.0
    %5995 = vmatprep.subr.mxu0 0.0
    %5996 = vmatpush1.msra.mxu0 0.0
    %5997 = vmatprep.subr.mxu0 0.0
    %5998 = vmatpush1.msra.mxu0 0.0
    %5999 = vmatprep.subr.mxu0 0.0
    %6000 = vmatpush1.msra.mxu0 0.0
    %6001 = vmatprep.subr.mxu0 0.0
    %6002 = vmatpush1.msra.mxu0 0.0
    %6003 = vmatprep.subr.mxu0 0.0
    %6004 = vmatpush1.msra.mxu0 0.0
    %6005 = vmatprep.subr.mxu0 0.0
    %6006 = vmatpush1.msra.mxu0 0.0
    %6007 = vmatprep.subr.mxu0 0.0
    %6008 = vmatpush1.msra.mxu0 0.0
    %6009 = vmatprep.subr.mxu0 0.0
    %6010 = vmatpush1.msra.mxu0 0.0
    %6011 = vmatprep.subr.mxu0 0.0
    %6012 = vmatpush1.msra.mxu0 0.0
    %6013 = vmatprep.subr.mxu0 0.0
    %6014 = vmatpush1.msra.mxu0 0.0
    %6015 = vmatprep.subr.mxu0 0.0
    %6016 = vmatpush1.msra.mxu0 0.0
    %6017 = vmatprep.mubr.f32.mxu0 0.0
    %6018 = vmatmul.mubr.f32.gmra.mrb[0].mxu0 %v5948
    %v6019 = vpop.f32.mrb[0].mxu0
    %v6020 = vadd.f32 0.0, %v6019
    %v6021 = vpop.f32.mrb[0].mxu0
    %6022 = vmatprep.mubr.f32.mxu0 0.0
    %6023 = vmatmul.mubr.f32.gmra.mrb[0].mxu0 %v5951
    %v6024 = vpop.f32.mrb[0].mxu0
    %v6025 = vadd.f32 0.0, %v6024
    %v6026 = vpop.f32.mrb[0].mxu0
    %6027 = vdwg.mxu0
    %v6028 = vadd.f32 %v5615, %v6020
    %v6029 = vadd.f32 %v5616, %v6025
    %v6030 = vsel %vm261, %v6028, 0.0
    %6031 = vadd.xlane.f32.xlu0 %v6030
    %v6032 = vpop.xlane.xlu0 %6031
    %v6033 = vsel %vm261, %v6029, 0.0
    %6034 = vadd.xlane.f32.xlu0 %v6033
    %v6035 = vpop.xlane.xlu0 %6034
    %v6036 = vmul.f32 %v6032, %v268
    %v6037 = vmul.f32 %v6035, %v268
    %v6038 = vsub.f32 %v6028, %v6036
    %v6039 = vsub.f32 %v6029, %v6037
    %v6040 = vmul.f32 %v6038, %v6038
    %v6041 = vmul.f32 %v6039, %v6039
    %v6042 = vsel %vm261, %v6040, 0.0
    %6043 = vadd.xlane.f32.xlu0 %v6042
    %v6044 = vpop.xlane.xlu0 %6043
    %v6045 = vsel %vm261, %v6041, 0.0
    %6046 = vadd.xlane.f32.xlu0 %v6045
    %v6047 = vpop.xlane.xlu0 %6046
    %v6048 = vmul.f32 %v6044, 0.032258064
    %v6049 = vmul.f32 %v6047, 0.032258064
    %v6050 = vrsqrt.pop %v6048
    %v6051 = vmul.f32 %v6048, %v6050
    %vm6052 = vcmp.eq.f32.partialorder %v6048, inf
    %v6053 = vsel %vm6052, %v6048, %v6051
    %vm6054 = vcmp.eq.f32.partialorder %v6048, 0.0
    %v6055 = vand.u32 %v6048, 2147483648
    %v6056 = vsel %vm6054, %v6055, %v6053
    %v6057 = vrsqrt.pop %v6049
    %v6058 = vmul.f32 %v6049, %v6057
    %vm6059 = vcmp.eq.f32.partialorder %v6049, inf
    %v6060 = vsel %vm6059, %v6049, %v6058
    %vm6061 = vcmp.eq.f32.partialorder %v6049, 0.0
    %v6062 = vand.u32 %v6049, 2147483648
    %v6063 = vsel %vm6061, %v6062, %v6060
    %v6064 = vadd.f32 %v6056, 1e-06
    %v6065 = vadd.f32 %v6063, 1e-06
    %v6066 = vrcp.pop %v6064
    %v6067 = vrcp.pop %v6065
    %v6068 = vmul.f32 %v6038, %v6066
    %v6069 = vmul.f32 %v6039, %v6067
    %v6070 = vlaneseq
    %v6071 = vshrl.u32 %v6070, 7
    %v6072 = vsub.s32 1, %v6071
    %v6073 = vrot.slane %v4216, %v6072
    %v6074 = vmul.f32 %v6068, %v6073
    %v6075 = vmul.f32 %v6069, %v6073
    %v6076 = vlaneseq
    %v6077 = vshrl.u32 %v6076, 7
    %v6078 = vsub.s32 1, %v6077
    %v6079 = vrot.slane %v4218, %v6078
    %v6080 = vadd.f32 %v6074, %v6079
    %v6081 = vadd.f32 %v6075, %v6079
    %s6082 = scalar_lea.vmem %s8, 32
    %v6083 = vld [vmem:[%s6082] sm:$0xff]
    %v6084 = vld [vmem:[%s6082 + $0x8] sm:$0xff]
    %v6085 = vld [vmem:[%s6082 + $0x10] sm:$0xff]
    %v6086 = vld [vmem:[%s6082 + $0x18] sm:$0xff]
    %s6087 = scalar_lea.vmem [#allocation7], 1
    %v6088 = vld [vmem:[%s6087] sm:$0x1]
    %v6090 = vlaneseq
    %v6091 = vshrl.u32 %v6090, 7
    %v6092 = vsub.s32 0, %v6091
    %v6093 = vrot.slane %v6088, %v6092
    %v6096 = vsel %vm261, %v6080, 0
    %v6099 = vsel %vm261, %v6081, 0
    %6101 = vmatprep.subr.mxu0 0.0
    %6102 = vmatpush1.msra.mxu0 %v6083
    %6103 = vmatprep.subr.mxu0 0.0
    %6104 = vmatpush1.msra.mxu0 %v6084
    %6105 = vmatprep.subr.mxu0 0.0
    %6106 = vmatpush1.msra.mxu0 %v6085
    %6107 = vmatprep.subr.mxu0 0.0
    %6108 = vmatpush1.msra.mxu0 %v6086
    %6109 = vmatprep.subr.mxu0 0.0
    %6110 = vmatpush1.msra.mxu0 0.0
    %6111 = vmatprep.subr.mxu0 0.0
    %6112 = vmatpush1.msra.mxu0 0.0
    %6113 = vmatprep.subr.mxu0 0.0
    %6114 = vmatpush1.msra.mxu0 0.0
    %6115 = vmatprep.subr.mxu0 0.0
    %6116 = vmatpush1.msra.mxu0 0.0
    %6117 = vmatprep.subr.mxu0 0.0
    %6118 = vmatpush1.msra.mxu0 0.0
    %6119 = vmatprep.subr.mxu0 0.0
    %6120 = vmatpush1.msra.mxu0 0.0
    %6121 = vmatprep.subr.mxu0 0.0
    %6122 = vmatpush1.msra.mxu0 0.0
    %6123 = vmatprep.subr.mxu0 0.0
    %6124 = vmatpush1.msra.mxu0 0.0
    %6125 = vmatprep.subr.mxu0 0.0
    %6126 = vmatpush1.msra.mxu0 0.0
    %6127 = vmatprep.subr.mxu0 0.0
    %6128 = vmatpush1.msra.mxu0 0.0
    %6129 = vmatprep.subr.mxu0 0.0
    %6130 = vmatpush1.msra.mxu0 0.0
    %6131 = vmatprep.subr.mxu0 0.0
    %6132 = vmatpush1.msra.mxu0 0.0
    %6133 = vmatprep.subr.mxu0 0.0
    %6134 = vmatpush1.msra.mxu0 0.0
    %6135 = vmatprep.subr.mxu0 0.0
    %6136 = vmatpush1.msra.mxu0 0.0
    %6137 = vmatprep.subr.mxu0 0.0
    %6138 = vmatpush1.msra.mxu0 0.0
    %6139 = vmatprep.subr.mxu0 0.0
    %6140 = vmatpush1.msra.mxu0 0.0
    %6141 = vmatprep.subr.mxu0 0.0
    %6142 = vmatpush1.msra.mxu0 0.0
    %6143 = vmatprep.subr.mxu0 0.0
    %6144 = vmatpush1.msra.mxu0 0.0
    %6145 = vmatprep.subr.mxu0 0.0
    %6146 = vmatpush1.msra.mxu0 0.0
    %6147 = vmatprep.subr.mxu0 0.0
    %6148 = vmatpush1.msra.mxu0 0.0
    %6149 = vmatprep.subr.mxu0 0.0
    %6150 = vmatpush1.msra.mxu0 0.0
    %6151 = vmatprep.subr.mxu0 0.0
    %6152 = vmatpush1.msra.mxu0 0.0
    %6153 = vmatprep.subr.mxu0 0.0
    %6154 = vmatpush1.msra.mxu0 0.0
    %6155 = vmatprep.subr.mxu0 0.0
    %6156 = vmatpush1.msra.mxu0 0.0
    %6157 = vmatprep.subr.mxu0 0.0
    %6158 = vmatpush1.msra.mxu0 0.0
    %6159 = vmatprep.subr.mxu0 0.0
    %6160 = vmatpush1.msra.mxu0 0.0
    %6161 = vmatprep.subr.mxu0 0.0
    %6162 = vmatpush1.msra.mxu0 0.0
    %6163 = vmatprep.subr.mxu0 0.0
    %6164 = vmatpush1.msra.mxu0 0.0
    %6165 = vmatprep.mubr.f32.mxu0 0.0
    %6166 = vmatmul.mubr.f32.gmra.mrb[0].mxu0 %v6096
    %v6167 = vpop.f32.mrb[0].mxu0
    %v6168 = vadd.f32 %v6093, %v6167
    %v6169 = vpop.f32.mrb[0].mxu0
    %6170 = vmatprep.mubr.f32.mxu0 0.0
    %6171 = vmatmul.mubr.f32.gmra.mrb[0].mxu0 %v6099
    %v6172 = vpop.f32.mrb[0].mxu0
    %v6173 = vadd.f32 %v6093, %v6172
    %v6174 = vpop.f32.mrb[0].mxu0
    %6175 = vdwg.mxu0
    %s6176 = scalar_lea.vmem [#allocation8], 32
    %v6177 = vld [vmem:[%s6176] sm:$0xff]
    %v6178 = vld [vmem:[%s6176 + $0x8] sm:$0xff]
    %v6179 = vld [vmem:[%s6176 + $0x10] sm:$0xff]
    %v6180 = vld [vmem:[%s6176 + $0x18] sm:$0xff]
    %s6181 = scalar_lea.vmem [#allocation10], 1
    %v6182 = vld [vmem:[%s6181] sm:$0x1]
    %v6184 = vlaneseq
    %v6185 = vshrl.u32 %v6184, 7
    %v6186 = vsub.s32 0, %v6185
    %v6187 = vrot.slane %v6182, %v6186
    %6189 = vmatprep.subr.mxu0 0.0
    %6190 = vmatpush1.msra.mxu0 %v6177
    %6191 = vmatprep.subr.mxu0 0.0
    %6192 = vmatpush1.msra.mxu0 %v6178
    %6193 = vmatprep.subr.mxu0 0.0
    %6194 = vmatpush1.msra.mxu0 %v6179
    %6195 = vmatprep.subr.mxu0 0.0
    %6196 = vmatpush1.msra.mxu0 %v6180
    %6197 = vmatprep.subr.mxu0 0.0
    %6198 = vmatpush1.msra.mxu0 0.0
    %6199 = vmatprep.subr.mxu0 0.0
    %6200 = vmatpush1.msra.mxu0 0.0
    %6201 = vmatprep.subr.mxu0 0.0
    %6202 = vmatpush1.msra.mxu0 0.0
    %6203 = vmatprep.subr.mxu0 0.0
    %6204 = vmatpush1.msra.mxu0 0.0
    %6205 = vmatprep.subr.mxu0 0.0
    %6206 = vmatpush1.msra.mxu0 0.0
    %6207 = vmatprep.subr.mxu0 0.0
    %6208 = vmatpush1.msra.mxu0 0.0
    %6209 = vmatprep.subr.mxu0 0.0
    %6210 = vmatpush1.msra.mxu0 0.0
    %6211 = vmatprep.subr.mxu0 0.0
    %6212 = vmatpush1.msra.mxu0 0.0
    %6213 = vmatprep.subr.mxu0 0.0
    %6214 = vmatpush1.msra.mxu0 0.0
    %6215 = vmatprep.subr.mxu0 0.0
    %6216 = vmatpush1.msra.mxu0 0.0
    %6217 = vmatprep.subr.mxu0 0.0
    %6218 = vmatpush1.msra.mxu0 0.0
    %6219 = vmatprep.subr.mxu0 0.0
    %6220 = vmatpush1.msra.mxu0 0.0
    %6221 = vmatprep.subr.mxu0 0.0
    %6222 = vmatpush1.msra.mxu0 0.0
    %6223 = vmatprep.subr.mxu0 0.0
    %6224 = vmatpush1.msra.mxu0 0.0
    %6225 = vmatprep.subr.mxu0 0.0
    %6226 = vmatpush1.msra.mxu0 0.0
    %6227 = vmatprep.subr.mxu0 0.0
    %6228 = vmatpush1.msra.mxu0 0.0
    %6229 = vmatprep.subr.mxu0 0.0
    %6230 = vmatpush1.msra.mxu0 0.0
    %6231 = vmatprep.subr.mxu0 0.0
    %6232 = vmatpush1.msra.mxu0 0.0
    %6233 = vmatprep.subr.mxu0 0.0
    %6234 = vmatpush1.msra.mxu0 0.0
    %6235 = vmatprep.subr.mxu0 0.0
    %6236 = vmatpush1.msra.mxu0 0.0
    %6237 = vmatprep.subr.mxu0 0.0
    %6238 = vmatpush1.msra.mxu0 0.0
    %6239 = vmatprep.subr.mxu0 0.0
    %6240 = vmatpush1.msra.mxu0 0.0
    %6241 = vmatprep.subr.mxu0 0.0
    %6242 = vmatpush1.msra.mxu0 0.0
    %6243 = vmatprep.subr.mxu0 0.0
    %6244 = vmatpush1.msra.mxu0 0.0
    %6245 = vmatprep.subr.mxu0 0.0
    %6246 = vmatpush1.msra.mxu0 0.0
    %6247 = vmatprep.subr.mxu0 0.0
    %6248 = vmatpush1.msra.mxu0 0.0
    %6249 = vmatprep.subr.mxu0 0.0
    %6250 = vmatpush1.msra.mxu0 0.0
    %6251 = vmatprep.subr.mxu0 0.0
    %6252 = vmatpush1.msra.mxu0 0.0
    %6253 = vmatprep.mubr.f32.mxu0 0.0
    %6254 = vmatmul.mubr.f32.gmra.mrb[0].mxu0 %v2227
    %v6255 = vpop.f32.mrb[0].mxu0
    %v6256 = vadd.f32 %v6187, %v6255
    %v6257 = vpop.f32.mrb[0].mxu0
    %6258 = vmatprep.mubr.f32.mxu0 0.0
    %6259 = vmatmul.mubr.f32.gmra.mrb[0].mxu0 %v2230
    %v6260 = vpop.f32.mrb[0].mxu0
    %v6261 = vadd.f32 %v6187, %v6260
    %v6262 = vpop.f32.mrb[0].mxu0
    %6263 = vdwg.mxu0
    %s6264 = scalar_lea.vmem [#allocation11], 32
    %v6265 = vld [vmem:[%s6264] sm:$0xff]
    %v6266 = vld [vmem:[%s6264 + $0x8] sm:$0xff]
    %v6267 = vld [vmem:[%s6264 + $0x10] sm:$0xff]
    %v6268 = vld [vmem:[%s6264 + $0x18] sm:$0xff]
    %s6269 = scalar_lea.vmem [#allocation13], 1
    %v6270 = vld [vmem:[%s6269] sm:$0x1]
    %v6272 = vlaneseq
    %v6273 = vshrl.u32 %v6272, 7
    %v6274 = vsub.s32 0, %v6273
    %v6275 = vrot.slane %v6270, %v6274
    %v6277 = vadd.f32 %v6028, %v6275
    %v6278 = vadd.f32 %v6029, %v6275
    %v6280 = vsel %vm423, %v6168, 0
    %v6283 = vsel %vm423, %v6256, 0
    %6285 = vmatprep.subr.mxu0 0.0
    %6286 = vmatpush1.xpose.msra.mxu0 %v6283
    %6287 = vmatprep.subr.mxu0 0.0
    %6288 = vmatpush1.xpose.msra.mxu0 0.0
    %6289 = vmatprep.subr.mxu0 0.0
    %6290 = vmatpush1.xpose.msra.mxu0 0.0
    %6291 = vmatprep.subr.mxu0 0.0
    %6292 = vmatpush1.xpose.msra.mxu0 0.0
    %6293 = vmatprep.subr.mxu0 0.0
    %6294 = vmatpush1.xpose.msra.mxu0 0.0
    %6295 = vmatprep.subr.mxu0 0.0
    %6296 = vmatpush1.xpose.msra.mxu0 0.0
    %6297 = vmatprep.subr.mxu0 0.0
    %6298 = vmatpush1.xpose.msra.mxu0 0.0
    %6299 = vmatprep.subr.mxu0 0.0
    %6300 = vmatpush1.xpose.msra.mxu0 0.0
    %6301 = vmatprep.subr.mxu0 0.0
    %6302 = vmatpush1.xpose.msra.mxu0 0.0
    %6303 = vmatprep.subr.mxu0 0.0
    %6304 = vmatpush1.xpose.msra.mxu0 0.0
    %6305 = vmatprep.subr.mxu0 0.0
    %6306 = vmatpush1.xpose.msra.mxu0 0.0
    %6307 = vmatprep.subr.mxu0 0.0
    %6308 = vmatpush1.xpose.msra.mxu0 0.0
    %6309 = vmatprep.subr.mxu0 0.0
    %6310 = vmatpush1.xpose.msra.mxu0 0.0
    %6311 = vmatprep.subr.mxu0 0.0
    %6312 = vmatpush1.xpose.msra.mxu0 0.0
    %6313 = vmatprep.subr.mxu0 0.0
    %6314 = vmatpush1.xpose.msra.mxu0 0.0
    %6315 = vmatprep.subr.mxu0 0.0
    %6316 = vmatpush1.xpose.msra.mxu0 0.0
    %6317 = vmatprep.subr.mxu0 0.0
    %6318 = vmatpush1.xpose.msra.mxu0 0.0
    %6319 = vmatprep.subr.mxu0 0.0
    %6320 = vmatpush1.xpose.msra.mxu0 0.0
    %6321 = vmatprep.subr.mxu0 0.0
    %6322 = vmatpush1.xpose.msra.mxu0 0.0
    %6323 = vmatprep.subr.mxu0 0.0
    %6324 = vmatpush1.xpose.msra.mxu0 0.0
    %6325 = vmatprep.subr.mxu0 0.0
    %6326 = vmatpush1.xpose.msra.mxu0 0.0
    %6327 = vmatprep.subr.mxu0 0.0
    %6328 = vmatpush1.xpose.msra.mxu0 0.0
    %6329 = vmatprep.subr.mxu0 0.0
    %6330 = vmatpush1.xpose.msra.mxu0 0.0
    %6331 = vmatprep.subr.mxu0 0.0
    %6332 = vmatpush1.xpose.msra.mxu0 0.0
    %6333 = vmatprep.subr.mxu0 0.0
    %6334 = vmatpush1.xpose.msra.mxu0 0.0
    %6335 = vmatprep.subr.mxu0 0.0
    %6336 = vmatpush1.xpose.msra.mxu0 0.0
    %6337 = vmatprep.subr.mxu0 0.0
    %6338 = vmatpush1.xpose.msra.mxu0 0.0
    %6339 = vmatprep.subr.mxu0 0.0
    %6340 = vmatpush1.xpose.msra.mxu0 0.0
    %6341 = vmatprep.subr.mxu0 0.0
    %6342 = vmatpush1.xpose.msra.mxu0 0.0
    %6343 = vmatprep.subr.mxu0 0.0
    %6344 = vmatpush1.xpose.msra.mxu0 0.0
    %6345 = vmatprep.subr.mxu0 0.0
    %6346 = vmatpush1.xpose.msra.mxu0 0.0
    %6347 = vmatprep.subr.mxu0 0.0
    %6348 = vmatpush1.xpose.msra.mxu0 0.0
    %6349 = vmatprep.mubr.f32.mxu0 0.0
    %6350 = vmatmul.mubr.f32.gmra.mrb[0].mxu0 %v6280
    %v6351 = vpop.f32.mrb[0].mxu0
    %v6352 = vadd.f32 %v248, %v6351
    %v6353 = vpop.f32.mrb[0].mxu0
    %6354 = vdwg.mxu0
    %v6356 = vsel %vm423, %v6173, 0
    %v6359 = vsel %vm423, %v6261, 0
    %6361 = vmatprep.subr.mxu0 0.0
    %6362 = vmatpush1.xpose.msra.mxu0 %v6359
    %6363 = vmatprep.subr.mxu0 0.0
    %6364 = vmatpush1.xpose.msra.mxu0 0.0
    %6365 = vmatprep.subr.mxu0 0.0
    %6366 = vmatpush1.xpose.msra.mxu0 0.0
    %6367 = vmatprep.subr.mxu0 0.0
    %6368 = vmatpush1.xpose.msra.mxu0 0.0
    %6369 = vmatprep.subr.mxu0 0.0
    %6370 = vmatpush1.xpose.msra.mxu0 0.0
    %6371 = vmatprep.subr.mxu0 0.0
    %6372 = vmatpush1.xpose.msra.mxu0 0.0
    %6373 = vmatprep.subr.mxu0 0.0
    %6374 = vmatpush1.xpose.msra.mxu0 0.0
    %6375 = vmatprep.subr.mxu0 0.0
    %6376 = vmatpush1.xpose.msra.mxu0 0.0
    %6377 = vmatprep.subr.mxu0 0.0
    %6378 = vmatpush1.xpose.msra.mxu0 0.0
    %6379 = vmatprep.subr.mxu0 0.0
    %6380 = vmatpush1.xpose.msra.mxu0 0.0
    %6381 = vmatprep.subr.mxu0 0.0
    %6382 = vmatpush1.xpose.msra.mxu0 0.0
    %6383 = vmatprep.subr.mxu0 0.0
    %6384 = vmatpush1.xpose.msra.mxu0 0.0
    %6385 = vmatprep.subr.mxu0 0.0
    %6386 = vmatpush1.xpose.msra.mxu0 0.0
    %6387 = vmatprep.subr.mxu0 0.0
    %6388 = vmatpush1.xpose.msra.mxu0 0.0
    %6389 = vmatprep.subr.mxu0 0.0
    %6390 = vmatpush1.xpose.msra.mxu0 0.0
    %6391 = vmatprep.subr.mxu0 0.0
    %6392 = vmatpush1.xpose.msra.mxu0 0.0
    %6393 = vmatprep.subr.mxu0 0.0
    %6394 = vmatpush1.xpose.msra.mxu0 0.0
    %6395 = vmatprep.subr.mxu0 0.0
    %6396 = vmatpush1.xpose.msra.mxu0 0.0
    %6397 = vmatprep.subr.mxu0 0.0
    %6398 = vmatpush1.xpose.msra.mxu0 0.0
    %6399 = vmatprep.subr.mxu0 0.0
    %6400 = vmatpush1.xpose.msra.mxu0 0.0
    %6401 = vmatprep.subr.mxu0 0.0
    %6402 = vmatpush1.xpose.msra.mxu0 0.0
    %6403 = vmatprep.subr.mxu0 0.0
    %6404 = vmatpush1.xpose.msra.mxu0 0.0
    %6405 = vmatprep.subr.mxu0 0.0
    %6406 = vmatpush1.xpose.msra.mxu0 0.0
    %6407 = vmatprep.subr.mxu0 0.0
    %6408 = vmatpush1.xpose.msra.mxu0 0.0
    %6409 = vmatprep.subr.mxu0 0.0
    %6410 = vmatpush1.xpose.msra.mxu0 0.0
    %6411 = vmatprep.subr.mxu0 0.0
    %6412 = vmatpush1.xpose.msra.mxu0 0.0
    %6413 = vmatprep.subr.mxu0 0.0
    %6414 = vmatpush1.xpose.msra.mxu0 0.0
    %6415 = vmatprep.subr.mxu0 0.0
    %6416 = vmatpush1.xpose.msra.mxu0 0.0
    %6417 = vmatprep.subr.mxu0 0.0
    %6418 = vmatpush1.xpose.msra.mxu0 0.0
    %6419 = vmatprep.subr.mxu0 0.0
    %6420 = vmatpush1.xpose.msra.mxu0 0.0
    %6421 = vmatprep.subr.mxu0 0.0
    %6422 = vmatpush1.xpose.msra.mxu0 0.0
    %6423 = vmatprep.subr.mxu0 0.0
    %6424 = vmatpush1.xpose.msra.mxu0 0.0
    %6425 = vmatprep.mubr.f32.mxu0 0.0
    %6426 = vmatmul.mubr.f32.gmra.mrb[0].mxu0 %v6356
    %v6427 = vpop.f32.mrb[0].mxu0
    %v6428 = vadd.f32 %v252, %v6427
    %v6429 = vpop.f32.mrb[0].mxu0
    %6430 = vdwg.mxu0
    %v6431 = vsel %vm423, %v6352, -inf
    %6432 = vmax.xlane.f32.xlu0 %v6431
    %v6433 = vpop.xlane.xlu0 %6432
    %v6434 = vsel %vm423, %v6428, -inf
    %6435 = vmax.xlane.f32.xlu0 %v6434
    %v6436 = vpop.xlane.xlu0 %6435
    %v6437 = vsub.f32 %v6352, %v6433
    %v6438 = vsub.f32 %v6428, %v6436
    %v6439 = vmul.f32 %v6437, 1.442695
    %v6440 = vpow.pop %v6439
    %v6441 = vmul.f32 %v6438, 1.442695
    %v6442 = vpow.pop %v6441
    %v6443 = vsel %vm423, %v6440, 0.0
    %6444 = vadd.xlane.f32.xlu0 %v6443
    %v6445 = vpop.xlane.xlu0 %6444
    %v6446 = vsel %vm423, %v6442, 0.0
    %6447 = vadd.xlane.f32.xlu0 %v6446
    %v6448 = vpop.xlane.xlu0 %6447
    %v6449 = vrcp.pop %v6445
    %v6450 = vrcp.pop %v6448
    %v6451 = vmul.f32 %v6440, %v6449
    %v6452 = vmul.f32 %v6442, %v6450
    %6453 = vrot.lane.b32.xlu0 %v6256, 96
    %v6454 = vpop.permute.xlu0 %6453
    %v6457 = vsel %vm423, %v6451, 0
    %6459 = vmatprep.subr.mxu0 0.0
    %6460 = vmatpush1.msra.mxu0 %v6454
    %6461 = vmatprep.subr.mxu0 0.0
    %6462 = vmatpush1.msra.mxu0 0.0
    %6463 = vmatprep.subr.mxu0 0.0
    %6464 = vmatpush1.msra.mxu0 0.0
    %6465 = vmatprep.subr.mxu0 0.0
    %6466 = vmatpush1.msra.mxu0 0.0
    %6467 = vmatprep.subr.mxu0 0.0
    %6468 = vmatpush1.msra.mxu0 0.0
    %6469 = vmatprep.subr.mxu0 0.0
    %6470 = vmatpush1.msra.mxu0 0.0
    %6471 = vmatprep.subr.mxu0 0.0
    %6472 = vmatpush1.msra.mxu0 0.0
    %6473 = vmatprep.subr.mxu0 0.0
    %6474 = vmatpush1.msra.mxu0 0.0
    %6475 = vmatprep.subr.mxu0 0.0
    %6476 = vmatpush1.msra.mxu0 0.0
    %6477 = vmatprep.subr.mxu0 0.0
    %6478 = vmatpush1.msra.mxu0 0.0
    %6479 = vmatprep.subr.mxu0 0.0
    %6480 = vmatpush1.msra.mxu0 0.0
    %6481 = vmatprep.subr.mxu0 0.0
    %6482 = vmatpush1.msra.mxu0 0.0
    %6483 = vmatprep.subr.mxu0 0.0
    %6484 = vmatpush1.msra.mxu0 0.0
    %6485 = vmatprep.subr.mxu0 0.0
    %6486 = vmatpush1.msra.mxu0 0.0
    %6487 = vmatprep.subr.mxu0 0.0
    %6488 = vmatpush1.msra.mxu0 0.0
    %6489 = vmatprep.subr.mxu0 0.0
    %6490 = vmatpush1.msra.mxu0 0.0
    %6491 = vmatprep.subr.mxu0 0.0
    %6492 = vmatpush1.msra.mxu0 0.0
    %6493 = vmatprep.subr.mxu0 0.0
    %6494 = vmatpush1.msra.mxu0 0.0
    %6495 = vmatprep.subr.mxu0 0.0
    %6496 = vmatpush1.msra.mxu0 0.0
    %6497 = vmatprep.subr.mxu0 0.0
    %6498 = vmatpush1.msra.mxu0 0.0
    %6499 = vmatprep.subr.mxu0 0.0
    %6500 = vmatpush1.msra.mxu0 0.0
    %6501 = vmatprep.subr.mxu0 0.0
    %6502 = vmatpush1.msra.mxu0 0.0
    %6503 = vmatprep.subr.mxu0 0.0
    %6504 = vmatpush1.msra.mxu0 0.0
    %6505 = vmatprep.subr.mxu0 0.0
    %6506 = vmatpush1.msra.mxu0 0.0
    %6507 = vmatprep.subr.mxu0 0.0
    %6508 = vmatpush1.msra.mxu0 0.0
    %6509 = vmatprep.subr.mxu0 0.0
    %6510 = vmatpush1.msra.mxu0 0.0
    %6511 = vmatprep.subr.mxu0 0.0
    %6512 = vmatpush1.msra.mxu0 0.0
    %6513 = vmatprep.subr.mxu0 0.0
    %6514 = vmatpush1.msra.mxu0 0.0
    %6515 = vmatprep.subr.mxu0 0.0
    %6516 = vmatpush1.msra.mxu0 0.0
    %6517 = vmatprep.subr.mxu0 0.0
    %6518 = vmatpush1.msra.mxu0 0.0
    %6519 = vmatprep.subr.mxu0 0.0
    %6520 = vmatpush1.msra.mxu0 0.0
    %6521 = vmatprep.subr.mxu0 0.0
    %6522 = vmatpush1.msra.mxu0 0.0
    %6523 = vmatprep.mubr.f32.mxu0 0.0
    %6524 = vmatmul.mubr.f32.gmra.mrb[0].mxu0 %v6457
    %v6525 = vpop.f32.mrb[0].mxu0
    %v6526 = vadd.f32 0.0, %v6525
    %v6527 = vpop.f32.mrb[0].mxu0
    %6528 = vdwg.mxu0
    %6529 = vrot.lane.b32.xlu0 %v6261, 96
    %v6530 = vpop.permute.xlu0 %6529
    %v6533 = vsel %vm423, %v6452, 0
    %6535 = vmatprep.subr.mxu0 0.0
    %6536 = vmatpush1.msra.mxu0 %v6530
    %6537 = vmatprep.subr.mxu0 0.0
    %6538 = vmatpush1.msra.mxu0 0.0
    %6539 = vmatprep.subr.mxu0 0.0
    %6540 = vmatpush1.msra.mxu0 0.0
    %6541 = vmatprep.subr.mxu0 0.0
    %6542 = vmatpush1.msra.mxu0 0.0
    %6543 = vmatprep.subr.mxu0 0.0
    %6544 = vmatpush1.msra.mxu0 0.0
    %6545 = vmatprep.subr.mxu0 0.0
    %6546 = vmatpush1.msra.mxu0 0.0
    %6547 = vmatprep.subr.mxu0 0.0
    %6548 = vmatpush1.msra.mxu0 0.0
    %6549 = vmatprep.subr.mxu0 0.0
    %6550 = vmatpush1.msra.mxu0 0.0
    %6551 = vmatprep.subr.mxu0 0.0
    %6552 = vmatpush1.msra.mxu0 0.0
    %6553 = vmatprep.subr.mxu0 0.0
    %6554 = vmatpush1.msra.mxu0 0.0
    %6555 = vmatprep.subr.mxu0 0.0
    %6556 = vmatpush1.msra.mxu0 0.0
    %6557 = vmatprep.subr.mxu0 0.0
    %6558 = vmatpush1.msra.mxu0 0.0
    %6559 = vmatprep.subr.mxu0 0.0
    %6560 = vmatpush1.msra.mxu0 0.0
    %6561 = vmatprep.subr.mxu0 0.0
    %6562 = vmatpush1.msra.mxu0 0.0
    %6563 = vmatprep.subr.mxu0 0.0
    %6564 = vmatpush1.msra.mxu0 0.0
    %6565 = vmatprep.subr.mxu0 0.0
    %6566 = vmatpush1.msra.mxu0 0.0
    %6567 = vmatprep.subr.mxu0 0.0
    %6568 = vmatpush1.msra.mxu0 0.0
    %6569 = vmatprep.subr.mxu0 0.0
    %6570 = vmatpush1.msra.mxu0 0.0
    %6571 = vmatprep.subr.mxu0 0.0
    %6572 = vmatpush1.msra.mxu0 0.0
    %6573 = vmatprep.subr.mxu0 0.0
    %6574 = vmatpush1.msra.mxu0 0.0
    %6575 = vmatprep.subr.mxu0 0.0
    %6576 = vmatpush1.msra.mxu0 0.0
    %6577 = vmatprep.subr.mxu0 0.0
    %6578 = vmatpush1.msra.mxu0 0.0
    %6579 = vmatprep.subr.mxu0 0.0
    %6580 = vmatpush1.msra.mxu0 0.0
    %6581 = vmatprep.subr.mxu0 0.0
    %6582 = vmatpush1.msra.mxu0 0.0
    %6583 = vmatprep.subr.mxu0 0.0
    %6584 = vmatpush1.msra.mxu0 0.0
    %6585 = vmatprep.subr.mxu0 0.0
    %6586 = vmatpush1.msra.mxu0 0.0
    %6587 = vmatprep.subr.mxu0 0.0
    %6588 = vmatpush1.msra.mxu0 0.0
    %6589 = vmatprep.subr.mxu0 0.0
    %6590 = vmatpush1.msra.mxu0 0.0
    %6591 = vmatprep.subr.mxu0 0.0
    %6592 = vmatpush1.msra.mxu0 0.0
    %6593 = vmatprep.subr.mxu0 0.0
    %6594 = vmatpush1.msra.mxu0 0.0
    %6595 = vmatprep.subr.mxu0 0.0
    %6596 = vmatpush1.msra.mxu0 0.0
    %6597 = vmatprep.subr.mxu0 0.0
    %6598 = vmatpush1.msra.mxu0 0.0
    %6599 = vmatprep.mubr.f32.mxu0 0.0
    %6600 = vmatmul.mubr.f32.gmra.mrb[0].mxu0 %v6533
    %v6601 = vpop.f32.mrb[0].mxu0
    %v6602 = vadd.f32 0.0, %v6601
    %v6603 = vpop.f32.mrb[0].mxu0
    %6604 = vdwg.mxu0
    %v6606 = vsel %vm423, %v6526, 0
    %v6609 = vsel %vm423, %v6602, 0
    %6611 = vmatprep.subr.mxu0 0.0
    %6612 = vmatpush1.msra.mxu0 %v6265
    %6613 = vmatprep.subr.mxu0 0.0
    %6614 = vmatpush1.msra.mxu0 0.0
    %6615 = vmatprep.subr.mxu0 0.0
    %6616 = vmatpush1.msra.mxu0 0.0
    %6617 = vmatprep.subr.mxu0 0.0
    %6618 = vmatpush1.msra.mxu0 0.0
    %6619 = vmatprep.subr.mxu0 0.0
    %6620 = vmatpush1.msra.mxu0 0.0
    %6621 = vmatprep.subr.mxu0 0.0
    %6622 = vmatpush1.msra.mxu0 0.0
    %6623 = vmatprep.subr.mxu0 0.0
    %6624 = vmatpush1.msra.mxu0 0.0
    %6625 = vmatprep.subr.mxu0 0.0
    %6626 = vmatpush1.msra.mxu0 0.0
    %6627 = vmatprep.subr.mxu0 0.0
    %6628 = vmatpush1.msra.mxu0 0.0
    %6629 = vmatprep.subr.mxu0 0.0
    %6630 = vmatpush1.msra.mxu0 0.0
    %6631 = vmatprep.subr.mxu0 0.0
    %6632 = vmatpush1.msra.mxu0 0.0
    %6633 = vmatprep.subr.mxu0 0.0
    %6634 = vmatpush1.msra.mxu0 0.0
    %6635 = vmatprep.subr.mxu0 0.0
    %6636 = vmatpush1.msra.mxu0 0.0
    %6637 = vmatprep.subr.mxu0 0.0
    %6638 = vmatpush1.msra.mxu0 0.0
    %6639 = vmatprep.subr.mxu0 0.0
    %6640 = vmatpush1.msra.mxu0 0.0
    %6641 = vmatprep.subr.mxu0 0.0
    %6642 = vmatpush1.msra.mxu0 0.0
    %6643 = vmatprep.subr.mxu0 0.0
    %6644 = vmatpush1.msra.mxu0 0.0
    %6645 = vmatprep.subr.mxu0 0.0
    %6646 = vmatpush1.msra.mxu0 0.0
    %6647 = vmatprep.subr.mxu0 0.0
    %6648 = vmatpush1.msra.mxu0 0.0
    %6649 = vmatprep.subr.mxu0 0.0
    %6650 = vmatpush1.msra.mxu0 0.0
    %6651 = vmatprep.subr.mxu0 0.0
    %6652 = vmatpush1.msra.mxu0 0.0
    %6653 = vmatprep.subr.mxu0 0.0
    %6654 = vmatpush1.msra.mxu0 0.0
    %6655 = vmatprep.subr.mxu0 0.0
    %6656 = vmatpush1.msra.mxu0 0.0
    %6657 = vmatprep.subr.mxu0 0.0
    %6658 = vmatpush1.msra.mxu0 0.0
    %6659 = vmatprep.subr.mxu0 0.0
    %6660 = vmatpush1.msra.mxu0 0.0
    %6661 = vmatprep.subr.mxu0 0.0
    %6662 = vmatpush1.msra.mxu0 0.0
    %6663 = vmatprep.subr.mxu0 0.0
    %6664 = vmatpush1.msra.mxu0 0.0
    %6665 = vmatprep.subr.mxu0 0.0
    %6666 = vmatpush1.msra.mxu0 0.0
    %6667 = vmatprep.subr.mxu0 0.0
    %6668 = vmatpush1.msra.mxu0 0.0
    %6669 = vmatprep.subr.mxu0 0.0
    %6670 = vmatpush1.msra.mxu0 0.0
    %6671 = vmatprep.subr.mxu0 0.0
    %6672 = vmatpush1.msra.mxu0 0.0
    %6673 = vmatprep.subr.mxu0 0.0
    %6674 = vmatpush1.msra.mxu0 0.0
    %6675 = vmatprep.mubr.f32.mxu0 0.0
    %6676 = vmatmul.mubr.f32.gmra.mrb[0].mxu0 %v6606
    %v6677 = vpop.f32.mrb[0].mxu0
    %v6678 = vadd.f32 0.0, %v6677
    %v6679 = vpop.f32.mrb[0].mxu0
    %6680 = vmatprep.mubr.f32.mxu0 0.0
    %6681 = vmatmul.mubr.f32.gmra.mrb[0].mxu0 %v6609
    %v6682 = vpop.f32.mrb[0].mxu0
    %v6683 = vadd.f32 0.0, %v6682
    %v6684 = vpop.f32.mrb[0].mxu0
    %6685 = vdwg.mxu0
    %v6686 = vadd.f32 %v6277, %v6678
    %v6687 = vadd.f32 %v6278, %v6683
    %6688 = vrot.lane.b32.xlu0 %v6168, 120
    %v6689 = vpop.permute.xlu0 %6688
    %6690 = vrot.lane.b32.xlu0 %v6256, 120
    %v6691 = vpop.permute.xlu0 %6690
    %v6692 = vsel %vm423, %v6689, 0
    %v6694 = vsel %vm423, %v6691, 0
    %6696 = vmatprep.subr.mxu0 0.0
    %6697 = vmatpush1.xpose.msra.mxu0 %v6694
    %6698 = vmatprep.subr.mxu0 0.0
    %6699 = vmatpush1.xpose.msra.mxu0 0.0
    %6700 = vmatprep.subr.mxu0 0.0
    %6701 = vmatpush1.xpose.msra.mxu0 0.0
    %6702 = vmatprep.subr.mxu0 0.0
    %6703 = vmatpush1.xpose.msra.mxu0 0.0
    %6704 = vmatprep.subr.mxu0 0.0
    %6705 = vmatpush1.xpose.msra.mxu0 0.0
    %6706 = vmatprep.subr.mxu0 0.0
    %6707 = vmatpush1.xpose.msra.mxu0 0.0
    %6708 = vmatprep.subr.mxu0 0.0
    %6709 = vmatpush1.xpose.msra.mxu0 0.0
    %6710 = vmatprep.subr.mxu0 0.0
    %6711 = vmatpush1.xpose.msra.mxu0 0.0
    %6712 = vmatprep.subr.mxu0 0.0
    %6713 = vmatpush1.xpose.msra.mxu0 0.0
    %6714 = vmatprep.subr.mxu0 0.0
    %6715 = vmatpush1.xpose.msra.mxu0 0.0
    %6716 = vmatprep.subr.mxu0 0.0
    %6717 = vmatpush1.xpose.msra.mxu0 0.0
    %6718 = vmatprep.subr.mxu0 0.0
    %6719 = vmatpush1.xpose.msra.mxu0 0.0
    %6720 = vmatprep.subr.mxu0 0.0
    %6721 = vmatpush1.xpose.msra.mxu0 0.0
    %6722 = vmatprep.subr.mxu0 0.0
    %6723 = vmatpush1.xpose.msra.mxu0 0.0
    %6724 = vmatprep.subr.mxu0 0.0
    %6725 = vmatpush1.xpose.msra.mxu0 0.0
    %6726 = vmatprep.subr.mxu0 0.0
    %6727 = vmatpush1.xpose.msra.mxu0 0.0
    %6728 = vmatprep.subr.mxu0 0.0
    %6729 = vmatpush1.xpose.msra.mxu0 0.0
    %6730 = vmatprep.subr.mxu0 0.0
    %6731 = vmatpush1.xpose.msra.mxu0 0.0
    %6732 = vmatprep.subr.mxu0 0.0
    %6733 = vmatpush1.xpose.msra.mxu0 0.0
    %6734 = vmatprep.subr.mxu0 0.0
    %6735 = vmatpush1.xpose.msra.mxu0 0.0
    %6736 = vmatprep.subr.mxu0 0.0
    %6737 = vmatpush1.xpose.msra.mxu0 0.0
    %6738 = vmatprep.subr.mxu0 0.0
    %6739 = vmatpush1.xpose.msra.mxu0 0.0
    %6740 = vmatprep.subr.mxu0 0.0
    %6741 = vmatpush1.xpose.msra.mxu0 0.0
    %6742 = vmatprep.subr.mxu0 0.0
    %6743 = vmatpush1.xpose.msra.mxu0 0.0
    %6744 = vmatprep.subr.mxu0 0.0
    %6745 = vmatpush1.xpose.msra.mxu0 0.0
    %6746 = vmatprep.subr.mxu0 0.0
    %6747 = vmatpush1.xpose.msra.mxu0 0.0
    %6748 = vmatprep.subr.mxu0 0.0
    %6749 = vmatpush1.xpose.msra.mxu0 0.0
    %6750 = vmatprep.subr.mxu0 0.0
    %6751 = vmatpush1.xpose.msra.mxu0 0.0
    %6752 = vmatprep.subr.mxu0 0.0
    %6753 = vmatpush1.xpose.msra.mxu0 0.0
    %6754 = vmatprep.subr.mxu0 0.0
    %6755 = vmatpush1.xpose.msra.mxu0 0.0
    %6756 = vmatprep.subr.mxu0 0.0
    %6757 = vmatpush1.xpose.msra.mxu0 0.0
    %6758 = vmatprep.subr.mxu0 0.0
    %6759 = vmatpush1.xpose.msra.mxu0 0.0
    %6760 = vmatprep.mubr.f32.mxu0 0.0
    %6761 = vmatmul.mubr.f32.gmra.mrb[0].mxu0 %v6692
    %v6762 = vpop.f32.mrb[0].mxu0
    %v6763 = vadd.f32 %v248, %v6762
    %v6764 = vpop.f32.mrb[0].mxu0
    %6765 = vdwg.mxu0
    %6766 = vrot.lane.b32.xlu0 %v6173, 120
    %v6767 = vpop.permute.xlu0 %6766
    %6768 = vrot.lane.b32.xlu0 %v6261, 120
    %v6769 = vpop.permute.xlu0 %6768
    %v6770 = vsel %vm423, %v6767, 0
    %v6772 = vsel %vm423, %v6769, 0
    %6774 = vmatprep.subr.mxu0 0.0
    %6775 = vmatpush1.xpose.msra.mxu0 %v6772
    %6776 = vmatprep.subr.mxu0 0.0
    %6777 = vmatpush1.xpose.msra.mxu0 0.0
    %6778 = vmatprep.subr.mxu0 0.0
    %6779 = vmatpush1.xpose.msra.mxu0 0.0
    %6780 = vmatprep.subr.mxu0 0.0
    %6781 = vmatpush1.xpose.msra.mxu0 0.0
    %6782 = vmatprep.subr.mxu0 0.0
    %6783 = vmatpush1.xpose.msra.mxu0 0.0
    %6784 = vmatprep.subr.mxu0 0.0
    %6785 = vmatpush1.xpose.msra.mxu0 0.0
    %6786 = vmatprep.subr.mxu0 0.0
    %6787 = vmatpush1.xpose.msra.mxu0 0.0
    %6788 = vmatprep.subr.mxu0 0.0
    %6789 = vmatpush1.xpose.msra.mxu0 0.0
    %6790 = vmatprep.subr.mxu0 0.0
    %6791 = vmatpush1.xpose.msra.mxu0 0.0
    %6792 = vmatprep.subr.mxu0 0.0
    %6793 = vmatpush1.xpose.msra.mxu0 0.0
    %6794 = vmatprep.subr.mxu0 0.0
    %6795 = vmatpush1.xpose.msra.mxu0 0.0
    %6796 = vmatprep.subr.mxu0 0.0
    %6797 = vmatpush1.xpose.msra.mxu0 0.0
    %6798 = vmatprep.subr.mxu0 0.0
    %6799 = vmatpush1.xpose.msra.mxu0 0.0
    %6800 = vmatprep.subr.mxu0 0.0
    %6801 = vmatpush1.xpose.msra.mxu0 0.0
    %6802 = vmatprep.subr.mxu0 0.0
    %6803 = vmatpush1.xpose.msra.mxu0 0.0
    %6804 = vmatprep.subr.mxu0 0.0
    %6805 = vmatpush1.xpose.msra.mxu0 0.0
    %6806 = vmatprep.subr.mxu0 0.0
    %6807 = vmatpush1.xpose.msra.mxu0 0.0
    %6808 = vmatprep.subr.mxu0 0.0
    %6809 = vmatpush1.xpose.msra.mxu0 0.0
    %6810 = vmatprep.subr.mxu0 0.0
    %6811 = vmatpush1.xpose.msra.mxu0 0.0
    %6812 = vmatprep.subr.mxu0 0.0
    %6813 = vmatpush1.xpose.msra.mxu0 0.0
    %6814 = vmatprep.subr.mxu0 0.0
    %6815 = vmatpush1.xpose.msra.mxu0 0.0
    %6816 = vmatprep.subr.mxu0 0.0
    %6817 = vmatpush1.xpose.msra.mxu0 0.0
    %6818 = vmatprep.subr.mxu0 0.0
    %6819 = vmatpush1.xpose.msra.mxu0 0.0
    %6820 = vmatprep.subr.mxu0 0.0
    %6821 = vmatpush1.xpose.msra.mxu0 0.0
    %6822 = vmatprep.subr.mxu0 0.0
    %6823 = vmatpush1.xpose.msra.mxu0 0.0
    %6824 = vmatprep.subr.mxu0 0.0
    %6825 = vmatpush1.xpose.msra.mxu0 0.0
    %6826 = vmatprep.subr.mxu0 0.0
    %6827 = vmatpush1.xpose.msra.mxu0 0.0
    %6828 = vmatprep.subr.mxu0 0.0
    %6829 = vmatpush1.xpose.msra.mxu0 0.0
    %6830 = vmatprep.subr.mxu0 0.0
    %6831 = vmatpush1.xpose.msra.mxu0 0.0
    %6832 = vmatprep.subr.mxu0 0.0
    %6833 = vmatpush1.xpose.msra.mxu0 0.0
    %6834 = vmatprep.subr.mxu0 0.0
    %6835 = vmatpush1.xpose.msra.mxu0 0.0
    %6836 = vmatprep.subr.mxu0 0.0
    %6837 = vmatpush1.xpose.msra.mxu0 0.0
    %6838 = vmatprep.mubr.f32.mxu0 0.0
    %6839 = vmatmul.mubr.f32.gmra.mrb[0].mxu0 %v6770
    %v6840 = vpop.f32.mrb[0].mxu0
    %v6841 = vadd.f32 %v252, %v6840
    %v6842 = vpop.f32.mrb[0].mxu0
    %6843 = vdwg.mxu0
    %v6844 = vsel %vm423, %v6763, -inf
    %6845 = vmax.xlane.f32.xlu0 %v6844
    %v6846 = vpop.xlane.xlu0 %6845
    %v6847 = vsel %vm423, %v6841, -inf
    %6848 = vmax.xlane.f32.xlu0 %v6847
    %v6849 = vpop.xlane.xlu0 %6848
    %v6850 = vsub.f32 %v6763, %v6846
    %v6851 = vsub.f32 %v6841, %v6849
    %v6852 = vmul.f32 %v6850, 1.442695
    %v6853 = vpow.pop %v6852
    %v6854 = vmul.f32 %v6851, 1.442695
    %v6855 = vpow.pop %v6854
    %v6856 = vsel %vm423, %v6853, 0.0
    %6857 = vadd.xlane.f32.xlu0 %v6856
    %v6858 = vpop.xlane.xlu0 %6857
    %v6859 = vsel %vm423, %v6855, 0.0
    %6860 = vadd.xlane.f32.xlu0 %v6859
    %v6861 = vpop.xlane.xlu0 %6860
    %v6862 = vrcp.pop %v6858
    %v6863 = vrcp.pop %v6861
    %v6864 = vmul.f32 %v6853, %v6862
    %v6865 = vmul.f32 %v6855, %v6863
    %6866 = vrot.lane.b32.xlu0 %v6256, 88
    %v6867 = vpop.permute.xlu0 %6866
    %v6870 = vsel %vm423, %v6864, 0
    %6872 = vmatprep.subr.mxu0 0.0
    %6873 = vmatpush1.msra.mxu0 %v6867
    %6874 = vmatprep.subr.mxu0 0.0
    %6875 = vmatpush1.msra.mxu0 0.0
    %6876 = vmatprep.subr.mxu0 0.0
    %6877 = vmatpush1.msra.mxu0 0.0
    %6878 = vmatprep.subr.mxu0 0.0
    %6879 = vmatpush1.msra.mxu0 0.0
    %6880 = vmatprep.subr.mxu0 0.0
    %6881 = vmatpush1.msra.mxu0 0.0
    %6882 = vmatprep.subr.mxu0 0.0
    %6883 = vmatpush1.msra.mxu0 0.0
    %6884 = vmatprep.subr.mxu0 0.0
    %6885 = vmatpush1.msra.mxu0 0.0
    %6886 = vmatprep.subr.mxu0 0.0
    %6887 = vmatpush1.msra.mxu0 0.0
    %6888 = vmatprep.subr.mxu0 0.0
    %6889 = vmatpush1.msra.mxu0 0.0
    %6890 = vmatprep.subr.mxu0 0.0
    %6891 = vmatpush1.msra.mxu0 0.0
    %6892 = vmatprep.subr.mxu0 0.0
    %6893 = vmatpush1.msra.mxu0 0.0
    %6894 = vmatprep.subr.mxu0 0.0
    %6895 = vmatpush1.msra.mxu0 0.0
    %6896 = vmatprep.subr.mxu0 0.0
    %6897 = vmatpush1.msra.mxu0 0.0
    %6898 = vmatprep.subr.mxu0 0.0
    %6899 = vmatpush1.msra.mxu0 0.0
    %6900 = vmatprep.subr.mxu0 0.0
    %6901 = vmatpush1.msra.mxu0 0.0
    %6902 = vmatprep.subr.mxu0 0.0
    %6903 = vmatpush1.msra.mxu0 0.0
    %6904 = vmatprep.subr.mxu0 0.0
    %6905 = vmatpush1.msra.mxu0 0.0
    %6906 = vmatprep.subr.mxu0 0.0
    %6907 = vmatpush1.msra.mxu0 0.0
    %6908 = vmatprep.subr.mxu0 0.0
    %6909 = vmatpush1.msra.mxu0 0.0
    %6910 = vmatprep.subr.mxu0 0.0
    %6911 = vmatpush1.msra.mxu0 0.0
    %6912 = vmatprep.subr.mxu0 0.0
    %6913 = vmatpush1.msra.mxu0 0.0
    %6914 = vmatprep.subr.mxu0 0.0
    %6915 = vmatpush1.msra.mxu0 0.0
    %6916 = vmatprep.subr.mxu0 0.0
    %6917 = vmatpush1.msra.mxu0 0.0
    %6918 = vmatprep.subr.mxu0 0.0
    %6919 = vmatpush1.msra.mxu0 0.0
    %6920 = vmatprep.subr.mxu0 0.0
    %6921 = vmatpush1.msra.mxu0 0.0
    %6922 = vmatprep.subr.mxu0 0.0
    %6923 = vmatpush1.msra.mxu0 0.0
    %6924 = vmatprep.subr.mxu0 0.0
    %6925 = vmatpush1.msra.mxu0 0.0
    %6926 = vmatprep.subr.mxu0 0.0
    %6927 = vmatpush1.msra.mxu0 0.0
    %6928 = vmatprep.subr.mxu0 0.0
    %6929 = vmatpush1.msra.mxu0 0.0
    %6930 = vmatprep.subr.mxu0 0.0
    %6931 = vmatpush1.msra.mxu0 0.0
    %6932 = vmatprep.subr.mxu0 0.0
    %6933 = vmatpush1.msra.mxu0 0.0
    %6934 = vmatprep.subr.mxu0 0.0
    %6935 = vmatpush1.msra.mxu0 0.0
    %6936 = vmatprep.mubr.f32.mxu0 0.0
    %6937 = vmatmul.mubr.f32.gmra.mrb[0].mxu0 %v6870
    %v6938 = vpop.f32.mrb[0].mxu0
    %v6939 = vadd.f32 0.0, %v6938
    %v6940 = vpop.f32.mrb[0].mxu0
    %6941 = vdwg.mxu0
    %6942 = vrot.lane.b32.xlu0 %v6261, 88
    %v6943 = vpop.permute.xlu0 %6942
    %v6946 = vsel %vm423, %v6865, 0
    %6948 = vmatprep.subr.mxu0 0.0
    %6949 = vmatpush1.msra.mxu0 %v6943
    %6950 = vmatprep.subr.mxu0 0.0
    %6951 = vmatpush1.msra.mxu0 0.0
    %6952 = vmatprep.subr.mxu0 0.0
    %6953 = vmatpush1.msra.mxu0 0.0
    %6954 = vmatprep.subr.mxu0 0.0
    %6955 = vmatpush1.msra.mxu0 0.0
    %6956 = vmatprep.subr.mxu0 0.0
    %6957 = vmatpush1.msra.mxu0 0.0
    %6958 = vmatprep.subr.mxu0 0.0
    %6959 = vmatpush1.msra.mxu0 0.0
    %6960 = vmatprep.subr.mxu0 0.0
    %6961 = vmatpush1.msra.mxu0 0.0
    %6962 = vmatprep.subr.mxu0 0.0
    %6963 = vmatpush1.msra.mxu0 0.0
    %6964 = vmatprep.subr.mxu0 0.0
    %6965 = vmatpush1.msra.mxu0 0.0
    %6966 = vmatprep.subr.mxu0 0.0
    %6967 = vmatpush1.msra.mxu0 0.0
    %6968 = vmatprep.subr.mxu0 0.0
    %6969 = vmatpush1.msra.mxu0 0.0
    %6970 = vmatprep.subr.mxu0 0.0
    %6971 = vmatpush1.msra.mxu0 0.0
    %6972 = vmatprep.subr.mxu0 0.0
    %6973 = vmatpush1.msra.mxu0 0.0
    %6974 = vmatprep.subr.mxu0 0.0
    %6975 = vmatpush1.msra.mxu0 0.0
    %6976 = vmatprep.subr.mxu0 0.0
    %6977 = vmatpush1.msra.mxu0 0.0
    %6978 = vmatprep.subr.mxu0 0.0
    %6979 = vmatpush1.msra.mxu0 0.0
    %6980 = vmatprep.subr.mxu0 0.0
    %6981 = vmatpush1.msra.mxu0 0.0
    %6982 = vmatprep.subr.mxu0 0.0
    %6983 = vmatpush1.msra.mxu0 0.0
    %6984 = vmatprep.subr.mxu0 0.0
    %6985 = vmatpush1.msra.mxu0 0.0
    %6986 = vmatprep.subr.mxu0 0.0
    %6987 = vmatpush1.msra.mxu0 0.0
    %6988 = vmatprep.subr.mxu0 0.0
    %6989 = vmatpush1.msra.mxu0 0.0
    %6990 = vmatprep.subr.mxu0 0.0
    %6991 = vmatpush1.msra.mxu0 0.0
    %6992 = vmatprep.subr.mxu0 0.0
    %6993 = vmatpush1.msra.mxu0 0.0
    %6994 = vmatprep.subr.mxu0 0.0
    %6995 = vmatpush1.msra.mxu0 0.0
    %6996 = vmatprep.subr.mxu0 0.0
    %6997 = vmatpush1.msra.mxu0 0.0
    %6998 = vmatprep.subr.mxu0 0.0
    %6999 = vmatpush1.msra.mxu0 0.0
    %7000 = vmatprep.subr.mxu0 0.0
    %7001 = vmatpush1.msra.mxu0 0.0
    %7002 = vmatprep.subr.mxu0 0.0
    %7003 = vmatpush1.msra.mxu0 0.0
    %7004 = vmatprep.subr.mxu0 0.0
    %7005 = vmatpush1.msra.mxu0 0.0
    %7006 = vmatprep.subr.mxu0 0.0
    %7007 = vmatpush1.msra.mxu0 0.0
    %7008 = vmatprep.subr.mxu0 0.0
    %7009 = vmatpush1.msra.mxu0 0.0
    %7010 = vmatprep.subr.mxu0 0.0
    %7011 = vmatpush1.msra.mxu0 0.0
    %7012 = vmatprep.mubr.f32.mxu0 0.0
    %7013 = vmatmul.mubr.f32.gmra.mrb[0].mxu0 %v6946
    %v7014 = vpop.f32.mrb[0].mxu0
    %v7015 = vadd.f32 0.0, %v7014
    %v7016 = vpop.f32.mrb[0].mxu0
    %7017 = vdwg.mxu0
    %v7019 = vsel %vm423, %v6939, 0
    %v7022 = vsel %vm423, %v7015, 0
    %7024 = vmatprep.subr.mxu0 0.0
    %7025 = vmatpush1.msra.mxu0 %v6266
    %7026 = vmatprep.subr.mxu0 0.0
    %7027 = vmatpush1.msra.mxu0 0.0
    %7028 = vmatprep.subr.mxu0 0.0
    %7029 = vmatpush1.msra.mxu0 0.0
    %7030 = vmatprep.subr.mxu0 0.0
    %7031 = vmatpush1.msra.mxu0 0.0
    %7032 = vmatprep.subr.mxu0 0.0
    %7033 = vmatpush1.msra.mxu0 0.0
    %7034 = vmatprep.subr.mxu0 0.0
    %7035 = vmatpush1.msra.mxu0 0.0
    %7036 = vmatprep.subr.mxu0 0.0
    %7037 = vmatpush1.msra.mxu0 0.0
    %7038 = vmatprep.subr.mxu0 0.0
    %7039 = vmatpush1.msra.mxu0 0.0
    %7040 = vmatprep.subr.mxu0 0.0
    %7041 = vmatpush1.msra.mxu0 0.0
    %7042 = vmatprep.subr.mxu0 0.0
    %7043 = vmatpush1.msra.mxu0 0.0
    %7044 = vmatprep.subr.mxu0 0.0
    %7045 = vmatpush1.msra.mxu0 0.0
    %7046 = vmatprep.subr.mxu0 0.0
    %7047 = vmatpush1.msra.mxu0 0.0
    %7048 = vmatprep.subr.mxu0 0.0
    %7049 = vmatpush1.msra.mxu0 0.0
    %7050 = vmatprep.subr.mxu0 0.0
    %7051 = vmatpush1.msra.mxu0 0.0
    %7052 = vmatprep.subr.mxu0 0.0
    %7053 = vmatpush1.msra.mxu0 0.0
    %7054 = vmatprep.subr.mxu0 0.0
    %7055 = vmatpush1.msra.mxu0 0.0
    %7056 = vmatprep.subr.mxu0 0.0
    %7057 = vmatpush1.msra.mxu0 0.0
    %7058 = vmatprep.subr.mxu0 0.0
    %7059 = vmatpush1.msra.mxu0 0.0
    %7060 = vmatprep.subr.mxu0 0.0
    %7061 = vmatpush1.msra.mxu0 0.0
    %7062 = vmatprep.subr.mxu0 0.0
    %7063 = vmatpush1.msra.mxu0 0.0
    %7064 = vmatprep.subr.mxu0 0.0
    %7065 = vmatpush1.msra.mxu0 0.0
    %7066 = vmatprep.subr.mxu0 0.0
    %7067 = vmatpush1.msra.mxu0 0.0
    %7068 = vmatprep.subr.mxu0 0.0
    %7069 = vmatpush1.msra.mxu0 0.0
    %7070 = vmatprep.subr.mxu0 0.0
    %7071 = vmatpush1.msra.mxu0 0.0
    %7072 = vmatprep.subr.mxu0 0.0
    %7073 = vmatpush1.msra.mxu0 0.0
    %7074 = vmatprep.subr.mxu0 0.0
    %7075 = vmatpush1.msra.mxu0 0.0
    %7076 = vmatprep.subr.mxu0 0.0
    %7077 = vmatpush1.msra.mxu0 0.0
    %7078 = vmatprep.subr.mxu0 0.0
    %7079 = vmatpush1.msra.mxu0 0.0
    %7080 = vmatprep.subr.mxu0 0.0
    %7081 = vmatpush1.msra.mxu0 0.0
    %7082 = vmatprep.subr.mxu0 0.0
    %7083 = vmatpush1.msra.mxu0 0.0
    %7084 = vmatprep.subr.mxu0 0.0
    %7085 = vmatpush1.msra.mxu0 0.0
    %7086 = vmatprep.subr.mxu0 0.0
    %7087 = vmatpush1.msra.mxu0 0.0
    %7088 = vmatprep.mubr.f32.mxu0 0.0
    %7089 = vmatmul.mubr.f32.gmra.mrb[0].mxu0 %v7019
    %v7090 = vpop.f32.mrb[0].mxu0
    %v7091 = vadd.f32 0.0, %v7090
    %v7092 = vpop.f32.mrb[0].mxu0
    %7093 = vmatprep.mubr.f32.mxu0 0.0
    %7094 = vmatmul.mubr.f32.gmra.mrb[0].mxu0 %v7022
    %v7095 = vpop.f32.mrb[0].mxu0
    %v7096 = vadd.f32 0.0, %v7095
    %v7097 = vpop.f32.mrb[0].mxu0
    %7098 = vdwg.mxu0
    %v7099 = vadd.f32 %v6686, %v7091
    %v7100 = vadd.f32 %v6687, %v7096
    %7101 = vrot.lane.b32.xlu0 %v6168, 112
    %v7102 = vpop.permute.xlu0 %7101
    %7103 = vrot.lane.b32.xlu0 %v6256, 112
    %v7104 = vpop.permute.xlu0 %7103
    %v7105 = vsel %vm423, %v7102, 0
    %v7107 = vsel %vm423, %v7104, 0
    %7109 = vmatprep.subr.mxu0 0.0
    %7110 = vmatpush1.xpose.msra.mxu0 %v7107
    %7111 = vmatprep.subr.mxu0 0.0
    %7112 = vmatpush1.xpose.msra.mxu0 0.0
    %7113 = vmatprep.subr.mxu0 0.0
    %7114 = vmatpush1.xpose.msra.mxu0 0.0
    %7115 = vmatprep.subr.mxu0 0.0
    %7116 = vmatpush1.xpose.msra.mxu0 0.0
    %7117 = vmatprep.subr.mxu0 0.0
    %7118 = vmatpush1.xpose.msra.mxu0 0.0
    %7119 = vmatprep.subr.mxu0 0.0
    %7120 = vmatpush1.xpose.msra.mxu0 0.0
    %7121 = vmatprep.subr.mxu0 0.0
    %7122 = vmatpush1.xpose.msra.mxu0 0.0
    %7123 = vmatprep.subr.mxu0 0.0
    %7124 = vmatpush1.xpose.msra.mxu0 0.0
    %7125 = vmatprep.subr.mxu0 0.0
    %7126 = vmatpush1.xpose.msra.mxu0 0.0
    %7127 = vmatprep.subr.mxu0 0.0
    %7128 = vmatpush1.xpose.msra.mxu0 0.0
    %7129 = vmatprep.subr.mxu0 0.0
    %7130 = vmatpush1.xpose.msra.mxu0 0.0
    %7131 = vmatprep.subr.mxu0 0.0
    %7132 = vmatpush1.xpose.msra.mxu0 0.0
    %7133 = vmatprep.subr.mxu0 0.0
    %7134 = vmatpush1.xpose.msra.mxu0 0.0
    %7135 = vmatprep.subr.mxu0 0.0
    %7136 = vmatpush1.xpose.msra.mxu0 0.0
    %7137 = vmatprep.subr.mxu0 0.0
    %7138 = vmatpush1.xpose.msra.mxu0 0.0
    %7139 = vmatprep.subr.mxu0 0.0
    %7140 = vmatpush1.xpose.msra.mxu0 0.0
    %7141 = vmatprep.subr.mxu0 0.0
    %7142 = vmatpush1.xpose.msra.mxu0 0.0
    %7143 = vmatprep.subr.mxu0 0.0
    %7144 = vmatpush1.xpose.msra.mxu0 0.0
    %7145 = vmatprep.subr.mxu0 0.0
    %7146 = vmatpush1.xpose.msra.mxu0 0.0
    %7147 = vmatprep.subr.mxu0 0.0
    %7148 = vmatpush1.xpose.msra.mxu0 0.0
    %7149 = vmatprep.subr.mxu0 0.0
    %7150 = vmatpush1.xpose.msra.mxu0 0.0
    %7151 = vmatprep.subr.mxu0 0.0
    %7152 = vmatpush1.xpose.msra.mxu0 0.0
    %7153 = vmatprep.subr.mxu0 0.0
    %7154 = vmatpush1.xpose.msra.mxu0 0.0
    %7155 = vmatprep.subr.mxu0 0.0
    %7156 = vmatpush1.xpose.msra.mxu0 0.0
    %7157 = vmatprep.subr.mxu0 0.0
    %7158 = vmatpush1.xpose.msra.mxu0 0.0
    %7159 = vmatprep.subr.mxu0 0.0
    %7160 = vmatpush1.xpose.msra.mxu0 0.0
    %7161 = vmatprep.subr.mxu0 0.0
    %7162 = vmatpush1.xpose.msra.mxu0 0.0
    %7163 = vmatprep.subr.mxu0 0.0
    %7164 = vmatpush1.xpose.msra.mxu0 0.0
    %7165 = vmatprep.subr.mxu0 0.0
    %7166 = vmatpush1.xpose.msra.mxu0 0.0
    %7167 = vmatprep.subr.mxu0 0.0
    %7168 = vmatpush1.xpose.msra.mxu0 0.0
    %7169 = vmatprep.subr.mxu0 0.0
    %7170 = vmatpush1.xpose.msra.mxu0 0.0
    %7171 = vmatprep.subr.mxu0 0.0
    %7172 = vmatpush1.xpose.msra.mxu0 0.0
    %7173 = vmatprep.mubr.f32.mxu0 0.0
    %7174 = vmatmul.mubr.f32.gmra.mrb[0].mxu0 %v7105
    %v7175 = vpop.f32.mrb[0].mxu0
    %v7176 = vadd.f32 %v248, %v7175
    %v7177 = vpop.f32.mrb[0].mxu0
    %7178 = vdwg.mxu0
    %7179 = vrot.lane.b32.xlu0 %v6173, 112
    %v7180 = vpop.permute.xlu0 %7179
    %7181 = vrot.lane.b32.xlu0 %v6261, 112
    %v7182 = vpop.permute.xlu0 %7181
    %v7183 = vsel %vm423, %v7180, 0
    %v7185 = vsel %vm423, %v7182, 0
    %7187 = vmatprep.subr.mxu0 0.0
    %7188 = vmatpush1.xpose.msra.mxu0 %v7185
    %7189 = vmatprep.subr.mxu0 0.0
    %7190 = vmatpush1.xpose.msra.mxu0 0.0
    %7191 = vmatprep.subr.mxu0 0.0
    %7192 = vmatpush1.xpose.msra.mxu0 0.0
    %7193 = vmatprep.subr.mxu0 0.0
    %7194 = vmatpush1.xpose.msra.mxu0 0.0
    %7195 = vmatprep.subr.mxu0 0.0
    %7196 = vmatpush1.xpose.msra.mxu0 0.0
    %7197 = vmatprep.subr.mxu0 0.0
    %7198 = vmatpush1.xpose.msra.mxu0 0.0
    %7199 = vmatprep.subr.mxu0 0.0
    %7200 = vmatpush1.xpose.msra.mxu0 0.0
    %7201 = vmatprep.subr.mxu0 0.0
    %7202 = vmatpush1.xpose.msra.mxu0 0.0
    %7203 = vmatprep.subr.mxu0 0.0
    %7204 = vmatpush1.xpose.msra.mxu0 0.0
    %7205 = vmatprep.subr.mxu0 0.0
    %7206 = vmatpush1.xpose.msra.mxu0 0.0
    %7207 = vmatprep.subr.mxu0 0.0
    %7208 = vmatpush1.xpose.msra.mxu0 0.0
    %7209 = vmatprep.subr.mxu0 0.0
    %7210 = vmatpush1.xpose.msra.mxu0 0.0
    %7211 = vmatprep.subr.mxu0 0.0
    %7212 = vmatpush1.xpose.msra.mxu0 0.0
    %7213 = vmatprep.subr.mxu0 0.0
    %7214 = vmatpush1.xpose.msra.mxu0 0.0
    %7215 = vmatprep.subr.mxu0 0.0
    %7216 = vmatpush1.xpose.msra.mxu0 0.0
    %7217 = vmatprep.subr.mxu0 0.0
    %7218 = vmatpush1.xpose.msra.mxu0 0.0
    %7219 = vmatprep.subr.mxu0 0.0
    %7220 = vmatpush1.xpose.msra.mxu0 0.0
    %7221 = vmatprep.subr.mxu0 0.0
    %7222 = vmatpush1.xpose.msra.mxu0 0.0
    %7223 = vmatprep.subr.mxu0 0.0
    %7224 = vmatpush1.xpose.msra.mxu0 0.0
    %7225 = vmatprep.subr.mxu0 0.0
    %7226 = vmatpush1.xpose.msra.mxu0 0.0
    %7227 = vmatprep.subr.mxu0 0.0
    %7228 = vmatpush1.xpose.msra.mxu0 0.0
    %7229 = vmatprep.subr.mxu0 0.0
    %7230 = vmatpush1.xpose.msra.mxu0 0.0
    %7231 = vmatprep.subr.mxu0 0.0
    %7232 = vmatpush1.xpose.msra.mxu0 0.0
    %7233 = vmatprep.subr.mxu0 0.0
    %7234 = vmatpush1.xpose.msra.mxu0 0.0
    %7235 = vmatprep.subr.mxu0 0.0
    %7236 = vmatpush1.xpose.msra.mxu0 0.0
    %7237 = vmatprep.subr.mxu0 0.0
    %7238 = vmatpush1.xpose.msra.mxu0 0.0
    %7239 = vmatprep.subr.mxu0 0.0
    %7240 = vmatpush1.xpose.msra.mxu0 0.0
    %7241 = vmatprep.subr.mxu0 0.0
    %7242 = vmatpush1.xpose.msra.mxu0 0.0
    %7243 = vmatprep.subr.mxu0 0.0
    %7244 = vmatpush1.xpose.msra.mxu0 0.0
    %7245 = vmatprep.subr.mxu0 0.0
    %7246 = vmatpush1.xpose.msra.mxu0 0.0
    %7247 = vmatprep.subr.mxu0 0.0
    %7248 = vmatpush1.xpose.msra.mxu0 0.0
    %7249 = vmatprep.subr.mxu0 0.0
    %7250 = vmatpush1.xpose.msra.mxu0 0.0
    %7251 = vmatprep.mubr.f32.mxu0 0.0
    %7252 = vmatmul.mubr.f32.gmra.mrb[0].mxu0 %v7183
    %v7253 = vpop.f32.mrb[0].mxu0
    %v7254 = vadd.f32 %v252, %v7253
    %v7255 = vpop.f32.mrb[0].mxu0
    %7256 = vdwg.mxu0
    %v7257 = vsel %vm423, %v7176, -inf
    %7258 = vmax.xlane.f32.xlu0 %v7257
    %v7259 = vpop.xlane.xlu0 %7258
    %v7260 = vsel %vm423, %v7254, -inf
    %7261 = vmax.xlane.f32.xlu0 %v7260
    %v7262 = vpop.xlane.xlu0 %7261
    %v7263 = vsub.f32 %v7176, %v7259
    %v7264 = vsub.f32 %v7254, %v7262
    %v7265 = vmul.f32 %v7263, 1.442695
    %v7266 = vpow.pop %v7265
    %v7267 = vmul.f32 %v7264, 1.442695
    %v7268 = vpow.pop %v7267
    %v7269 = vsel %vm423, %v7266, 0.0
    %7270 = vadd.xlane.f32.xlu0 %v7269
    %v7271 = vpop.xlane.xlu0 %7270
    %v7272 = vsel %vm423, %v7268, 0.0
    %7273 = vadd.xlane.f32.xlu0 %v7272
    %v7274 = vpop.xlane.xlu0 %7273
    %v7275 = vrcp.pop %v7271
    %v7276 = vrcp.pop %v7274
    %v7277 = vmul.f32 %v7266, %v7275
    %v7278 = vmul.f32 %v7268, %v7276
    %7279 = vrot.lane.b32.xlu0 %v6256, 80
    %v7280 = vpop.permute.xlu0 %7279
    %v7283 = vsel %vm423, %v7277, 0
    %7285 = vmatprep.subr.mxu0 0.0
    %7286 = vmatpush1.msra.mxu0 %v7280
    %7287 = vmatprep.subr.mxu0 0.0
    %7288 = vmatpush1.msra.mxu0 0.0
    %7289 = vmatprep.subr.mxu0 0.0
    %7290 = vmatpush1.msra.mxu0 0.0
    %7291 = vmatprep.subr.mxu0 0.0
    %7292 = vmatpush1.msra.mxu0 0.0
    %7293 = vmatprep.subr.mxu0 0.0
    %7294 = vmatpush1.msra.mxu0 0.0
    %7295 = vmatprep.subr.mxu0 0.0
    %7296 = vmatpush1.msra.mxu0 0.0
    %7297 = vmatprep.subr.mxu0 0.0
    %7298 = vmatpush1.msra.mxu0 0.0
    %7299 = vmatprep.subr.mxu0 0.0
    %7300 = vmatpush1.msra.mxu0 0.0
    %7301 = vmatprep.subr.mxu0 0.0
    %7302 = vmatpush1.msra.mxu0 0.0
    %7303 = vmatprep.subr.mxu0 0.0
    %7304 = vmatpush1.msra.mxu0 0.0
    %7305 = vmatprep.subr.mxu0 0.0
    %7306 = vmatpush1.msra.mxu0 0.0
    %7307 = vmatprep.subr.mxu0 0.0
    %7308 = vmatpush1.msra.mxu0 0.0
    %7309 = vmatprep.subr.mxu0 0.0
    %7310 = vmatpush1.msra.mxu0 0.0
    %7311 = vmatprep.subr.mxu0 0.0
    %7312 = vmatpush1.msra.mxu0 0.0
    %7313 = vmatprep.subr.mxu0 0.0
    %7314 = vmatpush1.msra.mxu0 0.0
    %7315 = vmatprep.subr.mxu0 0.0
    %7316 = vmatpush1.msra.mxu0 0.0
    %7317 = vmatprep.subr.mxu0 0.0
    %7318 = vmatpush1.msra.mxu0 0.0
    %7319 = vmatprep.subr.mxu0 0.0
    %7320 = vmatpush1.msra.mxu0 0.0
    %7321 = vmatprep.subr.mxu0 0.0
    %7322 = vmatpush1.msra.mxu0 0.0
    %7323 = vmatprep.subr.mxu0 0.0
    %7324 = vmatpush1.msra.mxu0 0.0
    %7325 = vmatprep.subr.mxu0 0.0
    %7326 = vmatpush1.msra.mxu0 0.0
    %7327 = vmatprep.subr.mxu0 0.0
    %7328 = vmatpush1.msra.mxu0 0.0
    %7329 = vmatprep.subr.mxu0 0.0
    %7330 = vmatpush1.msra.mxu0 0.0
    %7331 = vmatprep.subr.mxu0 0.0
    %7332 = vmatpush1.msra.mxu0 0.0
    %7333 = vmatprep.subr.mxu0 0.0
    %7334 = vmatpush1.msra.mxu0 0.0
    %7335 = vmatprep.subr.mxu0 0.0
    %7336 = vmatpush1.msra.mxu0 0.0
    %7337 = vmatprep.subr.mxu0 0.0
    %7338 = vmatpush1.msra.mxu0 0.0
    %7339 = vmatprep.subr.mxu0 0.0
    %7340 = vmatpush1.msra.mxu0 0.0
    %7341 = vmatprep.subr.mxu0 0.0
    %7342 = vmatpush1.msra.mxu0 0.0
    %7343 = vmatprep.subr.mxu0 0.0
    %7344 = vmatpush1.msra.mxu0 0.0
    %7345 = vmatprep.subr.mxu0 0.0
    %7346 = vmatpush1.msra.mxu0 0.0
    %7347 = vmatprep.subr.mxu0 0.0
    %7348 = vmatpush1.msra.mxu0 0.0
    %7349 = vmatprep.mubr.f32.mxu0 0.0
    %7350 = vmatmul.mubr.f32.gmra.mrb[0].mxu0 %v7283
    %v7351 = vpop.f32.mrb[0].mxu0
    %v7352 = vadd.f32 0.0, %v7351
    %v7353 = vpop.f32.mrb[0].mxu0
    %7354 = vdwg.mxu0
    %7355 = vrot.lane.b32.xlu0 %v6261, 80
    %v7356 = vpop.permute.xlu0 %7355
    %v7359 = vsel %vm423, %v7278, 0
    %7361 = vmatprep.subr.mxu0 0.0
    %7362 = vmatpush1.msra.mxu0 %v7356
    %7363 = vmatprep.subr.mxu0 0.0
    %7364 = vmatpush1.msra.mxu0 0.0
    %7365 = vmatprep.subr.mxu0 0.0
    %7366 = vmatpush1.msra.mxu0 0.0
    %7367 = vmatprep.subr.mxu0 0.0
    %7368 = vmatpush1.msra.mxu0 0.0
    %7369 = vmatprep.subr.mxu0 0.0
    %7370 = vmatpush1.msra.mxu0 0.0
    %7371 = vmatprep.subr.mxu0 0.0
    %7372 = vmatpush1.msra.mxu0 0.0
    %7373 = vmatprep.subr.mxu0 0.0
    %7374 = vmatpush1.msra.mxu0 0.0
    %7375 = vmatprep.subr.mxu0 0.0
    %7376 = vmatpush1.msra.mxu0 0.0
    %7377 = vmatprep.subr.mxu0 0.0
    %7378 = vmatpush1.msra.mxu0 0.0
    %7379 = vmatprep.subr.mxu0 0.0
    %7380 = vmatpush1.msra.mxu0 0.0
    %7381 = vmatprep.subr.mxu0 0.0
    %7382 = vmatpush1.msra.mxu0 0.0
    %7383 = vmatprep.subr.mxu0 0.0
    %7384 = vmatpush1.msra.mxu0 0.0
    %7385 = vmatprep.subr.mxu0 0.0
    %7386 = vmatpush1.msra.mxu0 0.0
    %7387 = vmatprep.subr.mxu0 0.0
    %7388 = vmatpush1.msra.mxu0 0.0
    %7389 = vmatprep.subr.mxu0 0.0
    %7390 = vmatpush1.msra.mxu0 0.0
    %7391 = vmatprep.subr.mxu0 0.0
    %7392 = vmatpush1.msra.mxu0 0.0
    %7393 = vmatprep.subr.mxu0 0.0
    %7394 = vmatpush1.msra.mxu0 0.0
    %7395 = vmatprep.subr.mxu0 0.0
    %7396 = vmatpush1.msra.mxu0 0.0
    %7397 = vmatprep.subr.mxu0 0.0
    %7398 = vmatpush1.msra.mxu0 0.0
    %7399 = vmatprep.subr.mxu0 0.0
    %7400 = vmatpush1.msra.mxu0 0.0
    %7401 = vmatprep.subr.mxu0 0.0
    %7402 = vmatpush1.msra.mxu0 0.0
    %7403 = vmatprep.subr.mxu0 0.0
    %7404 = vmatpush1.msra.mxu0 0.0
    %7405 = vmatprep.subr.mxu0 0.0
    %7406 = vmatpush1.msra.mxu0 0.0
    %7407 = vmatprep.subr.mxu0 0.0
    %7408 = vmatpush1.msra.mxu0 0.0
    %7409 = vmatprep.subr.mxu0 0.0
    %7410 = vmatpush1.msra.mxu0 0.0
    %7411 = vmatprep.subr.mxu0 0.0
    %7412 = vmatpush1.msra.mxu0 0.0
    %7413 = vmatprep.subr.mxu0 0.0
    %7414 = vmatpush1.msra.mxu0 0.0
    %7415 = vmatprep.subr.mxu0 0.0
    %7416 = vmatpush1.msra.mxu0 0.0
    %7417 = vmatprep.subr.mxu0 0.0
    %7418 = vmatpush1.msra.mxu0 0.0
    %7419 = vmatprep.subr.mxu0 0.0
    %7420 = vmatpush1.msra.mxu0 0.0
    %7421 = vmatprep.subr.mxu0 0.0
    %7422 = vmatpush1.msra.mxu0 0.0
    %7423 = vmatprep.subr.mxu0 0.0
    %7424 = vmatpush1.msra.mxu0 0.0
    %7425 = vmatprep.mubr.f32.mxu0 0.0
    %7426 = vmatmul.mubr.f32.gmra.mrb[0].mxu0 %v7359
    %v7427 = vpop.f32.mrb[0].mxu0
    %v7428 = vadd.f32 0.0, %v7427
    %v7429 = vpop.f32.mrb[0].mxu0
    %7430 = vdwg.mxu0
    %v7432 = vsel %vm423, %v7352, 0
    %v7435 = vsel %vm423, %v7428, 0
    %7437 = vmatprep.subr.mxu0 0.0
    %7438 = vmatpush1.msra.mxu0 %v6267
    %7439 = vmatprep.subr.mxu0 0.0
    %7440 = vmatpush1.msra.mxu0 0.0
    %7441 = vmatprep.subr.mxu0 0.0
    %7442 = vmatpush1.msra.mxu0 0.0
    %7443 = vmatprep.subr.mxu0 0.0
    %7444 = vmatpush1.msra.mxu0 0.0
    %7445 = vmatprep.subr.mxu0 0.0
    %7446 = vmatpush1.msra.mxu0 0.0
    %7447 = vmatprep.subr.mxu0 0.0
    %7448 = vmatpush1.msra.mxu0 0.0
    %7449 = vmatprep.subr.mxu0 0.0
    %7450 = vmatpush1.msra.mxu0 0.0
    %7451 = vmatprep.subr.mxu0 0.0
    %7452 = vmatpush1.msra.mxu0 0.0
    %7453 = vmatprep.subr.mxu0 0.0
    %7454 = vmatpush1.msra.mxu0 0.0
    %7455 = vmatprep.subr.mxu0 0.0
    %7456 = vmatpush1.msra.mxu0 0.0
    %7457 = vmatprep.subr.mxu0 0.0
    %7458 = vmatpush1.msra.mxu0 0.0
    %7459 = vmatprep.subr.mxu0 0.0
    %7460 = vmatpush1.msra.mxu0 0.0
    %7461 = vmatprep.subr.mxu0 0.0
    %7462 = vmatpush1.msra.mxu0 0.0
    %7463 = vmatprep.subr.mxu0 0.0
    %7464 = vmatpush1.msra.mxu0 0.0
    %7465 = vmatprep.subr.mxu0 0.0
    %7466 = vmatpush1.msra.mxu0 0.0
    %7467 = vmatprep.subr.mxu0 0.0
    %7468 = vmatpush1.msra.mxu0 0.0
    %7469 = vmatprep.subr.mxu0 0.0
    %7470 = vmatpush1.msra.mxu0 0.0
    %7471 = vmatprep.subr.mxu0 0.0
    %7472 = vmatpush1.msra.mxu0 0.0
    %7473 = vmatprep.subr.mxu0 0.0
    %7474 = vmatpush1.msra.mxu0 0.0
    %7475 = vmatprep.subr.mxu0 0.0
    %7476 = vmatpush1.msra.mxu0 0.0
    %7477 = vmatprep.subr.mxu0 0.0
    %7478 = vmatpush1.msra.mxu0 0.0
    %7479 = vmatprep.subr.mxu0 0.0
    %7480 = vmatpush1.msra.mxu0 0.0
    %7481 = vmatprep.subr.mxu0 0.0
    %7482 = vmatpush1.msra.mxu0 0.0
    %7483 = vmatprep.subr.mxu0 0.0
    %7484 = vmatpush1.msra.mxu0 0.0
    %7485 = vmatprep.subr.mxu0 0.0
    %7486 = vmatpush1.msra.mxu0 0.0
    %7487 = vmatprep.subr.mxu0 0.0
    %7488 = vmatpush1.msra.mxu0 0.0
    %7489 = vmatprep.subr.mxu0 0.0
    %7490 = vmatpush1.msra.mxu0 0.0
    %7491 = vmatprep.subr.mxu0 0.0
    %7492 = vmatpush1.msra.mxu0 0.0
    %7493 = vmatprep.subr.mxu0 0.0
    %7494 = vmatpush1.msra.mxu0 0.0
    %7495 = vmatprep.subr.mxu0 0.0
    %7496 = vmatpush1.msra.mxu0 0.0
    %7497 = vmatprep.subr.mxu0 0.0
    %7498 = vmatpush1.msra.mxu0 0.0
    %7499 = vmatprep.subr.mxu0 0.0
    %7500 = vmatpush1.msra.mxu0 0.0
    %7501 = vmatprep.mubr.f32.mxu0 0.0
    %7502 = vmatmul.mubr.f32.gmra.mrb[0].mxu0 %v7432
    %v7503 = vpop.f32.mrb[0].mxu0
    %v7504 = vadd.f32 0.0, %v7503
    %v7505 = vpop.f32.mrb[0].mxu0
    %7506 = vmatprep.mubr.f32.mxu0 0.0
    %7507 = vmatmul.mubr.f32.gmra.mrb[0].mxu0 %v7435
    %v7508 = vpop.f32.mrb[0].mxu0
    %v7509 = vadd.f32 0.0, %v7508
    %v7510 = vpop.f32.mrb[0].mxu0
    %7511 = vdwg.mxu0
    %v7512 = vadd.f32 %v7099, %v7504
    %v7513 = vadd.f32 %v7100, %v7509
    %7514 = vrot.lane.b32.xlu0 %v6168, 104
    %v7515 = vpop.permute.xlu0 %7514
    %7516 = vrot.lane.b32.xlu0 %v6256, 104
    %v7517 = vpop.permute.xlu0 %7516
    %v7518 = vsel %vm423, %v7515, 0
    %v7520 = vsel %vm423, %v7517, 0
    %7522 = vmatprep.subr.mxu0 0.0
    %7523 = vmatpush1.xpose.msra.mxu0 %v7520
    %7524 = vmatprep.subr.mxu0 0.0
    %7525 = vmatpush1.xpose.msra.mxu0 0.0
    %7526 = vmatprep.subr.mxu0 0.0
    %7527 = vmatpush1.xpose.msra.mxu0 0.0
    %7528 = vmatprep.subr.mxu0 0.0
    %7529 = vmatpush1.xpose.msra.mxu0 0.0
    %7530 = vmatprep.subr.mxu0 0.0
    %7531 = vmatpush1.xpose.msra.mxu0 0.0
    %7532 = vmatprep.subr.mxu0 0.0
    %7533 = vmatpush1.xpose.msra.mxu0 0.0
    %7534 = vmatprep.subr.mxu0 0.0
    %7535 = vmatpush1.xpose.msra.mxu0 0.0
    %7536 = vmatprep.subr.mxu0 0.0
    %7537 = vmatpush1.xpose.msra.mxu0 0.0
    %7538 = vmatprep.subr.mxu0 0.0
    %7539 = vmatpush1.xpose.msra.mxu0 0.0
    %7540 = vmatprep.subr.mxu0 0.0
    %7541 = vmatpush1.xpose.msra.mxu0 0.0
    %7542 = vmatprep.subr.mxu0 0.0
    %7543 = vmatpush1.xpose.msra.mxu0 0.0
    %7544 = vmatprep.subr.mxu0 0.0
    %7545 = vmatpush1.xpose.msra.mxu0 0.0
    %7546 = vmatprep.subr.mxu0 0.0
    %7547 = vmatpush1.xpose.msra.mxu0 0.0
    %7548 = vmatprep.subr.mxu0 0.0
    %7549 = vmatpush1.xpose.msra.mxu0 0.0
    %7550 = vmatprep.subr.mxu0 0.0
    %7551 = vmatpush1.xpose.msra.mxu0 0.0
    %7552 = vmatprep.subr.mxu0 0.0
    %7553 = vmatpush1.xpose.msra.mxu0 0.0
    %7554 = vmatprep.subr.mxu0 0.0
    %7555 = vmatpush1.xpose.msra.mxu0 0.0
    %7556 = vmatprep.subr.mxu0 0.0
    %7557 = vmatpush1.xpose.msra.mxu0 0.0
    %7558 = vmatprep.subr.mxu0 0.0
    %7559 = vmatpush1.xpose.msra.mxu0 0.0
    %7560 = vmatprep.subr.mxu0 0.0
    %7561 = vmatpush1.xpose.msra.mxu0 0.0
    %7562 = vmatprep.subr.mxu0 0.0
    %7563 = vmatpush1.xpose.msra.mxu0 0.0
    %7564 = vmatprep.subr.mxu0 0.0
    %7565 = vmatpush1.xpose.msra.mxu0 0.0
    %7566 = vmatprep.subr.mxu0 0.0
    %7567 = vmatpush1.xpose.msra.mxu0 0.0
    %7568 = vmatprep.subr.mxu0 0.0
    %7569 = vmatpush1.xpose.msra.mxu0 0.0
    %7570 = vmatprep.subr.mxu0 0.0
    %7571 = vmatpush1.xpose.msra.mxu0 0.0
    %7572 = vmatprep.subr.mxu0 0.0
    %7573 = vmatpush1.xpose.msra.mxu0 0.0
    %7574 = vmatprep.subr.mxu0 0.0
    %7575 = vmatpush1.xpose.msra.mxu0 0.0
    %7576 = vmatprep.subr.mxu0 0.0
    %7577 = vmatpush1.xpose.msra.mxu0 0.0
    %7578 = vmatprep.subr.mxu0 0.0
    %7579 = vmatpush1.xpose.msra.mxu0 0.0
    %7580 = vmatprep.subr.mxu0 0.0
    %7581 = vmatpush1.xpose.msra.mxu0 0.0
    %7582 = vmatprep.subr.mxu0 0.0
    %7583 = vmatpush1.xpose.msra.mxu0 0.0
    %7584 = vmatprep.subr.mxu0 0.0
    %7585 = vmatpush1.xpose.msra.mxu0 0.0
    %7586 = vmatprep.mubr.f32.mxu0 0.0
    %7587 = vmatmul.mubr.f32.gmra.mrb[0].mxu0 %v7518
    %v7588 = vpop.f32.mrb[0].mxu0
    %v7589 = vadd.f32 %v248, %v7588
    %v7590 = vpop.f32.mrb[0].mxu0
    %7591 = vdwg.mxu0
    %7592 = vrot.lane.b32.xlu0 %v6173, 104
    %v7593 = vpop.permute.xlu0 %7592
    %7594 = vrot.lane.b32.xlu0 %v6261, 104
    %v7595 = vpop.permute.xlu0 %7594
    %v7596 = vsel %vm423, %v7593, 0
    %v7598 = vsel %vm423, %v7595, 0
    %7600 = vmatprep.subr.mxu0 0.0
    %7601 = vmatpush1.xpose.msra.mxu0 %v7598
    %7602 = vmatprep.subr.mxu0 0.0
    %7603 = vmatpush1.xpose.msra.mxu0 0.0
    %7604 = vmatprep.subr.mxu0 0.0
    %7605 = vmatpush1.xpose.msra.mxu0 0.0
    %7606 = vmatprep.subr.mxu0 0.0
    %7607 = vmatpush1.xpose.msra.mxu0 0.0
    %7608 = vmatprep.subr.mxu0 0.0
    %7609 = vmatpush1.xpose.msra.mxu0 0.0
    %7610 = vmatprep.subr.mxu0 0.0
    %7611 = vmatpush1.xpose.msra.mxu0 0.0
    %7612 = vmatprep.subr.mxu0 0.0
    %7613 = vmatpush1.xpose.msra.mxu0 0.0
    %7614 = vmatprep.subr.mxu0 0.0
    %7615 = vmatpush1.xpose.msra.mxu0 0.0
    %7616 = vmatprep.subr.mxu0 0.0
    %7617 = vmatpush1.xpose.msra.mxu0 0.0
    %7618 = vmatprep.subr.mxu0 0.0
    %7619 = vmatpush1.xpose.msra.mxu0 0.0
    %7620 = vmatprep.subr.mxu0 0.0
    %7621 = vmatpush1.xpose.msra.mxu0 0.0
    %7622 = vmatprep.subr.mxu0 0.0
    %7623 = vmatpush1.xpose.msra.mxu0 0.0
    %7624 = vmatprep.subr.mxu0 0.0
    %7625 = vmatpush1.xpose.msra.mxu0 0.0
    %7626 = vmatprep.subr.mxu0 0.0
    %7627 = vmatpush1.xpose.msra.mxu0 0.0
    %7628 = vmatprep.subr.mxu0 0.0
    %7629 = vmatpush1.xpose.msra.mxu0 0.0
    %7630 = vmatprep.subr.mxu0 0.0
    %7631 = vmatpush1.xpose.msra.mxu0 0.0
    %7632 = vmatprep.subr.mxu0 0.0
    %7633 = vmatpush1.xpose.msra.mxu0 0.0
    %7634 = vmatprep.subr.mxu0 0.0
    %7635 = vmatpush1.xpose.msra.mxu0 0.0
    %7636 = vmatprep.subr.mxu0 0.0
    %7637 = vmatpush1.xpose.msra.mxu0 0.0
    %7638 = vmatprep.subr.mxu0 0.0
    %7639 = vmatpush1.xpose.msra.mxu0 0.0
    %7640 = vmatprep.subr.mxu0 0.0
    %7641 = vmatpush1.xpose.msra.mxu0 0.0
    %7642 = vmatprep.subr.mxu0 0.0
    %7643 = vmatpush1.xpose.msra.mxu0 0.0
    %7644 = vmatprep.subr.mxu0 0.0
    %7645 = vmatpush1.xpose.msra.mxu0 0.0
    %7646 = vmatprep.subr.mxu0 0.0
    %7647 = vmatpush1.xpose.msra.mxu0 0.0
    %7648 = vmatprep.subr.mxu0 0.0
    %7649 = vmatpush1.xpose.msra.mxu0 0.0
    %7650 = vmatprep.subr.mxu0 0.0
    %7651 = vmatpush1.xpose.msra.mxu0 0.0
    %7652 = vmatprep.subr.mxu0 0.0
    %7653 = vmatpush1.xpose.msra.mxu0 0.0
    %7654 = vmatprep.subr.mxu0 0.0
    %7655 = vmatpush1.xpose.msra.mxu0 0.0
    %7656 = vmatprep.subr.mxu0 0.0
    %7657 = vmatpush1.xpose.msra.mxu0 0.0
    %7658 = vmatprep.subr.mxu0 0.0
    %7659 = vmatpush1.xpose.msra.mxu0 0.0
    %7660 = vmatprep.subr.mxu0 0.0
    %7661 = vmatpush1.xpose.msra.mxu0 0.0
    %7662 = vmatprep.subr.mxu0 0.0
    %7663 = vmatpush1.xpose.msra.mxu0 0.0
    %7664 = vmatprep.mubr.f32.mxu0 0.0
    %7665 = vmatmul.mubr.f32.gmra.mrb[0].mxu0 %v7596
    %v7666 = vpop.f32.mrb[0].mxu0
    %v7667 = vadd.f32 %v252, %v7666
    %v7668 = vpop.f32.mrb[0].mxu0
    %7669 = vdwg.mxu0
    %v7670 = vsel %vm423, %v7589, -inf
    %7671 = vmax.xlane.f32.xlu0 %v7670
    %v7672 = vpop.xlane.xlu0 %7671
    %v7673 = vsel %vm423, %v7667, -inf
    %7674 = vmax.xlane.f32.xlu0 %v7673
    %v7675 = vpop.xlane.xlu0 %7674
    %v7676 = vsub.f32 %v7589, %v7672
    %v7677 = vsub.f32 %v7667, %v7675
    %v7678 = vmul.f32 %v7676, 1.442695
    %v7679 = vpow.pop %v7678
    %v7680 = vmul.f32 %v7677, 1.442695
    %v7681 = vpow.pop %v7680
    %v7682 = vsel %vm423, %v7679, 0.0
    %7683 = vadd.xlane.f32.xlu0 %v7682
    %v7684 = vpop.xlane.xlu0 %7683
    %v7685 = vsel %vm423, %v7681, 0.0
    %7686 = vadd.xlane.f32.xlu0 %v7685
    %v7687 = vpop.xlane.xlu0 %7686
    %v7688 = vrcp.pop %v7684
    %v7689 = vrcp.pop %v7687
    %v7690 = vmul.f32 %v7679, %v7688
    %v7691 = vmul.f32 %v7681, %v7689
    %7692 = vrot.lane.b32.xlu0 %v6256, 72
    %v7693 = vpop.permute.xlu0 %7692
    %v7696 = vsel %vm423, %v7690, 0
    %7698 = vmatprep.subr.mxu0 0.0
    %7699 = vmatpush1.msra.mxu0 %v7693
    %7700 = vmatprep.subr.mxu0 0.0
    %7701 = vmatpush1.msra.mxu0 0.0
    %7702 = vmatprep.subr.mxu0 0.0
    %7703 = vmatpush1.msra.mxu0 0.0
    %7704 = vmatprep.subr.mxu0 0.0
    %7705 = vmatpush1.msra.mxu0 0.0
    %7706 = vmatprep.subr.mxu0 0.0
    %7707 = vmatpush1.msra.mxu0 0.0
    %7708 = vmatprep.subr.mxu0 0.0
    %7709 = vmatpush1.msra.mxu0 0.0
    %7710 = vmatprep.subr.mxu0 0.0
    %7711 = vmatpush1.msra.mxu0 0.0
    %7712 = vmatprep.subr.mxu0 0.0
    %7713 = vmatpush1.msra.mxu0 0.0
    %7714 = vmatprep.subr.mxu0 0.0
    %7715 = vmatpush1.msra.mxu0 0.0
    %7716 = vmatprep.subr.mxu0 0.0
    %7717 = vmatpush1.msra.mxu0 0.0
    %7718 = vmatprep.subr.mxu0 0.0
    %7719 = vmatpush1.msra.mxu0 0.0
    %7720 = vmatprep.subr.mxu0 0.0
    %7721 = vmatpush1.msra.mxu0 0.0
    %7722 = vmatprep.subr.mxu0 0.0
    %7723 = vmatpush1.msra.mxu0 0.0
    %7724 = vmatprep.subr.mxu0 0.0
    %7725 = vmatpush1.msra.mxu0 0.0
    %7726 = vmatprep.subr.mxu0 0.0
    %7727 = vmatpush1.msra.mxu0 0.0
    %7728 = vmatprep.subr.mxu0 0.0
    %7729 = vmatpush1.msra.mxu0 0.0
    %7730 = vmatprep.subr.mxu0 0.0
    %7731 = vmatpush1.msra.mxu0 0.0
    %7732 = vmatprep.subr.mxu0 0.0
    %7733 = vmatpush1.msra.mxu0 0.0
    %7734 = vmatprep.subr.mxu0 0.0
    %7735 = vmatpush1.msra.mxu0 0.0
    %7736 = vmatprep.subr.mxu0 0.0
    %7737 = vmatpush1.msra.mxu0 0.0
    %7738 = vmatprep.subr.mxu0 0.0
    %7739 = vmatpush1.msra.mxu0 0.0
    %7740 = vmatprep.subr.mxu0 0.0
    %7741 = vmatpush1.msra.mxu0 0.0
    %7742 = vmatprep.subr.mxu0 0.0
    %7743 = vmatpush1.msra.mxu0 0.0
    %7744 = vmatprep.subr.mxu0 0.0
    %7745 = vmatpush1.msra.mxu0 0.0
    %7746 = vmatprep.subr.mxu0 0.0
    %7747 = vmatpush1.msra.mxu0 0.0
    %7748 = vmatprep.subr.mxu0 0.0
    %7749 = vmatpush1.msra.mxu0 0.0
    %7750 = vmatprep.subr.mxu0 0.0
    %7751 = vmatpush1.msra.mxu0 0.0
    %7752 = vmatprep.subr.mxu0 0.0
    %7753 = vmatpush1.msra.mxu0 0.0
    %7754 = vmatprep.subr.mxu0 0.0
    %7755 = vmatpush1.msra.mxu0 0.0
    %7756 = vmatprep.subr.mxu0 0.0
    %7757 = vmatpush1.msra.mxu0 0.0
    %7758 = vmatprep.subr.mxu0 0.0
    %7759 = vmatpush1.msra.mxu0 0.0
    %7760 = vmatprep.subr.mxu0 0.0
    %7761 = vmatpush1.msra.mxu0 0.0
    %7762 = vmatprep.mubr.f32.mxu0 0.0
    %7763 = vmatmul.mubr.f32.gmra.mrb[0].mxu0 %v7696
    %v7764 = vpop.f32.mrb[0].mxu0
    %v7765 = vadd.f32 0.0, %v7764
    %v7766 = vpop.f32.mrb[0].mxu0
    %7767 = vdwg.mxu0
    %7768 = vrot.lane.b32.xlu0 %v6261, 72
    %v7769 = vpop.permute.xlu0 %7768
    %v7772 = vsel %vm423, %v7691, 0
    %7774 = vmatprep.subr.mxu0 0.0
    %7775 = vmatpush1.msra.mxu0 %v7769
    %7776 = vmatprep.subr.mxu0 0.0
    %7777 = vmatpush1.msra.mxu0 0.0
    %7778 = vmatprep.subr.mxu0 0.0
    %7779 = vmatpush1.msra.mxu0 0.0
    %7780 = vmatprep.subr.mxu0 0.0
    %7781 = vmatpush1.msra.mxu0 0.0
    %7782 = vmatprep.subr.mxu0 0.0
    %7783 = vmatpush1.msra.mxu0 0.0
    %7784 = vmatprep.subr.mxu0 0.0
    %7785 = vmatpush1.msra.mxu0 0.0
    %7786 = vmatprep.subr.mxu0 0.0
    %7787 = vmatpush1.msra.mxu0 0.0
    %7788 = vmatprep.subr.mxu0 0.0
    %7789 = vmatpush1.msra.mxu0 0.0
    %7790 = vmatprep.subr.mxu0 0.0
    %7791 = vmatpush1.msra.mxu0 0.0
    %7792 = vmatprep.subr.mxu0 0.0
    %7793 = vmatpush1.msra.mxu0 0.0
    %7794 = vmatprep.subr.mxu0 0.0
    %7795 = vmatpush1.msra.mxu0 0.0
    %7796 = vmatprep.subr.mxu0 0.0
    %7797 = vmatpush1.msra.mxu0 0.0
    %7798 = vmatprep.subr.mxu0 0.0
    %7799 = vmatpush1.msra.mxu0 0.0
    %7800 = vmatprep.subr.mxu0 0.0
    %7801 = vmatpush1.msra.mxu0 0.0
    %7802 = vmatprep.subr.mxu0 0.0
    %7803 = vmatpush1.msra.mxu0 0.0
    %7804 = vmatprep.subr.mxu0 0.0
    %7805 = vmatpush1.msra.mxu0 0.0
    %7806 = vmatprep.subr.mxu0 0.0
    %7807 = vmatpush1.msra.mxu0 0.0
    %7808 = vmatprep.subr.mxu0 0.0
    %7809 = vmatpush1.msra.mxu0 0.0
    %7810 = vmatprep.subr.mxu0 0.0
    %7811 = vmatpush1.msra.mxu0 0.0
    %7812 = vmatprep.subr.mxu0 0.0
    %7813 = vmatpush1.msra.mxu0 0.0
    %7814 = vmatprep.subr.mxu0 0.0
    %7815 = vmatpush1.msra.mxu0 0.0
    %7816 = vmatprep.subr.mxu0 0.0
    %7817 = vmatpush1.msra.mxu0 0.0
    %7818 = vmatprep.subr.mxu0 0.0
    %7819 = vmatpush1.msra.mxu0 0.0
    %7820 = vmatprep.subr.mxu0 0.0
    %7821 = vmatpush1.msra.mxu0 0.0
    %7822 = vmatprep.subr.mxu0 0.0
    %7823 = vmatpush1.msra.mxu0 0.0
    %7824 = vmatprep.subr.mxu0 0.0
    %7825 = vmatpush1.msra.mxu0 0.0
    %7826 = vmatprep.subr.mxu0 0.0
    %7827 = vmatpush1.msra.mxu0 0.0
    %7828 = vmatprep.subr.mxu0 0.0
    %7829 = vmatpush1.msra.mxu0 0.0
    %7830 = vmatprep.subr.mxu0 0.0
    %7831 = vmatpush1.msra.mxu0 0.0
    %7832 = vmatprep.subr.mxu0 0.0
    %7833 = vmatpush1.msra.mxu0 0.0
    %7834 = vmatprep.subr.mxu0 0.0
    %7835 = vmatpush1.msra.mxu0 0.0
    %7836 = vmatprep.subr.mxu0 0.0
    %7837 = vmatpush1.msra.mxu0 0.0
    %7838 = vmatprep.mubr.f32.mxu0 0.0
    %7839 = vmatmul.mubr.f32.gmra.mrb[0].mxu0 %v7772
    %v7840 = vpop.f32.mrb[0].mxu0
    %v7841 = vadd.f32 0.0, %v7840
    %v7842 = vpop.f32.mrb[0].mxu0
    %7843 = vdwg.mxu0
    %v7845 = vsel %vm423, %v7765, 0
    %v7848 = vsel %vm423, %v7841, 0
    %7850 = vmatprep.subr.mxu0 0.0
    %7851 = vmatpush1.msra.mxu0 %v6268
    %7852 = vmatprep.subr.mxu0 0.0
    %7853 = vmatpush1.msra.mxu0 0.0
    %7854 = vmatprep.subr.mxu0 0.0
    %7855 = vmatpush1.msra.mxu0 0.0
    %7856 = vmatprep.subr.mxu0 0.0
    %7857 = vmatpush1.msra.mxu0 0.0
    %7858 = vmatprep.subr.mxu0 0.0
    %7859 = vmatpush1.msra.mxu0 0.0
    %7860 = vmatprep.subr.mxu0 0.0
    %7861 = vmatpush1.msra.mxu0 0.0
    %7862 = vmatprep.subr.mxu0 0.0
    %7863 = vmatpush1.msra.mxu0 0.0
    %7864 = vmatprep.subr.mxu0 0.0
    %7865 = vmatpush1.msra.mxu0 0.0
    %7866 = vmatprep.subr.mxu0 0.0
    %7867 = vmatpush1.msra.mxu0 0.0
    %7868 = vmatprep.subr.mxu0 0.0
    %7869 = vmatpush1.msra.mxu0 0.0
    %7870 = vmatprep.subr.mxu0 0.0
    %7871 = vmatpush1.msra.mxu0 0.0
    %7872 = vmatprep.subr.mxu0 0.0
    %7873 = vmatpush1.msra.mxu0 0.0
    %7874 = vmatprep.subr.mxu0 0.0
    %7875 = vmatpush1.msra.mxu0 0.0
    %7876 = vmatprep.subr.mxu0 0.0
    %7877 = vmatpush1.msra.mxu0 0.0
    %7878 = vmatprep.subr.mxu0 0.0
    %7879 = vmatpush1.msra.mxu0 0.0
    %7880 = vmatprep.subr.mxu0 0.0
    %7881 = vmatpush1.msra.mxu0 0.0
    %7882 = vmatprep.subr.mxu0 0.0
    %7883 = vmatpush1.msra.mxu0 0.0
    %7884 = vmatprep.subr.mxu0 0.0
    %7885 = vmatpush1.msra.mxu0 0.0
    %7886 = vmatprep.subr.mxu0 0.0
    %7887 = vmatpush1.msra.mxu0 0.0
    %7888 = vmatprep.subr.mxu0 0.0
    %7889 = vmatpush1.msra.mxu0 0.0
    %7890 = vmatprep.subr.mxu0 0.0
    %7891 = vmatpush1.msra.mxu0 0.0
    %7892 = vmatprep.subr.mxu0 0.0
    %7893 = vmatpush1.msra.mxu0 0.0
    %7894 = vmatprep.subr.mxu0 0.0
    %7895 = vmatpush1.msra.mxu0 0.0
    %7896 = vmatprep.subr.mxu0 0.0
    %7897 = vmatpush1.msra.mxu0 0.0
    %7898 = vmatprep.subr.mxu0 0.0
    %7899 = vmatpush1.msra.mxu0 0.0
    %7900 = vmatprep.subr.mxu0 0.0
    %7901 = vmatpush1.msra.mxu0 0.0
    %7902 = vmatprep.subr.mxu0 0.0
    %7903 = vmatpush1.msra.mxu0 0.0
    %7904 = vmatprep.subr.mxu0 0.0
    %7905 = vmatpush1.msra.mxu0 0.0
    %7906 = vmatprep.subr.mxu0 0.0
    %7907 = vmatpush1.msra.mxu0 0.0
    %7908 = vmatprep.subr.mxu0 0.0
    %7909 = vmatpush1.msra.mxu0 0.0
    %7910 = vmatprep.subr.mxu0 0.0
    %7911 = vmatpush1.msra.mxu0 0.0
    %7912 = vmatprep.subr.mxu0 0.0
    %7913 = vmatpush1.msra.mxu0 0.0
    %7914 = vmatprep.mubr.f32.mxu0 0.0
    %7915 = vmatmul.mubr.f32.gmra.mrb[0].mxu0 %v7845
    %v7916 = vpop.f32.mrb[0].mxu0
    %v7917 = vadd.f32 0.0, %v7916
    %v7918 = vpop.f32.mrb[0].mxu0
    %7919 = vmatprep.mubr.f32.mxu0 0.0
    %7920 = vmatmul.mubr.f32.gmra.mrb[0].mxu0 %v7848
    %v7921 = vpop.f32.mrb[0].mxu0
    %v7922 = vadd.f32 0.0, %v7921
    %v7923 = vpop.f32.mrb[0].mxu0
    %7924 = vdwg.mxu0
    %v7925 = vadd.f32 %v7512, %v7917
    %v7926 = vadd.f32 %v7513, %v7922
    %v7927 = vsel %vm261, %v7925, 0.0
    %7928 = vadd.xlane.f32.xlu0 %v7927
    %v7929 = vpop.xlane.xlu0 %7928
    %v7930 = vsel %vm261, %v7926, 0.0
    %7931 = vadd.xlane.f32.xlu0 %v7930
    %v7932 = vpop.xlane.xlu0 %7931
    %v7933 = vmul.f32 %v7929, %v268
    %v7934 = vmul.f32 %v7932, %v268
    %v7935 = vsub.f32 %v7925, %v7933
    %v7936 = vsub.f32 %v7926, %v7934
    %v7937 = vmul.f32 %v7935, %v7935
    %v7938 = vmul.f32 %v7936, %v7936
    %v7939 = vsel %vm261, %v7937, 0.0
    %7940 = vadd.xlane.f32.xlu0 %v7939
    %v7941 = vpop.xlane.xlu0 %7940
    %v7942 = vsel %vm261, %v7938, 0.0
    %7943 = vadd.xlane.f32.xlu0 %v7942
    %v7944 = vpop.xlane.xlu0 %7943
    %v7945 = vmul.f32 %v7941, 0.032258064
    %v7946 = vmul.f32 %v7944, 0.032258064
    %v7947 = vrsqrt.pop %v7945
    %v7948 = vmul.f32 %v7945, %v7947
    %vm7949 = vcmp.eq.f32.partialorder %v7945, inf
    %v7950 = vsel %vm7949, %v7945, %v7948
    %vm7951 = vcmp.eq.f32.partialorder %v7945, 0.0
    %v7952 = vand.u32 %v7945, 2147483648
    %v7953 = vsel %vm7951, %v7952, %v7950
    %v7954 = vrsqrt.pop %v7946
    %v7955 = vmul.f32 %v7946, %v7954
    %vm7956 = vcmp.eq.f32.partialorder %v7946, inf
    %v7957 = vsel %vm7956, %v7946, %v7955
    %vm7958 = vcmp.eq.f32.partialorder %v7946, 0.0
    %v7959 = vand.u32 %v7946, 2147483648
    %v7960 = vsel %vm7958, %v7959, %v7957
    %v7961 = vadd.f32 %v7953, 1e-06
    %v7962 = vadd.f32 %v7960, 1e-06
    %v7963 = vrcp.pop %v7961
    %v7964 = vrcp.pop %v7962
    %v7965 = vmul.f32 %v7935, %v7963
    %v7966 = vmul.f32 %v7936, %v7964
    %v7967 = vlaneseq
    %v7968 = vshrl.u32 %v7967, 7
    %v7969 = vsub.s32 2, %v7968
    %v7970 = vrot.slane %v4216, %v7969
    %v7971 = vmul.f32 %v7965, %v7970
    %v7972 = vmul.f32 %v7966, %v7970
    %v7973 = vlaneseq
    %v7974 = vshrl.u32 %v7973, 7
    %v7975 = vsub.s32 2, %v7974
    %v7976 = vrot.slane %v4218, %v7975
    %v7977 = vadd.f32 %v7971, %v7976
    %v7978 = vadd.f32 %v7972, %v7976
    %s7979 = scalar_lea.vmem [#allocation14], 32
    %v7980 = vld [vmem:[%s7979] sm:$0xff]
    %v7981 = vld [vmem:[%s7979 + $0x8] sm:$0xff]
    %v7982 = vld [vmem:[%s7979 + $0x10] sm:$0xff]
    %v7983 = vld [vmem:[%s7979 + $0x18] sm:$0xff]
    %s7984 = scalar_lea.vmem [#allocation16], 1
    %v7985 = vld [vmem:[%s7984] sm:$0x1]
    %v7987 = vlaneseq
    %v7988 = vshrl.u32 %v7987, 7
    %v7989 = vsub.s32 0, %v7988
    %v7990 = vrot.slane %v7985, %v7989
    %v7993 = vsel %vm261, %v7977, 0
    %v7996 = vsel %vm261, %v7978, 0
    %7998 = vmatprep.subr.mxu0 0.0
    %7999 = vmatpush1.msra.mxu0 %v7980
    %8000 = vmatprep.subr.mxu0 0.0
    %8001 = vmatpush1.msra.mxu0 %v7981
    %8002 = vmatprep.subr.mxu0 0.0
    %8003 = vmatpush1.msra.mxu0 %v7982
    %8004 = vmatprep.subr.mxu0 0.0
    %8005 = vmatpush1.msra.mxu0 %v7983
    %8006 = vmatprep.subr.mxu0 0.0
    %8007 = vmatpush1.msra.mxu0 0.0
    %8008 = vmatprep.subr.mxu0 0.0
    %8009 = vmatpush1.msra.mxu0 0.0
    %8010 = vmatprep.subr.mxu0 0.0
    %8011 = vmatpush1.msra.mxu0 0.0
    %8012 = vmatprep.subr.mxu0 0.0
    %8013 = vmatpush1.msra.mxu0 0.0
    %8014 = vmatprep.subr.mxu0 0.0
    %8015 = vmatpush1.msra.mxu0 0.0
    %8016 = vmatprep.subr.mxu0 0.0
    %8017 = vmatpush1.msra.mxu0 0.0
    %8018 = vmatprep.subr.mxu0 0.0
    %8019 = vmatpush1.msra.mxu0 0.0
    %8020 = vmatprep.subr.mxu0 0.0
    %8021 = vmatpush1.msra.mxu0 0.0
    %8022 = vmatprep.subr.mxu0 0.0
    %8023 = vmatpush1.msra.mxu0 0.0
    %8024 = vmatprep.subr.mxu0 0.0
    %8025 = vmatpush1.msra.mxu0 0.0
    %8026 = vmatprep.subr.mxu0 0.0
    %8027 = vmatpush1.msra.mxu0 0.0
    %8028 = vmatprep.subr.mxu0 0.0
    %8029 = vmatpush1.msra.mxu0 0.0
    %8030 = vmatprep.subr.mxu0 0.0
    %8031 = vmatpush1.msra.mxu0 0.0
    %8032 = vmatprep.subr.mxu0 0.0
    %8033 = vmatpush1.msra.mxu0 0.0
    %8034 = vmatprep.subr.mxu0 0.0
    %8035 = vmatpush1.msra.mxu0 0.0
    %8036 = vmatprep.subr.mxu0 0.0
    %8037 = vmatpush1.msra.mxu0 0.0
    %8038 = vmatprep.subr.mxu0 0.0
    %8039 = vmatpush1.msra.mxu0 0.0
    %8040 = vmatprep.subr.mxu0 0.0
    %8041 = vmatpush1.msra.mxu0 0.0
    %8042 = vmatprep.subr.mxu0 0.0
    %8043 = vmatpush1.msra.mxu0 0.0
    %8044 = vmatprep.subr.mxu0 0.0
    %8045 = vmatpush1.msra.mxu0 0.0
    %8046 = vmatprep.subr.mxu0 0.0
    %8047 = vmatpush1.msra.mxu0 0.0
    %8048 = vmatprep.subr.mxu0 0.0
    %8049 = vmatpush1.msra.mxu0 0.0
    %8050 = vmatprep.subr.mxu0 0.0
    %8051 = vmatpush1.msra.mxu0 0.0
    %8052 = vmatprep.subr.mxu0 0.0
    %8053 = vmatpush1.msra.mxu0 0.0
    %8054 = vmatprep.subr.mxu0 0.0
    %8055 = vmatpush1.msra.mxu0 0.0
    %8056 = vmatprep.subr.mxu0 0.0
    %8057 = vmatpush1.msra.mxu0 0.0
    %8058 = vmatprep.subr.mxu0 0.0
    %8059 = vmatpush1.msra.mxu0 0.0
    %8060 = vmatprep.subr.mxu0 0.0
    %8061 = vmatpush1.msra.mxu0 0.0
    %8062 = vmatprep.mubr.f32.mxu0 0.0
    %8063 = vmatmul.mubr.f32.gmra.mrb[0].mxu0 %v7993
    %v8064 = vpop.f32.mrb[0].mxu0
    %v8065 = vadd.f32 %v7990, %v8064
    %v8066 = vpop.f32.mrb[0].mxu0
    %8067 = vmatprep.mubr.f32.mxu0 0.0
    %8068 = vmatmul.mubr.f32.gmra.mrb[0].mxu0 %v7996
    %v8069 = vpop.f32.mrb[0].mxu0
    %v8070 = vadd.f32 %v7990, %v8069
    %v8071 = vpop.f32.mrb[0].mxu0
    %8072 = vdwg.mxu0
    %v8073 = vmax.f32 %v8065, 0.0
    %v8074 = vmax.f32 %v8070, 0.0
    %s8075 = scalar_lea.vmem %s16, 64
    %v8076 = vld [vmem:[%s8075] sm:$0xff]
    %v8077 = vld [vmem:[%s8075 + $0x8] sm:$0xff]
    %v8078 = vld [vmem:[%s8075 + $0x10] sm:$0xff]
    %v8079 = vld [vmem:[%s8075 + $0x18] sm:$0xff]
    %v8080 = vld [vmem:[%s8075 + $0x20] sm:$0xff]
    %v8081 = vld [vmem:[%s8075 + $0x28] sm:$0xff]
    %v8082 = vld [vmem:[%s8075 + $0x30] sm:$0xff]
    %v8083 = vld [vmem:[%s8075 + $0x38] sm:$0xff]
    %v8085 = vsel %vm4122, %v8073, 0
    %v8088 = vsel %vm4122, %v8074, 0
    %8090 = vmatprep.subr.mxu0 0.0
    %8091 = vmatpush1.msra.mxu0 %v8076
    %8092 = vmatprep.subr.mxu0 0.0
    %8093 = vmatpush1.msra.mxu0 %v8077
    %8094 = vmatprep.subr.mxu0 0.0
    %8095 = vmatpush1.msra.mxu0 %v8078
    %8096 = vmatprep.subr.mxu0 0.0
    %8097 = vmatpush1.msra.mxu0 %v8079
    %8098 = vmatprep.subr.mxu0 0.0
    %8099 = vmatpush1.msra.mxu0 %v8080
    %8100 = vmatprep.subr.mxu0 0.0
    %8101 = vmatpush1.msra.mxu0 %v8081
    %8102 = vmatprep.subr.mxu0 0.0
    %8103 = vmatpush1.msra.mxu0 %v8082
    %8104 = vmatprep.subr.mxu0 0.0
    %8105 = vmatpush1.msra.mxu0 %v8083
    %8106 = vmatprep.subr.mxu0 0.0
    %8107 = vmatpush1.msra.mxu0 0.0
    %8108 = vmatprep.subr.mxu0 0.0
    %8109 = vmatpush1.msra.mxu0 0.0
    %8110 = vmatprep.subr.mxu0 0.0
    %8111 = vmatpush1.msra.mxu0 0.0
    %8112 = vmatprep.subr.mxu0 0.0
    %8113 = vmatpush1.msra.mxu0 0.0
    %8114 = vmatprep.subr.mxu0 0.0
    %8115 = vmatpush1.msra.mxu0 0.0
    %8116 = vmatprep.subr.mxu0 0.0
    %8117 = vmatpush1.msra.mxu0 0.0
    %8118 = vmatprep.subr.mxu0 0.0
    %8119 = vmatpush1.msra.mxu0 0.0
    %8120 = vmatprep.subr.mxu0 0.0
    %8121 = vmatpush1.msra.mxu0 0.0
    %8122 = vmatprep.subr.mxu0 0.0
    %8123 = vmatpush1.msra.mxu0 0.0
    %8124 = vmatprep.subr.mxu0 0.0
    %8125 = vmatpush1.msra.mxu0 0.0
    %8126 = vmatprep.subr.mxu0 0.0
    %8127 = vmatpush1.msra.mxu0 0.0
    %8128 = vmatprep.subr.mxu0 0.0
    %8129 = vmatpush1.msra.mxu0 0.0
    %8130 = vmatprep.subr.mxu0 0.0
    %8131 = vmatpush1.msra.mxu0 0.0
    %8132 = vmatprep.subr.mxu0 0.0
    %8133 = vmatpush1.msra.mxu0 0.0
    %8134 = vmatprep.subr.mxu0 0.0
    %8135 = vmatpush1.msra.mxu0 0.0
    %8136 = vmatprep.subr.mxu0 0.0
    %8137 = vmatpush1.msra.mxu0 0.0
    %8138 = vmatprep.subr.mxu0 0.0
    %8139 = vmatpush1.msra.mxu0 0.0
    %8140 = vmatprep.subr.mxu0 0.0
    %8141 = vmatpush1.msra.mxu0 0.0
    %8142 = vmatprep.subr.mxu0 0.0
    %8143 = vmatpush1.msra.mxu0 0.0
    %8144 = vmatprep.subr.mxu0 0.0
    %8145 = vmatpush1.msra.mxu0 0.0
    %8146 = vmatprep.subr.mxu0 0.0
    %8147 = vmatpush1.msra.mxu0 0.0
    %8148 = vmatprep.subr.mxu0 0.0
    %8149 = vmatpush1.msra.mxu0 0.0
    %8150 = vmatprep.subr.mxu0 0.0
    %8151 = vmatpush1.msra.mxu0 0.0
    %8152 = vmatprep.subr.mxu0 0.0
    %8153 = vmatpush1.msra.mxu0 0.0
    %8154 = vmatprep.mubr.f32.mxu0 0.0
    %8155 = vmatmul.mubr.f32.gmra.mrb[0].mxu0 %v8085
    %v8156 = vpop.f32.mrb[0].mxu0
    %v8157 = vadd.f32 0.0, %v8156
    %v8158 = vpop.f32.mrb[0].mxu0
    %8159 = vmatprep.mubr.f32.mxu0 0.0
    %8160 = vmatmul.mubr.f32.gmra.mrb[0].mxu0 %v8088
    %v8161 = vpop.f32.mrb[0].mxu0
    %v8162 = vadd.f32 0.0, %v8161
    %v8163 = vpop.f32.mrb[0].mxu0
    %8164 = vdwg.mxu0
    %v8165 = vadd.f32 %v7925, %v8157
    %v8166 = vadd.f32 %v7926, %v8162
    %s8167 = scalar_lea.vmem [#allocation17], 1
    %v8168 = vld [vmem:[%s8167] sm:$0x1]
    %v8170 = vlaneseq
    %v8171 = vshrl.u32 %v8170, 7
    %v8172 = vsub.s32 0, %v8171
    %v8173 = vrot.slane %v8168, %v8172
    %v8175 = vadd.f32 %v8165, %v8173
    %v8176 = vadd.f32 %v8166, %v8173
    %v8177 = vld [vmem:[#allocation19] sm:$0x1]
    %v8178 = vld [vmem:[#allocation20] sm:$0x1]
    %v8179 = vsel %vm261, %v8175, 0.0
    %8180 = vadd.xlane.f32.xlu0 %v8179
    %v8181 = vpop.xlane.xlu0 %8180
    %v8182 = vsel %vm261, %v8176, 0.0
    %8183 = vadd.xlane.f32.xlu0 %v8182
    %v8184 = vpop.xlane.xlu0 %8183
    %v8185 = vmul.f32 %v8181, %v268
    %v8186 = vmul.f32 %v8184, %v268
    %v8187 = vsub.f32 %v8175, %v8185
    %v8188 = vsub.f32 %v8176, %v8186
    %v8189 = vmul.f32 %v8187, %v8187
    %v8190 = vmul.f32 %v8188, %v8188
    %v8191 = vsel %vm261, %v8189, 0.0
    %8192 = vadd.xlane.f32.xlu0 %v8191
    %v8193 = vpop.xlane.xlu0 %8192
    %v8194 = vsel %vm261, %v8190, 0.0
    %8195 = vadd.xlane.f32.xlu0 %v8194
    %v8196 = vpop.xlane.xlu0 %8195
    %v8197 = vmul.f32 %v8193, 0.032258064
    %v8198 = vmul.f32 %v8196, 0.032258064
    %v8199 = vrsqrt.pop %v8197
    %v8200 = vmul.f32 %v8197, %v8199
    %vm8201 = vcmp.eq.f32.partialorder %v8197, inf
    %v8202 = vsel %vm8201, %v8197, %v8200
    %vm8203 = vcmp.eq.f32.partialorder %v8197, 0.0
    %v8204 = vand.u32 %v8197, 2147483648
    %v8205 = vsel %vm8203, %v8204, %v8202
    %v8206 = vrsqrt.pop %v8198
    %v8207 = vmul.f32 %v8198, %v8206
    %vm8208 = vcmp.eq.f32.partialorder %v8198, inf
    %v8209 = vsel %vm8208, %v8198, %v8207
    %vm8210 = vcmp.eq.f32.partialorder %v8198, 0.0
    %v8211 = vand.u32 %v8198, 2147483648
    %v8212 = vsel %vm8210, %v8211, %v8209
    %v8213 = vadd.f32 %v8205, 1e-06
    %v8214 = vadd.f32 %v8212, 1e-06
    %v8215 = vrcp.pop %v8213
    %v8216 = vrcp.pop %v8214
    %v8217 = vmul.f32 %v8187, %v8215
    %v8218 = vmul.f32 %v8188, %v8216
    %v8220 = vlaneseq
    %v8221 = vshrl.u32 %v8220, 7
    %v8222 = vsub.s32 0, %v8221
    %v8223 = vrot.slane %v8177, %v8222
    %v8225 = vmul.f32 %v8217, %v8223
    %v8226 = vmul.f32 %v8218, %v8223
    %v8228 = vlaneseq
    %v8229 = vshrl.u32 %v8228, 7
    %v8230 = vsub.s32 0, %v8229
    %v8231 = vrot.slane %v8178, %v8230
    %v8233 = vadd.f32 %v8225, %v8231
    %v8234 = vadd.f32 %v8226, %v8231
    %8235 = vst.msk [vmem:[#allocation22] sm:$0xff] %vm261, %v8233
    %8236 = vst.msk [vmem:[#allocation22 + $0x8] sm:$0xff] %vm261, %v8234
    // Predicated region
    $region138: #{decoder_forward.1} parent=1 // pred_check
      _
    $region139: #{decoder_forward.1} parent=1 // pred_check_branch
      %8238 = sbr.rel (0) target = $region141
    $region140: #{decoder_forward.1} parent=1 // pred_region
      %s8240 = ssub.s32 256, 256
      %8241 = vsyncadd [#allocation4], %s8240
      %s8242 = sshll.u32 [#allocation22], 4
      %s8243 = int_to_ptr.vmem [resolvable:$true] %s8242
      %8248 = dma.vmem_to_hbm [thread:$0]  %s8243, 256, %s22, [#allocation4], 128, 128, 8
    $region141: #{decoder_forward.1} parent=1 // pred_fallthru
      _
    // Predicated region
    $region142: #{decoder_forward.1} parent=1 // pred_check
      _
    $region143: #{decoder_forward.1} parent=1 // pred_check_branch
      %8250 = sbr.rel (0) target = $region145
    $region144: #{decoder_forward.1} parent=1 // pred_region
      %8251 = dma.done [#allocation4], 256
    $region145: #{decoder_forward.1} parent=1 // pred_fallthru
      _
    %8252 = vsyncpa [#allocation3], 1
    %8253 = vsyncpa [#allocation6], 1
    %8254 = vsyncpa [#allocation9], 1
    %8255 = vsyncpa [#allocation12], 1
    %8256 = vsyncpa [#allocation15], 1
    %8257 = vsyncpa [#allocation18], 1
    %8258 = vsyncpa [#allocation21], 1
    %8259 = vsyncpa [#allocation4], 1

</llo_original>
